<compile_context>
chip_gen: v7x
topology: tpu7x:2x2x1
jax: 0.10.0
libtpu: 0.0.40
codegen_flags: <defaults>
</compile_context>

<pallas_src>
import functools

import jax
import jax.numpy as jnp
from jax.experimental import pallas as pl
from jax.experimental.pallas import tpu as pltpu

_PAR = pltpu.CompilerParams(dimension_semantics=("parallel",))
_ARB = pltpu.CompilerParams(dimension_semantics=("arbitrary",))


def _split2(n):
    # 2-way megacore-friendly split of a leading batch axis when evenly divisible.
    return (2, n // 2) if (n % 2 == 0 and n >= 4) else (1, n)


def patch_len(n, epochs):
    # E2R.patch_len (static python ints)
    base = n // epochs
    lens = [base] * epochs
    for i in range(n - base * epochs):
        lens[i] += 1
    assert sum(lens) == n
    return lens


# --------------------------------------------------------------------------
# Kernel 1: fused frontend
#   conv1 (per-time matmul) + BN1 (train stats) + conv2 'same' (K shifted matmuls)
#   + BN2 (train stats) + E2R per-(batch, patch) trace-normalized covariances.
# One launch, one grid step; all intermediates live in VMEM / scratch.
# --------------------------------------------------------------------------
def _frontend_kernel(x_ref, w1_ref, b1_ref, g1_ref, be1_ref,
                     w2_ref, b2_ref, g2_ref, be2_ref,
                     spd_ref, pad_scr, h2_scr,
                     *, B, T, K, pad_l, lens, eps_bn, eps_spd):
    Tp = T + K - 1

    # conv1: (c1, Cin) @ (Cin, B*T) + bias
    h1 = jnp.dot(w1_ref[...], x_ref[...],
                 preferred_element_type=jnp.float32) + b1_ref[...]

    # BN1 (training-mode batch stats, biased variance) applied in place.
    mu1 = jnp.mean(h1, axis=-1, keepdims=True)
    var1 = jnp.mean(jnp.square(h1 - mu1), axis=-1, keepdims=True)
    y1 = (h1 - mu1) * (g1_ref[...] / jnp.sqrt(var1 + eps_bn)) + be1_ref[...]

    # per-batch zero-padded buffer for conv2 padding='same'
    pad_scr[...] = jnp.zeros_like(pad_scr)
    for b in range(B):
        pad_scr[:, b * Tp + pad_l:b * Tp + pad_l + T] = y1[:, b * T:(b + 1) * T]

    # conv2: K shifted matmuls (cross-correlation), per batch element, f32 accum.
    c2 = b2_ref.shape[0]
    w2 = w2_ref[...]                                       # (K, c2, c1)
    for b in range(B):
        acc = jnp.broadcast_to(b2_ref[...], (c2, T))
        for k in range(K):
            acc = acc + jnp.dot(w2[k],
                                pad_scr[:, b * Tp + k:b * Tp + k + T],
                                preferred_element_type=jnp.float32)
        h2_scr[:, b * T:(b + 1) * T] = acc

    # BN2 (training-mode batch stats).
    h2 = h2_scr[...]
    mu2 = jnp.mean(h2, axis=-1, keepdims=True)
    var2 = jnp.mean(jnp.square(h2 - mu2), axis=-1, keepdims=True)
    y2 = (h2 - mu2) * (g2_ref[...] / jnp.sqrt(var2 + eps_bn)) + be2_ref[...]

    # E2R / signal2spd: per (batch, patch) mean-centered covariance,
    # trace-normalized, + eps*I.  Static unrolled loop (B*m tiny dots) in ONE kernel.
    rows = jax.lax.broadcasted_iota(jnp.int32, (c2, c2), 0)
    cols = jax.lax.broadcasted_iota(jnp.int32, (c2, c2), 1)
    eye = (rows == cols).astype(jnp.float32)
    m = len(lens)
    for b in range(B):
        off = 0
        for p, L in enumerate(lens):
            seg = y2[:, b * T + off:b * T + off + L]       # (c2, L)
            segc = seg - jnp.mean(seg, axis=-1, keepdims=True)
            cov = jax.lax.dot_general(segc, segc, (((1,), (1,)), ((), ())),
                                      preferred_element_type=jnp.float32) / float(L - 1)
            tra = jnp.sum(cov * eye, keepdims=True)        # (1, 1) trace
            spd_ref[b * m + p] = cov / tra + eps_spd * eye
            off += L


def frontend_spd(x2d, w1, b1, g1, be1, w2, b2, g2, be2, *, B, T, lens):
    cin = x2d.shape[0]
    c1 = w1.shape[0]
    K, c2, _ = w2.shape
    pad_l = (K - 1) // 2
    Tp = T + K - 1
    m = len(lens)
    N = B * m

    def full(shape):
        return pl.BlockSpec(shape, lambda i, _n=len(shape): (0,) * _n)

    col = lambda a: a.reshape(-1, 1)
    kern = functools.partial(_frontend_kernel, B=B, T=T, K=K, pad_l=pad_l,
                             lens=tuple(lens), eps_bn=1e-5, eps_spd=1e-5)
    return pl.pallas_call(
        kern,
        out_shape=jax.ShapeDtypeStruct((N, c2, c2), jnp.float32),
        grid=(1,),
        in_specs=[full((cin, B * T)),
                  full((c1, cin)), full((c1, 1)), full((c1, 1)), full((c1, 1)),
                  full((K, c2, c1)), full((c2, 1)), full((c2, 1)), full((c2, 1))],
        out_specs=full((N, c2, c2)),
        scratch_shapes=[pltpu.VMEM((c1, B * Tp), jnp.float32),
                        pltpu.VMEM((c2, B * T), jnp.float32)],
        compiler_params=_ARB,
    )(x2d, w1, col(b1), col(g1), col(be1), w2, col(b2), col(g2), col(be2))


# --------------------------------------------------------------------------
# Kernel 2: SPDTransform for Q, K, V over the whole (N, c2, c2) stack.
#   Stage 1: X @ [Wq|Wk|Wv] as one fat 2-D matmul.
#   Stage 2: W^T (X W) as batched dot_generals; outputs stacked (3, N, d, d).
# --------------------------------------------------------------------------
def _qkv_kernel(x_ref, wcat_ref, wt_ref, o_ref):
    nb, c2, _ = x_ref.shape
    d = wt_ref.shape[1]
    x2 = x_ref[...].reshape(nb * c2, c2)
    y = jnp.dot(x2, wcat_ref[...], preferred_element_type=jnp.float32)   # (nb*c2, 3d)
    y3 = y.reshape(nb, c2, 3 * d)
    for i in range(3):
        wt_b = jnp.broadcast_to(wt_ref[i][None], (nb, d, c2))            # (nb, d, c2)
        yi = y3[:, :, i * d:(i + 1) * d]                                 # (nb, c2, d)
        o_ref[i] = jnp.einsum('nbc,nca->nba', wt_b, yi,
                              preferred_element_type=jnp.float32)        # W^T X W


def qkv_transform(spd, wcat, wt):
    N, c2, _ = spd.shape
    d = wt.shape[1]
    G, Nb = _split2(N)
    return pl.pallas_call(
        _qkv_kernel,
        out_shape=jax.ShapeDtypeStruct((3, N, d, d), jnp.float32),
        grid=(G,),
        in_specs=[pl.BlockSpec((Nb, c2, c2), lambda i: (i, 0, 0)),
                  pl.BlockSpec((c2, 3 * d), lambda i: (0, 0)),
                  pl.BlockSpec((3, d, c2), lambda i: (0, 0, 0))],
        out_specs=pl.BlockSpec((3, Nb, d, d), lambda i: (0, i, 0, 0)),
        compiler_params=_PAR,
    )(spd, wcat, wt)


# --------------------------------------------------------------------------
# Kernel 3: batched U diag(s) U^T reconstruction (shared epilogue of matrix
# log / exp / rectification).  Single launch over the full stack.
# --------------------------------------------------------------------------
def _recon_kernel(u_ref, s_ref, o_ref):
    us = u_ref[...] * s_ref[...]                         # scale columns of U
    o_ref[...] = jnp.einsum('nik,njk->nij', us, u_ref[...],
                            preferred_element_type=jnp.float32)


def eig_reconstruct(u, s):
    # u: (N, d, d), s: (N, 1, d)
    N, d, _ = u.shape
    G, Nb = _split2(N)
    return pl.pallas_call(
        _recon_kernel,
        out_shape=jax.ShapeDtypeStruct((N, d, d), jnp.float32),
        grid=(G,),
        in_specs=[pl.BlockSpec((Nb, d, d), lambda i: (i, 0, 0)),
                  pl.BlockSpec((Nb, 1, d), lambda i: (i, 0, 0))],
        out_specs=pl.BlockSpec((Nb, d, d), lambda i: (i, 0, 0)),
        compiler_params=_PAR,
    )(u, s)


# --------------------------------------------------------------------------
# Kernel 4: manifold attention in the log-Euclidean tangent space.
#   energy[j, i] = ||log K_i - log Q_j||_F^2 (clamped >= 0)
#   prob = softmax over keys i of 1 / (1 + log(1 + energy))
#   out_j = sum_i prob[j, i] * vec(log V_i)
# grid=(B,) marked "parallel" so both TensorCores are used on v7x.
# --------------------------------------------------------------------------
def _attn_kernel(lq_ref, lk_ref, lv_ref, o_ref):
    lq = lq_ref[0]                                       # (m, d*d)
    lk = lk_ref[0]
    lv = lv_ref[0]
    q2 = jnp.sum(lq * lq, axis=-1, keepdims=True)        # (m, 1)
    k2 = jnp.sum(lk * lk, axis=-1, keepdims=True)        # (m, 1)
    cross = jax.lax.dot_general(lq, lk, (((1,), (1,)), ((), ())),
                                preferred_element_type=jnp.float32)   # [query j, key i]
    energy = jnp.maximum(q2 + jnp.transpose(k2) - 2.0 * cross, 0.0)
    att = 1.0 / (1.0 + jnp.log(1.0 + energy))
    att_max = jnp.max(att, axis=-1, keepdims=True)       # softmax over keys (last axis)
    p = jnp.exp(att - att_max)
    p = p / jnp.sum(p, axis=-1, keepdims=True)
    o_ref[0] = jnp.dot(p, lv, preferred_element_type=jnp.float32)


def attention(lq, lk, lv):
    B, m, dd = lq.shape
    spec = pl.BlockSpec((1, m, dd), lambda i: (i, 0, 0))
    return pl.pallas_call(
        _attn_kernel,
        out_shape=jax.ShapeDtypeStruct((B, m, dd), jnp.float32),
        grid=(B,),
        in_specs=[spec, spec, spec],
        out_specs=spec,
        compiler_params=_PAR,
    )(lq, lk, lv)


# ------------------------------ full forward ------------------------------
def matt_forward(x, params, *, epochs, embedding_dim):
    # x: [B, n_channels, T]  (the `x.dim() == 3` path of the PyTorch forward)
    if x.ndim == 2:
        x = x[None]
    x = x.astype(jnp.float32)
    B, cin, T = x.shape
    d = embedding_dim
    m = epochs
    lens = patch_len(T, m)
    N = B * m

    # fused conv1 + BN1 + conv2('same') + BN2 + E2R covariances (one launch)
    x2d = jnp.transpose(x, (1, 0, 2)).reshape(cin, B * T)
    spd = frontend_spd(x2d, params["w1"], params["b1"], params["bn1_g"], params["bn1_b"],
                       params["w2"], params["b2"], params["bn2_g"], params["bn2_b"],
                       B=B, T=T, lens=lens)                      # (B*m, c2, c2)

    # AttentionManifold: Q/K/V SPD transforms (one launch over the whole stack)
    wq, wk, wv = params["wq"], params["wk"], params["wv"]
    wcat = jnp.concatenate([wq, wk, wv], axis=1)                 # (c2, 3d)
    wt = jnp.stack([wq.T, wk.T, wv.T], axis=0)                   # (3, d, c2)
    qkv = qkv_transform(spd, wcat, wt)                           # (3, N, d, d)

    # TODO(synk): symmetric eigendecomposition (torch.svd / torch.linalg.eigh on SPD
    # matrices) has no Pallas TPU equivalent; it stays in jnp.linalg.eigh (batched,
    # only 2 dispatches total: one for Q|K|V, one for the attention output).
    s, u = jnp.linalg.eigh(qkv.reshape(3 * N, d, d))
    log_s = jnp.log(jnp.maximum(s, 1e-20))                       # clamp before log
    lqkv = eig_reconstruct(u, log_s.reshape(3 * N, 1, d))        # matrix log of Q,K,V
    lqkv = lqkv.reshape(3, B, m, d * d)
    lq, lk, lv = lqkv[0], lqkv[1], lqkv[2]

    att = attention(lq, lk, lv)                                  # (B, m, d*d) tangent mean

    # expm -> SPDRectified(1e-4) -> tangent log share one eigh:
    #   out_spd = U exp(s) U^T, rect = U max(exp(s),eps) U^T, tangent = U log(max(exp(s),eps)) U^T
    s2, u2 = jnp.linalg.eigh(att.reshape(N, d, d))
    s_t = jnp.log(jnp.maximum(jnp.exp(s2), 1e-4))
    tang = eig_reconstruct(u2, s_t.reshape(N, 1, d))             # (N, d, d)

    # upper-triangular vectorization + final Linear (tiny -> left to XLA)
    iu_r, iu_c = jnp.triu_indices(d)
    vec = tang[:, iu_r, iu_c]                                    # (N, d(d+1)/2)
    feat = vec.reshape(B, m * d * (d + 1) // 2)
    y = jnp.dot(feat, params["w_lin"]) + params["b_lin"]
    if y.shape[-1] == 1:
        y = jnp.squeeze(y, axis=-1)
    return y


def init_params(key, *, n_channels, n_outputs, epochs, c1, c2, ksz, d):
    ks = jax.random.split(key, 8)

    def orth(k, rows, cols):  # Stiefel (orthonormal-column) init, as nn.init.orthogonal_
        q, _ = jnp.linalg.qr(jax.random.normal(k, (rows, rows), jnp.float32))
        return q[:, :cols]

    feat = d * (d + 1) // 2 * epochs
    return {
        "w1": 0.3 * jax.random.normal(ks[0], (c1, n_channels), jnp.float32),
        "b1": 0.1 * jax.random.normal(ks[1], (c1,), jnp.float32),
        "bn1_g": jnp.ones((c1,), jnp.float32),
        "bn1_b": jnp.zeros((c1,), jnp.float32),
        "w2": 0.3 * jax.random.normal(ks[2], (ksz, c2, c1), jnp.float32),
        "b2": 0.1 * jax.random.normal(ks[3], (c2,), jnp.float32),
        "bn2_g": jnp.ones((c2,), jnp.float32),
        "bn2_b": jnp.zeros((c2,), jnp.float32),
        "wq": orth(ks[4], c2, d),
        "wk": orth(ks[5], c2, d),
        "wv": orth(ks[6], c2, d),
        "w_lin": 0.2 * jax.random.normal(ks[7], (feat, n_outputs), jnp.float32),
        "b_lin": jnp.zeros((n_outputs,), jnp.float32),
    }


if __name__ == "__main__":
    # Small configuration consistent with mAtt(n_channels=4, n_outputs=1, epochs=5,
    #   n_kernels_conv1=16, n_kernels_conv2=8, kernel_size_conv2=5, embedding_dim=4)
    B, n_channels, T = 2, 4, 50
    epochs, n_outputs = 5, 1
    c1, c2, ksz, d = 16, 8, 5, 4

    key = jax.random.PRNGKey(0)
    k_x, k_p = jax.random.split(key)
    x = jax.random.normal(k_x, (B, n_channels, T), jnp.float32)
    params = init_params(k_p, n_channels=n_channels, n_outputs=n_outputs,
                         epochs=epochs, c1=c1, c2=c2, ksz=ksz, d=d)

    fwd = jax.jit(functools.partial(matt_forward, epochs=epochs, embedding_dim=d))
    y = fwd(x, params)
    jax.block_until_ready(y)
    assert y.shape == (B,), y.shape
    assert bool(jnp.all(jnp.isfinite(y)))
    print("KERNEL_OK")
</pallas_src>

<mosaic_0001>
module attributes {stable_mosaic.version = 11 : i64} {
  func.func private @main(%arg0: i32) attributes {dimension_semantics = [#tpu.dimension_semantics<core_parallel>], iteration_bounds = array<i64: 2>, tpu.core_type = #tpu.core_type<sc_scalar_subcore>, window_params = []} {
    return
  }
}

module attributes {stable_mosaic.version = 11 : i64} {
  func.func private @main(%arg0: i32) attributes {dimension_semantics = [#tpu.dimension_semantics<core_parallel>], iteration_bounds = array<i64: 2>, tpu.core_type = #tpu.core_type<sc_scalar_subcore>, window_params = []} {
    return
  }
}

module attributes {stable_mosaic.version = 11 : i64} {
  func.func @_qkv_kernel(%arg0: i32, %arg1: memref<5x8x8xf32, #tpu.memory_space<vmem>>, %arg2: memref<8x12xf32, #tpu.memory_space<vmem>>, %arg3: memref<3x4x8xf32, #tpu.memory_space<vmem>>, %arg4: memref<3x5x4x4xf32, #tpu.memory_space<vmem>>) attributes {dimension_semantics = [#tpu.dimension_semantics<parallel>], iteration_bounds = array<i64: 2>, scalar_prefetch = 0 : i64, scratch_operands = 0 : i64, tpu.core_type = #tpu.core_type<tc>, window_params = [{transform_indices = @transform_0, window_bounds = array<i64: 5, 8, 8>}, {pipeline_mode = #tpu.pipeline_mode<synchronous>, transform_indices = @transform_1, window_bounds = array<i64: 8, 12>}, {pipeline_mode = #tpu.pipeline_mode<synchronous>, transform_indices = @transform_2, window_bounds = array<i64: 3, 4, 8>}, {transform_indices = @transform_3, window_bounds = array<i64: 3, 5, 4, 4>}]} {
    %c0 = arith.constant 0 : index
    %c0_0 = arith.constant 0 : index
    %c0_1 = arith.constant 0 : index
    %0 = vector.load %arg1[%c0, %c0_0, %c0_1] : memref<5x8x8xf32, #tpu.memory_space<vmem>>, vector<5x8x8xf32>
    %1 = vector.shape_cast %0 : vector<5x8x8xf32> to vector<40x8xf32>
    %c0_2 = arith.constant 0 : index
    %c0_3 = arith.constant 0 : index
    %2 = vector.load %arg2[%c0_2, %c0_3] : memref<8x12xf32, #tpu.memory_space<vmem>>, vector<8x12xf32>
    %cst = arith.constant dense<0.000000e+00> : vector<40x12xf32>
    %3 = tpu.matmul %1, %2, %cst {dimension_numbers = #tpu.dot_dimension_numbers<[1], [0], [0], [1], [0, 0, 1, 1], [], []>} : vector<40x8xf32>, vector<8x12xf32>, vector<40x12xf32> -> vector<40x12xf32>
    %4 = vector.shape_cast %3 : vector<40x12xf32> to vector<5x8x12xf32>
    %c0_4 = arith.constant 0 : index
    %c0_5 = arith.constant 0 : index
    %c0_6 = arith.constant 0 : index
    %5 = vector.load %arg3[%c0_4, %c0_5, %c0_6] : memref<3x4x8xf32, #tpu.memory_space<vmem>>, vector<1x4x8xf32>
    %6 = vector.shape_cast %5 : vector<1x4x8xf32> to vector<4x8xf32>
    %7 = vector.shape_cast %6 : vector<4x8xf32> to vector<1x4x8xf32>
    %8 = vector.shape_cast %7 : vector<1x4x8xf32> to vector<1x4x8xf32>
    %9 = vector.broadcast %8 : vector<1x4x8xf32> to vector<5x4x8xf32>
    %10 = vector.extract_strided_slice %4 {offsets = [0, 0, 0], sizes = [5, 8, 4], strides = [1, 1, 1]} : vector<5x8x12xf32> to vector<5x8x4xf32>
    "tpu.trace_start"() <{level = 10 : i32, message = "nbc,nca->nba"}> : () -> ()
    %cst_7 = arith.constant dense<0.000000e+00> : vector<5x4x4xf32>
    %11 = tpu.matmul %9, %10, %cst_7 {dimension_numbers = #tpu.dot_dimension_numbers<[2], [1], [1], [2], [0, 0, 0, 1, 1, 2], [0], [0]>} : vector<5x4x8xf32>, vector<5x8x4xf32>, vector<5x4x4xf32> -> vector<5x4x4xf32>
    "tpu.trace_stop"() : () -> ()
    %c0_8 = arith.constant 0 : index
    %c0_9 = arith.constant 0 : index
    %c0_10 = arith.constant 0 : index
    %c0_11 = arith.constant 0 : index
    %12 = vector.load %arg4[%c0_8, %c0_9, %c0_10, %c0_11] : memref<3x5x4x4xf32, #tpu.memory_space<vmem>>, vector<1x5x4x4xf32>
    %13 = vector.shape_cast %12 : vector<1x5x4x4xf32> to vector<5x4x4xf32>
    %14 = vector.shape_cast %11 : vector<5x4x4xf32> to vector<1x5x4x4xf32>
    tpu.vector_store %arg4[%c0_8, %c0_9, %c0_10, %c0_11], %14 {strides = array<i32>} : memref<3x5x4x4xf32, #tpu.memory_space<vmem>>, vector<1x5x4x4xf32>,
    %c1 = arith.constant 1 : index
    %c0_12 = arith.constant 0 : index
    %c0_13 = arith.constant 0 : index
    %15 = vector.load %arg3[%c1, %c0_12, %c0_13] : memref<3x4x8xf32, #tpu.memory_space<vmem>>, vector<1x4x8xf32>
    %16 = vector.shape_cast %15 : vector<1x4x8xf32> to vector<4x8xf32>
    %17 = vector.shape_cast %16 : vector<4x8xf32> to vector<1x4x8xf32>
    %18 = vector.shape_cast %17 : vector<1x4x8xf32> to vector<1x4x8xf32>
    %19 = vector.broadcast %18 : vector<1x4x8xf32> to vector<5x4x8xf32>
    %20 = vector.extract_strided_slice %4 {offsets = [0, 0, 4], sizes = [5, 8, 4], strides = [1, 1, 1]} : vector<5x8x12xf32> to vector<5x8x4xf32>
    "tpu.trace_start"() <{level = 10 : i32, message = "nbc,nca->nba"}> : () -> ()
    %cst_14 = arith.constant dense<0.000000e+00> : vector<5x4x4xf32>
    %21 = tpu.matmul %19, %20, %cst_14 {dimension_numbers = #tpu.dot_dimension_numbers<[2], [1], [1], [2], [0, 0, 0, 1, 1, 2], [0], [0]>} : vector<5x4x8xf32>, vector<5x8x4xf32>, vector<5x4x4xf32> -> vector<5x4x4xf32>
    "tpu.trace_stop"() : () -> ()
    %c1_15 = arith.constant 1 : index
    %c0_16 = arith.constant 0 : index
    %c0_17 = arith.constant 0 : index
    %c0_18 = arith.constant 0 : index
    %22 = vector.load %arg4[%c1_15, %c0_16, %c0_17, %c0_18] : memref<3x5x4x4xf32, #tpu.memory_space<vmem>>, vector<1x5x4x4xf32>
    %23 = vector.shape_cast %22 : vector<1x5x4x4xf32> to vector<5x4x4xf32>
    %24 = vector.shape_cast %21 : vector<5x4x4xf32> to vector<1x5x4x4xf32>
    tpu.vector_store %arg4[%c1_15, %c0_16, %c0_17, %c0_18], %24 {strides = array<i32>} : memref<3x5x4x4xf32, #tpu.memory_space<vmem>>, vector<1x5x4x4xf32>,
    %c2 = arith.constant 2 : index
    %c0_19 = arith.constant 0 : index
    %c0_20 = arith.constant 0 : index
    %25 = vector.load %arg3[%c2, %c0_19, %c0_20] : memref<3x4x8xf32, #tpu.memory_space<vmem>>, vector<1x4x8xf32>
    %26 = vector.shape_cast %25 : vector<1x4x8xf32> to vector<4x8xf32>
    %27 = vector.shape_cast %26 : vector<4x8xf32> to vector<1x4x8xf32>
    %28 = vector.shape_cast %27 : vector<1x4x8xf32> to vector<1x4x8xf32>
    %29 = vector.broadcast %28 : vector<1x4x8xf32> to vector<5x4x8xf32>
    %30 = vector.extract_strided_slice %4 {offsets = [0, 0, 8], sizes = [5, 8, 4], strides = [1, 1, 1]} : vector<5x8x12xf32> to vector<5x8x4xf32>
    "tpu.trace_start"() <{level = 10 : i32, message = "nbc,nca->nba"}> : () -> ()
    %cst_21 = arith.constant dense<0.000000e+00> : vector<5x4x4xf32>
    %31 = tpu.matmul %29, %30, %cst_21 {dimension_numbers = #tpu.dot_dimension_numbers<[2], [1], [1], [2], [0, 0, 0, 1, 1, 2], [0], [0]>} : vector<5x4x8xf32>, vector<5x8x4xf32>, vector<5x4x4xf32> -> vector<5x4x4xf32>
    "tpu.trace_stop"() : () -> ()
    %c2_22 = arith.constant 2 : index
    %c0_23 = arith.constant 0 : index
    %c0_24 = arith.constant 0 : index
    %c0_25 = arith.constant 0 : index
    %32 = vector.load %arg4[%c2_22, %c0_23, %c0_24, %c0_25] : memref<3x5x4x4xf32, #tpu.memory_space<vmem>>, vector<1x5x4x4xf32>
    %33 = vector.shape_cast %32 : vector<1x5x4x4xf32> to vector<5x4x4xf32>
    %34 = vector.shape_cast %31 : vector<5x4x4xf32> to vector<1x5x4x4xf32>
    tpu.vector_store %arg4[%c2_22, %c0_23, %c0_24, %c0_25], %34 {strides = array<i32>} : memref<3x5x4x4xf32, #tpu.memory_space<vmem>>, vector<1x5x4x4xf32>,
    return
  }
  func.func @transform_0(%arg0: i32) -> (i32, i32, i32) {
    %c0_i32 = arith.constant 0 : i32
    %c0_i32_0 = arith.constant 0 : i32
    %c0_i32_1 = arith.constant 0 : i32
    return %arg0, %c0_i32, %c0_i32_0 : i32, i32, i32
  }
  func.func @transform_1(%arg0: i32) -> (i32, i32) {
    %c0_i32 = arith.constant 0 : i32
    %c0_i32_0 = arith.constant 0 : i32
    %c0_i32_1 = arith.constant 0 : i32
    return %c0_i32, %c0_i32_0 : i32, i32
  }
  func.func @transform_2(%arg0: i32) -> (i32, i32, i32) {
    %c0_i32 = arith.constant 0 : i32
    %c0_i32_0 = arith.constant 0 : i32
    %c0_i32_1 = arith.constant 0 : i32
    %c0_i32_2 = arith.constant 0 : i32
    return %c0_i32, %c0_i32_0, %c0_i32_1 : i32, i32, i32
  }
  func.func @transform_3(%arg0: i32) -> (i32, i32, i32, i32) {
    %c0_i32 = arith.constant 0 : i32
    %c0_i32_0 = arith.constant 0 : i32
    %c0_i32_1 = arith.constant 0 : i32
    %c0_i32_2 = arith.constant 0 : i32
    return %c0_i32, %arg0, %c0_i32_0, %c0_i32_1 : i32, i32, i32, i32
  }
}

module attributes {stable_mosaic.version = 11 : i64} {
  func.func @_frontend_kernel(%arg0: i32, %arg1: memref<4x100xf32, #tpu.memory_space<vmem>>, %arg2: memref<16x4xf32, #tpu.memory_space<vmem>>, %arg3: memref<16x1xf32, #tpu.memory_space<vmem>>, %arg4: memref<16x1xf32, #tpu.memory_space<vmem>>, %arg5: memref<16x1xf32, #tpu.memory_space<vmem>>, %arg6: memref<5x8x16xf32, #tpu.memory_space<vmem>>, %arg7: memref<8x1xf32, #tpu.memory_space<vmem>>, %arg8: memref<8x1xf32, #tpu.memory_space<vmem>>, %arg9: memref<8x1xf32, #tpu.memory_space<vmem>>, %arg10: memref<10x8x8xf32, #tpu.memory_space<vmem>>, %arg11: memref<16x108xf32, #tpu.memory_space<vmem>>, %arg12: memref<8x100xf32, #tpu.memory_space<vmem>>) attributes {dimension_semantics = [#tpu.dimension_semantics<arbitrary>], iteration_bounds = array<i64: 1>, scalar_prefetch = 0 : i64, scratch_operands = 2 : i64, tpu.core_type = #tpu.core_type<tc>, window_params = [{pipeline_mode = #tpu.pipeline_mode<synchronous>, transform_indices = @transform_0, window_bounds = array<i64: 4, 100>}, {pipeline_mode = #tpu.pipeline_mode<synchronous>, transform_indices = @transform_1, window_bounds = array<i64: 16, 4>}, {pipeline_mode = #tpu.pipeline_mode<synchronous>, transform_indices = @transform_2, window_bounds = array<i64: 16, 1>}, {pipeline_mode = #tpu.pipeline_mode<synchronous>, transform_indices = @transform_3, window_bounds = array<i64: 16, 1>}, {pipeline_mode = #tpu.pipeline_mode<synchronous>, transform_indices = @transform_4, window_bounds = array<i64: 16, 1>}, {pipeline_mode = #tpu.pipeline_mode<synchronous>, transform_indices = @transform_5, window_bounds = array<i64: 5, 8, 16>}, {pipeline_mode = #tpu.pipeline_mode<synchronous>, transform_indices = @transform_6, window_bounds = array<i64: 8, 1>}, {pipeline_mode = #tpu.pipeline_mode<synchronous>, transform_indices = @transform_7, window_bounds = array<i64: 8, 1>}, {pipeline_mode = #tpu.pipeline_mode<synchronous>, transform_indices = @transform_8, window_bounds = array<i64: 8, 1>}, {pipeline_mode = #tpu.pipeline_mode<synchronous>, transform_indices = @transform_9, window_bounds = array<i64: 10, 8, 8>}]} {
    %c0 = arith.constant 0 : index
    %c0_0 = arith.constant 0 : index
    %0 = vector.load %arg2[%c0, %c0_0] : memref<16x4xf32, #tpu.memory_space<vmem>>, vector<16x4xf32>
    %c0_1 = arith.constant 0 : index
    %c0_2 = arith.constant 0 : index
    %1 = vector.load %arg1[%c0_1, %c0_2] : memref<4x100xf32, #tpu.memory_space<vmem>>, vector<4x100xf32>
    %cst = arith.constant dense<0.000000e+00> : vector<16x100xf32>
    %2 = tpu.matmul %0, %1, %cst {dimension_numbers = #tpu.dot_dimension_numbers<[1], [0], [0], [1], [0, 0, 1, 1], [], []>} : vector<16x4xf32>, vector<4x100xf32>, vector<16x100xf32> -> vector<16x100xf32>
    %c0_3 = arith.constant 0 : index
    %c0_4 = arith.constant 0 : index
    %3 = vector.load %arg3[%c0_3, %c0_4] : memref<16x1xf32, #tpu.memory_space<vmem>>, vector<16x1xf32>
    %4 = vector.broadcast %3 : vector<16x1xf32> to vector<16x100xf32>
    %5 = arith.addf %2, %4 : vector<16x100xf32>
    %cst_5 = arith.constant dense<0.000000e+00> : vector<16xf32>
    %6 = vector.multi_reduction <add>, %5, %cst_5 [1] : vector<16x100xf32> to vector<16xf32>
    %7 = vector.shape_cast %6 : vector<16xf32> to vector<16x1xf32>
    %cst_6 = arith.constant 1.000000e+02 : f32
    %8 = vector.broadcast %cst_6 : f32 to vector<16x1xf32>
    %9 = arith.divf %7, %8 : vector<16x1xf32>
    %10 = vector.broadcast %9 : vector<16x1xf32> to vector<16x100xf32>
    %11 = arith.subf %5, %10 : vector<16x100xf32>
    %12 = arith.mulf %11, %11 : vector<16x100xf32>
    %cst_7 = arith.constant dense<0.000000e+00> : vector<16xf32>
    %13 = vector.multi_reduction <add>, %12, %cst_7 [1] : vector<16x100xf32> to vector<16xf32>
    %14 = vector.shape_cast %13 : vector<16xf32> to vector<16x1xf32>
    %cst_8 = arith.constant 1.000000e+02 : f32
    %15 = vector.broadcast %cst_8 : f32 to vector<16x1xf32>
    %16 = arith.divf %14, %15 : vector<16x1xf32>
    %17 = vector.broadcast %9 : vector<16x1xf32> to vector<16x100xf32>
    %18 = arith.subf %5, %17 : vector<16x100xf32>
    %c0_9 = arith.constant 0 : index
    %c0_10 = arith.constant 0 : index
    %19 = vector.load %arg4[%c0_9, %c0_10] : memref<16x1xf32, #tpu.memory_space<vmem>>, vector<16x1xf32>
    %cst_11 = arith.constant 9.99999974E-6 : f32
    %20 = vector.broadcast %cst_11 : f32 to vector<16x1xf32>
    %21 = arith.addf %16, %20 : vector<16x1xf32>
    %22 = math.sqrt %21 : vector<16x1xf32>
    %23 = arith.divf %19, %22 : vector<16x1xf32>
    %24 = vector.broadcast %23 : vector<16x1xf32> to vector<16x100xf32>
    %25 = arith.mulf %18, %24 : vector<16x100xf32>
    %c0_12 = arith.constant 0 : index
    %c0_13 = arith.constant 0 : index
    %26 = vector.load %arg5[%c0_12, %c0_13] : memref<16x1xf32, #tpu.memory_space<vmem>>, vector<16x1xf32>
    %27 = vector.broadcast %26 : vector<16x1xf32> to vector<16x100xf32>
    %28 = arith.addf %25, %27 : vector<16x100xf32>
    %cst_14 = arith.constant 0.000000e+00 : f32
    %29 = vector.broadcast %cst_14 : f32 to vector<16x108xf32>
    %c0_15 = arith.constant 0 : index
    %c0_16 = arith.constant 0 : index
    %30 = vector.load %arg11[%c0_15, %c0_16] : memref<16x108xf32, #tpu.memory_space<vmem>>, vector<16x108xf32>
    tpu.vector_store %arg11[%c0_15, %c0_16], %29 {strides = array<i32>} : memref<16x108xf32, #tpu.memory_space<vmem>>, vector<16x108xf32>,
    %31 = vector.extract_strided_slice %28 {offsets = [0, 0], sizes = [16, 50], strides = [1, 1]} : vector<16x100xf32> to vector<16x50xf32>
    %c0_17 = arith.constant 0 : index
    %c2 = arith.constant 2 : index
    %32 = vector.load %arg11[%c0_17, %c2] : memref<16x108xf32, #tpu.memory_space<vmem>>, vector<16x50xf32>
    tpu.vector_store %arg11[%c0_17, %c2], %31 {strides = array<i32>} : memref<16x108xf32, #tpu.memory_space<vmem>>, vector<16x50xf32>,
    %33 = vector.extract_strided_slice %28 {offsets = [0, 50], sizes = [16, 50], strides = [1, 1]} : vector<16x100xf32> to vector<16x50xf32>
    %c0_18 = arith.constant 0 : index
    %c56 = arith.constant 56 : index
    %34 = vector.load %arg11[%c0_18, %c56] : memref<16x108xf32, #tpu.memory_space<vmem>>, vector<16x50xf32>
    tpu.vector_store %arg11[%c0_18, %c56], %33 {strides = array<i32>} : memref<16x108xf32, #tpu.memory_space<vmem>>, vector<16x50xf32>,
    %c0_19 = arith.constant 0 : index
    %c0_20 = arith.constant 0 : index
    %c0_21 = arith.constant 0 : index
    %35 = vector.load %arg6[%c0_19, %c0_20, %c0_21] : memref<5x8x16xf32, #tpu.memory_space<vmem>>, vector<5x8x16xf32>
    %c0_22 = arith.constant 0 : index
    %c0_23 = arith.constant 0 : index
    %36 = vector.load %arg7[%c0_22, %c0_23] : memref<8x1xf32, #tpu.memory_space<vmem>>, vector<8x1xf32>
    %37 = vector.shape_cast %36 : vector<8x1xf32> to vector<8x1xf32>
    %38 = vector.broadcast %37 : vector<8x1xf32> to vector<8x50xf32>
    %39 = vector.extract_strided_slice %35 {offsets = [0, 0, 0], sizes = [1, 8, 16], strides = [1, 1, 1]} : vector<5x8x16xf32> to vector<1x8x16xf32>
    %40 = vector.shape_cast %39 : vector<1x8x16xf32> to vector<8x16xf32>
    %c0_24 = arith.constant 0 : index
    %c0_25 = arith.constant 0 : index
    %41 = vector.load %arg11[%c0_24, %c0_25] : memref<16x108xf32, #tpu.memory_space<vmem>>, vector<16x50xf32>
    %cst_26 = arith.constant dense<0.000000e+00> : vector<8x50xf32>
    %42 = tpu.matmul %40, %41, %cst_26 {dimension_numbers = #tpu.dot_dimension_numbers<[1], [0], [0], [1], [0, 0, 1, 1], [], []>} : vector<8x16xf32>, vector<16x50xf32>, vector<8x50xf32> -> vector<8x50xf32>
    %43 = arith.addf %38, %42 : vector<8x50xf32>
    %44 = vector.extract_strided_slice %35 {offsets = [1, 0, 0], sizes = [1, 8, 16], strides = [1, 1, 1]} : vector<5x8x16xf32> to vector<1x8x16xf32>
    %45 = vector.shape_cast %44 : vector<1x8x16xf32> to vector<8x16xf32>
    %c0_27 = arith.constant 0 : index
    %c1 = arith.constant 1 : index
    %46 = vector.load %arg11[%c0_27, %c1] : memref<16x108xf32, #tpu.memory_space<vmem>>, vector<16x50xf32>
    %cst_28 = arith.constant dense<0.000000e+00> : vector<8x50xf32>
    %47 = tpu.matmul %45, %46, %cst_28 {dimension_numbers = #tpu.dot_dimension_numbers<[1], [0], [0], [1], [0, 0, 1, 1], [], []>} : vector<8x16xf32>, vector<16x50xf32>, vector<8x50xf32> -> vector<8x50xf32>
    %48 = arith.addf %43, %47 : vector<8x50xf32>
    %49 = vector.extract_strided_slice %35 {offsets = [2, 0, 0], sizes = [1, 8, 16], strides = [1, 1, 1]} : vector<5x8x16xf32> to vector<1x8x16xf32>
    %50 = vector.shape_cast %49 : vector<1x8x16xf32> to vector<8x16xf32>
    %c0_29 = arith.constant 0 : index
    %c2_30 = arith.constant 2 : index
    %51 = vector.load %arg11[%c0_29, %c2_30] : memref<16x108xf32, #tpu.memory_space<vmem>>, vector<16x50xf32>
    %cst_31 = arith.constant dense<0.000000e+00> : vector<8x50xf32>
    %52 = tpu.matmul %50, %51, %cst_31 {dimension_numbers = #tpu.dot_dimension_numbers<[1], [0], [0], [1], [0, 0, 1, 1], [], []>} : vector<8x16xf32>, vector<16x50xf32>, vector<8x50xf32> -> vector<8x50xf32>
    %53 = arith.addf %48, %52 : vector<8x50xf32>
    %54 = vector.extract_strided_slice %35 {offsets = [3, 0, 0], sizes = [1, 8, 16], strides = [1, 1, 1]} : vector<5x8x16xf32> to vector<1x8x16xf32>
    %55 = vector.shape_cast %54 : vector<1x8x16xf32> to vector<8x16xf32>
    %c0_32 = arith.constant 0 : index
    %c3 = arith.constant 3 : index
    %56 = vector.load %arg11[%c0_32, %c3] : memref<16x108xf32, #tpu.memory_space<vmem>>, vector<16x50xf32>
    %cst_33 = arith.constant dense<0.000000e+00> : vector<8x50xf32>
    %57 = tpu.matmul %55, %56, %cst_33 {dimension_numbers = #tpu.dot_dimension_numbers<[1], [0], [0], [1], [0, 0, 1, 1], [], []>} : vector<8x16xf32>, vector<16x50xf32>, vector<8x50xf32> -> vector<8x50xf32>
    %58 = arith.addf %53, %57 : vector<8x50xf32>
    %59 = vector.extract_strided_slice %35 {offsets = [4, 0, 0], sizes = [1, 8, 16], strides = [1, 1, 1]} : vector<5x8x16xf32> to vector<1x8x16xf32>
    %60 = vector.shape_cast %59 : vector<1x8x16xf32> to vector<8x16xf32>
    %c0_34 = arith.constant 0 : index
    %c4 = arith.constant 4 : index
    %61 = vector.load %arg11[%c0_34, %c4] : memref<16x108xf32, #tpu.memory_space<vmem>>, vector<16x50xf32>
    %cst_35 = arith.constant dense<0.000000e+00> : vector<8x50xf32>
    %62 = tpu.matmul %60, %61, %cst_35 {dimension_numbers = #tpu.dot_dimension_numbers<[1], [0], [0], [1], [0, 0, 1, 1], [], []>} : vector<8x16xf32>, vector<16x50xf32>, vector<8x50xf32> -> vector<8x50xf32>
    %63 = arith.addf %58, %62 : vector<8x50xf32>
    %c0_36 = arith.constant 0 : index
    %c0_37 = arith.constant 0 : index
    %64 = vector.load %arg12[%c0_36, %c0_37] : memref<8x100xf32, #tpu.memory_space<vmem>>, vector<8x50xf32>
    tpu.vector_store %arg12[%c0_36, %c0_37], %63 {strides = array<i32>} : memref<8x100xf32, #tpu.memory_space<vmem>>, vector<8x50xf32>,
    %c0_38 = arith.constant 0 : index
    %c0_39 = arith.constant 0 : index
    %65 = vector.load %arg7[%c0_38, %c0_39] : memref<8x1xf32, #tpu.memory_space<vmem>>, vector<8x1xf32>
    %66 = vector.shape_cast %65 : vector<8x1xf32> to vector<8x1xf32>
    %67 = vector.broadcast %66 : vector<8x1xf32> to vector<8x50xf32>
    %68 = vector.extract_strided_slice %35 {offsets = [0, 0, 0], sizes = [1, 8, 16], strides = [1, 1, 1]} : vector<5x8x16xf32> to vector<1x8x16xf32>
    %69 = vector.shape_cast %68 : vector<1x8x16xf32> to vector<8x16xf32>
    %c0_40 = arith.constant 0 : index
    %c54 = arith.constant 54 : index
    %70 = vector.load %arg11[%c0_40, %c54] : memref<16x108xf32, #tpu.memory_space<vmem>>, vector<16x50xf32>
    %cst_41 = arith.constant dense<0.000000e+00> : vector<8x50xf32>
    %71 = tpu.matmul %69, %70, %cst_41 {dimension_numbers = #tpu.dot_dimension_numbers<[1], [0], [0], [1], [0, 0, 1, 1], [], []>} : vector<8x16xf32>, vector<16x50xf32>, vector<8x50xf32> -> vector<8x50xf32>
    %72 = arith.addf %67, %71 : vector<8x50xf32>
    %73 = vector.extract_strided_slice %35 {offsets = [1, 0, 0], sizes = [1, 8, 16], strides = [1, 1, 1]} : vector<5x8x16xf32> to vector<1x8x16xf32>
    %74 = vector.shape_cast %73 : vector<1x8x16xf32> to vector<8x16xf32>
    %c0_42 = arith.constant 0 : index
    %c55 = arith.constant 55 : index
    %75 = vector.load %arg11[%c0_42, %c55] : memref<16x108xf32, #tpu.memory_space<vmem>>, vector<16x50xf32>
    %cst_43 = arith.constant dense<0.000000e+00> : vector<8x50xf32>
    %76 = tpu.matmul %74, %75, %cst_43 {dimension_numbers = #tpu.dot_dimension_numbers<[1], [0], [0], [1], [0, 0, 1, 1], [], []>} : vector<8x16xf32>, vector<16x50xf32>, vector<8x50xf32> -> vector<8x50xf32>
    %77 = arith.addf %72, %76 : vector<8x50xf32>
    %78 = vector.extract_strided_slice %35 {offsets = [2, 0, 0], sizes = [1, 8, 16], strides = [1, 1, 1]} : vector<5x8x16xf32> to vector<1x8x16xf32>
    %79 = vector.shape_cast %78 : vector<1x8x16xf32> to vector<8x16xf32>
    %c0_44 = arith.constant 0 : index
    %c56_45 = arith.constant 56 : index
    %80 = vector.load %arg11[%c0_44, %c56_45] : memref<16x108xf32, #tpu.memory_space<vmem>>, vector<16x50xf32>
    %cst_46 = arith.constant dense<0.000000e+00> : vector<8x50xf32>
    %81 = tpu.matmul %79, %80, %cst_46 {dimension_numbers = #tpu.dot_dimension_numbers<[1], [0], [0], [1], [0, 0, 1, 1], [], []>} : vector<8x16xf32>, vector<16x50xf32>, vector<8x50xf32> -> vector<8x50xf32>
    %82 = arith.addf %77, %81 : vector<8x50xf32>
    %83 = vector.extract_strided_slice %35 {offsets = [3, 0, 0], sizes = [1, 8, 16], strides = [1, 1, 1]} : vector<5x8x16xf32> to vector<1x8x16xf32>
    %84 = vector.shape_cast %83 : vector<1x8x16xf32> to vector<8x16xf32>
    %c0_47 = arith.constant 0 : index
    %c57 = arith.constant 57 : index
    %85 = vector.load %arg11[%c0_47, %c57] : memref<16x108xf32, #tpu.memory_space<vmem>>, vector<16x50xf32>
    %cst_48 = arith.constant dense<0.000000e+00> : vector<8x50xf32>
    %86 = tpu.matmul %84, %85, %cst_48 {dimension_numbers = #tpu.dot_dimension_numbers<[1], [0], [0], [1], [0, 0, 1, 1], [], []>} : vector<8x16xf32>, vector<16x50xf32>, vector<8x50xf32> -> vector<8x50xf32>
    %87 = arith.addf %82, %86 : vector<8x50xf32>
    %88 = vector.extract_strided_slice %35 {offsets = [4, 0, 0], sizes = [1, 8, 16], strides = [1, 1, 1]} : vector<5x8x16xf32> to vector<1x8x16xf32>
    %89 = vector.shape_cast %88 : vector<1x8x16xf32> to vector<8x16xf32>
    %c0_49 = arith.constant 0 : index
    %c58 = arith.constant 58 : index
    %90 = vector.load %arg11[%c0_49, %c58] : memref<16x108xf32, #tpu.memory_space<vmem>>, vector<16x50xf32>
    %cst_50 = arith.constant dense<0.000000e+00> : vector<8x50xf32>
    %91 = tpu.matmul %89, %90, %cst_50 {dimension_numbers = #tpu.dot_dimension_numbers<[1], [0], [0], [1], [0, 0, 1, 1], [], []>} : vector<8x16xf32>, vector<16x50xf32>, vector<8x50xf32> -> vector<8x50xf32>
    %92 = arith.addf %87, %91 : vector<8x50xf32>
    %c0_51 = arith.constant 0 : index
    %c50 = arith.constant 50 : index
    %93 = vector.load %arg12[%c0_51, %c50] : memref<8x100xf32, #tpu.memory_space<vmem>>, vector<8x50xf32>
    tpu.vector_store %arg12[%c0_51, %c50], %92 {strides = array<i32>} : memref<8x100xf32, #tpu.memory_space<vmem>>, vector<8x50xf32>,
    %c0_52 = arith.constant 0 : index
    %c0_53 = arith.constant 0 : index
    %94 = vector.load %arg12[%c0_52, %c0_53] : memref<8x100xf32, #tpu.memory_space<vmem>>, vector<8x100xf32>
    %cst_54 = arith.constant dense<0.000000e+00> : vector<8xf32>
    %95 = vector.multi_reduction <add>, %94, %cst_54 [1] : vector<8x100xf32> to vector<8xf32>
    %96 = vector.shape_cast %95 : vector<8xf32> to vector<8x1xf32>
    %cst_55 = arith.constant 1.000000e+02 : f32
    %97 = vector.broadcast %cst_55 : f32 to vector<8x1xf32>
    %98 = arith.divf %96, %97 : vector<8x1xf32>
    %99 = vector.broadcast %98 : vector<8x1xf32> to vector<8x100xf32>
    %100 = arith.subf %94, %99 : vector<8x100xf32>
    %101 = arith.mulf %100, %100 : vector<8x100xf32>
    %cst_56 = arith.constant dense<0.000000e+00> : vector<8xf32>
    %102 = vector.multi_reduction <add>, %101, %cst_56 [1] : vector<8x100xf32> to vector<8xf32>
    %103 = vector.shape_cast %102 : vector<8xf32> to vector<8x1xf32>
    %cst_57 = arith.constant 1.000000e+02 : f32
    %104 = vector.broadcast %cst_57 : f32 to vector<8x1xf32>
    %105 = arith.divf %103, %104 : vector<8x1xf32>
    %106 = vector.broadcast %98 : vector<8x1xf32> to vector<8x100xf32>
    %107 = arith.subf %94, %106 : vector<8x100xf32>
    %c0_58 = arith.constant 0 : index
    %c0_59 = arith.constant 0 : index
    %108 = vector.load %arg8[%c0_58, %c0_59] : memref<8x1xf32, #tpu.memory_space<vmem>>, vector<8x1xf32>
    %cst_60 = arith.constant 9.99999974E-6 : f32
    %109 = vector.broadcast %cst_60 : f32 to vector<8x1xf32>
    %110 = arith.addf %105, %109 : vector<8x1xf32>
    %111 = math.sqrt %110 : vector<8x1xf32>
    %112 = arith.divf %108, %111 : vector<8x1xf32>
    %113 = vector.broadcast %112 : vector<8x1xf32> to vector<8x100xf32>
    %114 = arith.mulf %107, %113 : vector<8x100xf32>
    %c0_61 = arith.constant 0 : index
    %c0_62 = arith.constant 0 : index
    %115 = vector.load %arg9[%c0_61, %c0_62] : memref<8x1xf32, #tpu.memory_space<vmem>>, vector<8x1xf32>
    %116 = vector.broadcast %115 : vector<8x1xf32> to vector<8x100xf32>
    %117 = arith.addf %114, %116 : vector<8x100xf32>
    %118 = tpu.iota {dimensions = array<i32: 0>} : vector<8x8xi32>
    %119 = tpu.iota {dimensions = array<i32: 1>} : vector<8x8xi32>
    %120 = arith.cmpi eq, %118, %119 : vector<8x8xi32>
    %121 = arith.extui %120 : vector<8x8xi1> to vector<8x8xi32>
    %122 = arith.sitofp %121 : vector<8x8xi32> to vector<8x8xf32>
    %123 = vector.extract_strided_slice %117 {offsets = [0, 0], sizes = [8, 10], strides = [1, 1]} : vector<8x100xf32> to vector<8x10xf32>
    %cst_63 = arith.constant dense<0.000000e+00> : vector<8xf32>
    %124 = vector.multi_reduction <add>, %123, %cst_63 [1] : vector<8x10xf32> to vector<8xf32>
    %125 = vector.shape_cast %124 : vector<8xf32> to vector<8x1xf32>
    %cst_64 = arith.constant 1.000000e+01 : f32
    %126 = vector.broadcast %cst_64 : f32 to vector<8x1xf32>
    %127 = arith.divf %125, %126 : vector<8x1xf32>
    %128 = vector.broadcast %127 : vector<8x1xf32> to vector<8x10xf32>
    %129 = arith.subf %123, %128 : vector<8x10xf32>
    %cst_65 = arith.constant dense<0.000000e+00> : vector<8x8xf32>
    %130 = tpu.matmul %129, %129, %cst_65 {dimension_numbers = #tpu.dot_dimension_numbers<[1], [1], [0], [0], [0, 0, 1, 0], [], []>} : vector<8x10xf32>, vector<8x10xf32>, vector<8x8xf32> -> vector<8x8xf32>
    %cst_66 = arith.constant 9.000000e+00 : f32
    %131 = vector.broadcast %cst_66 : f32 to vector<8x8xf32>
    %132 = arith.divf %130, %131 : vector<8x8xf32>
    %133 = arith.mulf %132, %122 : vector<8x8xf32>
    %134 = vector.shape_cast %133 : vector<8x8xf32> to vector<1x8x8xf32>
    %cst_67 = arith.constant dense<0.000000e+00> : vector<1xf32>
    %135 = vector.multi_reduction <add>, %134, %cst_67 [1, 2] : vector<1x8x8xf32> to vector<1xf32>
    %136 = vector.shape_cast %135 : vector<1xf32> to vector<1x1x1xf32>
    %137 = vector.extract %136[0, 0, 0] : f32 from vector<1x1x1xf32>
    %138 = vector.broadcast %137 : f32 to vector<1x1xf32>
    %139 = vector.broadcast %138 : vector<1x1xf32> to vector<8x8xf32>
    %140 = arith.divf %132, %139 : vector<8x8xf32>
    %cst_68 = arith.constant 9.99999974E-6 : f32
    %141 = vector.broadcast %cst_68 : f32 to vector<8x8xf32>
    %142 = arith.mulf %141, %122 : vector<8x8xf32>
    %143 = arith.addf %140, %142 : vector<8x8xf32>
    %c0_69 = arith.constant 0 : index
    %c0_70 = arith.constant 0 : index
    %c0_71 = arith.constant 0 : index
    %144 = vector.load %arg10[%c0_69, %c0_70, %c0_71] : memref<10x8x8xf32, #tpu.memory_space<vmem>>, vector<1x8x8xf32>
    %145 = vector.shape_cast %144 : vector<1x8x8xf32> to vector<8x8xf32>
    %146 = vector.shape_cast %143 : vector<8x8xf32> to vector<1x8x8xf32>
    tpu.vector_store %arg10[%c0_69, %c0_70, %c0_71], %146 {strides = array<i32>} : memref<10x8x8xf32, #tpu.memory_space<vmem>>, vector<1x8x8xf32>,
    %147 = vector.extract_strided_slice %117 {offsets = [0, 10], sizes = [8, 10], strides = [1, 1]} : vector<8x100xf32> to vector<8x10xf32>
    %cst_72 = arith.constant dense<0.000000e+00> : vector<8xf32>
    %148 = vector.multi_reduction <add>, %147, %cst_72 [1] : vector<8x10xf32> to vector<8xf32>
    %149 = vector.shape_cast %148 : vector<8xf32> to vector<8x1xf32>
    %cst_73 = arith.constant 1.000000e+01 : f32
    %150 = vector.broadcast %cst_73 : f32 to vector<8x1xf32>
    %151 = arith.divf %149, %150 : vector<8x1xf32>
    %152 = vector.broadcast %151 : vector<8x1xf32> to vector<8x10xf32>
    %153 = arith.subf %147, %152 : vector<8x10xf32>
    %cst_74 = arith.constant dense<0.000000e+00> : vector<8x8xf32>
    %154 = tpu.matmul %153, %153, %cst_74 {dimension_numbers = #tpu.dot_dimension_numbers<[1], [1], [0], [0], [0, 0, 1, 0], [], []>} : vector<8x10xf32>, vector<8x10xf32>, vector<8x8xf32> -> vector<8x8xf32>
    %cst_75 = arith.constant 9.000000e+00 : f32
    %155 = vector.broadcast %cst_75 : f32 to vector<8x8xf32>
    %156 = arith.divf %154, %155 : vector<8x8xf32>
    %157 = arith.mulf %156, %122 : vector<8x8xf32>
    %158 = vector.shape_cast %157 : vector<8x8xf32> to vector<1x8x8xf32>
    %cst_76 = arith.constant dense<0.000000e+00> : vector<1xf32>
    %159 = vector.multi_reduction <add>, %158, %cst_76 [1, 2] : vector<1x8x8xf32> to vector<1xf32>
    %160 = vector.shape_cast %159 : vector<1xf32> to vector<1x1x1xf32>
    %161 = vector.extract %160[0, 0, 0] : f32 from vector<1x1x1xf32>
    %162 = vector.broadcast %161 : f32 to vector<1x1xf32>
    %163 = vector.broadcast %162 : vector<1x1xf32> to vector<8x8xf32>
    %164 = arith.divf %156, %163 : vector<8x8xf32>
    %cst_77 = arith.constant 9.99999974E-6 : f32
    %165 = vector.broadcast %cst_77 : f32 to vector<8x8xf32>
    %166 = arith.mulf %165, %122 : vector<8x8xf32>
    %167 = arith.addf %164, %166 : vector<8x8xf32>
    %c1_78 = arith.constant 1 : index
    %c0_79 = arith.constant 0 : index
    %c0_80 = arith.constant 0 : index
    %168 = vector.load %arg10[%c1_78, %c0_79, %c0_80] : memref<10x8x8xf32, #tpu.memory_space<vmem>>, vector<1x8x8xf32>
    %169 = vector.shape_cast %168 : vector<1x8x8xf32> to vector<8x8xf32>
    %170 = vector.shape_cast %167 : vector<8x8xf32> to vector<1x8x8xf32>
    tpu.vector_store %arg10[%c1_78, %c0_79, %c0_80], %170 {strides = array<i32>} : memref<10x8x8xf32, #tpu.memory_space<vmem>>, vector<1x8x8xf32>,
    %171 = vector.extract_strided_slice %117 {offsets = [0, 20], sizes = [8, 10], strides = [1, 1]} : vector<8x100xf32> to vector<8x10xf32>
    %cst_81 = arith.constant dense<0.000000e+00> : vector<8xf32>
    %172 = vector.multi_reduction <add>, %171, %cst_81 [1] : vector<8x10xf32> to vector<8xf32>
    %173 = vector.shape_cast %172 : vector<8xf32> to vector<8x1xf32>
    %cst_82 = arith.constant 1.000000e+01 : f32
    %174 = vector.broadcast %cst_82 : f32 to vector<8x1xf32>
    %175 = arith.divf %173, %174 : vector<8x1xf32>
    %176 = vector.broadcast %175 : vector<8x1xf32> to vector<8x10xf32>
    %177 = arith.subf %171, %176 : vector<8x10xf32>
    %cst_83 = arith.constant dense<0.000000e+00> : vector<8x8xf32>
    %178 = tpu.matmul %177, %177, %cst_83 {dimension_numbers = #tpu.dot_dimension_numbers<[1], [1], [0], [0], [0, 0, 1, 0], [], []>} : vector<8x10xf32>, vector<8x10xf32>, vector<8x8xf32> -> vector<8x8xf32>
    %cst_84 = arith.constant 9.000000e+00 : f32
    %179 = vector.broadcast %cst_84 : f32 to vector<8x8xf32>
    %180 = arith.divf %178, %179 : vector<8x8xf32>
    %181 = arith.mulf %180, %122 : vector<8x8xf32>
    %182 = vector.shape_cast %181 : vector<8x8xf32> to vector<1x8x8xf32>
    %cst_85 = arith.constant dense<0.000000e+00> : vector<1xf32>
    %183 = vector.multi_reduction <add>, %182, %cst_85 [1, 2] : vector<1x8x8xf32> to vector<1xf32>
    %184 = vector.shape_cast %183 : vector<1xf32> to vector<1x1x1xf32>
    %185 = vector.extract %184[0, 0, 0] : f32 from vector<1x1x1xf32>
    %186 = vector.broadcast %185 : f32 to vector<1x1xf32>
    %187 = vector.broadcast %186 : vector<1x1xf32> to vector<8x8xf32>
    %188 = arith.divf %180, %187 : vector<8x8xf32>
    %cst_86 = arith.constant 9.99999974E-6 : f32
    %189 = vector.broadcast %cst_86 : f32 to vector<8x8xf32>
    %190 = arith.mulf %189, %122 : vector<8x8xf32>
    %191 = arith.addf %188, %190 : vector<8x8xf32>
    %c2_87 = arith.constant 2 : index
    %c0_88 = arith.constant 0 : index
    %c0_89 = arith.constant 0 : index
    %192 = vector.load %arg10[%c2_87, %c0_88, %c0_89] : memref<10x8x8xf32, #tpu.memory_space<vmem>>, vector<1x8x8xf32>
    %193 = vector.shape_cast %192 : vector<1x8x8xf32> to vector<8x8xf32>
    %194 = vector.shape_cast %191 : vector<8x8xf32> to vector<1x8x8xf32>
    tpu.vector_store %arg10[%c2_87, %c0_88, %c0_89], %194 {strides = array<i32>} : memref<10x8x8xf32, #tpu.memory_space<vmem>>, vector<1x8x8xf32>,
    %195 = vector.extract_strided_slice %117 {offsets = [0, 30], sizes = [8, 10], strides = [1, 1]} : vector<8x100xf32> to vector<8x10xf32>
    %cst_90 = arith.constant dense<0.000000e+00> : vector<8xf32>
    %196 = vector.multi_reduction <add>, %195, %cst_90 [1] : vector<8x10xf32> to vector<8xf32>
    %197 = vector.shape_cast %196 : vector<8xf32> to vector<8x1xf32>
    %cst_91 = arith.constant 1.000000e+01 : f32
    %198 = vector.broadcast %cst_91 : f32 to vector<8x1xf32>
    %199 = arith.divf %197, %198 : vector<8x1xf32>
    %200 = vector.broadcast %199 : vector<8x1xf32> to vector<8x10xf32>
    %201 = arith.subf %195, %200 : vector<8x10xf32>
    %cst_92 = arith.constant dense<0.000000e+00> : vector<8x8xf32>
    %202 = tpu.matmul %201, %201, %cst_92 {dimension_numbers = #tpu.dot_dimension_numbers<[1], [1], [0], [0], [0, 0, 1, 0], [], []>} : vector<8x10xf32>, vector<8x10xf32>, vector<8x8xf32> -> vector<8x8xf32>
    %cst_93 = arith.constant 9.000000e+00 : f32
    %203 = vector.broadcast %cst_93 : f32 to vector<8x8xf32>
    %204 = arith.divf %202, %203 : vector<8x8xf32>
    %205 = arith.mulf %204, %122 : vector<8x8xf32>
    %206 = vector.shape_cast %205 : vector<8x8xf32> to vector<1x8x8xf32>
    %cst_94 = arith.constant dense<0.000000e+00> : vector<1xf32>
    %207 = vector.multi_reduction <add>, %206, %cst_94 [1, 2] : vector<1x8x8xf32> to vector<1xf32>
    %208 = vector.shape_cast %207 : vector<1xf32> to vector<1x1x1xf32>
    %209 = vector.extract %208[0, 0, 0] : f32 from vector<1x1x1xf32>
    %210 = vector.broadcast %209 : f32 to vector<1x1xf32>
    %211 = vector.broadcast %210 : vector<1x1xf32> to vector<8x8xf32>
    %212 = arith.divf %204, %211 : vector<8x8xf32>
    %cst_95 = arith.constant 9.99999974E-6 : f32
    %213 = vector.broadcast %cst_95 : f32 to vector<8x8xf32>
    %214 = arith.mulf %213, %122 : vector<8x8xf32>
    %215 = arith.addf %212, %214 : vector<8x8xf32>
    %c3_96 = arith.constant 3 : index
    %c0_97 = arith.constant 0 : index
    %c0_98 = arith.constant 0 : index
    %216 = vector.load %arg10[%c3_96, %c0_97, %c0_98] : memref<10x8x8xf32, #tpu.memory_space<vmem>>, vector<1x8x8xf32>
    %217 = vector.shape_cast %216 : vector<1x8x8xf32> to vector<8x8xf32>
    %218 = vector.shape_cast %215 : vector<8x8xf32> to vector<1x8x8xf32>
    tpu.vector_store %arg10[%c3_96, %c0_97, %c0_98], %218 {strides = array<i32>} : memref<10x8x8xf32, #tpu.memory_space<vmem>>, vector<1x8x8xf32>,
    %219 = vector.extract_strided_slice %117 {offsets = [0, 40], sizes = [8, 10], strides = [1, 1]} : vector<8x100xf32> to vector<8x10xf32>
    %cst_99 = arith.constant dense<0.000000e+00> : vector<8xf32>
    %220 = vector.multi_reduction <add>, %219, %cst_99 [1] : vector<8x10xf32> to vector<8xf32>
    %221 = vector.shape_cast %220 : vector<8xf32> to vector<8x1xf32>
    %cst_100 = arith.constant 1.000000e+01 : f32
    %222 = vector.broadcast %cst_100 : f32 to vector<8x1xf32>
    %223 = arith.divf %221, %222 : vector<8x1xf32>
    %224 = vector.broadcast %223 : vector<8x1xf32> to vector<8x10xf32>
    %225 = arith.subf %219, %224 : vector<8x10xf32>
    %cst_101 = arith.constant dense<0.000000e+00> : vector<8x8xf32>
    %226 = tpu.matmul %225, %225, %cst_101 {dimension_numbers = #tpu.dot_dimension_numbers<[1], [1], [0], [0], [0, 0, 1, 0], [], []>} : vector<8x10xf32>, vector<8x10xf32>, vector<8x8xf32> -> vector<8x8xf32>
    %cst_102 = arith.constant 9.000000e+00 : f32
    %227 = vector.broadcast %cst_102 : f32 to vector<8x8xf32>
    %228 = arith.divf %226, %227 : vector<8x8xf32>
    %229 = arith.mulf %228, %122 : vector<8x8xf32>
    %230 = vector.shape_cast %229 : vector<8x8xf32> to vector<1x8x8xf32>
    %cst_103 = arith.constant dense<0.000000e+00> : vector<1xf32>
    %231 = vector.multi_reduction <add>, %230, %cst_103 [1, 2] : vector<1x8x8xf32> to vector<1xf32>
    %232 = vector.shape_cast %231 : vector<1xf32> to vector<1x1x1xf32>
    %233 = vector.extract %232[0, 0, 0] : f32 from vector<1x1x1xf32>
    %234 = vector.broadcast %233 : f32 to vector<1x1xf32>
    %235 = vector.broadcast %234 : vector<1x1xf32> to vector<8x8xf32>
    %236 = arith.divf %228, %235 : vector<8x8xf32>
    %cst_104 = arith.constant 9.99999974E-6 : f32
    %237 = vector.broadcast %cst_104 : f32 to vector<8x8xf32>
    %238 = arith.mulf %237, %122 : vector<8x8xf32>
    %239 = arith.addf %236, %238 : vector<8x8xf32>
    %c4_105 = arith.constant 4 : index
    %c0_106 = arith.constant 0 : index
    %c0_107 = arith.constant 0 : index
    %240 = vector.load %arg10[%c4_105, %c0_106, %c0_107] : memref<10x8x8xf32, #tpu.memory_space<vmem>>, vector<1x8x8xf32>
    %241 = vector.shape_cast %240 : vector<1x8x8xf32> to vector<8x8xf32>
    %242 = vector.shape_cast %239 : vector<8x8xf32> to vector<1x8x8xf32>
    tpu.vector_store %arg10[%c4_105, %c0_106, %c0_107], %242 {strides = array<i32>} : memref<10x8x8xf32, #tpu.memory_space<vmem>>, vector<1x8x8xf32>,
    %243 = vector.extract_strided_slice %117 {offsets = [0, 50], sizes = [8, 10], strides = [1, 1]} : vector<8x100xf32> to vector<8x10xf32>
    %cst_108 = arith.constant dense<0.000000e+00> : vector<8xf32>
    %244 = vector.multi_reduction <add>, %243, %cst_108 [1] : vector<8x10xf32> to vector<8xf32>
    %245 = vector.shape_cast %244 : vector<8xf32> to vector<8x1xf32>
    %cst_109 = arith.constant 1.000000e+01 : f32
    %246 = vector.broadcast %cst_109 : f32 to vector<8x1xf32>
    %247 = arith.divf %245, %246 : vector<8x1xf32>
    %248 = vector.broadcast %247 : vector<8x1xf32> to vector<8x10xf32>
    %249 = arith.subf %243, %248 : vector<8x10xf32>
    %cst_110 = arith.constant dense<0.000000e+00> : vector<8x8xf32>
    %250 = tpu.matmul %249, %249, %cst_110 {dimension_numbers = #tpu.dot_dimension_numbers<[1], [1], [0], [0], [0, 0, 1, 0], [], []>} : vector<8x10xf32>, vector<8x10xf32>, vector<8x8xf32> -> vector<8x8xf32>
    %cst_111 = arith.constant 9.000000e+00 : f32
    %251 = vector.broadcast %cst_111 : f32 to vector<8x8xf32>
    %252 = arith.divf %250, %251 : vector<8x8xf32>
    %253 = arith.mulf %252, %122 : vector<8x8xf32>
    %254 = vector.shape_cast %253 : vector<8x8xf32> to vector<1x8x8xf32>
    %cst_112 = arith.constant dense<0.000000e+00> : vector<1xf32>
    %255 = vector.multi_reduction <add>, %254, %cst_112 [1, 2] : vector<1x8x8xf32> to vector<1xf32>
    %256 = vector.shape_cast %255 : vector<1xf32> to vector<1x1x1xf32>
    %257 = vector.extract %256[0, 0, 0] : f32 from vector<1x1x1xf32>
    %258 = vector.broadcast %257 : f32 to vector<1x1xf32>
    %259 = vector.broadcast %258 : vector<1x1xf32> to vector<8x8xf32>
    %260 = arith.divf %252, %259 : vector<8x8xf32>
    %cst_113 = arith.constant 9.99999974E-6 : f32
    %261 = vector.broadcast %cst_113 : f32 to vector<8x8xf32>
    %262 = arith.mulf %261, %122 : vector<8x8xf32>
    %263 = arith.addf %260, %262 : vector<8x8xf32>
    %c5 = arith.constant 5 : index
    %c0_114 = arith.constant 0 : index
    %c0_115 = arith.constant 0 : index
    %264 = vector.load %arg10[%c5, %c0_114, %c0_115] : memref<10x8x8xf32, #tpu.memory_space<vmem>>, vector<1x8x8xf32>
    %265 = vector.shape_cast %264 : vector<1x8x8xf32> to vector<8x8xf32>
    %266 = vector.shape_cast %263 : vector<8x8xf32> to vector<1x8x8xf32>
    tpu.vector_store %arg10[%c5, %c0_114, %c0_115], %266 {strides = array<i32>} : memref<10x8x8xf32, #tpu.memory_space<vmem>>, vector<1x8x8xf32>,
    %267 = vector.extract_strided_slice %117 {offsets = [0, 60], sizes = [8, 10], strides = [1, 1]} : vector<8x100xf32> to vector<8x10xf32>
    %cst_116 = arith.constant dense<0.000000e+00> : vector<8xf32>
    %268 = vector.multi_reduction <add>, %267, %cst_116 [1] : vector<8x10xf32> to vector<8xf32>
    %269 = vector.shape_cast %268 : vector<8xf32> to vector<8x1xf32>
    %cst_117 = arith.constant 1.000000e+01 : f32
    %270 = vector.broadcast %cst_117 : f32 to vector<8x1xf32>
    %271 = arith.divf %269, %270 : vector<8x1xf32>
    %272 = vector.broadcast %271 : vector<8x1xf32> to vector<8x10xf32>
    %273 = arith.subf %267, %272 : vector<8x10xf32>
    %cst_118 = arith.constant dense<0.000000e+00> : vector<8x8xf32>
    %274 = tpu.matmul %273, %273, %cst_118 {dimension_numbers = #tpu.dot_dimension_numbers<[1], [1], [0], [0], [0, 0, 1, 0], [], []>} : vector<8x10xf32>, vector<8x10xf32>, vector<8x8xf32> -> vector<8x8xf32>
    %cst_119 = arith.constant 9.000000e+00 : f32
    %275 = vector.broadcast %cst_119 : f32 to vector<8x8xf32>
    %276 = arith.divf %274, %275 : vector<8x8xf32>
    %277 = arith.mulf %276, %122 : vector<8x8xf32>
    %278 = vector.shape_cast %277 : vector<8x8xf32> to vector<1x8x8xf32>
    %cst_120 = arith.constant dense<0.000000e+00> : vector<1xf32>
    %279 = vector.multi_reduction <add>, %278, %cst_120 [1, 2] : vector<1x8x8xf32> to vector<1xf32>
    %280 = vector.shape_cast %279 : vector<1xf32> to vector<1x1x1xf32>
    %281 = vector.extract %280[0, 0, 0] : f32 from vector<1x1x1xf32>
    %282 = vector.broadcast %281 : f32 to vector<1x1xf32>
    %283 = vector.broadcast %282 : vector<1x1xf32> to vector<8x8xf32>
    %284 = arith.divf %276, %283 : vector<8x8xf32>
    %cst_121 = arith.constant 9.99999974E-6 : f32
    %285 = vector.broadcast %cst_121 : f32 to vector<8x8xf32>
    %286 = arith.mulf %285, %122 : vector<8x8xf32>
    %287 = arith.addf %284, %286 : vector<8x8xf32>
    %c6 = arith.constant 6 : index
    %c0_122 = arith.constant 0 : index
    %c0_123 = arith.constant 0 : index
    %288 = vector.load %arg10[%c6, %c0_122, %c0_123] : memref<10x8x8xf32, #tpu.memory_space<vmem>>, vector<1x8x8xf32>
    %289 = vector.shape_cast %288 : vector<1x8x8xf32> to vector<8x8xf32>
    %290 = vector.shape_cast %287 : vector<8x8xf32> to vector<1x8x8xf32>
    tpu.vector_store %arg10[%c6, %c0_122, %c0_123], %290 {strides = array<i32>} : memref<10x8x8xf32, #tpu.memory_space<vmem>>, vector<1x8x8xf32>,
    %291 = vector.extract_strided_slice %117 {offsets = [0, 70], sizes = [8, 10], strides = [1, 1]} : vector<8x100xf32> to vector<8x10xf32>
    %cst_124 = arith.constant dense<0.000000e+00> : vector<8xf32>
    %292 = vector.multi_reduction <add>, %291, %cst_124 [1] : vector<8x10xf32> to vector<8xf32>
    %293 = vector.shape_cast %292 : vector<8xf32> to vector<8x1xf32>
    %cst_125 = arith.constant 1.000000e+01 : f32
    %294 = vector.broadcast %cst_125 : f32 to vector<8x1xf32>
    %295 = arith.divf %293, %294 : vector<8x1xf32>
    %296 = vector.broadcast %295 : vector<8x1xf32> to vector<8x10xf32>
    %297 = arith.subf %291, %296 : vector<8x10xf32>
    %cst_126 = arith.constant dense<0.000000e+00> : vector<8x8xf32>
    %298 = tpu.matmul %297, %297, %cst_126 {dimension_numbers = #tpu.dot_dimension_numbers<[1], [1], [0], [0], [0, 0, 1, 0], [], []>} : vector<8x10xf32>, vector<8x10xf32>, vector<8x8xf32> -> vector<8x8xf32>
    %cst_127 = arith.constant 9.000000e+00 : f32
    %299 = vector.broadcast %cst_127 : f32 to vector<8x8xf32>
    %300 = arith.divf %298, %299 : vector<8x8xf32>
    %301 = arith.mulf %300, %122 : vector<8x8xf32>
    %302 = vector.shape_cast %301 : vector<8x8xf32> to vector<1x8x8xf32>
    %cst_128 = arith.constant dense<0.000000e+00> : vector<1xf32>
    %303 = vector.multi_reduction <add>, %302, %cst_128 [1, 2] : vector<1x8x8xf32> to vector<1xf32>
    %304 = vector.shape_cast %303 : vector<1xf32> to vector<1x1x1xf32>
    %305 = vector.extract %304[0, 0, 0] : f32 from vector<1x1x1xf32>
    %306 = vector.broadcast %305 : f32 to vector<1x1xf32>
    %307 = vector.broadcast %306 : vector<1x1xf32> to vector<8x8xf32>
    %308 = arith.divf %300, %307 : vector<8x8xf32>
    %cst_129 = arith.constant 9.99999974E-6 : f32
    %309 = vector.broadcast %cst_129 : f32 to vector<8x8xf32>
    %310 = arith.mulf %309, %122 : vector<8x8xf32>
    %311 = arith.addf %308, %310 : vector<8x8xf32>
    %c7 = arith.constant 7 : index
    %c0_130 = arith.constant 0 : index
    %c0_131 = arith.constant 0 : index
    %312 = vector.load %arg10[%c7, %c0_130, %c0_131] : memref<10x8x8xf32, #tpu.memory_space<vmem>>, vector<1x8x8xf32>
    %313 = vector.shape_cast %312 : vector<1x8x8xf32> to vector<8x8xf32>
    %314 = vector.shape_cast %311 : vector<8x8xf32> to vector<1x8x8xf32>
    tpu.vector_store %arg10[%c7, %c0_130, %c0_131], %314 {strides = array<i32>} : memref<10x8x8xf32, #tpu.memory_space<vmem>>, vector<1x8x8xf32>,
    %315 = vector.extract_strided_slice %117 {offsets = [0, 80], sizes = [8, 10], strides = [1, 1]} : vector<8x100xf32> to vector<8x10xf32>
    %cst_132 = arith.constant dense<0.000000e+00> : vector<8xf32>
    %316 = vector.multi_reduction <add>, %315, %cst_132 [1] : vector<8x10xf32> to vector<8xf32>
    %317 = vector.shape_cast %316 : vector<8xf32> to vector<8x1xf32>
    %cst_133 = arith.constant 1.000000e+01 : f32
    %318 = vector.broadcast %cst_133 : f32 to vector<8x1xf32>
    %319 = arith.divf %317, %318 : vector<8x1xf32>
    %320 = vector.broadcast %319 : vector<8x1xf32> to vector<8x10xf32>
    %321 = arith.subf %315, %320 : vector<8x10xf32>
    %cst_134 = arith.constant dense<0.000000e+00> : vector<8x8xf32>
    %322 = tpu.matmul %321, %321, %cst_134 {dimension_numbers = #tpu.dot_dimension_numbers<[1], [1], [0], [0], [0, 0, 1, 0], [], []>} : vector<8x10xf32>, vector<8x10xf32>, vector<8x8xf32> -> vector<8x8xf32>
    %cst_135 = arith.constant 9.000000e+00 : f32
    %323 = vector.broadcast %cst_135 : f32 to vector<8x8xf32>
    %324 = arith.divf %322, %323 : vector<8x8xf32>
    %325 = arith.mulf %324, %122 : vector<8x8xf32>
    %326 = vector.shape_cast %325 : vector<8x8xf32> to vector<1x8x8xf32>
    %cst_136 = arith.constant dense<0.000000e+00> : vector<1xf32>
    %327 = vector.multi_reduction <add>, %326, %cst_136 [1, 2] : vector<1x8x8xf32> to vector<1xf32>
    %328 = vector.shape_cast %327 : vector<1xf32> to vector<1x1x1xf32>
    %329 = vector.extract %328[0, 0, 0] : f32 from vector<1x1x1xf32>
    %330 = vector.broadcast %329 : f32 to vector<1x1xf32>
    %331 = vector.broadcast %330 : vector<1x1xf32> to vector<8x8xf32>
    %332 = arith.divf %324, %331 : vector<8x8xf32>
    %cst_137 = arith.constant 9.99999974E-6 : f32
    %333 = vector.broadcast %cst_137 : f32 to vector<8x8xf32>
    %334 = arith.mulf %333, %122 : vector<8x8xf32>
    %335 = arith.addf %332, %334 : vector<8x8xf32>
    %c8 = arith.constant 8 : index
    %c0_138 = arith.constant 0 : index
    %c0_139 = arith.constant 0 : index
    %336 = vector.load %arg10[%c8, %c0_138, %c0_139] : memref<10x8x8xf32, #tpu.memory_space<vmem>>, vector<1x8x8xf32>
    %337 = vector.shape_cast %336 : vector<1x8x8xf32> to vector<8x8xf32>
    %338 = vector.shape_cast %335 : vector<8x8xf32> to vector<1x8x8xf32>
    tpu.vector_store %arg10[%c8, %c0_138, %c0_139], %338 {strides = array<i32>} : memref<10x8x8xf32, #tpu.memory_space<vmem>>, vector<1x8x8xf32>,
    %339 = vector.extract_strided_slice %117 {offsets = [0, 90], sizes = [8, 10], strides = [1, 1]} : vector<8x100xf32> to vector<8x10xf32>
    %cst_140 = arith.constant dense<0.000000e+00> : vector<8xf32>
    %340 = vector.multi_reduction <add>, %339, %cst_140 [1] : vector<8x10xf32> to vector<8xf32>
    %341 = vector.shape_cast %340 : vector<8xf32> to vector<8x1xf32>
    %cst_141 = arith.constant 1.000000e+01 : f32
    %342 = vector.broadcast %cst_141 : f32 to vector<8x1xf32>
    %343 = arith.divf %341, %342 : vector<8x1xf32>
    %344 = vector.broadcast %343 : vector<8x1xf32> to vector<8x10xf32>
    %345 = arith.subf %339, %344 : vector<8x10xf32>
    %cst_142 = arith.constant dense<0.000000e+00> : vector<8x8xf32>
    %346 = tpu.matmul %345, %345, %cst_142 {dimension_numbers = #tpu.dot_dimension_numbers<[1], [1], [0], [0], [0, 0, 1, 0], [], []>} : vector<8x10xf32>, vector<8x10xf32>, vector<8x8xf32> -> vector<8x8xf32>
    %cst_143 = arith.constant 9.000000e+00 : f32
    %347 = vector.broadcast %cst_143 : f32 to vector<8x8xf32>
    %348 = arith.divf %346, %347 : vector<8x8xf32>
    %349 = arith.mulf %348, %122 : vector<8x8xf32>
    %350 = vector.shape_cast %349 : vector<8x8xf32> to vector<1x8x8xf32>
    %cst_144 = arith.constant dense<0.000000e+00> : vector<1xf32>
    %351 = vector.multi_reduction <add>, %350, %cst_144 [1, 2] : vector<1x8x8xf32> to vector<1xf32>
    %352 = vector.shape_cast %351 : vector<1xf32> to vector<1x1x1xf32>
    %353 = vector.extract %352[0, 0, 0] : f32 from vector<1x1x1xf32>
    %354 = vector.broadcast %353 : f32 to vector<1x1xf32>
    %355 = vector.broadcast %354 : vector<1x1xf32> to vector<8x8xf32>
    %356 = arith.divf %348, %355 : vector<8x8xf32>
    %cst_145 = arith.constant 9.99999974E-6 : f32
    %357 = vector.broadcast %cst_145 : f32 to vector<8x8xf32>
    %358 = arith.mulf %357, %122 : vector<8x8xf32>
    %359 = arith.addf %356, %358 : vector<8x8xf32>
    %c9 = arith.constant 9 : index
    %c0_146 = arith.constant 0 : index
    %c0_147 = arith.constant 0 : index
    %360 = vector.load %arg10[%c9, %c0_146, %c0_147] : memref<10x8x8xf32, #tpu.memory_space<vmem>>, vector<1x8x8xf32>
    %361 = vector.shape_cast %360 : vector<1x8x8xf32> to vector<8x8xf32>
    %362 = vector.shape_cast %359 : vector<8x8xf32> to vector<1x8x8xf32>
    tpu.vector_store %arg10[%c9, %c0_146, %c0_147], %362 {strides = array<i32>} : memref<10x8x8xf32, #tpu.memory_space<vmem>>, vector<1x8x8xf32>,
    return
  }
  func.func @transform_0(%arg0: i32) -> (i32, i32) {
    %c0_i32 = arith.constant 0 : i32
    %c0_i32_0 = arith.constant 0 : i32
    %c0_i32_1 = arith.constant 0 : i32
    return %c0_i32, %c0_i32_0 : i32, i32
  }
  func.func @transform_1(%arg0: i32) -> (i32, i32) {
    %c0_i32 = arith.constant 0 : i32
    %c0_i32_0 = arith.constant 0 : i32
    %c0_i32_1 = arith.constant 0 : i32
    return %c0_i32, %c0_i32_0 : i32, i32
  }
  func.func @transform_2(%arg0: i32) -> (i32, i32) {
    %c0_i32 = arith.constant 0 : i32
    %c0_i32_0 = arith.constant 0 : i32
    %c0_i32_1 = arith.constant 0 : i32
    return %c0_i32, %c0_i32_0 : i32, i32
  }
  func.func @transform_3(%arg0: i32) -> (i32, i32) {
    %c0_i32 = arith.constant 0 : i32
    %c0_i32_0 = arith.constant 0 : i32
    %c0_i32_1 = arith.constant 0 : i32
    return %c0_i32, %c0_i32_0 : i32, i32
  }
  func.func @transform_4(%arg0: i32) -> (i32, i32) {
    %c0_i32 = arith.constant 0 : i32
    %c0_i32_0 = arith.constant 0 : i32
    %c0_i32_1 = arith.constant 0 : i32
    return %c0_i32, %c0_i32_0 : i32, i32
  }
  func.func @transform_5(%arg0: i32) -> (i32, i32, i32) {
    %c0_i32 = arith.constant 0 : i32
    %c0_i32_0 = arith.constant 0 : i32
    %c0_i32_1 = arith.constant 0 : i32
    %c0_i32_2 = arith.constant 0 : i32
    return %c0_i32, %c0_i32_0, %c0_i32_1 : i32, i32, i32
  }
  func.func @transform_6(%arg0: i32) -> (i32, i32) {
    %c0_i32 = arith.constant 0 : i32
    %c0_i32_0 = arith.constant 0 : i32
    %c0_i32_1 = arith.constant 0 : i32
    return %c0_i32, %c0_i32_0 : i32, i32
  }
  func.func @transform_7(%arg0: i32) -> (i32, i32) {
    %c0_i32 = arith.constant 0 : i32
    %c0_i32_0 = arith.constant 0 : i32
    %c0_i32_1 = arith.constant 0 : i32
    return %c0_i32, %c0_i32_0 : i32, i32
  }
  func.func @transform_8(%arg0: i32) -> (i32, i32) {
    %c0_i32 = arith.constant 0 : i32
    %c0_i32_0 = arith.constant 0 : i32
    %c0_i32_1 = arith.constant 0 : i32
    return %c0_i32, %c0_i32_0 : i32, i32
  }
  func.func @transform_9(%arg0: i32) -> (i32, i32, i32) {
    %c0_i32 = arith.constant 0 : i32
    %c0_i32_0 = arith.constant 0 : i32
    %c0_i32_1 = arith.constant 0 : i32
    %c0_i32_2 = arith.constant 0 : i32
    return %c0_i32, %c0_i32_0, %c0_i32_1 : i32, i32, i32
  }
}

module attributes {stable_mosaic.version = 11 : i64} {
  func.func @_recon_kernel(%arg0: i32, %arg1: memref<15x4x4xf32, #tpu.memory_space<vmem>>, %arg2: memref<15x1x4xf32, #tpu.memory_space<vmem>>, %arg3: memref<15x4x4xf32, #tpu.memory_space<vmem>>) attributes {dimension_semantics = [#tpu.dimension_semantics<parallel>], iteration_bounds = array<i64: 2>, scalar_prefetch = 0 : i64, scratch_operands = 0 : i64, tpu.core_type = #tpu.core_type<tc>, window_params = [{transform_indices = @transform_0, window_bounds = array<i64: 15, 4, 4>}, {transform_indices = @transform_1, window_bounds = array<i64: 15, 1, 4>}, {transform_indices = @transform_2, window_bounds = array<i64: 15, 4, 4>}]} {
    %c0 = arith.constant 0 : index
    %c0_0 = arith.constant 0 : index
    %c0_1 = arith.constant 0 : index
    %0 = vector.load %arg1[%c0, %c0_0, %c0_1] : memref<15x4x4xf32, #tpu.memory_space<vmem>>, vector<15x4x4xf32>
    %c0_2 = arith.constant 0 : index
    %c0_3 = arith.constant 0 : index
    %c0_4 = arith.constant 0 : index
    %1 = vector.load %arg2[%c0_2, %c0_3, %c0_4] : memref<15x1x4xf32, #tpu.memory_space<vmem>>, vector<15x1x4xf32>
    %2 = vector.broadcast %1 : vector<15x1x4xf32> to vector<15x4x4xf32>
    %3 = arith.mulf %0, %2 : vector<15x4x4xf32>
    %c0_5 = arith.constant 0 : index
    %c0_6 = arith.constant 0 : index
    %c0_7 = arith.constant 0 : index
    %4 = vector.load %arg1[%c0_5, %c0_6, %c0_7] : memref<15x4x4xf32, #tpu.memory_space<vmem>>, vector<15x4x4xf32>
    "tpu.trace_start"() <{level = 10 : i32, message = "nik,njk->nij"}> : () -> ()
    %cst = arith.constant dense<0.000000e+00> : vector<15x4x4xf32>
    %5 = tpu.matmul %3, %4, %cst {dimension_numbers = #tpu.dot_dimension_numbers<[2], [2], [1], [1], [0, 0, 0, 1, 1, 1], [0], [0]>} : vector<15x4x4xf32>, vector<15x4x4xf32>, vector<15x4x4xf32> -> vector<15x4x4xf32>
    "tpu.trace_stop"() : () -> ()
    %c0_8 = arith.constant 0 : index
    %c0_9 = arith.constant 0 : index
    %c0_10 = arith.constant 0 : index
    %6 = vector.load %arg3[%c0_8, %c0_9, %c0_10] : memref<15x4x4xf32, #tpu.memory_space<vmem>>, vector<15x4x4xf32>
    tpu.vector_store %arg3[%c0_8, %c0_9, %c0_10], %5 {strides = array<i32>} : memref<15x4x4xf32, #tpu.memory_space<vmem>>, vector<15x4x4xf32>,
    return
  }
  func.func @transform_0(%arg0: i32) -> (i32, i32, i32) {
    %c0_i32 = arith.constant 0 : i32
    %c0_i32_0 = arith.constant 0 : i32
    %c0_i32_1 = arith.constant 0 : i32
    return %arg0, %c0_i32, %c0_i32_0 : i32, i32, i32
  }
  func.func @transform_1(%arg0: i32) -> (i32, i32, i32) {
    %c0_i32 = arith.constant 0 : i32
    %c0_i32_0 = arith.constant 0 : i32
    %c0_i32_1 = arith.constant 0 : i32
    return %arg0, %c0_i32, %c0_i32_0 : i32, i32, i32
  }
  func.func @transform_2(%arg0: i32) -> (i32, i32, i32) {
    %c0_i32 = arith.constant 0 : i32
    %c0_i32_0 = arith.constant 0 : i32
    %c0_i32_1 = arith.constant 0 : i32
    return %arg0, %c0_i32, %c0_i32_0 : i32, i32, i32
  }
}

module attributes {stable_mosaic.version = 11 : i64} {
  func.func @_attn_kernel(%arg0: i32, %arg1: memref<1x5x16xf32, #tpu.memory_space<vmem>>, %arg2: memref<1x5x16xf32, #tpu.memory_space<vmem>>, %arg3: memref<1x5x16xf32, #tpu.memory_space<vmem>>, %arg4: memref<1x5x16xf32, #tpu.memory_space<vmem>>) attributes {dimension_semantics = [#tpu.dimension_semantics<parallel>], iteration_bounds = array<i64: 2>, scalar_prefetch = 0 : i64, scratch_operands = 0 : i64, tpu.core_type = #tpu.core_type<tc>, window_params = [{transform_indices = @transform_0, window_bounds = array<i64: 1, 5, 16>}, {transform_indices = @transform_1, window_bounds = array<i64: 1, 5, 16>}, {transform_indices = @transform_2, window_bounds = array<i64: 1, 5, 16>}, {transform_indices = @transform_3, window_bounds = array<i64: 1, 5, 16>}]} {
    %c0 = arith.constant 0 : index
    %c0_0 = arith.constant 0 : index
    %c0_1 = arith.constant 0 : index
    %0 = vector.load %arg1[%c0, %c0_0, %c0_1] : memref<1x5x16xf32, #tpu.memory_space<vmem>>, vector<1x5x16xf32>
    %1 = vector.shape_cast %0 : vector<1x5x16xf32> to vector<5x16xf32>
    %c0_2 = arith.constant 0 : index
    %c0_3 = arith.constant 0 : index
    %c0_4 = arith.constant 0 : index
    %2 = vector.load %arg2[%c0_2, %c0_3, %c0_4] : memref<1x5x16xf32, #tpu.memory_space<vmem>>, vector<1x5x16xf32>
    %3 = vector.shape_cast %2 : vector<1x5x16xf32> to vector<5x16xf32>
    %c0_5 = arith.constant 0 : index
    %c0_6 = arith.constant 0 : index
    %c0_7 = arith.constant 0 : index
    %4 = vector.load %arg3[%c0_5, %c0_6, %c0_7] : memref<1x5x16xf32, #tpu.memory_space<vmem>>, vector<1x5x16xf32>
    %5 = vector.shape_cast %4 : vector<1x5x16xf32> to vector<5x16xf32>
    %6 = arith.mulf %1, %1 : vector<5x16xf32>
    %cst = arith.constant dense<0.000000e+00> : vector<5xf32>
    %7 = vector.multi_reduction <add>, %6, %cst [1] : vector<5x16xf32> to vector<5xf32>
    %8 = vector.shape_cast %7 : vector<5xf32> to vector<5x1xf32>
    %9 = arith.mulf %3, %3 : vector<5x16xf32>
    %cst_8 = arith.constant dense<0.000000e+00> : vector<5xf32>
    %10 = vector.multi_reduction <add>, %9, %cst_8 [1] : vector<5x16xf32> to vector<5xf32>
    %11 = vector.shape_cast %10 : vector<5xf32> to vector<5x1xf32>
    %cst_9 = arith.constant dense<0.000000e+00> : vector<5x5xf32>
    %12 = tpu.matmul %1, %3, %cst_9 {dimension_numbers = #tpu.dot_dimension_numbers<[1], [1], [0], [0], [0, 0, 1, 0], [], []>} : vector<5x16xf32>, vector<5x16xf32>, vector<5x5xf32> -> vector<5x5xf32>
    %13 = tpu.transpose %11, [1, 0] : vector<5x1xf32> -> vector<1x5xf32>
    %14 = vector.broadcast %8 : vector<5x1xf32> to vector<5x5xf32>
    %15 = vector.broadcast %13 : vector<1x5xf32> to vector<5x5xf32>
    %16 = arith.addf %14, %15 : vector<5x5xf32>
    %cst_10 = arith.constant 2.000000e+00 : f32
    %17 = vector.broadcast %cst_10 : f32 to vector<5x5xf32>
    %18 = arith.mulf %17, %12 : vector<5x5xf32>
    %19 = arith.subf %16, %18 : vector<5x5xf32>
    %cst_11 = arith.constant 0.000000e+00 : f32
    %20 = vector.broadcast %cst_11 : f32 to vector<5x5xf32>
    %21 = arith.maximumf %19, %20 : vector<5x5xf32>
    %cst_12 = arith.constant 1.000000e+00 : f32
    %22 = vector.broadcast %cst_12 : f32 to vector<5x5xf32>
    %23 = arith.addf %22, %21 : vector<5x5xf32>
    %24 = math.log %23 : vector<5x5xf32>
    %cst_13 = arith.constant 1.000000e+00 : f32
    %25 = vector.broadcast %cst_13 : f32 to vector<5x5xf32>
    %26 = arith.addf %25, %24 : vector<5x5xf32>
    %cst_14 = arith.constant 1.000000e+00 : f32
    %27 = vector.broadcast %cst_14 : f32 to vector<5x5xf32>
    %28 = arith.divf %27, %26 : vector<5x5xf32>
    %cst_15 = arith.constant dense<0xFF800000> : vector<5xf32>
    %29 = vector.multi_reduction <maximumf>, %28, %cst_15 [1] : vector<5x5xf32> to vector<5xf32>
    %30 = vector.shape_cast %29 : vector<5xf32> to vector<5x1xf32>
    %31 = vector.broadcast %30 : vector<5x1xf32> to vector<5x5xf32>
    %32 = arith.subf %28, %31 : vector<5x5xf32>
    %33 = math.exp %32 : vector<5x5xf32>
    %cst_16 = arith.constant dense<0.000000e+00> : vector<5xf32>
    %34 = vector.multi_reduction <add>, %33, %cst_16 [1] : vector<5x5xf32> to vector<5xf32>
    %35 = vector.shape_cast %34 : vector<5xf32> to vector<5x1xf32>
    %36 = vector.broadcast %35 : vector<5x1xf32> to vector<5x5xf32>
    %37 = arith.divf %33, %36 : vector<5x5xf32>
    %cst_17 = arith.constant dense<0.000000e+00> : vector<5x16xf32>
    %38 = tpu.matmul %37, %5, %cst_17 {dimension_numbers = #tpu.dot_dimension_numbers<[1], [0], [0], [1], [0, 0, 1, 1], [], []>} : vector<5x5xf32>, vector<5x16xf32>, vector<5x16xf32> -> vector<5x16xf32>
    %c0_18 = arith.constant 0 : index
    %c0_19 = arith.constant 0 : index
    %c0_20 = arith.constant 0 : index
    %39 = vector.load %arg4[%c0_18, %c0_19, %c0_20] : memref<1x5x16xf32, #tpu.memory_space<vmem>>, vector<1x5x16xf32>
    %40 = vector.shape_cast %39 : vector<1x5x16xf32> to vector<5x16xf32>
    %41 = vector.shape_cast %38 : vector<5x16xf32> to vector<1x5x16xf32>
    tpu.vector_store %arg4[%c0_18, %c0_19, %c0_20], %41 {strides = array<i32>} : memref<1x5x16xf32, #tpu.memory_space<vmem>>, vector<1x5x16xf32>,
    return
  }
  func.func @transform_0(%arg0: i32) -> (i32, i32, i32) {
    %c0_i32 = arith.constant 0 : i32
    %c0_i32_0 = arith.constant 0 : i32
    %c0_i32_1 = arith.constant 0 : i32
    return %arg0, %c0_i32, %c0_i32_0 : i32, i32, i32
  }
  func.func @transform_1(%arg0: i32) -> (i32, i32, i32) {
    %c0_i32 = arith.constant 0 : i32
    %c0_i32_0 = arith.constant 0 : i32
    %c0_i32_1 = arith.constant 0 : i32
    return %arg0, %c0_i32, %c0_i32_0 : i32, i32, i32
  }
  func.func @transform_2(%arg0: i32) -> (i32, i32, i32) {
    %c0_i32 = arith.constant 0 : i32
    %c0_i32_0 = arith.constant 0 : i32
    %c0_i32_1 = arith.constant 0 : i32
    return %arg0, %c0_i32, %c0_i32_0 : i32, i32, i32
  }
  func.func @transform_3(%arg0: i32) -> (i32, i32, i32) {
    %c0_i32 = arith.constant 0 : i32
    %c0_i32_0 = arith.constant 0 : i32
    %c0_i32_1 = arith.constant 0 : i32
    return %arg0, %c0_i32, %c0_i32_0 : i32, i32, i32
  }
}

module attributes {stable_mosaic.version = 11 : i64} {
  func.func @_recon_kernel(%arg0: i32, %arg1: memref<5x4x4xf32, #tpu.memory_space<vmem>>, %arg2: memref<5x1x4xf32, #tpu.memory_space<vmem>>, %arg3: memref<5x4x4xf32, #tpu.memory_space<vmem>>) attributes {dimension_semantics = [#tpu.dimension_semantics<parallel>], iteration_bounds = array<i64: 2>, scalar_prefetch = 0 : i64, scratch_operands = 0 : i64, tpu.core_type = #tpu.core_type<tc>, window_params = [{transform_indices = @transform_0, window_bounds = array<i64: 5, 4, 4>}, {transform_indices = @transform_1, window_bounds = array<i64: 5, 1, 4>}, {transform_indices = @transform_2, window_bounds = array<i64: 5, 4, 4>}]} {
    %c0 = arith.constant 0 : index
    %c0_0 = arith.constant 0 : index
    %c0_1 = arith.constant 0 : index
    %0 = vector.load %arg1[%c0, %c0_0, %c0_1] : memref<5x4x4xf32, #tpu.memory_space<vmem>>, vector<5x4x4xf32>
    %c0_2 = arith.constant 0 : index
    %c0_3 = arith.constant 0 : index
    %c0_4 = arith.constant 0 : index
    %1 = vector.load %arg2[%c0_2, %c0_3, %c0_4] : memref<5x1x4xf32, #tpu.memory_space<vmem>>, vector<5x1x4xf32>
    %2 = vector.broadcast %1 : vector<5x1x4xf32> to vector<5x4x4xf32>
    %3 = arith.mulf %0, %2 : vector<5x4x4xf32>
    %c0_5 = arith.constant 0 : index
    %c0_6 = arith.constant 0 : index
    %c0_7 = arith.constant 0 : index
    %4 = vector.load %arg1[%c0_5, %c0_6, %c0_7] : memref<5x4x4xf32, #tpu.memory_space<vmem>>, vector<5x4x4xf32>
    "tpu.trace_start"() <{level = 10 : i32, message = "nik,njk->nij"}> : () -> ()
    %cst = arith.constant dense<0.000000e+00> : vector<5x4x4xf32>
    %5 = tpu.matmul %3, %4, %cst {dimension_numbers = #tpu.dot_dimension_numbers<[2], [2], [1], [1], [0, 0, 0, 1, 1, 1], [0], [0]>} : vector<5x4x4xf32>, vector<5x4x4xf32>, vector<5x4x4xf32> -> vector<5x4x4xf32>
    "tpu.trace_stop"() : () -> ()
    %c0_8 = arith.constant 0 : index
    %c0_9 = arith.constant 0 : index
    %c0_10 = arith.constant 0 : index
    %6 = vector.load %arg3[%c0_8, %c0_9, %c0_10] : memref<5x4x4xf32, #tpu.memory_space<vmem>>, vector<5x4x4xf32>
    tpu.vector_store %arg3[%c0_8, %c0_9, %c0_10], %5 {strides = array<i32>} : memref<5x4x4xf32, #tpu.memory_space<vmem>>, vector<5x4x4xf32>,
    return
  }
  func.func @transform_0(%arg0: i32) -> (i32, i32, i32) {
    %c0_i32 = arith.constant 0 : i32
    %c0_i32_0 = arith.constant 0 : i32
    %c0_i32_1 = arith.constant 0 : i32
    return %arg0, %c0_i32, %c0_i32_0 : i32, i32, i32
  }
  func.func @transform_1(%arg0: i32) -> (i32, i32, i32) {
    %c0_i32 = arith.constant 0 : i32
    %c0_i32_0 = arith.constant 0 : i32
    %c0_i32_1 = arith.constant 0 : i32
    return %arg0, %c0_i32, %c0_i32_0 : i32, i32, i32
  }
  func.func @transform_2(%arg0: i32) -> (i32, i32, i32) {
    %c0_i32 = arith.constant 0 : i32
    %c0_i32_0 = arith.constant 0 : i32
    %c0_i32_1 = arith.constant 0 : i32
    return %arg0, %c0_i32, %c0_i32_0 : i32, i32, i32
  }
}

</mosaic_0001>

<llo_original>
// kernel: custom-call.4
$region0: #{custom-call.4}
  %s0 = inlined_call_operand.vmem [shape: f32[30,2,2], index: 0, kind: input, shape index: {}]
  %s1 = inlined_call_operand.vmem [shape: f32[30,2,2], index: 1, kind: input, shape index: {}]
  %s2 = inlined_call_operand.vmem [shape: f32[30,2,2], index: 2, kind: input, shape index: {}]
  %s3 = inlined_call_operand.vmem [shape: f32[30,2,2], index: 3, kind: input, shape index: {}]
  %s4 = inlined_call_operand.vmem [shape: f32[30,2], index: 4, kind: output, shape index: {0}]
  %s5 = inlined_call_operand.vmem [shape: f32[30,2], index: 5, kind: output, shape index: {1}]
  %s6 = inlined_call_operand.vmem [shape: f32[30,2,2], index: 6, kind: output, shape index: {2}]
  %s7 = inlined_call_operand.vmem [shape: f32[30,2,2], index: 7, kind: output, shape index: {3}]
  %s8 = inlined_call_operand.vmem [shape: f32[30,2,2], index: 8, kind: output, shape index: {4}]
  %s9 = inlined_call_operand.vmem [shape: f32[30,2,2], index: 9, kind: output, shape index: {5}]
  %10 = xla_tuple %s4, %s5, %s6, %s7, %s8, %s9
  $region1: #{custom-call.4} parent=0
    #allocation0 [shape = 'u8[4096]{0}', space=vmem, size = 0x1000, scoped, tag = 'operand span for operand 0']
    #allocation1 [shape = 'u8[2048]{0}', space=vmem, size = 0x800, scoped, tag = 'packed  for operand 0']
    #allocation2 [shape = 'u8[4096]{0}', space=vmem, size = 0x1000, scoped, tag = 'operand span for operand 1']
    #allocation3 [shape = 'u8[2048]{0}', space=vmem, size = 0x800, scoped, tag = 'packed  for operand 1']
    #allocation4 [shape = 'u8[4096]{0}', space=vmem, size = 0x1000, scoped, tag = 'operand span for operand 2']
    #allocation5 [shape = 'u8[2048]{0}', space=vmem, size = 0x800, scoped, tag = 'packed  for operand 2']
    #allocation6 [shape = 'u8[4096]{0}', space=vmem, size = 0x1000, scoped, tag = 'operand span for operand 3']
    #allocation7 [shape = 'u8[2048]{0}', space=vmem, size = 0x800, scoped, tag = 'packed  for operand 3']
    #allocation8 [shape = 'u8[8192]{0}', space=vmem, size = 0x2000, scoped, tag = 'operand span for operand 4']
    #allocation9 [shape = 'u8[8192]{0}', space=vmem, size = 0x2000, scoped, tag = 'operand span for operand 5']
    #allocation10 [shape = 'u8[4096]{0}', space=vmem, size = 0x1000, scoped, tag = 'operand span for operand 6']
    #allocation11 [shape = 'u8[2048]{0}', space=vmem, size = 0x800, scoped, tag = 'packed  for operand 6']
    #allocation12 [shape = 'u8[4096]{0}', space=vmem, size = 0x1000, scoped, tag = 'operand span for operand 7']
    #allocation13 [shape = 'u8[2048]{0}', space=vmem, size = 0x800, scoped, tag = 'packed  for operand 7']
    #allocation14 [shape = 'u8[4096]{0}', space=vmem, size = 0x1000, scoped, tag = 'operand span for operand 8']
    #allocation15 [shape = 'u8[2048]{0}', space=vmem, size = 0x800, scoped, tag = 'packed  for operand 8']
    #allocation16 [shape = 'u8[4096]{0}', space=vmem, size = 0x1000, scoped, tag = 'operand span for operand 9']
    #allocation17 [shape = 'u8[2048]{0}', space=vmem, size = 0x800, scoped, tag = 'packed  for operand 9']
    loop: start=0, step=1, limit=32
    $region2: #{custom-call.4} parent=1 // loop_pre_header
      _
    $region3: #{custom-call.4} parent=1 // loop_header
      %s12 = sphi 0, %s16
      %p13 = scmp.ge.s32.totalorder %s12, 32
      %s24 = sphi 0, %s26
      %s27 = sphi 0, %s24
      %s28 = sphi 0, %s27
      %s44 = sphi 0, %s28
      %s52 = sphi 0, %s54
      %s55 = sphi 0, %s52
      %s56 = sphi 0, %s55
      %s72 = sphi 0, %s56
    $region4: #{custom-call.4} parent=1 // loop_header_branch
      %15 = sbr.rel (%p13) target = $region8
    $region5: #{custom-call.4} parent=1 // loop_body
      %s17 = ssub.s32 %s12, 1
      %s18 = ssub.s32 %s12, 2
      %s19 = sadd.s32 %s12, 1
      %s20 = sshrl.u32 %s12, 3
      %s21 = sshrl.u32 %s19, 3
      %s22 = ssub.s32 %s20, %s21
      %p23 = scmp.eq.s32.totalorder %s22, 0
      %s25 = sadd.s32 %s24, 1
      %s26 = scalar_select %p23, %s24, %s25
      %p29 = pneg %p23
      %p30 = scmp.eq.s32.totalorder %s12, 29
      %p31 = por %p29, %p30
      %p32 = scmp.ne.s32.totalorder %s24, %s27
      %p33 = scmp.eq.s32.totalorder %s12, 0
      %p34 = por %p32, %p33
      %p35 = scmp.ne.s32.totalorder %s24, %s27
      %p36 = scmp.eq.s32.totalorder %s17, 29
      %p37 = por %p35, %p36
      %p38 = scmp.ne.s32.totalorder %s27, %s28
      %p39 = scmp.eq.s32.totalorder %s17, 0
      %p40 = por %p38, %p39
      %p41 = scmp.ne.s32.totalorder %s27, %s28
      %p42 = scmp.eq.s32.totalorder %s18, 29
      %p43 = por %p41, %p42
      %p45 = scmp.ne.s32.totalorder %s28, %s44
      %p46 = scmp.eq.s32.totalorder %s18, 0
      %p47 = por %p45, %p46
      %s48 = sshrl.u32 %s12, 3
      %s49 = sshrl.u32 %s19, 3
      %s50 = ssub.s32 %s48, %s49
      %p51 = scmp.eq.s32.totalorder %s50, 0
      %s53 = sadd.s32 %s52, 1
      %s54 = scalar_select %p51, %s52, %s53
      %p57 = pneg %p51
      %p58 = scmp.eq.s32.totalorder %s12, 29
      %p59 = por %p57, %p58
      %p60 = scmp.ne.s32.totalorder %s52, %s55
      %p61 = scmp.eq.s32.totalorder %s12, 0
      %p62 = por %p60, %p61
      %p63 = scmp.ne.s32.totalorder %s52, %s55
      %p64 = scmp.eq.s32.totalorder %s17, 29
      %p65 = por %p63, %p64
      %p66 = scmp.ne.s32.totalorder %s55, %s56
      %p67 = scmp.eq.s32.totalorder %s17, 0
      %p68 = por %p66, %p67
      %p69 = scmp.ne.s32.totalorder %s55, %s56
      %p70 = scmp.eq.s32.totalorder %s18, 29
      %p71 = por %p69, %p70
      %p73 = scmp.ne.s32.totalorder %s56, %s72
      %p74 = scmp.eq.s32.totalorder %s18, 0
      %p75 = por %p73, %p74
      %p76 = scmp.le.s32.totalorder 1, %s12
      %p77 = scmp.lt.s32.totalorder %s12, 31
      %p78 = pnand %p76, %p77
      %p79 = pneg %p78
      // Predicated region
      $region9: #{custom-call.4} parent=5 // pred_check
        _
      $region10: #{custom-call.4} parent=5 // pred_check_branch
        %81 = sbr.rel (%p78) target = $region12
      $region11: #{custom-call.4} parent=5 // pred_region
        %s82 = ssub.s32 %s12, 1
      $region12: #{custom-call.4} parent=5 // pred_fallthru
        _
      %p83 = scmp.lt.s32.totalorder %s12, 30
      // Predicated region
      $region13: #{custom-call.4} parent=5 // pred_check
        %p84 = pneg %p83
      $region14: #{custom-call.4} parent=5 // pred_check_branch
        %86 = sbr.rel (%p84) target = $region16
      $region15: #{custom-call.4} parent=5 // pred_region
        %s87 = sand.u32 %s12, 1
        %s88 = sand.u32 %s12, 1
        %s89 = smul.addr %s88, 2
        %s90 = scalar_lea.vmem [#allocation1], %s89
        %s91 = smul.addr %s12, 2
        %s92 = scalar_lea.vmem %s0, %s91
        // Predicated region
        $region17: #{custom-call.4} parent=15 // pred_check
          _
        $region18: #{custom-call.4} parent=15 // pred_check_branch
          %94 = sbr.rel (0) target = $region20
        $region19: #{custom-call.4} parent=15 // pred_region
          // Predicated region
          $region21: #{custom-call.4} parent=19 // pred_check
            _
          $region22: #{custom-call.4} parent=19 // pred_check_branch
            %96 = sbr.rel target = $region24
          $region23: #{custom-call.4} parent=19 // pred_region
            // Predicated region
            $region36: #{custom-call.4} parent=23 // pred_check
              _
            $region37: #{custom-call.4} parent=23 // pred_check_branch
              %111 = sbr.rel (0) target = $region39
            $region38: #{custom-call.4} parent=23 // pred_region
              loop: start=0, step=1, limit=1
              $region40: #{custom-call.4} parent=38 // loop_pre_header
                _
              $region41: #{custom-call.4} parent=38 // loop_header
                %s114 = sphi 0, %s118
                %p115 = scmp.ge.s32.totalorder %s114, 1
                %s119 = sphi %s92, %s92
                %s120 = sphi %s90, %s90
              $region42: #{custom-call.4} parent=38 // loop_header_branch
                %117 = sbr.rel (%p115) target = $region46
              $region43: #{custom-call.4} parent=38 // loop_body
                %v121 = vld [vmem:[%s119] sm:$0x3]
                %122 = vst [vmem:[%s120] sm:$0x3] %v121
              $region44: #{custom-call.4} parent=38 // loop_footer
                %s118 = sadd.s32 1, %s114
              $region45: #{custom-call.4} parent=38 // loop_footer_branch
                %113 = sbr.rel target = $region41
              $region46: #{custom-call.4} parent=38 // loop_exit
                _
            $region39: #{custom-call.4} parent=23 // pred_fallthru
              _
          $region24: #{custom-call.4} parent=19 // pred_fallthru
            _
          // Predicated region
          $region25: #{custom-call.4} parent=19 // pred_check
            _
          $region26: #{custom-call.4} parent=19 // pred_check_branch
            %98 = sbr.rel (0) target = $region28
          $region27: #{custom-call.4} parent=19 // pred_region
            loop: start=0, step=1, limit=1
            $region29: #{custom-call.4} parent=27 // loop_pre_header
              _
            $region30: #{custom-call.4} parent=27 // loop_header
              %s101 = sphi 0, %s105
              %p102 = scmp.ge.s32.totalorder %s101, 1
              %s106 = sphi %s92, %s92
              %s107 = sphi %s90, %s90
            $region31: #{custom-call.4} parent=27 // loop_header_branch
              %104 = sbr.rel (%p102) target = $region35
            $region32: #{custom-call.4} parent=27 // loop_body
              %v108 = vld [vmem:[%s106] sm:$0x3]
              %109 = vst [vmem:[%s107] sm:$0x3] %v108
            $region33: #{custom-call.4} parent=27 // loop_footer
              %s105 = sadd.s32 1, %s101
            $region34: #{custom-call.4} parent=27 // loop_footer_branch
              %100 = sbr.rel target = $region30
            $region35: #{custom-call.4} parent=27 // loop_exit
              _
          $region28: #{custom-call.4} parent=19 // pred_fallthru
            _
        $region20: #{custom-call.4} parent=15 // pred_fallthru
          _
        %123 = vnop
        %s124 = sand.u32 %s12, 1
        %s125 = sand.u32 %s12, 1
        %s126 = smul.addr %s125, 2
        %s127 = scalar_lea.vmem [#allocation3], %s126
        %s128 = smul.addr %s12, 2
        %s129 = scalar_lea.vmem %s1, %s128
        // Predicated region
        $region47: #{custom-call.4} parent=15 // pred_check
          _
        $region48: #{custom-call.4} parent=15 // pred_check_branch
          %131 = sbr.rel (0) target = $region50
        $region49: #{custom-call.4} parent=15 // pred_region
          // Predicated region
          $region51: #{custom-call.4} parent=49 // pred_check
            _
          $region52: #{custom-call.4} parent=49 // pred_check_branch
            %133 = sbr.rel target = $region54
          $region53: #{custom-call.4} parent=49 // pred_region
            // Predicated region
            $region66: #{custom-call.4} parent=53 // pred_check
              _
            $region67: #{custom-call.4} parent=53 // pred_check_branch
              %148 = sbr.rel (0) target = $region69
            $region68: #{custom-call.4} parent=53 // pred_region
              loop: start=0, step=1, limit=1
              $region70: #{custom-call.4} parent=68 // loop_pre_header
                _
              $region71: #{custom-call.4} parent=68 // loop_header
                %s151 = sphi 0, %s155
                %p152 = scmp.ge.s32.totalorder %s151, 1
                %s156 = sphi %s129, %s129
                %s157 = sphi %s127, %s127
              $region72: #{custom-call.4} parent=68 // loop_header_branch
                %154 = sbr.rel (%p152) target = $region76
              $region73: #{custom-call.4} parent=68 // loop_body
                %v158 = vld [vmem:[%s156] sm:$0x3]
                %159 = vst [vmem:[%s157] sm:$0x3] %v158
              $region74: #{custom-call.4} parent=68 // loop_footer
                %s155 = sadd.s32 1, %s151
              $region75: #{custom-call.4} parent=68 // loop_footer_branch
                %150 = sbr.rel target = $region71
              $region76: #{custom-call.4} parent=68 // loop_exit
                _
            $region69: #{custom-call.4} parent=53 // pred_fallthru
              _
          $region54: #{custom-call.4} parent=49 // pred_fallthru
            _
          // Predicated region
          $region55: #{custom-call.4} parent=49 // pred_check
            _
          $region56: #{custom-call.4} parent=49 // pred_check_branch
            %135 = sbr.rel (0) target = $region58
          $region57: #{custom-call.4} parent=49 // pred_region
            loop: start=0, step=1, limit=1
            $region59: #{custom-call.4} parent=57 // loop_pre_header
              _
            $region60: #{custom-call.4} parent=57 // loop_header
              %s138 = sphi 0, %s142
              %p139 = scmp.ge.s32.totalorder %s138, 1
              %s143 = sphi %s129, %s129
              %s144 = sphi %s127, %s127
            $region61: #{custom-call.4} parent=57 // loop_header_branch
              %141 = sbr.rel (%p139) target = $region65
            $region62: #{custom-call.4} parent=57 // loop_body
              %v145 = vld [vmem:[%s143] sm:$0x3]
              %146 = vst [vmem:[%s144] sm:$0x3] %v145
            $region63: #{custom-call.4} parent=57 // loop_footer
              %s142 = sadd.s32 1, %s138
            $region64: #{custom-call.4} parent=57 // loop_footer_branch
              %137 = sbr.rel target = $region60
            $region65: #{custom-call.4} parent=57 // loop_exit
              _
          $region58: #{custom-call.4} parent=49 // pred_fallthru
            _
        $region50: #{custom-call.4} parent=15 // pred_fallthru
          _
        %160 = vnop
        %s161 = sand.u32 %s12, 1
        %s162 = sand.u32 %s12, 1
        %s163 = smul.addr %s162, 2
        %s164 = scalar_lea.vmem [#allocation5], %s163
        %s165 = smul.addr %s12, 2
        %s166 = scalar_lea.vmem %s2, %s165
        // Predicated region
        $region77: #{custom-call.4} parent=15 // pred_check
          _
        $region78: #{custom-call.4} parent=15 // pred_check_branch
          %168 = sbr.rel (0) target = $region80
        $region79: #{custom-call.4} parent=15 // pred_region
          // Predicated region
          $region81: #{custom-call.4} parent=79 // pred_check
            _
          $region82: #{custom-call.4} parent=79 // pred_check_branch
            %170 = sbr.rel target = $region84
          $region83: #{custom-call.4} parent=79 // pred_region
            // Predicated region
            $region96: #{custom-call.4} parent=83 // pred_check
              _
            $region97: #{custom-call.4} parent=83 // pred_check_branch
              %185 = sbr.rel (0) target = $region99
            $region98: #{custom-call.4} parent=83 // pred_region
              loop: start=0, step=1, limit=1
              $region100: #{custom-call.4} parent=98 // loop_pre_header
                _
              $region101: #{custom-call.4} parent=98 // loop_header
                %s188 = sphi 0, %s192
                %p189 = scmp.ge.s32.totalorder %s188, 1
                %s193 = sphi %s166, %s166
                %s194 = sphi %s164, %s164
              $region102: #{custom-call.4} parent=98 // loop_header_branch
                %191 = sbr.rel (%p189) target = $region106
              $region103: #{custom-call.4} parent=98 // loop_body
                %v195 = vld [vmem:[%s193] sm:$0x3]
                %196 = vst [vmem:[%s194] sm:$0x3] %v195
              $region104: #{custom-call.4} parent=98 // loop_footer
                %s192 = sadd.s32 1, %s188
              $region105: #{custom-call.4} parent=98 // loop_footer_branch
                %187 = sbr.rel target = $region101
              $region106: #{custom-call.4} parent=98 // loop_exit
                _
            $region99: #{custom-call.4} parent=83 // pred_fallthru
              _
          $region84: #{custom-call.4} parent=79 // pred_fallthru
            _
          // Predicated region
          $region85: #{custom-call.4} parent=79 // pred_check
            _
          $region86: #{custom-call.4} parent=79 // pred_check_branch
            %172 = sbr.rel (0) target = $region88
          $region87: #{custom-call.4} parent=79 // pred_region
            loop: start=0, step=1, limit=1
            $region89: #{custom-call.4} parent=87 // loop_pre_header
              _
            $region90: #{custom-call.4} parent=87 // loop_header
              %s175 = sphi 0, %s179
              %p176 = scmp.ge.s32.totalorder %s175, 1
              %s180 = sphi %s166, %s166
              %s181 = sphi %s164, %s164
            $region91: #{custom-call.4} parent=87 // loop_header_branch
              %178 = sbr.rel (%p176) target = $region95
            $region92: #{custom-call.4} parent=87 // loop_body
              %v182 = vld [vmem:[%s180] sm:$0x3]
              %183 = vst [vmem:[%s181] sm:$0x3] %v182
            $region93: #{custom-call.4} parent=87 // loop_footer
              %s179 = sadd.s32 1, %s175
            $region94: #{custom-call.4} parent=87 // loop_footer_branch
              %174 = sbr.rel target = $region90
            $region95: #{custom-call.4} parent=87 // loop_exit
              _
          $region88: #{custom-call.4} parent=79 // pred_fallthru
            _
        $region80: #{custom-call.4} parent=15 // pred_fallthru
          _
        %197 = vnop
        %s198 = sand.u32 %s12, 1
        %s199 = sand.u32 %s12, 1
        %s200 = smul.addr %s199, 2
        %s201 = scalar_lea.vmem [#allocation7], %s200
        %s202 = smul.addr %s12, 2
        %s203 = scalar_lea.vmem %s3, %s202
        // Predicated region
        $region107: #{custom-call.4} parent=15 // pred_check
          _
        $region108: #{custom-call.4} parent=15 // pred_check_branch
          %205 = sbr.rel (0) target = $region110
        $region109: #{custom-call.4} parent=15 // pred_region
          // Predicated region
          $region111: #{custom-call.4} parent=109 // pred_check
            _
          $region112: #{custom-call.4} parent=109 // pred_check_branch
            %207 = sbr.rel target = $region114
          $region113: #{custom-call.4} parent=109 // pred_region
            // Predicated region
            $region126: #{custom-call.4} parent=113 // pred_check
              _
            $region127: #{custom-call.4} parent=113 // pred_check_branch
              %222 = sbr.rel (0) target = $region129
            $region128: #{custom-call.4} parent=113 // pred_region
              loop: start=0, step=1, limit=1
              $region130: #{custom-call.4} parent=128 // loop_pre_header
                _
              $region131: #{custom-call.4} parent=128 // loop_header
                %s225 = sphi 0, %s229
                %p226 = scmp.ge.s32.totalorder %s225, 1
                %s230 = sphi %s203, %s203
                %s231 = sphi %s201, %s201
              $region132: #{custom-call.4} parent=128 // loop_header_branch
                %228 = sbr.rel (%p226) target = $region136
              $region133: #{custom-call.4} parent=128 // loop_body
                %v232 = vld [vmem:[%s230] sm:$0x3]
                %233 = vst [vmem:[%s231] sm:$0x3] %v232
              $region134: #{custom-call.4} parent=128 // loop_footer
                %s229 = sadd.s32 1, %s225
              $region135: #{custom-call.4} parent=128 // loop_footer_branch
                %224 = sbr.rel target = $region131
              $region136: #{custom-call.4} parent=128 // loop_exit
                _
            $region129: #{custom-call.4} parent=113 // pred_fallthru
              _
          $region114: #{custom-call.4} parent=109 // pred_fallthru
            _
          // Predicated region
          $region115: #{custom-call.4} parent=109 // pred_check
            _
          $region116: #{custom-call.4} parent=109 // pred_check_branch
            %209 = sbr.rel (0) target = $region118
          $region117: #{custom-call.4} parent=109 // pred_region
            loop: start=0, step=1, limit=1
            $region119: #{custom-call.4} parent=117 // loop_pre_header
              _
            $region120: #{custom-call.4} parent=117 // loop_header
              %s212 = sphi 0, %s216
              %p213 = scmp.ge.s32.totalorder %s212, 1
              %s217 = sphi %s203, %s203
              %s218 = sphi %s201, %s201
            $region121: #{custom-call.4} parent=117 // loop_header_branch
              %215 = sbr.rel (%p213) target = $region125
            $region122: #{custom-call.4} parent=117 // loop_body
              %v219 = vld [vmem:[%s217] sm:$0x3]
              %220 = vst [vmem:[%s218] sm:$0x3] %v219
            $region123: #{custom-call.4} parent=117 // loop_footer
              %s216 = sadd.s32 1, %s212
            $region124: #{custom-call.4} parent=117 // loop_footer_branch
              %211 = sbr.rel target = $region120
            $region125: #{custom-call.4} parent=117 // loop_exit
              _
          $region118: #{custom-call.4} parent=109 // pred_fallthru
            _
        $region110: #{custom-call.4} parent=15 // pred_fallthru
          _
        %234 = vnop
      $region16: #{custom-call.4} parent=5 // pred_fallthru
        _
      %p235 = scmp.le.s32.totalorder 1, %s12
      %p236 = scmp.lt.s32.totalorder %s12, 31
      %p237 = pnand %p235, %p236
      %p238 = pneg %p237
      // Predicated region
      $region137: #{custom-call.4} parent=5 // pred_check
        _
      $region138: #{custom-call.4} parent=5 // pred_check_branch
        %240 = sbr.rel (%p237) target = $region140
      $region139: #{custom-call.4} parent=5 // pred_region
        #allocation18 [shape = 'f32[2,2]{1,0}', space=vmem, size = 0x1000, scoped, tag = 'a top-left matrix']
        #allocation19 [shape = 'f32[2,2]{1,0}', space=vmem, size = 0x1000, scoped, tag = 'a top-right matrix']
        #allocation20 [shape = 'f32[2,2]{1,0}', space=vmem, size = 0x1000, scoped, tag = 'a bottom-left matrix']
        #allocation21 [shape = 'f32[2,2]{1,0}', space=vmem, size = 0x1000, scoped, tag = 'a bottom-right matrix']
        %s241 = ssub.s32 %s12, 1
        %s242 = sand.u32 %s17, 1
        %s243 = sand.u32 %s17, 1
        %s244 = smul.addr %s243, 2
        %s245 = scalar_lea.vmem [#allocation1], %s244
        %s246 = sand.u32 %s17, 1
        %s247 = sand.u32 %s17, 1
        %s248 = smul.addr %s247, 2
        %s249 = scalar_lea.vmem [#allocation3], %s248
        %s250 = sand.u32 %s17, 1
        %s251 = sand.u32 %s17, 1
        %s252 = smul.addr %s251, 2
        %s253 = scalar_lea.vmem [#allocation5], %s252
        %s254 = sand.u32 %s17, 1
        %s255 = sand.u32 %s17, 1
        %s256 = smul.addr %s255, 2
        %s257 = scalar_lea.vmem [#allocation7], %s256
        %s258 = sand.u32 %s17, 1
        %s259 = sand.u32 %s17, 1
        %s260 = smul.addr %s259, 2
        %s261 = scalar_lea.vmem [#allocation1], %s260
        %s262 = sand.u32 %s17, 1
        %s263 = sand.u32 %s17, 1
        %s264 = smul.addr %s263, 2
        %s265 = scalar_lea.vmem [#allocation3], %s264
        %s266 = sand.u32 %s17, 1
        %s267 = sand.u32 %s17, 1
        %s268 = smul.addr %s267, 2
        %s269 = scalar_lea.vmem [#allocation5], %s268
        %s270 = sand.u32 %s17, 1
        %s271 = sand.u32 %s17, 1
        %s272 = smul.addr %s271, 2
        %s273 = scalar_lea.vmem [#allocation7], %s272
        %p274 = pneg %p40
        %p275 = pneg %p37
        %s276 = sand.u32 %s27, 1
        %s277 = sand.u32 %s27, 1
        %s278 = smul.addr %s277, 8
        %s279 = scalar_lea.vmem [#allocation8], %s278
        %p280 = pneg %p68
        %p281 = pneg %p65
        %s282 = sand.u32 %s55, 1
        %s283 = sand.u32 %s55, 1
        %s284 = smul.addr %s283, 8
        %s285 = scalar_lea.vmem [#allocation9], %s284
        %s286 = sand.u32 %s17, 1
        %s287 = sand.u32 %s17, 1
        %s288 = smul.addr %s287, 2
        %s289 = scalar_lea.vmem [#allocation11], %s288
        %s290 = sand.u32 %s17, 1
        %s291 = sand.u32 %s17, 1
        %s292 = smul.addr %s291, 2
        %s293 = scalar_lea.vmem [#allocation13], %s292
        %s294 = sand.u32 %s17, 1
        %s295 = sand.u32 %s17, 1
        %s296 = smul.addr %s295, 2
        %s297 = scalar_lea.vmem [#allocation15], %s296
        %s298 = sand.u32 %s17, 1
        %s299 = sand.u32 %s17, 1
        %s300 = smul.addr %s299, 2
        %s301 = scalar_lea.vmem [#allocation17], %s300
        %s303 = sshllo.u32 0, 2
        %v304 = vld [vmem:[%s261] sm:%s303]
        %305 = vst [vmem:[#allocation0] sm:%s303] %v304
        %s307 = sshllo.u32 0, 2
        %v308 = vld [vmem:[%s265] sm:%s307]
        %309 = vst [vmem:[#allocation2] sm:%s307] %v308
        %s311 = sshllo.u32 0, 2
        %v312 = vld [vmem:[%s269] sm:%s311]
        %313 = vst [vmem:[#allocation4] sm:%s311] %v312
        %s315 = sshllo.u32 0, 2
        %v316 = vld [vmem:[%s273] sm:%s315]
        %317 = vst [vmem:[#allocation6] sm:%s315] %v316
        %s318 = sshrl.u32 %s17, 3
        %s319 = sshrl.u32 %s17, 3
        %s320 = smov [#allocation18]
        %v321 = vld [vmem:[#allocation0] sm:$0xff]
        %322 = vst [vmem:[%s320] sm:$0xff] %v321
        %s323 = smov [#allocation19]
        %v324 = vld [vmem:[#allocation2] sm:$0xff]
        %325 = vst [vmem:[%s323] sm:$0xff] %v324
        %s326 = smov [#allocation20]
        %v327 = vld [vmem:[#allocation4] sm:$0xff]
        %328 = vst [vmem:[%s326] sm:$0xff] %v327
        %s329 = smov [#allocation21]
        %v330 = vld [vmem:[#allocation6] sm:$0xff]
        %331 = vst [vmem:[%s329] sm:$0xff] %v330
        %332 = vst [vmem:[#allocation10] sm:$0xff] 0.0
        %333 = vst [vmem:[#allocation12] sm:$0xff] 0.0
        %334 = vst [vmem:[#allocation14] sm:$0xff] 0.0
        %335 = vst [vmem:[#allocation16] sm:$0xff] 0.0
        %s336 = smov [#allocation10]
        %v337 = vlaneseq
        %v338 = vand.u32 %v337, 127
        %v339 = vmov %v338
        %v340 = vlaneseq
        %v341 = vshrl.u32 %v340, 7
        %v342 = vmov %v341
        %v343 = vld [vmem:[%s336] sm:$0x3]
        %vm346 = vcmp.eq.s32.totalorder %v342, %v339
        %v347 = vsel %vm346, 1.0, %v343
        %348 = vst [vmem:[%s336] sm:$0x3] %v347
        %s349 = smov [#allocation16]
        %v350 = vlaneseq
        %v351 = vand.u32 %v350, 127
        %v352 = vmov %v351
        %v353 = vlaneseq
        %v354 = vshrl.u32 %v353, 7
        %v355 = vmov %v354
        %v356 = vld [vmem:[%s349] sm:$0x3]
        %vm359 = vcmp.eq.s32.totalorder %v355, %v352
        %v360 = vsel %vm359, 1.0, %v356
        %361 = vst [vmem:[%s349] sm:$0x3] %v360
        // While loop
        $region141: #{custom-call.4} parent=139 // loop_pre_header
          _
        $region142: #{custom-call.4} parent=139 // loop_header
          %s363 = sphi 0, %s905
          %v364 = vlaneseq
          %v365 = vand.u32 %v364, 127
          %v366 = vmov %v365
          %v367 = vlaneseq
          %v368 = vshrl.u32 %v367, 7
          %v369 = vmov %v368
          %s370 = smov [#allocation18]
          %v371 = vlaneseq
          %v372 = vand.u32 %v371, 127
          %vm373 = vcmp.ge.s32.totalorder %v372, 0
          %vm374 = vcmp.lt.s32.totalorder %v372, 2
          %vm375 = vmand %vm373, %vm374
          %v376 = vld [vmem:[%s370] sm:$0x3]
          %v377 = vsel %vm375, %v376, 0.0
          %v378 = vmul.f32 %v377, %v377
          %vm381 = vcmp.eq.s32.totalorder %v369, %v366
          %v382 = vsel %vm381, 0.0, %v378
          %v383 = vlaneseq
          %v384 = vand.u32 %v383, 127
          %v385 = vmov %v384
          %v386 = vlaneseq
          %v387 = vshrl.u32 %v386, 7
          %v388 = vmov %v387
          %s389 = smov [#allocation19]
          %v390 = vlaneseq
          %v391 = vand.u32 %v390, 127
          %vm392 = vcmp.ge.s32.totalorder %v391, 0
          %vm393 = vcmp.lt.s32.totalorder %v391, 2
          %vm394 = vmand %vm392, %vm393
          %v395 = vld [vmem:[%s389] sm:$0x3]
          %v396 = vsel %vm394, %v395, 0.0
          %v397 = vmul.f32 %v396, %v396
          %v398 = vadd.f32 %v382, %v397
          %v399 = vadd.f32 %v378, %v397
          %v400 = vlaneseq
          %v401 = vand.u32 %v400, 127
          %v402 = vmov %v401
          %v403 = vlaneseq
          %v404 = vshrl.u32 %v403, 7
          %v405 = vmov %v404
          %s406 = smov [#allocation20]
          %v407 = vlaneseq
          %v408 = vand.u32 %v407, 127
          %vm409 = vcmp.ge.s32.totalorder %v408, 0
          %vm410 = vcmp.lt.s32.totalorder %v408, 2
          %vm411 = vmand %vm409, %vm410
          %v412 = vld [vmem:[%s406] sm:$0x3]
          %v413 = vsel %vm411, %v412, 0.0
          %v414 = vmul.f32 %v413, %v413
          %v415 = vadd.f32 %v398, %v414
          %v416 = vadd.f32 %v399, %v414
          %v417 = vlaneseq
          %v418 = vand.u32 %v417, 127
          %v419 = vmov %v418
          %v420 = vlaneseq
          %v421 = vshrl.u32 %v420, 7
          %v422 = vmov %v421
          %s423 = smov [#allocation21]
          %v424 = vlaneseq
          %v425 = vand.u32 %v424, 127
          %vm426 = vcmp.ge.s32.totalorder %v425, 0
          %vm427 = vcmp.lt.s32.totalorder %v425, 2
          %vm428 = vmand %vm426, %vm427
          %v429 = vld [vmem:[%s423] sm:$0x3]
          %v430 = vsel %vm428, %v429, 0.0
          %v431 = vmul.f32 %v430, %v430
          %vm434 = vcmp.eq.s32.totalorder %v422, %v419
          %v435 = vsel %vm434, 0.0, %v431
          %v436 = vadd.f32 %v415, %v435
          %v437 = vadd.f32 %v416, %v431
          %438 = vadd.xlane.f32.xlu0 %v437
          %v439 = vpop.xlane.xlu0 %438
          %v440 = vrot.slane %v439, 4
          %v441 = vadd.f32 %v439, %v440
          %v442 = vrot.slane %v441, 2
          %v443 = vadd.f32 %v441, %v442
          %v444 = vrot.slane %v443, 1
          %v445 = vadd.f32 %v443, %v444
          %446 = vadd.xlane.f32.xlu0 %v436
          %v447 = vpop.xlane.xlu0 %446
          %v448 = vrot.slane %v447, 4
          %v449 = vadd.f32 %v447, %v448
          %v450 = vrot.slane %v449, 2
          %v451 = vadd.f32 %v449, %v450
          %v452 = vrot.slane %v451, 1
          %v453 = vadd.f32 %v451, %v452
          %s454 = vtos %v453
          %s455 = vtos %v445
          %s456 = smul.f32 1e-10, %s455
          %p457 = scmp.le.f32.partialorder %s454, %s456
          %p458 = scmp.ge.s32.totalorder %s363, 15
          %p459 = por %p457, %p458
        $region143: #{custom-call.4} parent=139 // loop_header_branch
          %907 = sbr.rel (%p459) target = $region147
        $region144: #{custom-call.4} parent=139 // loop_body
          loop: start=0, step=1, limit=3
          $region148: #{custom-call.4} parent=144 // loop_pre_header
            _
          $region149: #{custom-call.4} parent=144 // loop_header
            %s461 = sphi 0, %s465
            %p462 = scmp.ge.s32.totalorder %s461, 3
          $region150: #{custom-call.4} parent=144 // loop_header_branch
            %464 = sbr.rel (%p462) target = $region154
          $region151: #{custom-call.4} parent=144 // loop_body
            #allocation22 [shape = 'f32[1024]{0}', space=vmem, size = 0x1000, scoped, tag = 'a_tl_diag vmem']
            #allocation23 [shape = 'f32[1024]{0}', space=vmem, size = 0x1000, scoped, tag = 'a_tr_diag vmem']
            #allocation24 [shape = 'f32[1024]{0}', space=vmem, size = 0x1000, scoped, tag = 'a_br_diag vmem']
            #allocation25 [shape = 'f32[1024]{0}', space=vmem, size = 0x1000, scoped, tag = 'rt1 vmem']
            #allocation26 [shape = 'f32[1024]{0}', space=vmem, size = 0x1000, scoped, tag = 'rt2 vmem']
            #allocation27 [shape = 'f32[1024]{0}', space=vmem, size = 0x1000, scoped, tag = 'c vmem']
            #allocation28 [shape = 'f32[1024]{0}', space=vmem, size = 0x1000, scoped, tag = 's vmem']
            #allocation29 [shape = 'f32[4096]{0}', space=vmem, size = 0x4000, scoped, tag = 'c broadcast']
            #allocation30 [shape = 'f32[4096]{0}', space=vmem, size = 0x4000, scoped, tag = 's broadcast']
            %s466 = smov [#allocation18]
            %s467 = smov [#allocation22]
            %v468 = vlaneseq
            %v469 = vand.u32 %v468, 127
            %v470 = vmov %v469
            %v471 = vlaneseq
            %v472 = vshrl.u32 %v471, 7
            %v473 = vmov %v472
            %v474 = vld [vmem:[%s466] sm:$0x3]
            %vm477 = vcmp.eq.s32.totalorder %v473, %v470
            %v478 = vsel %vm477, %v474, 0.0
            %v479 = vrot.slane %v478, 4
            %v480 = vadd.f32 %v478, %v479
            %v481 = vrot.slane %v480, 2
            %v482 = vadd.f32 %v480, %v481
            %v483 = vrot.slane %v482, 1
            %v484 = vadd.f32 %v482, %v483
            %485 = vst [vmem:[%s467] sm:$0x1] %v484
            %s486 = smov [#allocation19]
            %s487 = smov [#allocation23]
            %v488 = vlaneseq
            %v489 = vand.u32 %v488, 127
            %v490 = vmov %v489
            %v491 = vlaneseq
            %v492 = vshrl.u32 %v491, 7
            %v493 = vmov %v492
            %v494 = vld [vmem:[%s486] sm:$0x3]
            %vm497 = vcmp.eq.s32.totalorder %v493, %v490
            %v498 = vsel %vm497, %v494, 0.0
            %v499 = vrot.slane %v498, 4
            %v500 = vadd.f32 %v498, %v499
            %v501 = vrot.slane %v500, 2
            %v502 = vadd.f32 %v500, %v501
            %v503 = vrot.slane %v502, 1
            %v504 = vadd.f32 %v502, %v503
            %505 = vst [vmem:[%s487] sm:$0x1] %v504
            %s506 = smov [#allocation21]
            %s507 = smov [#allocation24]
            %v508 = vlaneseq
            %v509 = vand.u32 %v508, 127
            %v510 = vmov %v509
            %v511 = vlaneseq
            %v512 = vshrl.u32 %v511, 7
            %v513 = vmov %v512
            %v514 = vld [vmem:[%s506] sm:$0x3]
            %vm517 = vcmp.eq.s32.totalorder %v513, %v510
            %v518 = vsel %vm517, %v514, 0.0
            %v519 = vrot.slane %v518, 4
            %v520 = vadd.f32 %v518, %v519
            %v521 = vrot.slane %v520, 2
            %v522 = vadd.f32 %v520, %v521
            %v523 = vrot.slane %v522, 1
            %v524 = vadd.f32 %v522, %v523
            %525 = vst [vmem:[%s507] sm:$0x1] %v524
            %s526 = smov [#allocation27]
            %s527 = smov [#allocation28]
            %s528 = smov [#allocation22]
            %v529 = vld [vmem:[%s528] sm:$0xff]
            %s530 = smov [#allocation23]
            %v531 = vld [vmem:[%s530] sm:$0xff]
            %s532 = smov [#allocation24]
            %v533 = vld [vmem:[%s532] sm:$0xff]
            %v534 = vsub.f32 %v533, %v529
            %v535 = vmul.f32 2.0, %v531
            %v536 = vrcp.pop %v535
            %v537 = vmul.f32 %v534, %v536
            %vm538 = vcmp.ge.f32.partialorder %v537, 0.0
            %v539 = vmul.f32 %v537, %v537
            %v540 = vadd.f32 1.0, %v539
            %v541 = vrsqrt.pop %v540
            %v542 = vmul.f32 %v540, %v541
            %vm543 = vcmp.eq.f32.partialorder %v540, inf
            %v544 = vsel %vm543, %v540, %v542
            %vm545 = vcmp.eq.f32.partialorder %v540, 0.0
            %v546 = vand.u32 %v540, 2147483648
            %v547 = vsel %vm545, %v546, %v544
            %v548 = vxor.u32 %v547, 2147483648
            %v549 = vsel %vm538, %v547, %v548
            %v550 = vadd.f32 %v537, %v549
            %v551 = vrcp.pop %v550
            %v552 = vand.u32 2147483647, %v529
            %v553 = vand.u32 2147483647, %v531
            %v554 = vand.u32 2147483647, %v533
            %v555 = vmin.f32 %v552, %v554
            %v556 = vmul.f32 1.1920929e-08, %v555
            %vm557 = vcmp.le.f32.partialorder %v553, %v556
            %v558 = vsel %vm557, 0.0, %v551
            %v559 = vmul.f32 %v558, %v558
            %v560 = vadd.f32 1.0, %v559
            %v561 = vrsqrt.pop %v560
            %v562 = vmul.f32 %v558, %v561
            %v563 = vmul.f32 %v558, %v531
            %v564 = vsub.f32 %v529, %v563
            %v565 = vmul.f32 %v558, %v531
            %v566 = vadd.f32 %v533, %v565
            %s567 = smov [#allocation25]
            %568 = vst [vmem:[%s567] sm:$0xff] %v564
            %s569 = smov [#allocation26]
            %570 = vst [vmem:[%s569] sm:$0xff] %v566
            %s571 = smov %s526
            %572 = vst [vmem:[%s571] sm:$0xff] %v561
            %s573 = smov %s527
            %574 = vst [vmem:[%s573] sm:$0xff] %v562
            %s575 = smov [#allocation27]
            %v576 = vld [vmem:[%s575] ss:$0 sm:$0xff]
            %v577 = vlaneseq
            %v578 = vand.u32 %v577, 127
            %v579 = vmov %v578
            %v580 = vlaneseq
            %v581 = vshrl.u32 %v580, 7
            %v582 = vmov %v581
            %vm584 = vcmp.eq.s32.totalorder %v582, %v579
            %v585 = vsel %vm584, %v576, 0.0
            %586 = vadd.xlane.f32.xlu0 %v585
            %v587 = vpop.xlane.xlu0 %586
            %s588 = smov [#allocation29]
            %589 = vst [vmem:[%s588] sm:$0xff] %v587
            %s590 = smov [#allocation28]
            %v591 = vld [vmem:[%s590] ss:$0 sm:$0xff]
            %v592 = vlaneseq
            %v593 = vand.u32 %v592, 127
            %v594 = vmov %v593
            %v595 = vlaneseq
            %v596 = vshrl.u32 %v595, 7
            %v597 = vmov %v596
            %vm599 = vcmp.eq.s32.totalorder %v597, %v594
            %v600 = vsel %vm599, %v591, 0.0
            %601 = vadd.xlane.f32.xlu0 %v600
            %v602 = vpop.xlane.xlu0 %601
            %s603 = smov [#allocation30]
            %604 = vst [vmem:[%s603] sm:$0xff] %v602
            %s605 = smov [#allocation29]
            %v606 = vld [vmem:[%s605] sm:$0xff]
            %s607 = smov [#allocation30]
            %v608 = vld [vmem:[%s607] sm:$0xff]
            %s609 = smov [#allocation18]
            %s610 = smov [#allocation19]
            %s611 = smov [#allocation20]
            %s612 = smov [#allocation21]
            %v613 = vld [vmem:[%s609] sm:$0x3]
            %v614 = vld [vmem:[%s610] sm:$0x3]
            %v615 = vld [vmem:[%s611] sm:$0x3]
            %v616 = vld [vmem:[%s612] sm:$0x3]
            %v617 = vmul.f32 %v606, %v613
            %v618 = vmul.f32 %v608, %v615
            %v619 = vsub.f32 %v617, %v618
            %v620 = vmul.f32 %v606, %v614
            %v621 = vmul.f32 %v608, %v616
            %v622 = vsub.f32 %v620, %v621
            %v623 = vmul.f32 %v608, %v613
            %v624 = vmul.f32 %v606, %v615
            %v625 = vadd.f32 %v623, %v624
            %v626 = vmul.f32 %v608, %v614
            %v627 = vmul.f32 %v606, %v616
            %v628 = vadd.f32 %v626, %v627
            %629 = vst [vmem:[%s609] sm:$0x3] %v619
            %630 = vst [vmem:[%s610] sm:$0x3] %v622
            %631 = vst [vmem:[%s611] sm:$0x3] %v625
            %632 = vst [vmem:[%s612] sm:$0x3] %v628
            %s633 = smov [#allocation27]
            %v634 = vld [vmem:[%s633] ss:$0 sm:$0xff]
            %s635 = smov [#allocation28]
            %v636 = vld [vmem:[%s635] ss:$0 sm:$0xff]
            %s637 = smov [#allocation18]
            %s638 = smov [#allocation19]
            %s639 = smov [#allocation20]
            %s640 = smov [#allocation21]
            %v641 = vld [vmem:[%s637] sm:$0x3]
            %v642 = vld [vmem:[%s638] sm:$0x3]
            %v643 = vld [vmem:[%s639] sm:$0x3]
            %v644 = vld [vmem:[%s640] sm:$0x3]
            %v645 = vmul.f32 %v634, %v641
            %v646 = vmul.f32 %v636, %v642
            %v647 = vsub.f32 %v645, %v646
            %v648 = vmul.f32 %v636, %v641
            %v649 = vmul.f32 %v634, %v642
            %v650 = vadd.f32 %v648, %v649
            %v651 = vmul.f32 %v634, %v643
            %v652 = vmul.f32 %v636, %v644
            %v653 = vsub.f32 %v651, %v652
            %v654 = vmul.f32 %v636, %v643
            %v655 = vmul.f32 %v634, %v644
            %v656 = vadd.f32 %v654, %v655
            %657 = vst [vmem:[%s637] sm:$0x3] %v647
            %658 = vst [vmem:[%s638] sm:$0x3] %v650
            %659 = vst [vmem:[%s639] sm:$0x3] %v653
            %660 = vst [vmem:[%s640] sm:$0x3] %v656
            %s661 = smov [#allocation18]
            %s662 = smov [#allocation25]
            %v663 = vlaneseq
            %v664 = vand.u32 %v663, 127
            %v665 = vmov %v664
            %v666 = vlaneseq
            %v667 = vshrl.u32 %v666, 7
            %v668 = vmov %v667
            %v669 = vld [vmem:[%s662] ss:$0 sm:$0xff]
            %v670 = vld [vmem:[%s661] sm:$0x3]
            %vm673 = vcmp.eq.s32.totalorder %v668, %v665
            %v674 = vsel %vm673, %v669, %v670
            %675 = vst [vmem:[%s661] sm:$0x3] %v674
            %s676 = smov [#allocation19]
            %v677 = vlaneseq
            %v678 = vand.u32 %v677, 127
            %v679 = vmov %v678
            %v680 = vlaneseq
            %v681 = vshrl.u32 %v680, 7
            %v682 = vmov %v681
            %v683 = vld [vmem:[%s676] sm:$0x3]
            %vm686 = vcmp.eq.s32.totalorder %v682, %v679
            %v687 = vsel %vm686, 0.0, %v683
            %688 = vst [vmem:[%s676] sm:$0x3] %v687
            %s689 = smov [#allocation20]
            %v690 = vlaneseq
            %v691 = vand.u32 %v690, 127
            %v692 = vmov %v691
            %v693 = vlaneseq
            %v694 = vshrl.u32 %v693, 7
            %v695 = vmov %v694
            %v696 = vld [vmem:[%s689] sm:$0x3]
            %vm699 = vcmp.eq.s32.totalorder %v695, %v692
            %v700 = vsel %vm699, 0.0, %v696
            %701 = vst [vmem:[%s689] sm:$0x3] %v700
            %s702 = smov [#allocation21]
            %s703 = smov [#allocation26]
            %v704 = vlaneseq
            %v705 = vand.u32 %v704, 127
            %v706 = vmov %v705
            %v707 = vlaneseq
            %v708 = vshrl.u32 %v707, 7
            %v709 = vmov %v708
            %v710 = vld [vmem:[%s703] ss:$0 sm:$0xff]
            %v711 = vld [vmem:[%s702] sm:$0x3]
            %vm714 = vcmp.eq.s32.totalorder %v709, %v706
            %v715 = vsel %vm714, %v710, %v711
            %716 = vst [vmem:[%s702] sm:$0x3] %v715
            %s717 = smov [#allocation18]
            %s718 = smov [#allocation19]
            %v719 = vld [vmem:[%s718] sm:$0x3]
            %720 = vrot.lane.b32.xlu0 %v719, 1
            %v721 = vpop.permute.xlu0 %720
            %v722 = vld [vmem:[%s717] sm:$0x3]
            %v723 = vld [vmem:[%s717] sm:$0x3]
            %724 = vrot.lane.b32.xlu0 %v723, 1
            %v725 = vpop.permute.xlu0 %724
            %v726 = vlaneseq
            %v727 = vand.u32 %v726, 127
            %vm728 = vcmp.eq.s32.totalorder %v727, 0
            %v729 = vsel %vm728, %v723, %v725
            %v730 = vlaneseq
            %v731 = vand.u32 %v730, 127
            %vm732 = vcmp.eq.s32.totalorder %v731, 1
            %v733 = vsel %vm732, %v721, %v729
            %v734 = vlaneseq
            %v735 = vand.u32 %v734, 127
            %vm736 = vcmp.ge.s32.totalorder %v735, 0
            %vm737 = vcmp.lt.s32.totalorder %v735, 2
            %vm738 = vmand %vm736, %vm737
            %v739 = vsel %vm738, %v733, 0.0
            %v740 = vld [vmem:[%s718] sm:$0x3]
            %741 = vrot.lane.b32.xlu0 %v740, 127
            %v742 = vpop.permute.xlu0 %741
            %v743 = vlaneseq
            %v744 = vand.u32 %v743, 127
            %vm745 = vcmp.eq.s32.totalorder %v744, 1
            %v746 = vsel %vm745, %v722, %v742
            %747 = vst [vmem:[%s717] sm:$0x3] %v739
            %748 = vst [vmem:[%s718] sm:$0x3] %v746
            %s749 = smov [#allocation20]
            %s750 = smov [#allocation21]
            %v751 = vld [vmem:[%s750] sm:$0x3]
            %752 = vrot.lane.b32.xlu0 %v751, 1
            %v753 = vpop.permute.xlu0 %752
            %v754 = vld [vmem:[%s749] sm:$0x3]
            %v755 = vld [vmem:[%s749] sm:$0x3]
            %756 = vrot.lane.b32.xlu0 %v755, 1
            %v757 = vpop.permute.xlu0 %756
            %v758 = vlaneseq
            %v759 = vand.u32 %v758, 127
            %vm760 = vcmp.eq.s32.totalorder %v759, 0
            %v761 = vsel %vm760, %v755, %v757
            %v762 = vlaneseq
            %v763 = vand.u32 %v762, 127
            %vm764 = vcmp.eq.s32.totalorder %v763, 1
            %v765 = vsel %vm764, %v753, %v761
            %v766 = vlaneseq
            %v767 = vand.u32 %v766, 127
            %vm768 = vcmp.ge.s32.totalorder %v767, 0
            %vm769 = vcmp.lt.s32.totalorder %v767, 2
            %vm770 = vmand %vm768, %vm769
            %v771 = vsel %vm770, %v765, 0.0
            %v772 = vld [vmem:[%s750] sm:$0x3]
            %773 = vrot.lane.b32.xlu0 %v772, 127
            %v774 = vpop.permute.xlu0 %773
            %v775 = vlaneseq
            %v776 = vand.u32 %v775, 127
            %vm777 = vcmp.eq.s32.totalorder %v776, 1
            %v778 = vsel %vm777, %v754, %v774
            %779 = vst [vmem:[%s749] sm:$0x3] %v771
            %780 = vst [vmem:[%s750] sm:$0x3] %v778
            %s781 = smov [#allocation18]
            %s782 = smov [#allocation20]
            %v783 = vld [vmem:[%s781] ss:$0 sm:$0xff]
            %s785 = scalar_lea.vmem %s781, 4294967295
            %v786 = vld [vmem:[%s785] sm:$0x2]
            %v787 = vlaneseq
            %v788 = vshrl.u32 %v787, 7
            %vm789 = vcmp.eq.s32.totalorder %v788, 0
            %v790 = vsel %vm789, %v783, %v786
            %s791 = scalar_lea.vmem %s781, 1
            %v792 = vld [vmem:[%s791] ss:$0 sm:$0xff]
            %793 = vst [vmem:[%s781] sm:$0x3] %v790
            %v794 = vld [vmem:[%s782] ss:$0 sm:$0xff]
            %s795 = scalar_lea.vmem %s781, 1
            %796 = vst [vmem:[%s795] sm:$0x1] %v794
            %s797 = scalar_lea.vmem %s782, 1
            %v798 = vld [vmem:[%s797] sm:$0x1]
            %v799 = vlaneseq
            %v800 = vshrl.u32 %v799, 7
            %vm801 = vcmp.eq.s32.totalorder %v800, 1
            %v802 = vsel %vm801, %v792, %v798
            %v803 = vld [vmem:[%s782] ss:$0 sm:$0xff]
            %804 = vst [vmem:[%s782] sm:$0x3] %v802
            %s805 = smov [#allocation19]
            %s806 = smov [#allocation21]
            %v807 = vld [vmem:[%s805] ss:$0 sm:$0xff]
            %s809 = scalar_lea.vmem %s805, 4294967295
            %v810 = vld [vmem:[%s809] sm:$0x2]
            %v811 = vlaneseq
            %v812 = vshrl.u32 %v811, 7
            %vm813 = vcmp.eq.s32.totalorder %v812, 0
            %v814 = vsel %vm813, %v807, %v810
            %s815 = scalar_lea.vmem %s805, 1
            %v816 = vld [vmem:[%s815] ss:$0 sm:$0xff]
            %817 = vst [vmem:[%s805] sm:$0x3] %v814
            %v818 = vld [vmem:[%s806] ss:$0 sm:$0xff]
            %s819 = scalar_lea.vmem %s805, 1
            %820 = vst [vmem:[%s819] sm:$0x1] %v818
            %s821 = scalar_lea.vmem %s806, 1
            %v822 = vld [vmem:[%s821] sm:$0x1]
            %v823 = vlaneseq
            %v824 = vshrl.u32 %v823, 7
            %vm825 = vcmp.eq.s32.totalorder %v824, 1
            %v826 = vsel %vm825, %v816, %v822
            %v827 = vld [vmem:[%s806] ss:$0 sm:$0xff]
            %828 = vst [vmem:[%s806] sm:$0x3] %v826
            %s829 = smov [#allocation29]
            %v830 = vld [vmem:[%s829] sm:$0xff]
            %s831 = smov [#allocation30]
            %v832 = vld [vmem:[%s831] sm:$0xff]
            %s833 = smov [#allocation10]
            %s834 = smov [#allocation12]
            %s835 = smov [#allocation14]
            %s836 = smov [#allocation16]
            %v837 = vld [vmem:[%s833] sm:$0x3]
            %v838 = vld [vmem:[%s834] sm:$0x3]
            %v839 = vld [vmem:[%s835] sm:$0x3]
            %v840 = vld [vmem:[%s836] sm:$0x3]
            %v841 = vmul.f32 %v830, %v837
            %v842 = vmul.f32 %v832, %v839
            %v843 = vsub.f32 %v841, %v842
            %v844 = vmul.f32 %v830, %v838
            %v845 = vmul.f32 %v832, %v840
            %v846 = vsub.f32 %v844, %v845
            %v847 = vmul.f32 %v832, %v837
            %v848 = vmul.f32 %v830, %v839
            %v849 = vadd.f32 %v847, %v848
            %v850 = vmul.f32 %v832, %v838
            %v851 = vmul.f32 %v830, %v840
            %v852 = vadd.f32 %v850, %v851
            %853 = vst [vmem:[%s833] sm:$0x3] %v843
            %854 = vst [vmem:[%s834] sm:$0x3] %v846
            %855 = vst [vmem:[%s835] sm:$0x3] %v849
            %856 = vst [vmem:[%s836] sm:$0x3] %v852
            %s857 = smov [#allocation10]
            %s858 = smov [#allocation14]
            %v859 = vld [vmem:[%s857] ss:$0 sm:$0xff]
            %s861 = scalar_lea.vmem %s857, 4294967295
            %v862 = vld [vmem:[%s861] sm:$0x2]
            %v863 = vlaneseq
            %v864 = vshrl.u32 %v863, 7
            %vm865 = vcmp.eq.s32.totalorder %v864, 0
            %v866 = vsel %vm865, %v859, %v862
            %s867 = scalar_lea.vmem %s857, 1
            %v868 = vld [vmem:[%s867] ss:$0 sm:$0xff]
            %869 = vst [vmem:[%s857] sm:$0x3] %v866
            %v870 = vld [vmem:[%s858] ss:$0 sm:$0xff]
            %s871 = scalar_lea.vmem %s857, 1
            %872 = vst [vmem:[%s871] sm:$0x1] %v870
            %s873 = scalar_lea.vmem %s858, 1
            %v874 = vld [vmem:[%s873] sm:$0x1]
            %v875 = vlaneseq
            %v876 = vshrl.u32 %v875, 7
            %vm877 = vcmp.eq.s32.totalorder %v876, 1
            %v878 = vsel %vm877, %v868, %v874
            %v879 = vld [vmem:[%s858] ss:$0 sm:$0xff]
            %880 = vst [vmem:[%s858] sm:$0x3] %v878
            %s881 = smov [#allocation12]
            %s882 = smov [#allocation16]
            %v883 = vld [vmem:[%s881] ss:$0 sm:$0xff]
            %s885 = scalar_lea.vmem %s881, 4294967295
            %v886 = vld [vmem:[%s885] sm:$0x2]
            %v887 = vlaneseq
            %v888 = vshrl.u32 %v887, 7
            %vm889 = vcmp.eq.s32.totalorder %v888, 0
            %v890 = vsel %vm889, %v883, %v886
            %s891 = scalar_lea.vmem %s881, 1
            %v892 = vld [vmem:[%s891] ss:$0 sm:$0xff]
            %893 = vst [vmem:[%s881] sm:$0x3] %v890
            %v894 = vld [vmem:[%s882] ss:$0 sm:$0xff]
            %s895 = scalar_lea.vmem %s881, 1
            %896 = vst [vmem:[%s895] sm:$0x1] %v894
            %s897 = scalar_lea.vmem %s882, 1
            %v898 = vld [vmem:[%s897] sm:$0x1]
            %v899 = vlaneseq
            %v900 = vshrl.u32 %v899, 7
            %vm901 = vcmp.eq.s32.totalorder %v900, 1
            %v902 = vsel %vm901, %v892, %v898
            %v903 = vld [vmem:[%s882] ss:$0 sm:$0xff]
            %904 = vst [vmem:[%s882] sm:$0x3] %v902
          $region152: #{custom-call.4} parent=144 // loop_footer
            %s465 = sadd.s32 1, %s461
          $region153: #{custom-call.4} parent=144 // loop_footer_branch
            %460 = sbr.rel target = $region149
          $region154: #{custom-call.4} parent=144 // loop_exit
            _
          %s905 = sadd.s32 %s363, 1
        $region145: #{custom-call.4} parent=139 // loop_footer
          _
        $region146: #{custom-call.4} parent=139 // loop_footer_branch
          %362 = sbr.rel target = $region142
        $region147: #{custom-call.4} parent=139 // loop_exit
          _
        %s908 = sand.u32 %s17, 7
        %s909 = scalar_lea.vmem %s279, %s908 [#allocation8]
        %s910 = sand.u32 %s17, 7
        %s911 = scalar_lea.vmem %s285, %s910 [#allocation9]
        %s912 = smov [#allocation18]
        %s913 = smov %s909
        %v914 = vlaneseq
        %v915 = vand.u32 %v914, 127
        %v916 = vmov %v915
        %v917 = vlaneseq
        %v918 = vshrl.u32 %v917, 7
        %v919 = vmov %v918
        %v920 = vld [vmem:[%s912] sm:$0x3]
        %vm923 = vcmp.eq.s32.totalorder %v919, %v916
        %v924 = vsel %vm923, %v920, 0.0
        %v925 = vrot.slane %v924, 4
        %v926 = vadd.f32 %v924, %v925
        %v927 = vrot.slane %v926, 2
        %v928 = vadd.f32 %v926, %v927
        %v929 = vrot.slane %v928, 1
        %v930 = vadd.f32 %v928, %v929
        %931 = vst [vmem:[%s913] sm:$0x1] %v930
        %s932 = smov [#allocation21]
        %s933 = smov %s911
        %v934 = vlaneseq
        %v935 = vand.u32 %v934, 127
        %v936 = vmov %v935
        %v937 = vlaneseq
        %v938 = vshrl.u32 %v937, 7
        %v939 = vmov %v938
        %v940 = vld [vmem:[%s932] sm:$0x3]
        %vm943 = vcmp.eq.s32.totalorder %v939, %v936
        %v944 = vsel %vm943, %v940, 0.0
        %v945 = vrot.slane %v944, 4
        %v946 = vadd.f32 %v944, %v945
        %v947 = vrot.slane %v946, 2
        %v948 = vadd.f32 %v946, %v947
        %v949 = vrot.slane %v948, 1
        %v950 = vadd.f32 %v948, %v949
        %951 = vst [vmem:[%s933] sm:$0x1] %v950
        %s953 = sshllo.u32 0, 2
        %v955 = vld [vmem:[#allocation10] sm:%s953]
        %s956 = sshllo.u32 0, 2
        %957 = vst [vmem:[%s289] sm:%s956] %v955
        %s959 = sshllo.u32 0, 2
        %v961 = vld [vmem:[#allocation12] sm:%s959]
        %s962 = sshllo.u32 0, 2
        %963 = vst [vmem:[%s293] sm:%s962] %v961
        %s965 = sshllo.u32 0, 2
        %v967 = vld [vmem:[#allocation14] sm:%s965]
        %s968 = sshllo.u32 0, 2
        %969 = vst [vmem:[%s297] sm:%s968] %v967
        %s971 = sshllo.u32 0, 2
        %v973 = vld [vmem:[#allocation16] sm:%s971]
        %s974 = sshllo.u32 0, 2
        %975 = vst [vmem:[%s301] sm:%s974] %v973
        %s976 = sand.u32 %s27, 1
        %s977 = sand.u32 %s27, 1
        %s978 = smul.addr %s977, 8
        %s979 = scalar_lea.vmem [#allocation8], %s978
        %s980 = sand.u32 %s55, 1
        %s981 = sand.u32 %s55, 1
        %s982 = smul.addr %s981, 8
        %s983 = scalar_lea.vmem [#allocation9], %s982
        %s984 = sand.u32 %s17, 1
        %s985 = sand.u32 %s17, 1
        %s986 = smul.addr %s985, 2
        %s987 = scalar_lea.vmem [#allocation11], %s986
        %s988 = sand.u32 %s17, 1
        %s989 = sand.u32 %s17, 1
        %s990 = smul.addr %s989, 2
        %s991 = scalar_lea.vmem [#allocation13], %s990
        %s992 = sand.u32 %s17, 1
        %s993 = sand.u32 %s17, 1
        %s994 = smul.addr %s993, 2
        %s995 = scalar_lea.vmem [#allocation15], %s994
        %s996 = sand.u32 %s17, 1
        %s997 = sand.u32 %s17, 1
        %s998 = smul.addr %s997, 2
        %s999 = scalar_lea.vmem [#allocation17], %s998
        // Predicated region
        $region155: #{custom-call.4} parent=139 // pred_check
          %p1000 = pneg %p37
        $region156: #{custom-call.4} parent=139 // pred_check_branch
          %1002 = sbr.rel (%p1000) target = $region158
        $region157: #{custom-call.4} parent=139 // pred_region
          %s1003 = sshrl.u32 %s17, 3
          %s1004 = smul.addr %s1003, 8
          %s1005 = scalar_lea.vmem %s4, %s1004
          // Predicated region
          $region159: #{custom-call.4} parent=157 // pred_check
            _
          $region160: #{custom-call.4} parent=157 // pred_check_branch
            %1007 = sbr.rel (0) target = $region162
          $region161: #{custom-call.4} parent=157 // pred_region
            // Predicated region
            $region163: #{custom-call.4} parent=161 // pred_check
              _
            $region164: #{custom-call.4} parent=161 // pred_check_branch
              %1009 = sbr.rel (0) target = $region166
            $region165: #{custom-call.4} parent=161 // pred_region
              // Predicated region
              $region178: #{custom-call.4} parent=165 // pred_check
                _
              $region179: #{custom-call.4} parent=165 // pred_check_branch
                %1024 = sbr.rel (0) target = $region181
              $region180: #{custom-call.4} parent=165 // pred_region
                loop: start=0, step=1, limit=1
                $region182: #{custom-call.4} parent=180 // loop_pre_header
                  _
                $region183: #{custom-call.4} parent=180 // loop_header
                  %s1026 = sphi 0, %s1030
                  %p1027 = scmp.ge.s32.totalorder %s1026, 1
                  %s1031 = sphi %s979, %s979
                  %s1032 = sphi %s1005, %s1005
                $region184: #{custom-call.4} parent=180 // loop_header_branch
                  %1029 = sbr.rel (%p1027) target = $region188
                $region185: #{custom-call.4} parent=180 // loop_body
                  %v1033 = vld [vmem:[%s1031] sm:$0xff]
                  %1034 = vst [vmem:[%s1032] sm:$0xff] %v1033
                $region186: #{custom-call.4} parent=180 // loop_footer
                  %s1030 = sadd.s32 1, %s1026
                $region187: #{custom-call.4} parent=180 // loop_footer_branch
                  %1025 = sbr.rel target = $region183
                $region188: #{custom-call.4} parent=180 // loop_exit
                  _
              $region181: #{custom-call.4} parent=165 // pred_fallthru
                _
              // Predicated region
              $region189: #{custom-call.4} parent=165 // pred_check
                _
              $region190: #{custom-call.4} parent=165 // pred_check_branch
                %1036 = sbr.rel target = $region192
              $region191: #{custom-call.4} parent=165 // pred_region
                _
              $region192: #{custom-call.4} parent=165 // pred_fallthru
                _
            $region166: #{custom-call.4} parent=161 // pred_fallthru
              _
            // Predicated region
            $region167: #{custom-call.4} parent=161 // pred_check
              _
            $region168: #{custom-call.4} parent=161 // pred_check_branch
              %1011 = sbr.rel target = $region170
            $region169: #{custom-call.4} parent=161 // pred_region
              loop: start=0, step=1, limit=1
              $region171: #{custom-call.4} parent=169 // loop_pre_header
                _
              $region172: #{custom-call.4} parent=169 // loop_header
                %s1014 = sphi 0, %s1018
                %p1015 = scmp.ge.s32.totalorder %s1014, 1
                %s1019 = sphi %s979, %s979
                %s1020 = sphi %s1005, %s1005
              $region173: #{custom-call.4} parent=169 // loop_header_branch
                %1017 = sbr.rel (%p1015) target = $region177
              $region174: #{custom-call.4} parent=169 // loop_body
                %v1021 = vld [vmem:[%s1019] sm:$0xff]
                %1022 = vst [vmem:[%s1020] sm:$0xff] %v1021
              $region175: #{custom-call.4} parent=169 // loop_footer
                %s1018 = sadd.s32 1, %s1014
              $region176: #{custom-call.4} parent=169 // loop_footer_branch
                %1013 = sbr.rel target = $region172
              $region177: #{custom-call.4} parent=169 // loop_exit
                _
            $region170: #{custom-call.4} parent=161 // pred_fallthru
              _
          $region162: #{custom-call.4} parent=157 // pred_fallthru
            _
          %1037 = vnop
        $region158: #{custom-call.4} parent=139 // pred_fallthru
          _
        // Predicated region
        $region193: #{custom-call.4} parent=139 // pred_check
          %p1038 = pneg %p65
        $region194: #{custom-call.4} parent=139 // pred_check_branch
          %1040 = sbr.rel (%p1038) target = $region196
        $region195: #{custom-call.4} parent=139 // pred_region
          %s1041 = sshrl.u32 %s17, 3
          %s1042 = smul.addr %s1041, 8
          %s1043 = scalar_lea.vmem %s5, %s1042
          // Predicated region
          $region197: #{custom-call.4} parent=195 // pred_check
            _
          $region198: #{custom-call.4} parent=195 // pred_check_branch
            %1045 = sbr.rel (0) target = $region200
          $region199: #{custom-call.4} parent=195 // pred_region
            // Predicated region
            $region201: #{custom-call.4} parent=199 // pred_check
              _
            $region202: #{custom-call.4} parent=199 // pred_check_branch
              %1047 = sbr.rel (0) target = $region204
            $region203: #{custom-call.4} parent=199 // pred_region
              // Predicated region
              $region216: #{custom-call.4} parent=203 // pred_check
                _
              $region217: #{custom-call.4} parent=203 // pred_check_branch
                %1062 = sbr.rel (0) target = $region219
              $region218: #{custom-call.4} parent=203 // pred_region
                loop: start=0, step=1, limit=1
                $region220: #{custom-call.4} parent=218 // loop_pre_header
                  _
                $region221: #{custom-call.4} parent=218 // loop_header
                  %s1064 = sphi 0, %s1068
                  %p1065 = scmp.ge.s32.totalorder %s1064, 1
                  %s1069 = sphi %s983, %s983
                  %s1070 = sphi %s1043, %s1043
                $region222: #{custom-call.4} parent=218 // loop_header_branch
                  %1067 = sbr.rel (%p1065) target = $region226
                $region223: #{custom-call.4} parent=218 // loop_body
                  %v1071 = vld [vmem:[%s1069] sm:$0xff]
                  %1072 = vst [vmem:[%s1070] sm:$0xff] %v1071
                $region224: #{custom-call.4} parent=218 // loop_footer
                  %s1068 = sadd.s32 1, %s1064
                $region225: #{custom-call.4} parent=218 // loop_footer_branch
                  %1063 = sbr.rel target = $region221
                $region226: #{custom-call.4} parent=218 // loop_exit
                  _
              $region219: #{custom-call.4} parent=203 // pred_fallthru
                _
              // Predicated region
              $region227: #{custom-call.4} parent=203 // pred_check
                _
              $region228: #{custom-call.4} parent=203 // pred_check_branch
                %1074 = sbr.rel target = $region230
              $region229: #{custom-call.4} parent=203 // pred_region
                _
              $region230: #{custom-call.4} parent=203 // pred_fallthru
                _
            $region204: #{custom-call.4} parent=199 // pred_fallthru
              _
            // Predicated region
            $region205: #{custom-call.4} parent=199 // pred_check
              _
            $region206: #{custom-call.4} parent=199 // pred_check_branch
              %1049 = sbr.rel target = $region208
            $region207: #{custom-call.4} parent=199 // pred_region
              loop: start=0, step=1, limit=1
              $region209: #{custom-call.4} parent=207 // loop_pre_header
                _
              $region210: #{custom-call.4} parent=207 // loop_header
                %s1052 = sphi 0, %s1056
                %p1053 = scmp.ge.s32.totalorder %s1052, 1
                %s1057 = sphi %s983, %s983
                %s1058 = sphi %s1043, %s1043
              $region211: #{custom-call.4} parent=207 // loop_header_branch
                %1055 = sbr.rel (%p1053) target = $region215
              $region212: #{custom-call.4} parent=207 // loop_body
                %v1059 = vld [vmem:[%s1057] sm:$0xff]
                %1060 = vst [vmem:[%s1058] sm:$0xff] %v1059
              $region213: #{custom-call.4} parent=207 // loop_footer
                %s1056 = sadd.s32 1, %s1052
              $region214: #{custom-call.4} parent=207 // loop_footer_branch
                %1051 = sbr.rel target = $region210
              $region215: #{custom-call.4} parent=207 // loop_exit
                _
            $region208: #{custom-call.4} parent=199 // pred_fallthru
              _
          $region200: #{custom-call.4} parent=195 // pred_fallthru
            _
          %1075 = vnop
        $region196: #{custom-call.4} parent=139 // pred_fallthru
          _
        %s1076 = smul.addr %s17, 2
        %s1077 = scalar_lea.vmem %s6, %s1076
        // Predicated region
        $region231: #{custom-call.4} parent=139 // pred_check
          _
        $region232: #{custom-call.4} parent=139 // pred_check_branch
          %1079 = sbr.rel (0) target = $region234
        $region233: #{custom-call.4} parent=139 // pred_region
          // Predicated region
          $region235: #{custom-call.4} parent=233 // pred_check
            _
          $region236: #{custom-call.4} parent=233 // pred_check_branch
            %1081 = sbr.rel target = $region238
          $region237: #{custom-call.4} parent=233 // pred_region
            // Predicated region
            $region250: #{custom-call.4} parent=237 // pred_check
              _
            $region251: #{custom-call.4} parent=237 // pred_check_branch
              %1096 = sbr.rel (0) target = $region253
            $region252: #{custom-call.4} parent=237 // pred_region
              loop: start=0, step=1, limit=1
              $region254: #{custom-call.4} parent=252 // loop_pre_header
                _
              $region255: #{custom-call.4} parent=252 // loop_header
                %s1099 = sphi 0, %s1103
                %p1100 = scmp.ge.s32.totalorder %s1099, 1
                %s1104 = sphi %s987, %s987
                %s1105 = sphi %s1077, %s1077
              $region256: #{custom-call.4} parent=252 // loop_header_branch
                %1102 = sbr.rel (%p1100) target = $region260
              $region257: #{custom-call.4} parent=252 // loop_body
                %v1106 = vld [vmem:[%s1104] sm:$0x3]
                %1107 = vst [vmem:[%s1105] sm:$0x3] %v1106
              $region258: #{custom-call.4} parent=252 // loop_footer
                %s1103 = sadd.s32 1, %s1099
              $region259: #{custom-call.4} parent=252 // loop_footer_branch
                %1098 = sbr.rel target = $region255
              $region260: #{custom-call.4} parent=252 // loop_exit
                _
            $region253: #{custom-call.4} parent=237 // pred_fallthru
              _
          $region238: #{custom-call.4} parent=233 // pred_fallthru
            _
          // Predicated region
          $region239: #{custom-call.4} parent=233 // pred_check
            _
          $region240: #{custom-call.4} parent=233 // pred_check_branch
            %1083 = sbr.rel (0) target = $region242
          $region241: #{custom-call.4} parent=233 // pred_region
            loop: start=0, step=1, limit=1
            $region243: #{custom-call.4} parent=241 // loop_pre_header
              _
            $region244: #{custom-call.4} parent=241 // loop_header
              %s1086 = sphi 0, %s1090
              %p1087 = scmp.ge.s32.totalorder %s1086, 1
              %s1091 = sphi %s987, %s987
              %s1092 = sphi %s1077, %s1077
            $region245: #{custom-call.4} parent=241 // loop_header_branch
              %1089 = sbr.rel (%p1087) target = $region249
            $region246: #{custom-call.4} parent=241 // loop_body
              %v1093 = vld [vmem:[%s1091] sm:$0x3]
              %1094 = vst [vmem:[%s1092] sm:$0x3] %v1093
            $region247: #{custom-call.4} parent=241 // loop_footer
              %s1090 = sadd.s32 1, %s1086
            $region248: #{custom-call.4} parent=241 // loop_footer_branch
              %1085 = sbr.rel target = $region244
            $region249: #{custom-call.4} parent=241 // loop_exit
              _
          $region242: #{custom-call.4} parent=233 // pred_fallthru
            _
        $region234: #{custom-call.4} parent=139 // pred_fallthru
          _
        %1108 = vnop
        %s1109 = smul.addr %s17, 2
        %s1110 = scalar_lea.vmem %s7, %s1109
        // Predicated region
        $region261: #{custom-call.4} parent=139 // pred_check
          _
        $region262: #{custom-call.4} parent=139 // pred_check_branch
          %1112 = sbr.rel (0) target = $region264
        $region263: #{custom-call.4} parent=139 // pred_region
          // Predicated region
          $region265: #{custom-call.4} parent=263 // pred_check
            _
          $region266: #{custom-call.4} parent=263 // pred_check_branch
            %1114 = sbr.rel target = $region268
          $region267: #{custom-call.4} parent=263 // pred_region
            // Predicated region
            $region280: #{custom-call.4} parent=267 // pred_check
              _
            $region281: #{custom-call.4} parent=267 // pred_check_branch
              %1129 = sbr.rel (0) target = $region283
            $region282: #{custom-call.4} parent=267 // pred_region
              loop: start=0, step=1, limit=1
              $region284: #{custom-call.4} parent=282 // loop_pre_header
                _
              $region285: #{custom-call.4} parent=282 // loop_header
                %s1132 = sphi 0, %s1136
                %p1133 = scmp.ge.s32.totalorder %s1132, 1
                %s1137 = sphi %s991, %s991
                %s1138 = sphi %s1110, %s1110
              $region286: #{custom-call.4} parent=282 // loop_header_branch
                %1135 = sbr.rel (%p1133) target = $region290
              $region287: #{custom-call.4} parent=282 // loop_body
                %v1139 = vld [vmem:[%s1137] sm:$0x3]
                %1140 = vst [vmem:[%s1138] sm:$0x3] %v1139
              $region288: #{custom-call.4} parent=282 // loop_footer
                %s1136 = sadd.s32 1, %s1132
              $region289: #{custom-call.4} parent=282 // loop_footer_branch
                %1131 = sbr.rel target = $region285
              $region290: #{custom-call.4} parent=282 // loop_exit
                _
            $region283: #{custom-call.4} parent=267 // pred_fallthru
              _
          $region268: #{custom-call.4} parent=263 // pred_fallthru
            _
          // Predicated region
          $region269: #{custom-call.4} parent=263 // pred_check
            _
          $region270: #{custom-call.4} parent=263 // pred_check_branch
            %1116 = sbr.rel (0) target = $region272
          $region271: #{custom-call.4} parent=263 // pred_region
            loop: start=0, step=1, limit=1
            $region273: #{custom-call.4} parent=271 // loop_pre_header
              _
            $region274: #{custom-call.4} parent=271 // loop_header
              %s1119 = sphi 0, %s1123
              %p1120 = scmp.ge.s32.totalorder %s1119, 1
              %s1124 = sphi %s991, %s991
              %s1125 = sphi %s1110, %s1110
            $region275: #{custom-call.4} parent=271 // loop_header_branch
              %1122 = sbr.rel (%p1120) target = $region279
            $region276: #{custom-call.4} parent=271 // loop_body
              %v1126 = vld [vmem:[%s1124] sm:$0x3]
              %1127 = vst [vmem:[%s1125] sm:$0x3] %v1126
            $region277: #{custom-call.4} parent=271 // loop_footer
              %s1123 = sadd.s32 1, %s1119
            $region278: #{custom-call.4} parent=271 // loop_footer_branch
              %1118 = sbr.rel target = $region274
            $region279: #{custom-call.4} parent=271 // loop_exit
              _
          $region272: #{custom-call.4} parent=263 // pred_fallthru
            _
        $region264: #{custom-call.4} parent=139 // pred_fallthru
          _
        %1141 = vnop
        %s1142 = smul.addr %s17, 2
        %s1143 = scalar_lea.vmem %s8, %s1142
        // Predicated region
        $region291: #{custom-call.4} parent=139 // pred_check
          _
        $region292: #{custom-call.4} parent=139 // pred_check_branch
          %1145 = sbr.rel (0) target = $region294
        $region293: #{custom-call.4} parent=139 // pred_region
          // Predicated region
          $region295: #{custom-call.4} parent=293 // pred_check
            _
          $region296: #{custom-call.4} parent=293 // pred_check_branch
            %1147 = sbr.rel target = $region298
          $region297: #{custom-call.4} parent=293 // pred_region
            // Predicated region
            $region310: #{custom-call.4} parent=297 // pred_check
              _
            $region311: #{custom-call.4} parent=297 // pred_check_branch
              %1162 = sbr.rel (0) target = $region313
            $region312: #{custom-call.4} parent=297 // pred_region
              loop: start=0, step=1, limit=1
              $region314: #{custom-call.4} parent=312 // loop_pre_header
                _
              $region315: #{custom-call.4} parent=312 // loop_header
                %s1165 = sphi 0, %s1169
                %p1166 = scmp.ge.s32.totalorder %s1165, 1
                %s1170 = sphi %s995, %s995
                %s1171 = sphi %s1143, %s1143
              $region316: #{custom-call.4} parent=312 // loop_header_branch
                %1168 = sbr.rel (%p1166) target = $region320
              $region317: #{custom-call.4} parent=312 // loop_body
                %v1172 = vld [vmem:[%s1170] sm:$0x3]
                %1173 = vst [vmem:[%s1171] sm:$0x3] %v1172
              $region318: #{custom-call.4} parent=312 // loop_footer
                %s1169 = sadd.s32 1, %s1165
              $region319: #{custom-call.4} parent=312 // loop_footer_branch
                %1164 = sbr.rel target = $region315
              $region320: #{custom-call.4} parent=312 // loop_exit
                _
            $region313: #{custom-call.4} parent=297 // pred_fallthru
              _
          $region298: #{custom-call.4} parent=293 // pred_fallthru
            _
          // Predicated region
          $region299: #{custom-call.4} parent=293 // pred_check
            _
          $region300: #{custom-call.4} parent=293 // pred_check_branch
            %1149 = sbr.rel (0) target = $region302
          $region301: #{custom-call.4} parent=293 // pred_region
            loop: start=0, step=1, limit=1
            $region303: #{custom-call.4} parent=301 // loop_pre_header
              _
            $region304: #{custom-call.4} parent=301 // loop_header
              %s1152 = sphi 0, %s1156
              %p1153 = scmp.ge.s32.totalorder %s1152, 1
              %s1157 = sphi %s995, %s995
              %s1158 = sphi %s1143, %s1143
            $region305: #{custom-call.4} parent=301 // loop_header_branch
              %1155 = sbr.rel (%p1153) target = $region309
            $region306: #{custom-call.4} parent=301 // loop_body
              %v1159 = vld [vmem:[%s1157] sm:$0x3]
              %1160 = vst [vmem:[%s1158] sm:$0x3] %v1159
            $region307: #{custom-call.4} parent=301 // loop_footer
              %s1156 = sadd.s32 1, %s1152
            $region308: #{custom-call.4} parent=301 // loop_footer_branch
              %1151 = sbr.rel target = $region304
            $region309: #{custom-call.4} parent=301 // loop_exit
              _
          $region302: #{custom-call.4} parent=293 // pred_fallthru
            _
        $region294: #{custom-call.4} parent=139 // pred_fallthru
          _
        %1174 = vnop
        %s1175 = smul.addr %s17, 2
        %s1176 = scalar_lea.vmem %s9, %s1175
        // Predicated region
        $region321: #{custom-call.4} parent=139 // pred_check
          _
        $region322: #{custom-call.4} parent=139 // pred_check_branch
          %1178 = sbr.rel (0) target = $region324
        $region323: #{custom-call.4} parent=139 // pred_region
          // Predicated region
          $region325: #{custom-call.4} parent=323 // pred_check
            _
          $region326: #{custom-call.4} parent=323 // pred_check_branch
            %1180 = sbr.rel target = $region328
          $region327: #{custom-call.4} parent=323 // pred_region
            // Predicated region
            $region340: #{custom-call.4} parent=327 // pred_check
              _
            $region341: #{custom-call.4} parent=327 // pred_check_branch
              %1195 = sbr.rel (0) target = $region343
            $region342: #{custom-call.4} parent=327 // pred_region
              loop: start=0, step=1, limit=1
              $region344: #{custom-call.4} parent=342 // loop_pre_header
                _
              $region345: #{custom-call.4} parent=342 // loop_header
                %s1198 = sphi 0, %s1202
                %p1199 = scmp.ge.s32.totalorder %s1198, 1
                %s1203 = sphi %s999, %s999
                %s1204 = sphi %s1176, %s1176
              $region346: #{custom-call.4} parent=342 // loop_header_branch
                %1201 = sbr.rel (%p1199) target = $region350
              $region347: #{custom-call.4} parent=342 // loop_body
                %v1205 = vld [vmem:[%s1203] sm:$0x3]
                %1206 = vst [vmem:[%s1204] sm:$0x3] %v1205
              $region348: #{custom-call.4} parent=342 // loop_footer
                %s1202 = sadd.s32 1, %s1198
              $region349: #{custom-call.4} parent=342 // loop_footer_branch
                %1197 = sbr.rel target = $region345
              $region350: #{custom-call.4} parent=342 // loop_exit
                _
            $region343: #{custom-call.4} parent=327 // pred_fallthru
              _
          $region328: #{custom-call.4} parent=323 // pred_fallthru
            _
          // Predicated region
          $region329: #{custom-call.4} parent=323 // pred_check
            _
          $region330: #{custom-call.4} parent=323 // pred_check_branch
            %1182 = sbr.rel (0) target = $region332
          $region331: #{custom-call.4} parent=323 // pred_region
            loop: start=0, step=1, limit=1
            $region333: #{custom-call.4} parent=331 // loop_pre_header
              _
            $region334: #{custom-call.4} parent=331 // loop_header
              %s1185 = sphi 0, %s1189
              %p1186 = scmp.ge.s32.totalorder %s1185, 1
              %s1190 = sphi %s999, %s999
              %s1191 = sphi %s1176, %s1176
            $region335: #{custom-call.4} parent=331 // loop_header_branch
              %1188 = sbr.rel (%p1186) target = $region339
            $region336: #{custom-call.4} parent=331 // loop_body
              %v1192 = vld [vmem:[%s1190] sm:$0x3]
              %1193 = vst [vmem:[%s1191] sm:$0x3] %v1192
            $region337: #{custom-call.4} parent=331 // loop_footer
              %s1189 = sadd.s32 1, %s1185
            $region338: #{custom-call.4} parent=331 // loop_footer_branch
              %1184 = sbr.rel target = $region334
            $region339: #{custom-call.4} parent=331 // loop_exit
              _
          $region332: #{custom-call.4} parent=323 // pred_fallthru
            _
        $region324: #{custom-call.4} parent=139 // pred_fallthru
          _
        %1207 = vnop
      $region140: #{custom-call.4} parent=5 // pred_fallthru
        _
      %p1208 = scmp.le.s32.totalorder 2, %s12
      // Predicated region
      $region351: #{custom-call.4} parent=5 // pred_check
        %p1209 = pneg %p1208
      $region352: #{custom-call.4} parent=5 // pred_check_branch
        %1211 = sbr.rel (%p1209) target = $region354
      $region353: #{custom-call.4} parent=5 // pred_region
        %s1212 = ssub.s32 %s12, 2
        // Predicated region
        $region355: #{custom-call.4} parent=353 // pred_check
          %p1213 = pneg %p43
        $region356: #{custom-call.4} parent=353 // pred_check_branch
          %1215 = sbr.rel (%p1213) target = $region358
        $region357: #{custom-call.4} parent=353 // pred_region
          %s1216 = sand.u32 %s28, 1
          %s1217 = sand.u32 %s28, 1
          %s1218 = smul.addr %s1217, 8
          %s1219 = scalar_lea.vmem [#allocation8], %s1218
        $region358: #{custom-call.4} parent=353 // pred_fallthru
          _
        // Predicated region
        $region359: #{custom-call.4} parent=353 // pred_check
          %p1220 = pneg %p71
        $region360: #{custom-call.4} parent=353 // pred_check_branch
          %1222 = sbr.rel (%p1220) target = $region362
        $region361: #{custom-call.4} parent=353 // pred_region
          %s1223 = sand.u32 %s56, 1
          %s1224 = sand.u32 %s56, 1
          %s1225 = smul.addr %s1224, 8
          %s1226 = scalar_lea.vmem [#allocation9], %s1225
        $region362: #{custom-call.4} parent=353 // pred_fallthru
          _
        %s1227 = sand.u32 %s18, 1
        %s1228 = sand.u32 %s18, 1
        %s1229 = smul.addr %s1228, 2
        %s1230 = scalar_lea.vmem [#allocation11], %s1229
        %s1231 = sand.u32 %s18, 1
        %s1232 = sand.u32 %s18, 1
        %s1233 = smul.addr %s1232, 2
        %s1234 = scalar_lea.vmem [#allocation13], %s1233
        %s1235 = sand.u32 %s18, 1
        %s1236 = sand.u32 %s18, 1
        %s1237 = smul.addr %s1236, 2
        %s1238 = scalar_lea.vmem [#allocation15], %s1237
        %s1239 = sand.u32 %s18, 1
        %s1240 = sand.u32 %s18, 1
        %s1241 = smul.addr %s1240, 2
        %s1242 = scalar_lea.vmem [#allocation17], %s1241
      $region354: #{custom-call.4} parent=5 // pred_fallthru
        _
    $region6: #{custom-call.4} parent=1 // loop_footer
      %s16 = sadd.s32 1, %s12
    $region7: #{custom-call.4} parent=1 // loop_footer_branch
      %11 = sbr.rel target = $region3
    $region8: #{custom-call.4} parent=1 // loop_exit
      _

// kernel: matt_forward.6
$region0: #{matt_forward.6}
  #allocation0 [shape = 'u32[]', space=smem, size = 0x4, offset = 0x4, fixed_abs, tag = 'smem constant byte address 0x4 - core index']
  #allocation1 [shape = 'u32[144,128]{1,0:T(1,128)}', space=vmem, size = 0x12000, scoped, tag = 'internal scratch']
  %s0 = inlined_call_operand.vmem [shape: f32[10,8,8], index: 0, kind: input, shape index: {}]
  %s1 = inlined_call_operand.vmem [shape: f32[8,12], index: 1, kind: input, shape index: {}]
  %s2 = inlined_call_operand.vmem [shape: f32[3,4,8], index: 2, kind: input, shape index: {}]
  %s3 = inlined_call_operand.vmem [shape: f32[3,10,4,4], index: 3, kind: output, shape index: {}]
  %s4 = sld [smem:[#allocation0]]
  $region82: #{matt_forward.6} parent=0
    _
  %s6 = ssub.s32 1, %s4
  %s7 = scalar_select 0, %s6, %s4
  $region1: #{matt_forward.6} parent=0
    #allocation2 [shape = 'u8[61440]{0}', space=vmem, size = 0xf000, scoped, tag = 'output window, operand 0']
    loop: start=0, step=1, limit=4
    $region2: #{matt_forward.6} parent=1 // loop_pre_header
      _
    $region3: #{matt_forward.6} parent=1 // loop_header
      %s9 = sphi 0, %s13
      %p10 = scmp.ge.s32.totalorder %s9, 4
      %s19 = sphi 0, %s21
      %s22 = sphi 0, %s19
      %s23 = sphi 0, %s22
      %s39 = sphi 0, %s23
      %s43 = sphi 0, %s43
      %s45 = sphi 0, %s43
      %s46 = sphi 0, %s45
      %s60 = sphi 0, %s46
      %s64 = sphi 0, %s64
      %s66 = sphi 0, %s64
      %s67 = sphi 0, %s66
      %s81 = sphi 0, %s67
      %s87 = sphi 0, %s89
      %s90 = sphi 0, %s87
      %s91 = sphi 0, %s90
      %s107 = sphi 0, %s91
    $region4: #{matt_forward.6} parent=1 // loop_header_branch
      %12 = sbr.rel (%p10) target = $region8
    $region5: #{matt_forward.6} parent=1 // loop_body
      %s14 = ssub.s32 %s9, 1
      %s15 = ssub.s32 %s9, 2
      %s16 = sadd.s32 %s9, 1
      %s17 = ssub.s32 %s9, %s16
      %p18 = scmp.eq.s32.totalorder %s17, 0
      %s20 = sadd.s32 %s19, 1
      %s21 = scalar_select %p18, %s19, %s20
      %p24 = pneg %p18
      %p25 = scmp.eq.s32.totalorder %s9, 1
      %p26 = por %p24, %p25
      %p27 = scmp.ne.s32.totalorder %s19, %s22
      %p28 = scmp.eq.s32.totalorder %s9, 0
      %p29 = por %p27, %p28
      %p30 = scmp.ne.s32.totalorder %s19, %s22
      %p31 = scmp.eq.s32.totalorder %s14, 1
      %p32 = por %p30, %p31
      %p33 = scmp.ne.s32.totalorder %s22, %s23
      %p34 = scmp.eq.s32.totalorder %s14, 0
      %p35 = por %p33, %p34
      %p36 = scmp.ne.s32.totalorder %s22, %s23
      %p37 = scmp.eq.s32.totalorder %s15, 1
      %p38 = por %p36, %p37
      %p40 = scmp.ne.s32.totalorder %s23, %s39
      %p41 = scmp.eq.s32.totalorder %s15, 0
      %p42 = por %p40, %p41
      %s44 = sadd.s32 %s43, 1
      %p47 = scmp.eq.s32.totalorder %s9, 1
      %p48 = scmp.ne.s32.totalorder %s43, %s45
      %p49 = scmp.eq.s32.totalorder %s9, 0
      %p50 = por %p48, %p49
      %p51 = scmp.ne.s32.totalorder %s43, %s45
      %p52 = scmp.eq.s32.totalorder %s14, 1
      %p53 = por %p51, %p52
      %p54 = scmp.ne.s32.totalorder %s45, %s46
      %p55 = scmp.eq.s32.totalorder %s14, 0
      %p56 = por %p54, %p55
      %p57 = scmp.ne.s32.totalorder %s45, %s46
      %p58 = scmp.eq.s32.totalorder %s15, 1
      %p59 = por %p57, %p58
      %p61 = scmp.ne.s32.totalorder %s46, %s60
      %p62 = scmp.eq.s32.totalorder %s15, 0
      %p63 = por %p61, %p62
      %s65 = sadd.s32 %s64, 1
      %p68 = scmp.eq.s32.totalorder %s9, 1
      %p69 = scmp.ne.s32.totalorder %s64, %s66
      %p70 = scmp.eq.s32.totalorder %s9, 0
      %p71 = por %p69, %p70
      %p72 = scmp.ne.s32.totalorder %s64, %s66
      %p73 = scmp.eq.s32.totalorder %s14, 1
      %p74 = por %p72, %p73
      %p75 = scmp.ne.s32.totalorder %s66, %s67
      %p76 = scmp.eq.s32.totalorder %s14, 0
      %p77 = por %p75, %p76
      %p78 = scmp.ne.s32.totalorder %s66, %s67
      %p79 = scmp.eq.s32.totalorder %s15, 1
      %p80 = por %p78, %p79
      %p82 = scmp.ne.s32.totalorder %s67, %s81
      %p83 = scmp.eq.s32.totalorder %s15, 0
      %p84 = por %p82, %p83
      %s85 = ssub.s32 %s9, %s16
      %p86 = scmp.eq.s32.totalorder %s85, 0
      %s88 = sadd.s32 %s87, 1
      %s89 = scalar_select %p86, %s87, %s88
      %p92 = pneg %p86
      %p93 = scmp.eq.s32.totalorder %s9, 1
      %p94 = por %p92, %p93
      %p95 = scmp.ne.s32.totalorder %s87, %s90
      %p96 = scmp.eq.s32.totalorder %s9, 0
      %p97 = por %p95, %p96
      %p98 = scmp.ne.s32.totalorder %s87, %s90
      %p99 = scmp.eq.s32.totalorder %s14, 1
      %p100 = por %p98, %p99
      %p101 = scmp.ne.s32.totalorder %s90, %s91
      %p102 = scmp.eq.s32.totalorder %s14, 0
      %p103 = por %p101, %p102
      %p104 = scmp.ne.s32.totalorder %s90, %s91
      %p105 = scmp.eq.s32.totalorder %s15, 1
      %p106 = por %p104, %p105
      %p108 = scmp.ne.s32.totalorder %s91, %s107
      %p109 = scmp.eq.s32.totalorder %s15, 0
      %p110 = por %p108, %p109
      %p111 = scmp.le.s32.totalorder 1, %s9
      %p112 = scmp.lt.s32.totalorder %s9, 3
      %p113 = pnand %p111, %p112
      %p114 = pneg %p113
      // Predicated region
      $region9: #{matt_forward.6} parent=5 // pred_check
        _
      $region10: #{matt_forward.6} parent=5 // pred_check_branch
        %116 = sbr.rel (%p113) target = $region12
      $region11: #{matt_forward.6} parent=5 // pred_region
        %s117 = ssub.s32 %s9, 1
        // Predicated region
        $region13: #{matt_forward.6} parent=11 // pred_check
          %p118 = pneg %p56
        $region14: #{matt_forward.6} parent=11 // pred_check_branch
          %120 = sbr.rel (%p118) target = $region16
        $region15: #{matt_forward.6} parent=11 // pred_region
          _
        $region16: #{matt_forward.6} parent=11 // pred_fallthru
          _
        // Predicated region
        $region17: #{matt_forward.6} parent=11 // pred_check
          %p121 = pneg %p77
        $region18: #{matt_forward.6} parent=11 // pred_check_branch
          %123 = sbr.rel (%p121) target = $region20
        $region19: #{matt_forward.6} parent=11 // pred_region
          _
        $region20: #{matt_forward.6} parent=11 // pred_fallthru
          _
      $region12: #{matt_forward.6} parent=5 // pred_fallthru
        _
      %p124 = scmp.lt.s32.totalorder %s9, 2
      // Predicated region
      $region21: #{matt_forward.6} parent=5 // pred_check
        %p125 = pneg %p124
      $region22: #{matt_forward.6} parent=5 // pred_check_branch
        %127 = sbr.rel (%p125) target = $region24
      $region23: #{matt_forward.6} parent=5 // pred_region
        // Predicated region
        $region25: #{matt_forward.6} parent=23 // pred_check
          %p128 = pneg %p29
        $region26: #{matt_forward.6} parent=23 // pred_check_branch
          %130 = sbr.rel (%p128) target = $region28
        $region27: #{matt_forward.6} parent=23 // pred_region
          %s131 = smul.u32 5, %s9
          %p132 = scmp.lt.s32.totalorder %s131, 9
          %s133 = scalar_select %p132, %s131, 9
          %s134 = smul.addr %s133, 8
          %s135 = scalar_lea.vmem %s0, %s134
          %s136 = smul.u32 5, %s9
        $region28: #{matt_forward.6} parent=23 // pred_fallthru
          _
      $region24: #{matt_forward.6} parent=5 // pred_fallthru
        _
      %p137 = scmp.le.s32.totalorder 1, %s9
      %p138 = scmp.lt.s32.totalorder %s9, 3
      %p139 = pnand %p137, %p138
      %p140 = pneg %p139
      // Predicated region
      $region29: #{matt_forward.6} parent=5 // pred_check
        _
      $region30: #{matt_forward.6} parent=5 // pred_check_branch
        %142 = sbr.rel (%p139) target = $region32
      $region31: #{matt_forward.6} parent=5 // pred_region
        %s143 = ssub.s32 %s9, 1
        %s144 = smul.u32 5, %s14
        %p145 = scmp.lt.s32.totalorder %s144, 9
        %s146 = scalar_select %p145, %s144, 9
        %s147 = smul.addr %s146, 8
        %s148 = scalar_lea.vmem %s0, %s147
        %p149 = pneg %p35
        %p150 = pneg %p32
        %p151 = pneg %p56
        %p152 = pneg %p53
        %p153 = pneg %p77
        %p154 = pneg %p74
        %p155 = pneg %p103
        %p156 = pneg %p100
        %s157 = sand.u32 %s90, 1
        %s158 = sand.u32 %s90, 1
        %s159 = smul.addr %s158, 60
        %s160 = scalar_lea.vmem [#allocation2], %s159
        %s161 = smul.u32 5, %s14
        %p162 = scmp.lt.s32.totalorder %s161, 9
        %s163 = scalar_select %p162, %s161, 9
        %s164 = smul.addr %s163, 8
        %s165 = scalar_lea.vmem %s0, %s164
        %s166 = smul.u32 5, %s14
        %s167 = smul.u32 5, %s14
        %v168 = vld [vmem:[%s165] sm:$0xff]
        %v169 = vld [vmem:[%s165 + $0x8] sm:$0xff]
        %v170 = vld [vmem:[%s165 + $0x10] sm:$0xff]
        %v171 = vld [vmem:[%s165 + $0x18] sm:$0xff]
        %v172 = vld [vmem:[%s165 + $0x20] sm:$0xff]
        %v173 = vld [vmem:[%s1] sm:$0xff]
        %vm174 = vcmask 64512
        %v176 = vsel %vm174, %v168, 0
        %v179 = vsel %vm174, %v169, 0
        %v182 = vsel %vm174, %v170, 0
        %v185 = vsel %vm174, %v171, 0
        %v188 = vsel %vm174, %v172, 0
        %190 = vmatprep.subr.mxu0 0.0
        %191 = vmatpush1.msra.mxu0 %v173
        %192 = vmatprep.subr.mxu0 0.0
        %193 = vmatpush1.msra.mxu0 0.0
        %194 = vmatprep.subr.mxu0 0.0
        %195 = vmatpush1.msra.mxu0 0.0
        %196 = vmatprep.subr.mxu0 0.0
        %197 = vmatpush1.msra.mxu0 0.0
        %198 = vmatprep.subr.mxu0 0.0
        %199 = vmatpush1.msra.mxu0 0.0
        %200 = vmatprep.subr.mxu0 0.0
        %201 = vmatpush1.msra.mxu0 0.0
        %202 = vmatprep.subr.mxu0 0.0
        %203 = vmatpush1.msra.mxu0 0.0
        %204 = vmatprep.subr.mxu0 0.0
        %205 = vmatpush1.msra.mxu0 0.0
        %206 = vmatprep.subr.mxu0 0.0
        %207 = vmatpush1.msra.mxu0 0.0
        %208 = vmatprep.subr.mxu0 0.0
        %209 = vmatpush1.msra.mxu0 0.0
        %210 = vmatprep.subr.mxu0 0.0
        %211 = vmatpush1.msra.mxu0 0.0
        %212 = vmatprep.subr.mxu0 0.0
        %213 = vmatpush1.msra.mxu0 0.0
        %214 = vmatprep.subr.mxu0 0.0
        %215 = vmatpush1.msra.mxu0 0.0
        %216 = vmatprep.subr.mxu0 0.0
        %217 = vmatpush1.msra.mxu0 0.0
        %218 = vmatprep.subr.mxu0 0.0
        %219 = vmatpush1.msra.mxu0 0.0
        %220 = vmatprep.subr.mxu0 0.0
        %221 = vmatpush1.msra.mxu0 0.0
        %222 = vmatprep.subr.mxu0 0.0
        %223 = vmatpush1.msra.mxu0 0.0
        %224 = vmatprep.subr.mxu0 0.0
        %225 = vmatpush1.msra.mxu0 0.0
        %226 = vmatprep.subr.mxu0 0.0
        %227 = vmatpush1.msra.mxu0 0.0
        %228 = vmatprep.subr.mxu0 0.0
        %229 = vmatpush1.msra.mxu0 0.0
        %230 = vmatprep.subr.mxu0 0.0
        %231 = vmatpush1.msra.mxu0 0.0
        %232 = vmatprep.subr.mxu0 0.0
        %233 = vmatpush1.msra.mxu0 0.0
        %234 = vmatprep.subr.mxu0 0.0
        %235 = vmatpush1.msra.mxu0 0.0
        %236 = vmatprep.subr.mxu0 0.0
        %237 = vmatpush1.msra.mxu0 0.0
        %238 = vmatprep.subr.mxu0 0.0
        %239 = vmatpush1.msra.mxu0 0.0
        %240 = vmatprep.subr.mxu0 0.0
        %241 = vmatpush1.msra.mxu0 0.0
        %242 = vmatprep.subr.mxu0 0.0
        %243 = vmatpush1.msra.mxu0 0.0
        %244 = vmatprep.subr.mxu0 0.0
        %245 = vmatpush1.msra.mxu0 0.0
        %246 = vmatprep.subr.mxu0 0.0
        %247 = vmatpush1.msra.mxu0 0.0
        %248 = vmatprep.subr.mxu0 0.0
        %249 = vmatpush1.msra.mxu0 0.0
        %250 = vmatprep.subr.mxu0 0.0
        %251 = vmatpush1.msra.mxu0 0.0
        %252 = vmatprep.subr.mxu0 0.0
        %253 = vmatpush1.msra.mxu0 0.0
        %254 = vmatprep.mubr.f32.mxu0 0.0
        %255 = vmatmul.mubr.f32.gmra.mrb[0].mxu0 %v176
        %v256 = vpop.f32.mrb[0].mxu0
        %v257 = vadd.f32 0.0, %v256
        %v258 = vpop.f32.mrb[0].mxu0
        %259 = vmatprep.mubr.f32.mxu0 0.0
        %260 = vmatmul.mubr.f32.gmra.mrb[0].mxu0 %v179
        %v261 = vpop.f32.mrb[0].mxu0
        %v262 = vadd.f32 0.0, %v261
        %v263 = vpop.f32.mrb[0].mxu0
        %264 = vmatprep.mubr.f32.mxu0 0.0
        %265 = vmatmul.mubr.f32.gmra.mrb[0].mxu0 %v182
        %v266 = vpop.f32.mrb[0].mxu0
        %v267 = vadd.f32 0.0, %v266
        %v268 = vpop.f32.mrb[0].mxu0
        %269 = vmatprep.mubr.f32.mxu0 0.0
        %270 = vmatmul.mubr.f32.gmra.mrb[0].mxu0 %v185
        %v271 = vpop.f32.mrb[0].mxu0
        %v272 = vadd.f32 0.0, %v271
        %v273 = vpop.f32.mrb[0].mxu0
        %274 = vmatprep.mubr.f32.mxu0 0.0
        %275 = vmatmul.mubr.f32.gmra.mrb[0].mxu0 %v188
        %v276 = vpop.f32.mrb[0].mxu0
        %v277 = vadd.f32 0.0, %v276
        %v278 = vpop.f32.mrb[0].mxu0
        %279 = vdwg.mxu0
        %v280 = vld [vmem:[%s2] sm:$0xf]
        %v282 = vsel %vm174, %v280, 0
        %284 = vmatprep.subr.mxu0 0.0
        %285 = vmatpush1.msra.mxu0 %v257
        %286 = vmatprep.subr.mxu0 0.0
        %287 = vmatpush1.msra.mxu0 0.0
        %288 = vmatprep.subr.mxu0 0.0
        %289 = vmatpush1.msra.mxu0 0.0
        %290 = vmatprep.subr.mxu0 0.0
        %291 = vmatpush1.msra.mxu0 0.0
        %292 = vmatprep.subr.mxu0 0.0
        %293 = vmatpush1.msra.mxu0 0.0
        %294 = vmatprep.subr.mxu0 0.0
        %295 = vmatpush1.msra.mxu0 0.0
        %296 = vmatprep.subr.mxu0 0.0
        %297 = vmatpush1.msra.mxu0 0.0
        %298 = vmatprep.subr.mxu0 0.0
        %299 = vmatpush1.msra.mxu0 0.0
        %300 = vmatprep.subr.mxu0 0.0
        %301 = vmatpush1.msra.mxu0 0.0
        %302 = vmatprep.subr.mxu0 0.0
        %303 = vmatpush1.msra.mxu0 0.0
        %304 = vmatprep.subr.mxu0 0.0
        %305 = vmatpush1.msra.mxu0 0.0
        %306 = vmatprep.subr.mxu0 0.0
        %307 = vmatpush1.msra.mxu0 0.0
        %308 = vmatprep.subr.mxu0 0.0
        %309 = vmatpush1.msra.mxu0 0.0
        %310 = vmatprep.subr.mxu0 0.0
        %311 = vmatpush1.msra.mxu0 0.0
        %312 = vmatprep.subr.mxu0 0.0
        %313 = vmatpush1.msra.mxu0 0.0
        %314 = vmatprep.subr.mxu0 0.0
        %315 = vmatpush1.msra.mxu0 0.0
        %316 = vmatprep.subr.mxu0 0.0
        %317 = vmatpush1.msra.mxu0 0.0
        %318 = vmatprep.subr.mxu0 0.0
        %319 = vmatpush1.msra.mxu0 0.0
        %320 = vmatprep.subr.mxu0 0.0
        %321 = vmatpush1.msra.mxu0 0.0
        %322 = vmatprep.subr.mxu0 0.0
        %323 = vmatpush1.msra.mxu0 0.0
        %324 = vmatprep.subr.mxu0 0.0
        %325 = vmatpush1.msra.mxu0 0.0
        %326 = vmatprep.subr.mxu0 0.0
        %327 = vmatpush1.msra.mxu0 0.0
        %328 = vmatprep.subr.mxu0 0.0
        %329 = vmatpush1.msra.mxu0 0.0
        %330 = vmatprep.subr.mxu0 0.0
        %331 = vmatpush1.msra.mxu0 0.0
        %332 = vmatprep.subr.mxu0 0.0
        %333 = vmatpush1.msra.mxu0 0.0
        %334 = vmatprep.subr.mxu0 0.0
        %335 = vmatpush1.msra.mxu0 0.0
        %336 = vmatprep.subr.mxu0 0.0
        %337 = vmatpush1.msra.mxu0 0.0
        %338 = vmatprep.subr.mxu0 0.0
        %339 = vmatpush1.msra.mxu0 0.0
        %340 = vmatprep.subr.mxu0 0.0
        %341 = vmatpush1.msra.mxu0 0.0
        %342 = vmatprep.subr.mxu0 0.0
        %343 = vmatpush1.msra.mxu0 0.0
        %344 = vmatprep.subr.mxu0 0.0
        %345 = vmatpush1.msra.mxu0 0.0
        %346 = vmatprep.subr.mxu0 0.0
        %347 = vmatpush1.msra.mxu0 0.0
        %348 = vmatprep.mubr.f32.mxu0 0.0
        %349 = vmatmul.mubr.f32.gmra.mrb[0].mxu0 %v282
        %v350 = vpop.f32.mrb[0].mxu0
        %v351 = vadd.f32 0.0, %v350
        %v352 = vpop.f32.mrb[0].mxu0
        %353 = vdwg.mxu0
        %354 = vmatprep.subr.mxu0 0.0
        %355 = vmatpush1.msra.mxu0 %v262
        %356 = vmatprep.subr.mxu0 0.0
        %357 = vmatpush1.msra.mxu0 0.0
        %358 = vmatprep.subr.mxu0 0.0
        %359 = vmatpush1.msra.mxu0 0.0
        %360 = vmatprep.subr.mxu0 0.0
        %361 = vmatpush1.msra.mxu0 0.0
        %362 = vmatprep.subr.mxu0 0.0
        %363 = vmatpush1.msra.mxu0 0.0
        %364 = vmatprep.subr.mxu0 0.0
        %365 = vmatpush1.msra.mxu0 0.0
        %366 = vmatprep.subr.mxu0 0.0
        %367 = vmatpush1.msra.mxu0 0.0
        %368 = vmatprep.subr.mxu0 0.0
        %369 = vmatpush1.msra.mxu0 0.0
        %370 = vmatprep.subr.mxu0 0.0
        %371 = vmatpush1.msra.mxu0 0.0
        %372 = vmatprep.subr.mxu0 0.0
        %373 = vmatpush1.msra.mxu0 0.0
        %374 = vmatprep.subr.mxu0 0.0
        %375 = vmatpush1.msra.mxu0 0.0
        %376 = vmatprep.subr.mxu0 0.0
        %377 = vmatpush1.msra.mxu0 0.0
        %378 = vmatprep.subr.mxu0 0.0
        %379 = vmatpush1.msra.mxu0 0.0
        %380 = vmatprep.subr.mxu0 0.0
        %381 = vmatpush1.msra.mxu0 0.0
        %382 = vmatprep.subr.mxu0 0.0
        %383 = vmatpush1.msra.mxu0 0.0
        %384 = vmatprep.subr.mxu0 0.0
        %385 = vmatpush1.msra.mxu0 0.0
        %386 = vmatprep.subr.mxu0 0.0
        %387 = vmatpush1.msra.mxu0 0.0
        %388 = vmatprep.subr.mxu0 0.0
        %389 = vmatpush1.msra.mxu0 0.0
        %390 = vmatprep.subr.mxu0 0.0
        %391 = vmatpush1.msra.mxu0 0.0
        %392 = vmatprep.subr.mxu0 0.0
        %393 = vmatpush1.msra.mxu0 0.0
        %394 = vmatprep.subr.mxu0 0.0
        %395 = vmatpush1.msra.mxu0 0.0
        %396 = vmatprep.subr.mxu0 0.0
        %397 = vmatpush1.msra.mxu0 0.0
        %398 = vmatprep.subr.mxu0 0.0
        %399 = vmatpush1.msra.mxu0 0.0
        %400 = vmatprep.subr.mxu0 0.0
        %401 = vmatpush1.msra.mxu0 0.0
        %402 = vmatprep.subr.mxu0 0.0
        %403 = vmatpush1.msra.mxu0 0.0
        %404 = vmatprep.subr.mxu0 0.0
        %405 = vmatpush1.msra.mxu0 0.0
        %406 = vmatprep.subr.mxu0 0.0
        %407 = vmatpush1.msra.mxu0 0.0
        %408 = vmatprep.subr.mxu0 0.0
        %409 = vmatpush1.msra.mxu0 0.0
        %410 = vmatprep.subr.mxu0 0.0
        %411 = vmatpush1.msra.mxu0 0.0
        %412 = vmatprep.subr.mxu0 0.0
        %413 = vmatpush1.msra.mxu0 0.0
        %414 = vmatprep.subr.mxu0 0.0
        %415 = vmatpush1.msra.mxu0 0.0
        %416 = vmatprep.subr.mxu0 0.0
        %417 = vmatpush1.msra.mxu0 0.0
        %418 = vmatprep.mubr.f32.mxu0 0.0
        %419 = vmatmul.mubr.f32.gmra.mrb[0].mxu0 %v282
        %v420 = vpop.f32.mrb[0].mxu0
        %v421 = vadd.f32 0.0, %v420
        %v422 = vpop.f32.mrb[0].mxu0
        %423 = vdwg.mxu0
        %424 = vmatprep.subr.mxu0 0.0
        %425 = vmatpush1.msra.mxu0 %v267
        %426 = vmatprep.subr.mxu0 0.0
        %427 = vmatpush1.msra.mxu0 0.0
        %428 = vmatprep.subr.mxu0 0.0
        %429 = vmatpush1.msra.mxu0 0.0
        %430 = vmatprep.subr.mxu0 0.0
        %431 = vmatpush1.msra.mxu0 0.0
        %432 = vmatprep.subr.mxu0 0.0
        %433 = vmatpush1.msra.mxu0 0.0
        %434 = vmatprep.subr.mxu0 0.0
        %435 = vmatpush1.msra.mxu0 0.0
        %436 = vmatprep.subr.mxu0 0.0
        %437 = vmatpush1.msra.mxu0 0.0
        %438 = vmatprep.subr.mxu0 0.0
        %439 = vmatpush1.msra.mxu0 0.0
        %440 = vmatprep.subr.mxu0 0.0
        %441 = vmatpush1.msra.mxu0 0.0
        %442 = vmatprep.subr.mxu0 0.0
        %443 = vmatpush1.msra.mxu0 0.0
        %444 = vmatprep.subr.mxu0 0.0
        %445 = vmatpush1.msra.mxu0 0.0
        %446 = vmatprep.subr.mxu0 0.0
        %447 = vmatpush1.msra.mxu0 0.0
        %448 = vmatprep.subr.mxu0 0.0
        %449 = vmatpush1.msra.mxu0 0.0
        %450 = vmatprep.subr.mxu0 0.0
        %451 = vmatpush1.msra.mxu0 0.0
        %452 = vmatprep.subr.mxu0 0.0
        %453 = vmatpush1.msra.mxu0 0.0
        %454 = vmatprep.subr.mxu0 0.0
        %455 = vmatpush1.msra.mxu0 0.0
        %456 = vmatprep.subr.mxu0 0.0
        %457 = vmatpush1.msra.mxu0 0.0
        %458 = vmatprep.subr.mxu0 0.0
        %459 = vmatpush1.msra.mxu0 0.0
        %460 = vmatprep.subr.mxu0 0.0
        %461 = vmatpush1.msra.mxu0 0.0
        %462 = vmatprep.subr.mxu0 0.0
        %463 = vmatpush1.msra.mxu0 0.0
        %464 = vmatprep.subr.mxu0 0.0
        %465 = vmatpush1.msra.mxu0 0.0
        %466 = vmatprep.subr.mxu0 0.0
        %467 = vmatpush1.msra.mxu0 0.0
        %468 = vmatprep.subr.mxu0 0.0
        %469 = vmatpush1.msra.mxu0 0.0
        %470 = vmatprep.subr.mxu0 0.0
        %471 = vmatpush1.msra.mxu0 0.0
        %472 = vmatprep.subr.mxu0 0.0
        %473 = vmatpush1.msra.mxu0 0.0
        %474 = vmatprep.subr.mxu0 0.0
        %475 = vmatpush1.msra.mxu0 0.0
        %476 = vmatprep.subr.mxu0 0.0
        %477 = vmatpush1.msra.mxu0 0.0
        %478 = vmatprep.subr.mxu0 0.0
        %479 = vmatpush1.msra.mxu0 0.0
        %480 = vmatprep.subr.mxu0 0.0
        %481 = vmatpush1.msra.mxu0 0.0
        %482 = vmatprep.subr.mxu0 0.0
        %483 = vmatpush1.msra.mxu0 0.0
        %484 = vmatprep.subr.mxu0 0.0
        %485 = vmatpush1.msra.mxu0 0.0
        %486 = vmatprep.subr.mxu0 0.0
        %487 = vmatpush1.msra.mxu0 0.0
        %488 = vmatprep.mubr.f32.mxu0 0.0
        %489 = vmatmul.mubr.f32.gmra.mrb[0].mxu0 %v282
        %v490 = vpop.f32.mrb[0].mxu0
        %v491 = vadd.f32 0.0, %v490
        %v492 = vpop.f32.mrb[0].mxu0
        %493 = vdwg.mxu0
        %494 = vmatprep.subr.mxu0 0.0
        %495 = vmatpush1.msra.mxu0 %v272
        %496 = vmatprep.subr.mxu0 0.0
        %497 = vmatpush1.msra.mxu0 0.0
        %498 = vmatprep.subr.mxu0 0.0
        %499 = vmatpush1.msra.mxu0 0.0
        %500 = vmatprep.subr.mxu0 0.0
        %501 = vmatpush1.msra.mxu0 0.0
        %502 = vmatprep.subr.mxu0 0.0
        %503 = vmatpush1.msra.mxu0 0.0
        %504 = vmatprep.subr.mxu0 0.0
        %505 = vmatpush1.msra.mxu0 0.0
        %506 = vmatprep.subr.mxu0 0.0
        %507 = vmatpush1.msra.mxu0 0.0
        %508 = vmatprep.subr.mxu0 0.0
        %509 = vmatpush1.msra.mxu0 0.0
        %510 = vmatprep.subr.mxu0 0.0
        %511 = vmatpush1.msra.mxu0 0.0
        %512 = vmatprep.subr.mxu0 0.0
        %513 = vmatpush1.msra.mxu0 0.0
        %514 = vmatprep.subr.mxu0 0.0
        %515 = vmatpush1.msra.mxu0 0.0
        %516 = vmatprep.subr.mxu0 0.0
        %517 = vmatpush1.msra.mxu0 0.0
        %518 = vmatprep.subr.mxu0 0.0
        %519 = vmatpush1.msra.mxu0 0.0
        %520 = vmatprep.subr.mxu0 0.0
        %521 = vmatpush1.msra.mxu0 0.0
        %522 = vmatprep.subr.mxu0 0.0
        %523 = vmatpush1.msra.mxu0 0.0
        %524 = vmatprep.subr.mxu0 0.0
        %525 = vmatpush1.msra.mxu0 0.0
        %526 = vmatprep.subr.mxu0 0.0
        %527 = vmatpush1.msra.mxu0 0.0
        %528 = vmatprep.subr.mxu0 0.0
        %529 = vmatpush1.msra.mxu0 0.0
        %530 = vmatprep.subr.mxu0 0.0
        %531 = vmatpush1.msra.mxu0 0.0
        %532 = vmatprep.subr.mxu0 0.0
        %533 = vmatpush1.msra.mxu0 0.0
        %534 = vmatprep.subr.mxu0 0.0
        %535 = vmatpush1.msra.mxu0 0.0
        %536 = vmatprep.subr.mxu0 0.0
        %537 = vmatpush1.msra.mxu0 0.0
        %538 = vmatprep.subr.mxu0 0.0
        %539 = vmatpush1.msra.mxu0 0.0
        %540 = vmatprep.subr.mxu0 0.0
        %541 = vmatpush1.msra.mxu0 0.0
        %542 = vmatprep.subr.mxu0 0.0
        %543 = vmatpush1.msra.mxu0 0.0
        %544 = vmatprep.subr.mxu0 0.0
        %545 = vmatpush1.msra.mxu0 0.0
        %546 = vmatprep.subr.mxu0 0.0
        %547 = vmatpush1.msra.mxu0 0.0
        %548 = vmatprep.subr.mxu0 0.0
        %549 = vmatpush1.msra.mxu0 0.0
        %550 = vmatprep.subr.mxu0 0.0
        %551 = vmatpush1.msra.mxu0 0.0
        %552 = vmatprep.subr.mxu0 0.0
        %553 = vmatpush1.msra.mxu0 0.0
        %554 = vmatprep.subr.mxu0 0.0
        %555 = vmatpush1.msra.mxu0 0.0
        %556 = vmatprep.subr.mxu0 0.0
        %557 = vmatpush1.msra.mxu0 0.0
        %558 = vmatprep.mubr.f32.mxu0 0.0
        %559 = vmatmul.mubr.f32.gmra.mrb[0].mxu0 %v282
        %v560 = vpop.f32.mrb[0].mxu0
        %v561 = vadd.f32 0.0, %v560
        %v562 = vpop.f32.mrb[0].mxu0
        %563 = vdwg.mxu0
        %564 = vmatprep.subr.mxu0 0.0
        %565 = vmatpush1.msra.mxu0 %v277
        %566 = vmatprep.subr.mxu0 0.0
        %567 = vmatpush1.msra.mxu0 0.0
        %568 = vmatprep.subr.mxu0 0.0
        %569 = vmatpush1.msra.mxu0 0.0
        %570 = vmatprep.subr.mxu0 0.0
        %571 = vmatpush1.msra.mxu0 0.0
        %572 = vmatprep.subr.mxu0 0.0
        %573 = vmatpush1.msra.mxu0 0.0
        %574 = vmatprep.subr.mxu0 0.0
        %575 = vmatpush1.msra.mxu0 0.0
        %576 = vmatprep.subr.mxu0 0.0
        %577 = vmatpush1.msra.mxu0 0.0
        %578 = vmatprep.subr.mxu0 0.0
        %579 = vmatpush1.msra.mxu0 0.0
        %580 = vmatprep.subr.mxu0 0.0
        %581 = vmatpush1.msra.mxu0 0.0
        %582 = vmatprep.subr.mxu0 0.0
        %583 = vmatpush1.msra.mxu0 0.0
        %584 = vmatprep.subr.mxu0 0.0
        %585 = vmatpush1.msra.mxu0 0.0
        %586 = vmatprep.subr.mxu0 0.0
        %587 = vmatpush1.msra.mxu0 0.0
        %588 = vmatprep.subr.mxu0 0.0
        %589 = vmatpush1.msra.mxu0 0.0
        %590 = vmatprep.subr.mxu0 0.0
        %591 = vmatpush1.msra.mxu0 0.0
        %592 = vmatprep.subr.mxu0 0.0
        %593 = vmatpush1.msra.mxu0 0.0
        %594 = vmatprep.subr.mxu0 0.0
        %595 = vmatpush1.msra.mxu0 0.0
        %596 = vmatprep.subr.mxu0 0.0
        %597 = vmatpush1.msra.mxu0 0.0
        %598 = vmatprep.subr.mxu0 0.0
        %599 = vmatpush1.msra.mxu0 0.0
        %600 = vmatprep.subr.mxu0 0.0
        %601 = vmatpush1.msra.mxu0 0.0
        %602 = vmatprep.subr.mxu0 0.0
        %603 = vmatpush1.msra.mxu0 0.0
        %604 = vmatprep.subr.mxu0 0.0
        %605 = vmatpush1.msra.mxu0 0.0
        %606 = vmatprep.subr.mxu0 0.0
        %607 = vmatpush1.msra.mxu0 0.0
        %608 = vmatprep.subr.mxu0 0.0
        %609 = vmatpush1.msra.mxu0 0.0
        %610 = vmatprep.subr.mxu0 0.0
        %611 = vmatpush1.msra.mxu0 0.0
        %612 = vmatprep.subr.mxu0 0.0
        %613 = vmatpush1.msra.mxu0 0.0
        %614 = vmatprep.subr.mxu0 0.0
        %615 = vmatpush1.msra.mxu0 0.0
        %616 = vmatprep.subr.mxu0 0.0
        %617 = vmatpush1.msra.mxu0 0.0
        %618 = vmatprep.subr.mxu0 0.0
        %619 = vmatpush1.msra.mxu0 0.0
        %620 = vmatprep.subr.mxu0 0.0
        %621 = vmatpush1.msra.mxu0 0.0
        %622 = vmatprep.subr.mxu0 0.0
        %623 = vmatpush1.msra.mxu0 0.0
        %624 = vmatprep.subr.mxu0 0.0
        %625 = vmatpush1.msra.mxu0 0.0
        %626 = vmatprep.subr.mxu0 0.0
        %627 = vmatpush1.msra.mxu0 0.0
        %628 = vmatprep.mubr.f32.mxu0 0.0
        %629 = vmatmul.mubr.f32.gmra.mrb[0].mxu0 %v282
        %v630 = vpop.f32.mrb[0].mxu0
        %v631 = vadd.f32 0.0, %v630
        %v632 = vpop.f32.mrb[0].mxu0
        %633 = vdwg.mxu0
        %vm634 = vcmask 27648
        %635 = vst.msk [vmem:[%s160] sm:$0xf] %vm634, %v351
        %636 = vst.msk [vmem:[%s160 + $0x4] sm:$0xf] %vm634, %v421
        %637 = vst.msk [vmem:[%s160 + $0x8] sm:$0xf] %vm634, %v491
        %638 = vst.msk [vmem:[%s160 + $0xc] sm:$0xf] %vm634, %v561
        %639 = vst.msk [vmem:[%s160 + $0x10] sm:$0xf] %vm634, %v631
        %s640 = scalar_lea.vmem %s2, 4
        %v641 = vld [vmem:[%s640] sm:$0xf]
        %643 = vrot.lane.b32.xlu0 %v257, 124
        %v644 = vpop.permute.xlu0 %643
        %v647 = vsel %vm174, %v641, 0
        %649 = vmatprep.subr.mxu0 0.0
        %650 = vmatpush1.msra.mxu0 %v644
        %651 = vmatprep.subr.mxu0 0.0
        %652 = vmatpush1.msra.mxu0 0.0
        %653 = vmatprep.subr.mxu0 0.0
        %654 = vmatpush1.msra.mxu0 0.0
        %655 = vmatprep.subr.mxu0 0.0
        %656 = vmatpush1.msra.mxu0 0.0
        %657 = vmatprep.subr.mxu0 0.0
        %658 = vmatpush1.msra.mxu0 0.0
        %659 = vmatprep.subr.mxu0 0.0
        %660 = vmatpush1.msra.mxu0 0.0
        %661 = vmatprep.subr.mxu0 0.0
        %662 = vmatpush1.msra.mxu0 0.0
        %663 = vmatprep.subr.mxu0 0.0
        %664 = vmatpush1.msra.mxu0 0.0
        %665 = vmatprep.subr.mxu0 0.0
        %666 = vmatpush1.msra.mxu0 0.0
        %667 = vmatprep.subr.mxu0 0.0
        %668 = vmatpush1.msra.mxu0 0.0
        %669 = vmatprep.subr.mxu0 0.0
        %670 = vmatpush1.msra.mxu0 0.0
        %671 = vmatprep.subr.mxu0 0.0
        %672 = vmatpush1.msra.mxu0 0.0
        %673 = vmatprep.subr.mxu0 0.0
        %674 = vmatpush1.msra.mxu0 0.0
        %675 = vmatprep.subr.mxu0 0.0
        %676 = vmatpush1.msra.mxu0 0.0
        %677 = vmatprep.subr.mxu0 0.0
        %678 = vmatpush1.msra.mxu0 0.0
        %679 = vmatprep.subr.mxu0 0.0
        %680 = vmatpush1.msra.mxu0 0.0
        %681 = vmatprep.subr.mxu0 0.0
        %682 = vmatpush1.msra.mxu0 0.0
        %683 = vmatprep.subr.mxu0 0.0
        %684 = vmatpush1.msra.mxu0 0.0
        %685 = vmatprep.subr.mxu0 0.0
        %686 = vmatpush1.msra.mxu0 0.0
        %687 = vmatprep.subr.mxu0 0.0
        %688 = vmatpush1.msra.mxu0 0.0
        %689 = vmatprep.subr.mxu0 0.0
        %690 = vmatpush1.msra.mxu0 0.0
        %691 = vmatprep.subr.mxu0 0.0
        %692 = vmatpush1.msra.mxu0 0.0
        %693 = vmatprep.subr.mxu0 0.0
        %694 = vmatpush1.msra.mxu0 0.0
        %695 = vmatprep.subr.mxu0 0.0
        %696 = vmatpush1.msra.mxu0 0.0
        %697 = vmatprep.subr.mxu0 0.0
        %698 = vmatpush1.msra.mxu0 0.0
        %699 = vmatprep.subr.mxu0 0.0
        %700 = vmatpush1.msra.mxu0 0.0
        %701 = vmatprep.subr.mxu0 0.0
        %702 = vmatpush1.msra.mxu0 0.0
        %703 = vmatprep.subr.mxu0 0.0
        %704 = vmatpush1.msra.mxu0 0.0
        %705 = vmatprep.subr.mxu0 0.0
        %706 = vmatpush1.msra.mxu0 0.0
        %707 = vmatprep.subr.mxu0 0.0
        %708 = vmatpush1.msra.mxu0 0.0
        %709 = vmatprep.subr.mxu0 0.0
        %710 = vmatpush1.msra.mxu0 0.0
        %711 = vmatprep.subr.mxu0 0.0
        %712 = vmatpush1.msra.mxu0 0.0
        %713 = vmatprep.mubr.f32.mxu0 0.0
        %714 = vmatmul.mubr.f32.gmra.mrb[0].mxu0 %v647
        %v715 = vpop.f32.mrb[0].mxu0
        %v716 = vadd.f32 0.0, %v715
        %v717 = vpop.f32.mrb[0].mxu0
        %718 = vdwg.mxu0
        %720 = vrot.lane.b32.xlu0 %v262, 124
        %v721 = vpop.permute.xlu0 %720
        %723 = vmatprep.subr.mxu0 0.0
        %724 = vmatpush1.msra.mxu0 %v721
        %725 = vmatprep.subr.mxu0 0.0
        %726 = vmatpush1.msra.mxu0 0.0
        %727 = vmatprep.subr.mxu0 0.0
        %728 = vmatpush1.msra.mxu0 0.0
        %729 = vmatprep.subr.mxu0 0.0
        %730 = vmatpush1.msra.mxu0 0.0
        %731 = vmatprep.subr.mxu0 0.0
        %732 = vmatpush1.msra.mxu0 0.0
        %733 = vmatprep.subr.mxu0 0.0
        %734 = vmatpush1.msra.mxu0 0.0
        %735 = vmatprep.subr.mxu0 0.0
        %736 = vmatpush1.msra.mxu0 0.0
        %737 = vmatprep.subr.mxu0 0.0
        %738 = vmatpush1.msra.mxu0 0.0
        %739 = vmatprep.subr.mxu0 0.0
        %740 = vmatpush1.msra.mxu0 0.0
        %741 = vmatprep.subr.mxu0 0.0
        %742 = vmatpush1.msra.mxu0 0.0
        %743 = vmatprep.subr.mxu0 0.0
        %744 = vmatpush1.msra.mxu0 0.0
        %745 = vmatprep.subr.mxu0 0.0
        %746 = vmatpush1.msra.mxu0 0.0
        %747 = vmatprep.subr.mxu0 0.0
        %748 = vmatpush1.msra.mxu0 0.0
        %749 = vmatprep.subr.mxu0 0.0
        %750 = vmatpush1.msra.mxu0 0.0
        %751 = vmatprep.subr.mxu0 0.0
        %752 = vmatpush1.msra.mxu0 0.0
        %753 = vmatprep.subr.mxu0 0.0
        %754 = vmatpush1.msra.mxu0 0.0
        %755 = vmatprep.subr.mxu0 0.0
        %756 = vmatpush1.msra.mxu0 0.0
        %757 = vmatprep.subr.mxu0 0.0
        %758 = vmatpush1.msra.mxu0 0.0
        %759 = vmatprep.subr.mxu0 0.0
        %760 = vmatpush1.msra.mxu0 0.0
        %761 = vmatprep.subr.mxu0 0.0
        %762 = vmatpush1.msra.mxu0 0.0
        %763 = vmatprep.subr.mxu0 0.0
        %764 = vmatpush1.msra.mxu0 0.0
        %765 = vmatprep.subr.mxu0 0.0
        %766 = vmatpush1.msra.mxu0 0.0
        %767 = vmatprep.subr.mxu0 0.0
        %768 = vmatpush1.msra.mxu0 0.0
        %769 = vmatprep.subr.mxu0 0.0
        %770 = vmatpush1.msra.mxu0 0.0
        %771 = vmatprep.subr.mxu0 0.0
        %772 = vmatpush1.msra.mxu0 0.0
        %773 = vmatprep.subr.mxu0 0.0
        %774 = vmatpush1.msra.mxu0 0.0
        %775 = vmatprep.subr.mxu0 0.0
        %776 = vmatpush1.msra.mxu0 0.0
        %777 = vmatprep.subr.mxu0 0.0
        %778 = vmatpush1.msra.mxu0 0.0
        %779 = vmatprep.subr.mxu0 0.0
        %780 = vmatpush1.msra.mxu0 0.0
        %781 = vmatprep.subr.mxu0 0.0
        %782 = vmatpush1.msra.mxu0 0.0
        %783 = vmatprep.subr.mxu0 0.0
        %784 = vmatpush1.msra.mxu0 0.0
        %785 = vmatprep.subr.mxu0 0.0
        %786 = vmatpush1.msra.mxu0 0.0
        %787 = vmatprep.mubr.f32.mxu0 0.0
        %788 = vmatmul.mubr.f32.gmra.mrb[0].mxu0 %v647
        %v789 = vpop.f32.mrb[0].mxu0
        %v790 = vadd.f32 0.0, %v789
        %v791 = vpop.f32.mrb[0].mxu0
        %792 = vdwg.mxu0
        %794 = vrot.lane.b32.xlu0 %v267, 124
        %v795 = vpop.permute.xlu0 %794
        %797 = vmatprep.subr.mxu0 0.0
        %798 = vmatpush1.msra.mxu0 %v795
        %799 = vmatprep.subr.mxu0 0.0
        %800 = vmatpush1.msra.mxu0 0.0
        %801 = vmatprep.subr.mxu0 0.0
        %802 = vmatpush1.msra.mxu0 0.0
        %803 = vmatprep.subr.mxu0 0.0
        %804 = vmatpush1.msra.mxu0 0.0
        %805 = vmatprep.subr.mxu0 0.0
        %806 = vmatpush1.msra.mxu0 0.0
        %807 = vmatprep.subr.mxu0 0.0
        %808 = vmatpush1.msra.mxu0 0.0
        %809 = vmatprep.subr.mxu0 0.0
        %810 = vmatpush1.msra.mxu0 0.0
        %811 = vmatprep.subr.mxu0 0.0
        %812 = vmatpush1.msra.mxu0 0.0
        %813 = vmatprep.subr.mxu0 0.0
        %814 = vmatpush1.msra.mxu0 0.0
        %815 = vmatprep.subr.mxu0 0.0
        %816 = vmatpush1.msra.mxu0 0.0
        %817 = vmatprep.subr.mxu0 0.0
        %818 = vmatpush1.msra.mxu0 0.0
        %819 = vmatprep.subr.mxu0 0.0
        %820 = vmatpush1.msra.mxu0 0.0
        %821 = vmatprep.subr.mxu0 0.0
        %822 = vmatpush1.msra.mxu0 0.0
        %823 = vmatprep.subr.mxu0 0.0
        %824 = vmatpush1.msra.mxu0 0.0
        %825 = vmatprep.subr.mxu0 0.0
        %826 = vmatpush1.msra.mxu0 0.0
        %827 = vmatprep.subr.mxu0 0.0
        %828 = vmatpush1.msra.mxu0 0.0
        %829 = vmatprep.subr.mxu0 0.0
        %830 = vmatpush1.msra.mxu0 0.0
        %831 = vmatprep.subr.mxu0 0.0
        %832 = vmatpush1.msra.mxu0 0.0
        %833 = vmatprep.subr.mxu0 0.0
        %834 = vmatpush1.msra.mxu0 0.0
        %835 = vmatprep.subr.mxu0 0.0
        %836 = vmatpush1.msra.mxu0 0.0
        %837 = vmatprep.subr.mxu0 0.0
        %838 = vmatpush1.msra.mxu0 0.0
        %839 = vmatprep.subr.mxu0 0.0
        %840 = vmatpush1.msra.mxu0 0.0
        %841 = vmatprep.subr.mxu0 0.0
        %842 = vmatpush1.msra.mxu0 0.0
        %843 = vmatprep.subr.mxu0 0.0
        %844 = vmatpush1.msra.mxu0 0.0
        %845 = vmatprep.subr.mxu0 0.0
        %846 = vmatpush1.msra.mxu0 0.0
        %847 = vmatprep.subr.mxu0 0.0
        %848 = vmatpush1.msra.mxu0 0.0
        %849 = vmatprep.subr.mxu0 0.0
        %850 = vmatpush1.msra.mxu0 0.0
        %851 = vmatprep.subr.mxu0 0.0
        %852 = vmatpush1.msra.mxu0 0.0
        %853 = vmatprep.subr.mxu0 0.0
        %854 = vmatpush1.msra.mxu0 0.0
        %855 = vmatprep.subr.mxu0 0.0
        %856 = vmatpush1.msra.mxu0 0.0
        %857 = vmatprep.subr.mxu0 0.0
        %858 = vmatpush1.msra.mxu0 0.0
        %859 = vmatprep.subr.mxu0 0.0
        %860 = vmatpush1.msra.mxu0 0.0
        %861 = vmatprep.mubr.f32.mxu0 0.0
        %862 = vmatmul.mubr.f32.gmra.mrb[0].mxu0 %v647
        %v863 = vpop.f32.mrb[0].mxu0
        %v864 = vadd.f32 0.0, %v863
        %v865 = vpop.f32.mrb[0].mxu0
        %866 = vdwg.mxu0
        %868 = vrot.lane.b32.xlu0 %v272, 124
        %v869 = vpop.permute.xlu0 %868
        %871 = vmatprep.subr.mxu0 0.0
        %872 = vmatpush1.msra.mxu0 %v869
        %873 = vmatprep.subr.mxu0 0.0
        %874 = vmatpush1.msra.mxu0 0.0
        %875 = vmatprep.subr.mxu0 0.0
        %876 = vmatpush1.msra.mxu0 0.0
        %877 = vmatprep.subr.mxu0 0.0
        %878 = vmatpush1.msra.mxu0 0.0
        %879 = vmatprep.subr.mxu0 0.0
        %880 = vmatpush1.msra.mxu0 0.0
        %881 = vmatprep.subr.mxu0 0.0
        %882 = vmatpush1.msra.mxu0 0.0
        %883 = vmatprep.subr.mxu0 0.0
        %884 = vmatpush1.msra.mxu0 0.0
        %885 = vmatprep.subr.mxu0 0.0
        %886 = vmatpush1.msra.mxu0 0.0
        %887 = vmatprep.subr.mxu0 0.0
        %888 = vmatpush1.msra.mxu0 0.0
        %889 = vmatprep.subr.mxu0 0.0
        %890 = vmatpush1.msra.mxu0 0.0
        %891 = vmatprep.subr.mxu0 0.0
        %892 = vmatpush1.msra.mxu0 0.0
        %893 = vmatprep.subr.mxu0 0.0
        %894 = vmatpush1.msra.mxu0 0.0
        %895 = vmatprep.subr.mxu0 0.0
        %896 = vmatpush1.msra.mxu0 0.0
        %897 = vmatprep.subr.mxu0 0.0
        %898 = vmatpush1.msra.mxu0 0.0
        %899 = vmatprep.subr.mxu0 0.0
        %900 = vmatpush1.msra.mxu0 0.0
        %901 = vmatprep.subr.mxu0 0.0
        %902 = vmatpush1.msra.mxu0 0.0
        %903 = vmatprep.subr.mxu0 0.0
        %904 = vmatpush1.msra.mxu0 0.0
        %905 = vmatprep.subr.mxu0 0.0
        %906 = vmatpush1.msra.mxu0 0.0
        %907 = vmatprep.subr.mxu0 0.0
        %908 = vmatpush1.msra.mxu0 0.0
        %909 = vmatprep.subr.mxu0 0.0
        %910 = vmatpush1.msra.mxu0 0.0
        %911 = vmatprep.subr.mxu0 0.0
        %912 = vmatpush1.msra.mxu0 0.0
        %913 = vmatprep.subr.mxu0 0.0
        %914 = vmatpush1.msra.mxu0 0.0
        %915 = vmatprep.subr.mxu0 0.0
        %916 = vmatpush1.msra.mxu0 0.0
        %917 = vmatprep.subr.mxu0 0.0
        %918 = vmatpush1.msra.mxu0 0.0
        %919 = vmatprep.subr.mxu0 0.0
        %920 = vmatpush1.msra.mxu0 0.0
        %921 = vmatprep.subr.mxu0 0.0
        %922 = vmatpush1.msra.mxu0 0.0
        %923 = vmatprep.subr.mxu0 0.0
        %924 = vmatpush1.msra.mxu0 0.0
        %925 = vmatprep.subr.mxu0 0.0
        %926 = vmatpush1.msra.mxu0 0.0
        %927 = vmatprep.subr.mxu0 0.0
        %928 = vmatpush1.msra.mxu0 0.0
        %929 = vmatprep.subr.mxu0 0.0
        %930 = vmatpush1.msra.mxu0 0.0
        %931 = vmatprep.subr.mxu0 0.0
        %932 = vmatpush1.msra.mxu0 0.0
        %933 = vmatprep.subr.mxu0 0.0
        %934 = vmatpush1.msra.mxu0 0.0
        %935 = vmatprep.mubr.f32.mxu0 0.0
        %936 = vmatmul.mubr.f32.gmra.mrb[0].mxu0 %v647
        %v937 = vpop.f32.mrb[0].mxu0
        %v938 = vadd.f32 0.0, %v937
        %v939 = vpop.f32.mrb[0].mxu0
        %940 = vdwg.mxu0
        %942 = vrot.lane.b32.xlu0 %v277, 124
        %v943 = vpop.permute.xlu0 %942
        %945 = vmatprep.subr.mxu0 0.0
        %946 = vmatpush1.msra.mxu0 %v943
        %947 = vmatprep.subr.mxu0 0.0
        %948 = vmatpush1.msra.mxu0 0.0
        %949 = vmatprep.subr.mxu0 0.0
        %950 = vmatpush1.msra.mxu0 0.0
        %951 = vmatprep.subr.mxu0 0.0
        %952 = vmatpush1.msra.mxu0 0.0
        %953 = vmatprep.subr.mxu0 0.0
        %954 = vmatpush1.msra.mxu0 0.0
        %955 = vmatprep.subr.mxu0 0.0
        %956 = vmatpush1.msra.mxu0 0.0
        %957 = vmatprep.subr.mxu0 0.0
        %958 = vmatpush1.msra.mxu0 0.0
        %959 = vmatprep.subr.mxu0 0.0
        %960 = vmatpush1.msra.mxu0 0.0
        %961 = vmatprep.subr.mxu0 0.0
        %962 = vmatpush1.msra.mxu0 0.0
        %963 = vmatprep.subr.mxu0 0.0
        %964 = vmatpush1.msra.mxu0 0.0
        %965 = vmatprep.subr.mxu0 0.0
        %966 = vmatpush1.msra.mxu0 0.0
        %967 = vmatprep.subr.mxu0 0.0
        %968 = vmatpush1.msra.mxu0 0.0
        %969 = vmatprep.subr.mxu0 0.0
        %970 = vmatpush1.msra.mxu0 0.0
        %971 = vmatprep.subr.mxu0 0.0
        %972 = vmatpush1.msra.mxu0 0.0
        %973 = vmatprep.subr.mxu0 0.0
        %974 = vmatpush1.msra.mxu0 0.0
        %975 = vmatprep.subr.mxu0 0.0
        %976 = vmatpush1.msra.mxu0 0.0
        %977 = vmatprep.subr.mxu0 0.0
        %978 = vmatpush1.msra.mxu0 0.0
        %979 = vmatprep.subr.mxu0 0.0
        %980 = vmatpush1.msra.mxu0 0.0
        %981 = vmatprep.subr.mxu0 0.0
        %982 = vmatpush1.msra.mxu0 0.0
        %983 = vmatprep.subr.mxu0 0.0
        %984 = vmatpush1.msra.mxu0 0.0
        %985 = vmatprep.subr.mxu0 0.0
        %986 = vmatpush1.msra.mxu0 0.0
        %987 = vmatprep.subr.mxu0 0.0
        %988 = vmatpush1.msra.mxu0 0.0
        %989 = vmatprep.subr.mxu0 0.0
        %990 = vmatpush1.msra.mxu0 0.0
        %991 = vmatprep.subr.mxu0 0.0
        %992 = vmatpush1.msra.mxu0 0.0
        %993 = vmatprep.subr.mxu0 0.0
        %994 = vmatpush1.msra.mxu0 0.0
        %995 = vmatprep.subr.mxu0 0.0
        %996 = vmatpush1.msra.mxu0 0.0
        %997 = vmatprep.subr.mxu0 0.0
        %998 = vmatpush1.msra.mxu0 0.0
        %999 = vmatprep.subr.mxu0 0.0
        %1000 = vmatpush1.msra.mxu0 0.0
        %1001 = vmatprep.subr.mxu0 0.0
        %1002 = vmatpush1.msra.mxu0 0.0
        %1003 = vmatprep.subr.mxu0 0.0
        %1004 = vmatpush1.msra.mxu0 0.0
        %1005 = vmatprep.subr.mxu0 0.0
        %1006 = vmatpush1.msra.mxu0 0.0
        %1007 = vmatprep.subr.mxu0 0.0
        %1008 = vmatpush1.msra.mxu0 0.0
        %1009 = vmatprep.mubr.f32.mxu0 0.0
        %1010 = vmatmul.mubr.f32.gmra.mrb[0].mxu0 %v647
        %v1011 = vpop.f32.mrb[0].mxu0
        %v1012 = vadd.f32 0.0, %v1011
        %v1013 = vpop.f32.mrb[0].mxu0
        %1014 = vdwg.mxu0
        %s1015 = scalar_lea.vmem %s160, 20 [#allocation2]
        %1016 = vst.msk [vmem:[%s1015] sm:$0xf] %vm634, %v716
        %1017 = vst.msk [vmem:[%s1015 + $0x4] sm:$0xf] %vm634, %v790
        %1018 = vst.msk [vmem:[%s1015 + $0x8] sm:$0xf] %vm634, %v864
        %1019 = vst.msk [vmem:[%s1015 + $0xc] sm:$0xf] %vm634, %v938
        %1020 = vst.msk [vmem:[%s1015 + $0x10] sm:$0xf] %vm634, %v1012
        %s1021 = scalar_lea.vmem %s2, 8
        %v1022 = vld [vmem:[%s1021] sm:$0xf]
        %1023 = vrot.lane.b32.xlu0 %v257, 120
        %v1024 = vpop.permute.xlu0 %1023
        %v1027 = vsel %vm174, %v1022, 0
        %1029 = vmatprep.subr.mxu0 0.0
        %1030 = vmatpush1.msra.mxu0 %v1024
        %1031 = vmatprep.subr.mxu0 0.0
        %1032 = vmatpush1.msra.mxu0 0.0
        %1033 = vmatprep.subr.mxu0 0.0
        %1034 = vmatpush1.msra.mxu0 0.0
        %1035 = vmatprep.subr.mxu0 0.0
        %1036 = vmatpush1.msra.mxu0 0.0
        %1037 = vmatprep.subr.mxu0 0.0
        %1038 = vmatpush1.msra.mxu0 0.0
        %1039 = vmatprep.subr.mxu0 0.0
        %1040 = vmatpush1.msra.mxu0 0.0
        %1041 = vmatprep.subr.mxu0 0.0
        %1042 = vmatpush1.msra.mxu0 0.0
        %1043 = vmatprep.subr.mxu0 0.0
        %1044 = vmatpush1.msra.mxu0 0.0
        %1045 = vmatprep.subr.mxu0 0.0
        %1046 = vmatpush1.msra.mxu0 0.0
        %1047 = vmatprep.subr.mxu0 0.0
        %1048 = vmatpush1.msra.mxu0 0.0
        %1049 = vmatprep.subr.mxu0 0.0
        %1050 = vmatpush1.msra.mxu0 0.0
        %1051 = vmatprep.subr.mxu0 0.0
        %1052 = vmatpush1.msra.mxu0 0.0
        %1053 = vmatprep.subr.mxu0 0.0
        %1054 = vmatpush1.msra.mxu0 0.0
        %1055 = vmatprep.subr.mxu0 0.0
        %1056 = vmatpush1.msra.mxu0 0.0
        %1057 = vmatprep.subr.mxu0 0.0
        %1058 = vmatpush1.msra.mxu0 0.0
        %1059 = vmatprep.subr.mxu0 0.0
        %1060 = vmatpush1.msra.mxu0 0.0
        %1061 = vmatprep.subr.mxu0 0.0
        %1062 = vmatpush1.msra.mxu0 0.0
        %1063 = vmatprep.subr.mxu0 0.0
        %1064 = vmatpush1.msra.mxu0 0.0
        %1065 = vmatprep.subr.mxu0 0.0
        %1066 = vmatpush1.msra.mxu0 0.0
        %1067 = vmatprep.subr.mxu0 0.0
        %1068 = vmatpush1.msra.mxu0 0.0
        %1069 = vmatprep.subr.mxu0 0.0
        %1070 = vmatpush1.msra.mxu0 0.0
        %1071 = vmatprep.subr.mxu0 0.0
        %1072 = vmatpush1.msra.mxu0 0.0
        %1073 = vmatprep.subr.mxu0 0.0
        %1074 = vmatpush1.msra.mxu0 0.0
        %1075 = vmatprep.subr.mxu0 0.0
        %1076 = vmatpush1.msra.mxu0 0.0
        %1077 = vmatprep.subr.mxu0 0.0
        %1078 = vmatpush1.msra.mxu0 0.0
        %1079 = vmatprep.subr.mxu0 0.0
        %1080 = vmatpush1.msra.mxu0 0.0
        %1081 = vmatprep.subr.mxu0 0.0
        %1082 = vmatpush1.msra.mxu0 0.0
        %1083 = vmatprep.subr.mxu0 0.0
        %1084 = vmatpush1.msra.mxu0 0.0
        %1085 = vmatprep.subr.mxu0 0.0
        %1086 = vmatpush1.msra.mxu0 0.0
        %1087 = vmatprep.subr.mxu0 0.0
        %1088 = vmatpush1.msra.mxu0 0.0
        %1089 = vmatprep.subr.mxu0 0.0
        %1090 = vmatpush1.msra.mxu0 0.0
        %1091 = vmatprep.subr.mxu0 0.0
        %1092 = vmatpush1.msra.mxu0 0.0
        %1093 = vmatprep.mubr.f32.mxu0 0.0
        %1094 = vmatmul.mubr.f32.gmra.mrb[0].mxu0 %v1027
        %v1095 = vpop.f32.mrb[0].mxu0
        %v1096 = vadd.f32 0.0, %v1095
        %v1097 = vpop.f32.mrb[0].mxu0
        %1098 = vdwg.mxu0
        %1099 = vrot.lane.b32.xlu0 %v262, 120
        %v1100 = vpop.permute.xlu0 %1099
        %1102 = vmatprep.subr.mxu0 0.0
        %1103 = vmatpush1.msra.mxu0 %v1100
        %1104 = vmatprep.subr.mxu0 0.0
        %1105 = vmatpush1.msra.mxu0 0.0
        %1106 = vmatprep.subr.mxu0 0.0
        %1107 = vmatpush1.msra.mxu0 0.0
        %1108 = vmatprep.subr.mxu0 0.0
        %1109 = vmatpush1.msra.mxu0 0.0
        %1110 = vmatprep.subr.mxu0 0.0
        %1111 = vmatpush1.msra.mxu0 0.0
        %1112 = vmatprep.subr.mxu0 0.0
        %1113 = vmatpush1.msra.mxu0 0.0
        %1114 = vmatprep.subr.mxu0 0.0
        %1115 = vmatpush1.msra.mxu0 0.0
        %1116 = vmatprep.subr.mxu0 0.0
        %1117 = vmatpush1.msra.mxu0 0.0
        %1118 = vmatprep.subr.mxu0 0.0
        %1119 = vmatpush1.msra.mxu0 0.0
        %1120 = vmatprep.subr.mxu0 0.0
        %1121 = vmatpush1.msra.mxu0 0.0
        %1122 = vmatprep.subr.mxu0 0.0
        %1123 = vmatpush1.msra.mxu0 0.0
        %1124 = vmatprep.subr.mxu0 0.0
        %1125 = vmatpush1.msra.mxu0 0.0
        %1126 = vmatprep.subr.mxu0 0.0
        %1127 = vmatpush1.msra.mxu0 0.0
        %1128 = vmatprep.subr.mxu0 0.0
        %1129 = vmatpush1.msra.mxu0 0.0
        %1130 = vmatprep.subr.mxu0 0.0
        %1131 = vmatpush1.msra.mxu0 0.0
        %1132 = vmatprep.subr.mxu0 0.0
        %1133 = vmatpush1.msra.mxu0 0.0
        %1134 = vmatprep.subr.mxu0 0.0
        %1135 = vmatpush1.msra.mxu0 0.0
        %1136 = vmatprep.subr.mxu0 0.0
        %1137 = vmatpush1.msra.mxu0 0.0
        %1138 = vmatprep.subr.mxu0 0.0
        %1139 = vmatpush1.msra.mxu0 0.0
        %1140 = vmatprep.subr.mxu0 0.0
        %1141 = vmatpush1.msra.mxu0 0.0
        %1142 = vmatprep.subr.mxu0 0.0
        %1143 = vmatpush1.msra.mxu0 0.0
        %1144 = vmatprep.subr.mxu0 0.0
        %1145 = vmatpush1.msra.mxu0 0.0
        %1146 = vmatprep.subr.mxu0 0.0
        %1147 = vmatpush1.msra.mxu0 0.0
        %1148 = vmatprep.subr.mxu0 0.0
        %1149 = vmatpush1.msra.mxu0 0.0
        %1150 = vmatprep.subr.mxu0 0.0
        %1151 = vmatpush1.msra.mxu0 0.0
        %1152 = vmatprep.subr.mxu0 0.0
        %1153 = vmatpush1.msra.mxu0 0.0
        %1154 = vmatprep.subr.mxu0 0.0
        %1155 = vmatpush1.msra.mxu0 0.0
        %1156 = vmatprep.subr.mxu0 0.0
        %1157 = vmatpush1.msra.mxu0 0.0
        %1158 = vmatprep.subr.mxu0 0.0
        %1159 = vmatpush1.msra.mxu0 0.0
        %1160 = vmatprep.subr.mxu0 0.0
        %1161 = vmatpush1.msra.mxu0 0.0
        %1162 = vmatprep.subr.mxu0 0.0
        %1163 = vmatpush1.msra.mxu0 0.0
        %1164 = vmatprep.subr.mxu0 0.0
        %1165 = vmatpush1.msra.mxu0 0.0
        %1166 = vmatprep.mubr.f32.mxu0 0.0
        %1167 = vmatmul.mubr.f32.gmra.mrb[0].mxu0 %v1027
        %v1168 = vpop.f32.mrb[0].mxu0
        %v1169 = vadd.f32 0.0, %v1168
        %v1170 = vpop.f32.mrb[0].mxu0
        %1171 = vdwg.mxu0
        %1172 = vrot.lane.b32.xlu0 %v267, 120
        %v1173 = vpop.permute.xlu0 %1172
        %1175 = vmatprep.subr.mxu0 0.0
        %1176 = vmatpush1.msra.mxu0 %v1173
        %1177 = vmatprep.subr.mxu0 0.0
        %1178 = vmatpush1.msra.mxu0 0.0
        %1179 = vmatprep.subr.mxu0 0.0
        %1180 = vmatpush1.msra.mxu0 0.0
        %1181 = vmatprep.subr.mxu0 0.0
        %1182 = vmatpush1.msra.mxu0 0.0
        %1183 = vmatprep.subr.mxu0 0.0
        %1184 = vmatpush1.msra.mxu0 0.0
        %1185 = vmatprep.subr.mxu0 0.0
        %1186 = vmatpush1.msra.mxu0 0.0
        %1187 = vmatprep.subr.mxu0 0.0
        %1188 = vmatpush1.msra.mxu0 0.0
        %1189 = vmatprep.subr.mxu0 0.0
        %1190 = vmatpush1.msra.mxu0 0.0
        %1191 = vmatprep.subr.mxu0 0.0
        %1192 = vmatpush1.msra.mxu0 0.0
        %1193 = vmatprep.subr.mxu0 0.0
        %1194 = vmatpush1.msra.mxu0 0.0
        %1195 = vmatprep.subr.mxu0 0.0
        %1196 = vmatpush1.msra.mxu0 0.0
        %1197 = vmatprep.subr.mxu0 0.0
        %1198 = vmatpush1.msra.mxu0 0.0
        %1199 = vmatprep.subr.mxu0 0.0
        %1200 = vmatpush1.msra.mxu0 0.0
        %1201 = vmatprep.subr.mxu0 0.0
        %1202 = vmatpush1.msra.mxu0 0.0
        %1203 = vmatprep.subr.mxu0 0.0
        %1204 = vmatpush1.msra.mxu0 0.0
        %1205 = vmatprep.subr.mxu0 0.0
        %1206 = vmatpush1.msra.mxu0 0.0
        %1207 = vmatprep.subr.mxu0 0.0
        %1208 = vmatpush1.msra.mxu0 0.0
        %1209 = vmatprep.subr.mxu0 0.0
        %1210 = vmatpush1.msra.mxu0 0.0
        %1211 = vmatprep.subr.mxu0 0.0
        %1212 = vmatpush1.msra.mxu0 0.0
        %1213 = vmatprep.subr.mxu0 0.0
        %1214 = vmatpush1.msra.mxu0 0.0
        %1215 = vmatprep.subr.mxu0 0.0
        %1216 = vmatpush1.msra.mxu0 0.0
        %1217 = vmatprep.subr.mxu0 0.0
        %1218 = vmatpush1.msra.mxu0 0.0
        %1219 = vmatprep.subr.mxu0 0.0
        %1220 = vmatpush1.msra.mxu0 0.0
        %1221 = vmatprep.subr.mxu0 0.0
        %1222 = vmatpush1.msra.mxu0 0.0
        %1223 = vmatprep.subr.mxu0 0.0
        %1224 = vmatpush1.msra.mxu0 0.0
        %1225 = vmatprep.subr.mxu0 0.0
        %1226 = vmatpush1.msra.mxu0 0.0
        %1227 = vmatprep.subr.mxu0 0.0
        %1228 = vmatpush1.msra.mxu0 0.0
        %1229 = vmatprep.subr.mxu0 0.0
        %1230 = vmatpush1.msra.mxu0 0.0
        %1231 = vmatprep.subr.mxu0 0.0
        %1232 = vmatpush1.msra.mxu0 0.0
        %1233 = vmatprep.subr.mxu0 0.0
        %1234 = vmatpush1.msra.mxu0 0.0
        %1235 = vmatprep.subr.mxu0 0.0
        %1236 = vmatpush1.msra.mxu0 0.0
        %1237 = vmatprep.subr.mxu0 0.0
        %1238 = vmatpush1.msra.mxu0 0.0
        %1239 = vmatprep.mubr.f32.mxu0 0.0
        %1240 = vmatmul.mubr.f32.gmra.mrb[0].mxu0 %v1027
        %v1241 = vpop.f32.mrb[0].mxu0
        %v1242 = vadd.f32 0.0, %v1241
        %v1243 = vpop.f32.mrb[0].mxu0
        %1244 = vdwg.mxu0
        %1245 = vrot.lane.b32.xlu0 %v272, 120
        %v1246 = vpop.permute.xlu0 %1245
        %1248 = vmatprep.subr.mxu0 0.0
        %1249 = vmatpush1.msra.mxu0 %v1246
        %1250 = vmatprep.subr.mxu0 0.0
        %1251 = vmatpush1.msra.mxu0 0.0
        %1252 = vmatprep.subr.mxu0 0.0
        %1253 = vmatpush1.msra.mxu0 0.0
        %1254 = vmatprep.subr.mxu0 0.0
        %1255 = vmatpush1.msra.mxu0 0.0
        %1256 = vmatprep.subr.mxu0 0.0
        %1257 = vmatpush1.msra.mxu0 0.0
        %1258 = vmatprep.subr.mxu0 0.0
        %1259 = vmatpush1.msra.mxu0 0.0
        %1260 = vmatprep.subr.mxu0 0.0
        %1261 = vmatpush1.msra.mxu0 0.0
        %1262 = vmatprep.subr.mxu0 0.0
        %1263 = vmatpush1.msra.mxu0 0.0
        %1264 = vmatprep.subr.mxu0 0.0
        %1265 = vmatpush1.msra.mxu0 0.0
        %1266 = vmatprep.subr.mxu0 0.0
        %1267 = vmatpush1.msra.mxu0 0.0
        %1268 = vmatprep.subr.mxu0 0.0
        %1269 = vmatpush1.msra.mxu0 0.0
        %1270 = vmatprep.subr.mxu0 0.0
        %1271 = vmatpush1.msra.mxu0 0.0
        %1272 = vmatprep.subr.mxu0 0.0
        %1273 = vmatpush1.msra.mxu0 0.0
        %1274 = vmatprep.subr.mxu0 0.0
        %1275 = vmatpush1.msra.mxu0 0.0
        %1276 = vmatprep.subr.mxu0 0.0
        %1277 = vmatpush1.msra.mxu0 0.0
        %1278 = vmatprep.subr.mxu0 0.0
        %1279 = vmatpush1.msra.mxu0 0.0
        %1280 = vmatprep.subr.mxu0 0.0
        %1281 = vmatpush1.msra.mxu0 0.0
        %1282 = vmatprep.subr.mxu0 0.0
        %1283 = vmatpush1.msra.mxu0 0.0
        %1284 = vmatprep.subr.mxu0 0.0
        %1285 = vmatpush1.msra.mxu0 0.0
        %1286 = vmatprep.subr.mxu0 0.0
        %1287 = vmatpush1.msra.mxu0 0.0
        %1288 = vmatprep.subr.mxu0 0.0
        %1289 = vmatpush1.msra.mxu0 0.0
        %1290 = vmatprep.subr.mxu0 0.0
        %1291 = vmatpush1.msra.mxu0 0.0
        %1292 = vmatprep.subr.mxu0 0.0
        %1293 = vmatpush1.msra.mxu0 0.0
        %1294 = vmatprep.subr.mxu0 0.0
        %1295 = vmatpush1.msra.mxu0 0.0
        %1296 = vmatprep.subr.mxu0 0.0
        %1297 = vmatpush1.msra.mxu0 0.0
        %1298 = vmatprep.subr.mxu0 0.0
        %1299 = vmatpush1.msra.mxu0 0.0
        %1300 = vmatprep.subr.mxu0 0.0
        %1301 = vmatpush1.msra.mxu0 0.0
        %1302 = vmatprep.subr.mxu0 0.0
        %1303 = vmatpush1.msra.mxu0 0.0
        %1304 = vmatprep.subr.mxu0 0.0
        %1305 = vmatpush1.msra.mxu0 0.0
        %1306 = vmatprep.subr.mxu0 0.0
        %1307 = vmatpush1.msra.mxu0 0.0
        %1308 = vmatprep.subr.mxu0 0.0
        %1309 = vmatpush1.msra.mxu0 0.0
        %1310 = vmatprep.subr.mxu0 0.0
        %1311 = vmatpush1.msra.mxu0 0.0
        %1312 = vmatprep.mubr.f32.mxu0 0.0
        %1313 = vmatmul.mubr.f32.gmra.mrb[0].mxu0 %v1027
        %v1314 = vpop.f32.mrb[0].mxu0
        %v1315 = vadd.f32 0.0, %v1314
        %v1316 = vpop.f32.mrb[0].mxu0
        %1317 = vdwg.mxu0
        %1318 = vrot.lane.b32.xlu0 %v277, 120
        %v1319 = vpop.permute.xlu0 %1318
        %1321 = vmatprep.subr.mxu0 0.0
        %1322 = vmatpush1.msra.mxu0 %v1319
        %1323 = vmatprep.subr.mxu0 0.0
        %1324 = vmatpush1.msra.mxu0 0.0
        %1325 = vmatprep.subr.mxu0 0.0
        %1326 = vmatpush1.msra.mxu0 0.0
        %1327 = vmatprep.subr.mxu0 0.0
        %1328 = vmatpush1.msra.mxu0 0.0
        %1329 = vmatprep.subr.mxu0 0.0
        %1330 = vmatpush1.msra.mxu0 0.0
        %1331 = vmatprep.subr.mxu0 0.0
        %1332 = vmatpush1.msra.mxu0 0.0
        %1333 = vmatprep.subr.mxu0 0.0
        %1334 = vmatpush1.msra.mxu0 0.0
        %1335 = vmatprep.subr.mxu0 0.0
        %1336 = vmatpush1.msra.mxu0 0.0
        %1337 = vmatprep.subr.mxu0 0.0
        %1338 = vmatpush1.msra.mxu0 0.0
        %1339 = vmatprep.subr.mxu0 0.0
        %1340 = vmatpush1.msra.mxu0 0.0
        %1341 = vmatprep.subr.mxu0 0.0
        %1342 = vmatpush1.msra.mxu0 0.0
        %1343 = vmatprep.subr.mxu0 0.0
        %1344 = vmatpush1.msra.mxu0 0.0
        %1345 = vmatprep.subr.mxu0 0.0
        %1346 = vmatpush1.msra.mxu0 0.0
        %1347 = vmatprep.subr.mxu0 0.0
        %1348 = vmatpush1.msra.mxu0 0.0
        %1349 = vmatprep.subr.mxu0 0.0
        %1350 = vmatpush1.msra.mxu0 0.0
        %1351 = vmatprep.subr.mxu0 0.0
        %1352 = vmatpush1.msra.mxu0 0.0
        %1353 = vmatprep.subr.mxu0 0.0
        %1354 = vmatpush1.msra.mxu0 0.0
        %1355 = vmatprep.subr.mxu0 0.0
        %1356 = vmatpush1.msra.mxu0 0.0
        %1357 = vmatprep.subr.mxu0 0.0
        %1358 = vmatpush1.msra.mxu0 0.0
        %1359 = vmatprep.subr.mxu0 0.0
        %1360 = vmatpush1.msra.mxu0 0.0
        %1361 = vmatprep.subr.mxu0 0.0
        %1362 = vmatpush1.msra.mxu0 0.0
        %1363 = vmatprep.subr.mxu0 0.0
        %1364 = vmatpush1.msra.mxu0 0.0
        %1365 = vmatprep.subr.mxu0 0.0
        %1366 = vmatpush1.msra.mxu0 0.0
        %1367 = vmatprep.subr.mxu0 0.0
        %1368 = vmatpush1.msra.mxu0 0.0
        %1369 = vmatprep.subr.mxu0 0.0
        %1370 = vmatpush1.msra.mxu0 0.0
        %1371 = vmatprep.subr.mxu0 0.0
        %1372 = vmatpush1.msra.mxu0 0.0
        %1373 = vmatprep.subr.mxu0 0.0
        %1374 = vmatpush1.msra.mxu0 0.0
        %1375 = vmatprep.subr.mxu0 0.0
        %1376 = vmatpush1.msra.mxu0 0.0
        %1377 = vmatprep.subr.mxu0 0.0
        %1378 = vmatpush1.msra.mxu0 0.0
        %1379 = vmatprep.subr.mxu0 0.0
        %1380 = vmatpush1.msra.mxu0 0.0
        %1381 = vmatprep.subr.mxu0 0.0
        %1382 = vmatpush1.msra.mxu0 0.0
        %1383 = vmatprep.subr.mxu0 0.0
        %1384 = vmatpush1.msra.mxu0 0.0
        %1385 = vmatprep.mubr.f32.mxu0 0.0
        %1386 = vmatmul.mubr.f32.gmra.mrb[0].mxu0 %v1027
        %v1387 = vpop.f32.mrb[0].mxu0
        %v1388 = vadd.f32 0.0, %v1387
        %v1389 = vpop.f32.mrb[0].mxu0
        %1390 = vdwg.mxu0
        %s1391 = scalar_lea.vmem %s160, 40 [#allocation2]
        %1392 = vst.msk [vmem:[%s1391] sm:$0xf] %vm634, %v1096
        %1393 = vst.msk [vmem:[%s1391 + $0x4] sm:$0xf] %vm634, %v1169
        %1394 = vst.msk [vmem:[%s1391 + $0x8] sm:$0xf] %vm634, %v1242
        %1395 = vst.msk [vmem:[%s1391 + $0xc] sm:$0xf] %vm634, %v1315
        %1396 = vst.msk [vmem:[%s1391 + $0x10] sm:$0xf] %vm634, %v1388
        %s1397 = sand.u32 %s90, 1
        %s1398 = sand.u32 %s90, 1
        %s1399 = smul.addr %s1398, 60
        %s1400 = scalar_lea.vmem [#allocation2], %s1399
        // Predicated region
        $region33: #{matt_forward.6} parent=31 // pred_check
          %p1401 = pneg %p100
        $region34: #{matt_forward.6} parent=31 // pred_check_branch
          %1403 = sbr.rel (%p1401) target = $region36
        $region35: #{matt_forward.6} parent=31 // pred_region
          %s1404 = smul.u32 5, %s14
          %s1405 = smul.addr %s1404, 4
          %s1406 = scalar_lea.vmem %s3, %s1405
          // Predicated region
          $region37: #{matt_forward.6} parent=35 // pred_check
            _
          $region38: #{matt_forward.6} parent=35 // pred_check_branch
            %1408 = sbr.rel (0) target = $region40
          $region39: #{matt_forward.6} parent=35 // pred_region
            // Predicated region
            $region41: #{matt_forward.6} parent=39 // pred_check
              _
            $region42: #{matt_forward.6} parent=39 // pred_check_branch
              %1410 = sbr.rel target = $region44
            $region43: #{matt_forward.6} parent=39 // pred_region
              // Predicated region
              $region56: #{matt_forward.6} parent=43 // pred_check
                _
              $region57: #{matt_forward.6} parent=43 // pred_check_branch
                %1453 = sbr.rel (0) target = $region59
              $region58: #{matt_forward.6} parent=43 // pred_region
                loop: start=0, step=1, limit=1
                $region60: #{matt_forward.6} parent=58 // loop_pre_header
                  _
                $region61: #{matt_forward.6} parent=58 // loop_header
                  %s1455 = sphi 0, %s1459
                  %p1456 = scmp.ge.s32.totalorder %s1455, 1
                  %s1460 = sphi %s1400, %s1400
                  %s1461 = sphi %s1406, %s1406
                $region62: #{matt_forward.6} parent=58 // loop_header_branch
                  %1458 = sbr.rel (%p1456) target = $region66
                $region63: #{matt_forward.6} parent=58 // loop_body
                  _
                $region64: #{matt_forward.6} parent=58 // loop_footer
                  %s1459 = sadd.s32 1, %s1455
                $region65: #{matt_forward.6} parent=58 // loop_footer_branch
                  %1454 = sbr.rel target = $region61
                $region66: #{matt_forward.6} parent=58 // loop_exit
                  _
                loop: start=0, step=1, limit=1
                $region67: #{matt_forward.6} parent=58 // loop_pre_header
                  _
                $region68: #{matt_forward.6} parent=58 // loop_header
                  %s1464 = sphi 0, %s1468
                  %p1465 = scmp.ge.s32.totalorder %s1464, 1
                  %s1469 = sphi %s1400, %s1400
                  %s1470 = sphi %s1406, %s1406
                $region69: #{matt_forward.6} parent=58 // loop_header_branch
                  %1467 = sbr.rel (%p1465) target = $region73
                $region70: #{matt_forward.6} parent=58 // loop_body
                  %v1471 = vld [vmem:[%s1469] sm:$0xf]
                  %1472 = vst [vmem:[%s1470] sm:$0xf] %v1471
                  %v1473 = vld [vmem:[%s1469 + $0x4] sm:$0xf]
                  %1474 = vst [vmem:[%s1470 + $0x4] sm:$0xf] %v1473
                  %v1475 = vld [vmem:[%s1469 + $0x8] sm:$0xf]
                  %1476 = vst [vmem:[%s1470 + $0x8] sm:$0xf] %v1475
                  %v1477 = vld [vmem:[%s1469 + $0xc] sm:$0xf]
                  %1478 = vst [vmem:[%s1470 + $0xc] sm:$0xf] %v1477
                  %v1479 = vld [vmem:[%s1469 + $0x10] sm:$0xf]
                  %1480 = vst [vmem:[%s1470 + $0x10] sm:$0xf] %v1479
                  %v1481 = vld [vmem:[%s1469 + $0x14] sm:$0xf]
                  %1482 = vst [vmem:[%s1470 + $0x28] sm:$0xf] %v1481
                  %v1483 = vld [vmem:[%s1469 + $0x18] sm:$0xf]
                  %1484 = vst [vmem:[%s1470 + $0x2c] sm:$0xf] %v1483
                  %v1485 = vld [vmem:[%s1469 + $0x1c] sm:$0xf]
                  %1486 = vst [vmem:[%s1470 + $0x30] sm:$0xf] %v1485
                  %v1487 = vld [vmem:[%s1469 + $0x20] sm:$0xf]
                  %1488 = vst [vmem:[%s1470 + $0x34] sm:$0xf] %v1487
                  %v1489 = vld [vmem:[%s1469 + $0x24] sm:$0xf]
                  %1490 = vst [vmem:[%s1470 + $0x38] sm:$0xf] %v1489
                  %v1491 = vld [vmem:[%s1469 + $0x28] sm:$0xf]
                  %1492 = vst [vmem:[%s1470 + $0x50] sm:$0xf] %v1491
                  %v1493 = vld [vmem:[%s1469 + $0x2c] sm:$0xf]
                  %1494 = vst [vmem:[%s1470 + $0x54] sm:$0xf] %v1493
                  %v1495 = vld [vmem:[%s1469 + $0x30] sm:$0xf]
                  %1496 = vst [vmem:[%s1470 + $0x58] sm:$0xf] %v1495
                  %v1497 = vld [vmem:[%s1469 + $0x34] sm:$0xf]
                  %1498 = vst [vmem:[%s1470 + $0x5c] sm:$0xf] %v1497
                  %v1499 = vld [vmem:[%s1469 + $0x38] sm:$0xf]
                  %1500 = vst [vmem:[%s1470 + $0x60] sm:$0xf] %v1499
                $region71: #{matt_forward.6} parent=58 // loop_footer
                  %s1468 = sadd.s32 1, %s1464
                $region72: #{matt_forward.6} parent=58 // loop_footer_branch
                  %1463 = sbr.rel target = $region68
                $region73: #{matt_forward.6} parent=58 // loop_exit
                  _
              $region59: #{matt_forward.6} parent=43 // pred_fallthru
                _
            $region44: #{matt_forward.6} parent=39 // pred_fallthru
              _
            // Predicated region
            $region45: #{matt_forward.6} parent=39 // pred_check
              _
            $region46: #{matt_forward.6} parent=39 // pred_check_branch
              %1412 = sbr.rel (0) target = $region48
            $region47: #{matt_forward.6} parent=39 // pred_region
              loop: start=0, step=1, limit=1
              $region49: #{matt_forward.6} parent=47 // loop_pre_header
                _
              $region50: #{matt_forward.6} parent=47 // loop_header
                %s1415 = sphi 0, %s1419
                %p1416 = scmp.ge.s32.totalorder %s1415, 1
                %s1420 = sphi %s1400, %s1400
                %s1421 = sphi %s1406, %s1406
              $region51: #{matt_forward.6} parent=47 // loop_header_branch
                %1418 = sbr.rel (%p1416) target = $region55
              $region52: #{matt_forward.6} parent=47 // loop_body
                %v1422 = vld [vmem:[%s1420] sm:$0xf]
                %1423 = vst [vmem:[%s1421] sm:$0xf] %v1422
                %v1424 = vld [vmem:[%s1420 + $0x4] sm:$0xf]
                %1425 = vst [vmem:[%s1421 + $0x4] sm:$0xf] %v1424
                %v1426 = vld [vmem:[%s1420 + $0x8] sm:$0xf]
                %1427 = vst [vmem:[%s1421 + $0x8] sm:$0xf] %v1426
                %v1428 = vld [vmem:[%s1420 + $0xc] sm:$0xf]
                %1429 = vst [vmem:[%s1421 + $0xc] sm:$0xf] %v1428
                %v1430 = vld [vmem:[%s1420 + $0x10] sm:$0xf]
                %1431 = vst [vmem:[%s1421 + $0x10] sm:$0xf] %v1430
                %v1432 = vld [vmem:[%s1420 + $0x14] sm:$0xf]
                %1433 = vst [vmem:[%s1421 + $0x28] sm:$0xf] %v1432
                %v1434 = vld [vmem:[%s1420 + $0x18] sm:$0xf]
                %1435 = vst [vmem:[%s1421 + $0x2c] sm:$0xf] %v1434
                %v1436 = vld [vmem:[%s1420 + $0x1c] sm:$0xf]
                %1437 = vst [vmem:[%s1421 + $0x30] sm:$0xf] %v1436
                %v1438 = vld [vmem:[%s1420 + $0x20] sm:$0xf]
                %1439 = vst [vmem:[%s1421 + $0x34] sm:$0xf] %v1438
                %v1440 = vld [vmem:[%s1420 + $0x24] sm:$0xf]
                %1441 = vst [vmem:[%s1421 + $0x38] sm:$0xf] %v1440
                %v1442 = vld [vmem:[%s1420 + $0x28] sm:$0xf]
                %1443 = vst [vmem:[%s1421 + $0x50] sm:$0xf] %v1442
                %v1444 = vld [vmem:[%s1420 + $0x2c] sm:$0xf]
                %1445 = vst [vmem:[%s1421 + $0x54] sm:$0xf] %v1444
                %v1446 = vld [vmem:[%s1420 + $0x30] sm:$0xf]
                %1447 = vst [vmem:[%s1421 + $0x58] sm:$0xf] %v1446
                %v1448 = vld [vmem:[%s1420 + $0x34] sm:$0xf]
                %1449 = vst [vmem:[%s1421 + $0x5c] sm:$0xf] %v1448
                %v1450 = vld [vmem:[%s1420 + $0x38] sm:$0xf]
                %1451 = vst [vmem:[%s1421 + $0x60] sm:$0xf] %v1450
              $region53: #{matt_forward.6} parent=47 // loop_footer
                %s1419 = sadd.s32 1, %s1415
              $region54: #{matt_forward.6} parent=47 // loop_footer_branch
                %1414 = sbr.rel target = $region50
              $region55: #{matt_forward.6} parent=47 // loop_exit
                _
            $region48: #{matt_forward.6} parent=39 // pred_fallthru
              _
          $region40: #{matt_forward.6} parent=35 // pred_fallthru
            _
          %1501 = vnop
        $region36: #{matt_forward.6} parent=31 // pred_fallthru
          _
      $region32: #{matt_forward.6} parent=5 // pred_fallthru
        _
      %p1502 = scmp.le.s32.totalorder 2, %s9
      // Predicated region
      $region74: #{matt_forward.6} parent=5 // pred_check
        %p1503 = pneg %p1502
      $region75: #{matt_forward.6} parent=5 // pred_check_branch
        %1505 = sbr.rel (%p1503) target = $region77
      $region76: #{matt_forward.6} parent=5 // pred_region
        %s1506 = ssub.s32 %s9, 2
        // Predicated region
        $region78: #{matt_forward.6} parent=76 // pred_check
          %p1507 = pneg %p106
        $region79: #{matt_forward.6} parent=76 // pred_check_branch
          %1509 = sbr.rel (%p1507) target = $region81
        $region80: #{matt_forward.6} parent=76 // pred_region
          %s1510 = sand.u32 %s91, 1
          %s1511 = sand.u32 %s91, 1
          %s1512 = smul.addr %s1511, 60
          %s1513 = scalar_lea.vmem [#allocation2], %s1512
        $region81: #{matt_forward.6} parent=76 // pred_fallthru
          _
      $region77: #{matt_forward.6} parent=5 // pred_fallthru
        _
    $region6: #{matt_forward.6} parent=1 // loop_footer
      %s13 = sadd.s32 1, %s9
    $region7: #{matt_forward.6} parent=1 // loop_footer_branch
      %8 = sbr.rel target = $region3
    $region8: #{matt_forward.6} parent=1 // loop_exit
      _

// kernel: matt_forward.5
$region0: #{matt_forward.5}
  #allocation0 [shape = 'u32[]', space=smem, size = 0x4, offset = 0x4, fixed_abs, tag = 'smem constant byte address 0x4 - core index']
  #allocation1 [shape = 'u32[144,128]{1,0:T(1,128)}', space=vmem, size = 0x12000, scoped, tag = 'internal scratch']
  #allocation2 [shape = 'f32[16,108]{1,0:T(8,128)}', space=vmem, size = 0x2000, scoped, tag = 'scratch operand']
  #allocation3 [shape = 'f32[8,100]{1,0:T(8,128)}', space=vmem, size = 0x1000, scoped, tag = 'scratch operand']
  %s0 = inlined_call_operand.vmem [shape: f32[4,100], index: 0, kind: input, shape index: {}]
  %s1 = inlined_call_operand.vmem [shape: f32[16,4], index: 1, kind: input, shape index: {}]
  %s2 = inlined_call_operand.vmem [shape: f32[16,1], index: 2, kind: input, shape index: {}]
  %s3 = inlined_call_operand.vmem [shape: f32[16,1], index: 3, kind: input, shape index: {}]
  %s4 = inlined_call_operand.vmem [shape: f32[16,1], index: 4, kind: input, shape index: {}]
  %s5 = inlined_call_operand.vmem [shape: f32[5,8,16], index: 5, kind: input, shape index: {}]
  %s6 = inlined_call_operand.vmem [shape: f32[8,1], index: 6, kind: input, shape index: {}]
  %s7 = inlined_call_operand.vmem [shape: f32[8,1], index: 7, kind: input, shape index: {}]
  %s8 = inlined_call_operand.vmem [shape: f32[8,1], index: 8, kind: input, shape index: {}]
  %s9 = inlined_call_operand.vmem [shape: f32[10,8,8], index: 9, kind: output, shape index: {}]
  %s10 = sld [smem:[#allocation0]]
  $region46: #{matt_forward.5} parent=0
    _
  %s12 = ssub.s32 1, %s10
  %s13 = scalar_select 0, %s12, %s10
  // Predicated region
  $region2: #{matt_forward.5} parent=0 // pred_check
    _
  $region3: #{matt_forward.5} parent=0 // pred_check_branch
    %15 = sbr.rel (0) target = $region5
  $region4: #{matt_forward.5} parent=0 // pred_region
    _
  $region5: #{matt_forward.5} parent=0 // pred_fallthru
    _
  // Predicated region
  $region6: #{matt_forward.5} parent=0 // pred_check
    _
  $region7: #{matt_forward.5} parent=0 // pred_check_branch
    %17 = sbr.rel (0) target = $region9
  $region8: #{matt_forward.5} parent=0 // pred_region
    _
  $region9: #{matt_forward.5} parent=0 // pred_fallthru
    _
  // Predicated region
  $region10: #{matt_forward.5} parent=0 // pred_check
    _
  $region11: #{matt_forward.5} parent=0 // pred_check_branch
    %19 = sbr.rel (0) target = $region13
  $region12: #{matt_forward.5} parent=0 // pred_region
    _
  $region13: #{matt_forward.5} parent=0 // pred_fallthru
    _
  // Predicated region
  $region14: #{matt_forward.5} parent=0 // pred_check
    _
  $region15: #{matt_forward.5} parent=0 // pred_check_branch
    %21 = sbr.rel (0) target = $region17
  $region16: #{matt_forward.5} parent=0 // pred_region
    _
  $region17: #{matt_forward.5} parent=0 // pred_fallthru
    _
  // Predicated region
  $region18: #{matt_forward.5} parent=0 // pred_check
    _
  $region19: #{matt_forward.5} parent=0 // pred_check_branch
    %23 = sbr.rel (0) target = $region21
  $region20: #{matt_forward.5} parent=0 // pred_region
    _
  $region21: #{matt_forward.5} parent=0 // pred_fallthru
    _
  // Predicated region
  $region22: #{matt_forward.5} parent=0 // pred_check
    _
  $region23: #{matt_forward.5} parent=0 // pred_check_branch
    %25 = sbr.rel (0) target = $region25
  $region24: #{matt_forward.5} parent=0 // pred_region
    _
  $region25: #{matt_forward.5} parent=0 // pred_fallthru
    _
  // Predicated region
  $region26: #{matt_forward.5} parent=0 // pred_check
    _
  $region27: #{matt_forward.5} parent=0 // pred_check_branch
    %27 = sbr.rel (0) target = $region29
  $region28: #{matt_forward.5} parent=0 // pred_region
    _
  $region29: #{matt_forward.5} parent=0 // pred_fallthru
    _
  // Predicated region
  $region30: #{matt_forward.5} parent=0 // pred_check
    _
  $region31: #{matt_forward.5} parent=0 // pred_check_branch
    %29 = sbr.rel (0) target = $region33
  $region32: #{matt_forward.5} parent=0 // pred_region
    _
  $region33: #{matt_forward.5} parent=0 // pred_fallthru
    _
  // Predicated region
  $region34: #{matt_forward.5} parent=0 // pred_check
    _
  $region35: #{matt_forward.5} parent=0 // pred_check_branch
    %31 = sbr.rel (0) target = $region37
  $region36: #{matt_forward.5} parent=0 // pred_region
    _
  $region37: #{matt_forward.5} parent=0 // pred_fallthru
    _
  %v32 = vld [vmem:[%s1] sm:$0xff]
  %v33 = vld [vmem:[%s1 + $0x8] sm:$0xff]
  %v34 = vld [vmem:[%s0] sm:$0xf]
  %v35 = vld [vmem:[%s2] sm:$0xff]
  %v36 = vld [vmem:[%s2 + $0x8] sm:$0xff]
  %38 = vset.pattern.permute.xlu0 0
  %39 = vperm.xlu0 %38, %v35
  %v40 = vpop.permute.xlu0 %39
  %43 = vset.pattern.permute.xlu0 0
  %44 = vperm.xlu0 %43, %v36
  %v45 = vpop.permute.xlu0 %44
  %vm47 = vcmask 31744
  %v49 = vsel %vm47, %v32, 0
  %v52 = vsel %vm47, %v33, 0
  %vm54 = vcmask 1043456
  %v56 = vsel %vm54, %v34, 0
  %58 = vmatprep.subr.mxu0 0.0
  %59 = vmatpush1.msra.mxu0 %v56
  %60 = vmatprep.subr.mxu0 0.0
  %61 = vmatpush1.msra.mxu0 0.0
  %62 = vmatprep.subr.mxu0 0.0
  %63 = vmatpush1.msra.mxu0 0.0
  %64 = vmatprep.subr.mxu0 0.0
  %65 = vmatpush1.msra.mxu0 0.0
  %66 = vmatprep.subr.mxu0 0.0
  %67 = vmatpush1.msra.mxu0 0.0
  %68 = vmatprep.subr.mxu0 0.0
  %69 = vmatpush1.msra.mxu0 0.0
  %70 = vmatprep.subr.mxu0 0.0
  %71 = vmatpush1.msra.mxu0 0.0
  %72 = vmatprep.subr.mxu0 0.0
  %73 = vmatpush1.msra.mxu0 0.0
  %74 = vmatprep.subr.mxu0 0.0
  %75 = vmatpush1.msra.mxu0 0.0
  %76 = vmatprep.subr.mxu0 0.0
  %77 = vmatpush1.msra.mxu0 0.0
  %78 = vmatprep.subr.mxu0 0.0
  %79 = vmatpush1.msra.mxu0 0.0
  %80 = vmatprep.subr.mxu0 0.0
  %81 = vmatpush1.msra.mxu0 0.0
  %82 = vmatprep.subr.mxu0 0.0
  %83 = vmatpush1.msra.mxu0 0.0
  %84 = vmatprep.subr.mxu0 0.0
  %85 = vmatpush1.msra.mxu0 0.0
  %86 = vmatprep.subr.mxu0 0.0
  %87 = vmatpush1.msra.mxu0 0.0
  %88 = vmatprep.subr.mxu0 0.0
  %89 = vmatpush1.msra.mxu0 0.0
  %90 = vmatprep.subr.mxu0 0.0
  %91 = vmatpush1.msra.mxu0 0.0
  %92 = vmatprep.subr.mxu0 0.0
  %93 = vmatpush1.msra.mxu0 0.0
  %94 = vmatprep.subr.mxu0 0.0
  %95 = vmatpush1.msra.mxu0 0.0
  %96 = vmatprep.subr.mxu0 0.0
  %97 = vmatpush1.msra.mxu0 0.0
  %98 = vmatprep.subr.mxu0 0.0
  %99 = vmatpush1.msra.mxu0 0.0
  %100 = vmatprep.subr.mxu0 0.0
  %101 = vmatpush1.msra.mxu0 0.0
  %102 = vmatprep.subr.mxu0 0.0
  %103 = vmatpush1.msra.mxu0 0.0
  %104 = vmatprep.subr.mxu0 0.0
  %105 = vmatpush1.msra.mxu0 0.0
  %106 = vmatprep.subr.mxu0 0.0
  %107 = vmatpush1.msra.mxu0 0.0
  %108 = vmatprep.subr.mxu0 0.0
  %109 = vmatpush1.msra.mxu0 0.0
  %110 = vmatprep.subr.mxu0 0.0
  %111 = vmatpush1.msra.mxu0 0.0
  %112 = vmatprep.subr.mxu0 0.0
  %113 = vmatpush1.msra.mxu0 0.0
  %114 = vmatprep.subr.mxu0 0.0
  %115 = vmatpush1.msra.mxu0 0.0
  %116 = vmatprep.subr.mxu0 0.0
  %117 = vmatpush1.msra.mxu0 0.0
  %118 = vmatprep.subr.mxu0 0.0
  %119 = vmatpush1.msra.mxu0 0.0
  %120 = vmatprep.subr.mxu0 0.0
  %121 = vmatpush1.msra.mxu0 0.0
  %122 = vmatprep.mubr.f32.mxu0 0.0
  %123 = vmatmul.mubr.f32.gmra.mrb[0].mxu0 %v49
  %v124 = vpop.f32.mrb[0].mxu0
  %v125 = vadd.f32 %v40, %v124
  %v126 = vpop.f32.mrb[0].mxu0
  %127 = vmatprep.mubr.f32.mxu0 0.0
  %128 = vmatmul.mubr.f32.gmra.mrb[0].mxu0 %v52
  %v129 = vpop.f32.mrb[0].mxu0
  %v130 = vadd.f32 %v45, %v129
  %v131 = vpop.f32.mrb[0].mxu0
  %132 = vdwg.mxu0
  %vm133 = vcmask 818176
  %v134 = vsel %vm133, %v125, 0.0
  %135 = vadd.xlane.f32.xlu0 %v134
  %v136 = vpop.xlane.xlu0 %135
  %v137 = vsel %vm133, %v130, 0.0
  %138 = vadd.xlane.f32.xlu0 %v137
  %v139 = vpop.xlane.xlu0 %138
  %v140 = vrcp.pop 100.0
  %v141 = vmul.f32 %v136, %v140
  %v142 = vmul.f32 %v139, %v140
  %v143 = vsub.f32 %v125, %v141
  %v144 = vsub.f32 %v130, %v142
  %v145 = vmul.f32 %v143, %v143
  %v146 = vmul.f32 %v144, %v144
  %v147 = vsel %vm133, %v145, 0.0
  %148 = vadd.xlane.f32.xlu0 %v147
  %v149 = vpop.xlane.xlu0 %148
  %v150 = vsel %vm133, %v146, 0.0
  %151 = vadd.xlane.f32.xlu0 %v150
  %v152 = vpop.xlane.xlu0 %151
  %v153 = vmul.f32 %v149, %v140
  %v154 = vmul.f32 %v152, %v140
  %v155 = vld [vmem:[%s3] sm:$0xff]
  %v156 = vld [vmem:[%s3 + $0x8] sm:$0xff]
  %v157 = vadd.f32 %v153, 1e-05
  %v158 = vadd.f32 %v154, 1e-05
  %v159 = vrsqrt.pop %v157
  %v160 = vmul.f32 %v157, %v159
  %vm161 = vcmp.eq.f32.partialorder %v157, inf
  %v162 = vsel %vm161, %v157, %v160
  %vm163 = vcmp.eq.f32.partialorder %v157, 0.0
  %v164 = vand.u32 %v157, 2147483648
  %v165 = vsel %vm163, %v164, %v162
  %v166 = vrsqrt.pop %v158
  %v167 = vmul.f32 %v158, %v166
  %vm168 = vcmp.eq.f32.partialorder %v158, inf
  %v169 = vsel %vm168, %v158, %v167
  %vm170 = vcmp.eq.f32.partialorder %v158, 0.0
  %v171 = vand.u32 %v158, 2147483648
  %v172 = vsel %vm170, %v171, %v169
  %v173 = vrcp.pop %v165
  %v174 = vmul.f32 %v155, %v173
  %v175 = vrcp.pop %v172
  %v176 = vmul.f32 %v156, %v175
  %178 = vset.pattern.permute.xlu0 0
  %179 = vperm.xlu0 %178, %v174
  %v180 = vpop.permute.xlu0 %179
  %183 = vset.pattern.permute.xlu0 0
  %184 = vperm.xlu0 %183, %v176
  %v185 = vpop.permute.xlu0 %184
  %v187 = vmul.f32 %v143, %v180
  %v188 = vmul.f32 %v144, %v185
  %v189 = vld [vmem:[%s4] sm:$0xff]
  %v190 = vld [vmem:[%s4 + $0x8] sm:$0xff]
  %192 = vset.pattern.permute.xlu0 0
  %193 = vperm.xlu0 %192, %v189
  %v194 = vpop.permute.xlu0 %193
  %197 = vset.pattern.permute.xlu0 0
  %198 = vperm.xlu0 %197, %v190
  %v199 = vpop.permute.xlu0 %198
  %v201 = vadd.f32 %v187, %v194
  %v202 = vadd.f32 %v188, %v199
  %vm203 = vcmask 883712
  %204 = vst.msk [vmem:[#allocation2] sm:$0xff] %vm203, 0.0
  %205 = vst.msk [vmem:[#allocation2 + $0x8] sm:$0xff] %vm203, 0.0
  %208 = vrot.lane.b32.xlu0 %v201, 2
  %v209 = vpop.permute.xlu0 %208
  %210 = vrot.lane.b32.xlu0 %v202, 2
  %v211 = vpop.permute.xlu0 %210
  %vm214 = vcmask 424976
  %215 = vst.msk [vmem:[#allocation2] sm:$0xff] %vm214, %v209
  %216 = vst.msk [vmem:[#allocation2 + $0x8] sm:$0xff] %vm214, %v211
  %217 = vrot.lane.b32.xlu0 %v201, 6
  %v218 = vpop.permute.xlu0 %217
  %219 = vrot.lane.b32.xlu0 %v202, 6
  %v220 = vpop.permute.xlu0 %219
  %vm223 = vcmask 867776
  %224 = vst.msk [vmem:[#allocation2] sm:$0xff] %vm223, %v218
  %225 = vst.msk [vmem:[#allocation2 + $0x8] sm:$0xff] %vm223, %v220
  %v226 = vld [vmem:[%s5] sm:$0xff]
  %v227 = vld [vmem:[%s5 + $0x8] sm:$0xff]
  %v228 = vld [vmem:[%s5 + $0x10] sm:$0xff]
  %v229 = vld [vmem:[%s5 + $0x18] sm:$0xff]
  %v230 = vld [vmem:[%s5 + $0x20] sm:$0xff]
  %v231 = vld [vmem:[%s6] sm:$0xff]
  %233 = vset.pattern.permute.xlu0 0
  %234 = vperm.xlu0 %233, %v231
  %v235 = vpop.permute.xlu0 %234
  %v237 = vld [vmem:[#allocation2] sm:$0xff]
  %v238 = vld [vmem:[#allocation2 + $0x8] sm:$0xff]
  %vm239 = vcmask 130048
  %v241 = vsel %vm239, %v226, 0
  %243 = vmatprep.subr.mxu0 0.0
  %244 = vmatpush1.msra.mxu0 %v237
  %245 = vmatprep.subr.mxu0 0.0
  %246 = vmatpush1.msra.mxu0 %v238
  %247 = vmatprep.subr.mxu0 0.0
  %248 = vmatpush1.msra.mxu0 0.0
  %249 = vmatprep.subr.mxu0 0.0
  %250 = vmatpush1.msra.mxu0 0.0
  %251 = vmatprep.subr.mxu0 0.0
  %252 = vmatpush1.msra.mxu0 0.0
  %253 = vmatprep.subr.mxu0 0.0
  %254 = vmatpush1.msra.mxu0 0.0
  %255 = vmatprep.subr.mxu0 0.0
  %256 = vmatpush1.msra.mxu0 0.0
  %257 = vmatprep.subr.mxu0 0.0
  %258 = vmatpush1.msra.mxu0 0.0
  %259 = vmatprep.subr.mxu0 0.0
  %260 = vmatpush1.msra.mxu0 0.0
  %261 = vmatprep.subr.mxu0 0.0
  %262 = vmatpush1.msra.mxu0 0.0
  %263 = vmatprep.subr.mxu0 0.0
  %264 = vmatpush1.msra.mxu0 0.0
  %265 = vmatprep.subr.mxu0 0.0
  %266 = vmatpush1.msra.mxu0 0.0
  %267 = vmatprep.subr.mxu0 0.0
  %268 = vmatpush1.msra.mxu0 0.0
  %269 = vmatprep.subr.mxu0 0.0
  %270 = vmatpush1.msra.mxu0 0.0
  %271 = vmatprep.subr.mxu0 0.0
  %272 = vmatpush1.msra.mxu0 0.0
  %273 = vmatprep.subr.mxu0 0.0
  %274 = vmatpush1.msra.mxu0 0.0
  %275 = vmatprep.subr.mxu0 0.0
  %276 = vmatpush1.msra.mxu0 0.0
  %277 = vmatprep.subr.mxu0 0.0
  %278 = vmatpush1.msra.mxu0 0.0
  %279 = vmatprep.subr.mxu0 0.0
  %280 = vmatpush1.msra.mxu0 0.0
  %281 = vmatprep.subr.mxu0 0.0
  %282 = vmatpush1.msra.mxu0 0.0
  %283 = vmatprep.subr.mxu0 0.0
  %284 = vmatpush1.msra.mxu0 0.0
  %285 = vmatprep.subr.mxu0 0.0
  %286 = vmatpush1.msra.mxu0 0.0
  %287 = vmatprep.subr.mxu0 0.0
  %288 = vmatpush1.msra.mxu0 0.0
  %289 = vmatprep.subr.mxu0 0.0
  %290 = vmatpush1.msra.mxu0 0.0
  %291 = vmatprep.subr.mxu0 0.0
  %292 = vmatpush1.msra.mxu0 0.0
  %293 = vmatprep.subr.mxu0 0.0
  %294 = vmatpush1.msra.mxu0 0.0
  %295 = vmatprep.subr.mxu0 0.0
  %296 = vmatpush1.msra.mxu0 0.0
  %297 = vmatprep.subr.mxu0 0.0
  %298 = vmatpush1.msra.mxu0 0.0
  %299 = vmatprep.subr.mxu0 0.0
  %300 = vmatpush1.msra.mxu0 0.0
  %301 = vmatprep.subr.mxu0 0.0
  %302 = vmatpush1.msra.mxu0 0.0
  %303 = vmatprep.subr.mxu0 0.0
  %304 = vmatpush1.msra.mxu0 0.0
  %305 = vmatprep.subr.mxu0 0.0
  %306 = vmatpush1.msra.mxu0 0.0
  %307 = vmatprep.mubr.f32.mxu0 0.0
  %308 = vmatmul.mubr.f32.gmra.mrb[0].mxu0 %v241
  %v309 = vpop.f32.mrb[0].mxu0
  %v310 = vadd.f32 0.0, %v309
  %v311 = vpop.f32.mrb[0].mxu0
  %312 = vdwg.mxu0
  %v313 = vadd.f32 %v235, %v310
  %316 = vrot.lane.b32.xlu0 %v237, 127
  %v317 = vpop.permute.xlu0 %316
  %318 = vrot.lane.b32.xlu0 %v238, 127
  %v319 = vpop.permute.xlu0 %318
  %v323 = vsel %vm239, %v227, 0
  %325 = vmatprep.subr.mxu0 0.0
  %326 = vmatpush1.msra.mxu0 %v317
  %327 = vmatprep.subr.mxu0 0.0
  %328 = vmatpush1.msra.mxu0 %v319
  %329 = vmatprep.subr.mxu0 0.0
  %330 = vmatpush1.msra.mxu0 0.0
  %331 = vmatprep.subr.mxu0 0.0
  %332 = vmatpush1.msra.mxu0 0.0
  %333 = vmatprep.subr.mxu0 0.0
  %334 = vmatpush1.msra.mxu0 0.0
  %335 = vmatprep.subr.mxu0 0.0
  %336 = vmatpush1.msra.mxu0 0.0
  %337 = vmatprep.subr.mxu0 0.0
  %338 = vmatpush1.msra.mxu0 0.0
  %339 = vmatprep.subr.mxu0 0.0
  %340 = vmatpush1.msra.mxu0 0.0
  %341 = vmatprep.subr.mxu0 0.0
  %342 = vmatpush1.msra.mxu0 0.0
  %343 = vmatprep.subr.mxu0 0.0
  %344 = vmatpush1.msra.mxu0 0.0
  %345 = vmatprep.subr.mxu0 0.0
  %346 = vmatpush1.msra.mxu0 0.0
  %347 = vmatprep.subr.mxu0 0.0
  %348 = vmatpush1.msra.mxu0 0.0
  %349 = vmatprep.subr.mxu0 0.0
  %350 = vmatpush1.msra.mxu0 0.0
  %351 = vmatprep.subr.mxu0 0.0
  %352 = vmatpush1.msra.mxu0 0.0
  %353 = vmatprep.subr.mxu0 0.0
  %354 = vmatpush1.msra.mxu0 0.0
  %355 = vmatprep.subr.mxu0 0.0
  %356 = vmatpush1.msra.mxu0 0.0
  %357 = vmatprep.subr.mxu0 0.0
  %358 = vmatpush1.msra.mxu0 0.0
  %359 = vmatprep.subr.mxu0 0.0
  %360 = vmatpush1.msra.mxu0 0.0
  %361 = vmatprep.subr.mxu0 0.0
  %362 = vmatpush1.msra.mxu0 0.0
  %363 = vmatprep.subr.mxu0 0.0
  %364 = vmatpush1.msra.mxu0 0.0
  %365 = vmatprep.subr.mxu0 0.0
  %366 = vmatpush1.msra.mxu0 0.0
  %367 = vmatprep.subr.mxu0 0.0
  %368 = vmatpush1.msra.mxu0 0.0
  %369 = vmatprep.subr.mxu0 0.0
  %370 = vmatpush1.msra.mxu0 0.0
  %371 = vmatprep.subr.mxu0 0.0
  %372 = vmatpush1.msra.mxu0 0.0
  %373 = vmatprep.subr.mxu0 0.0
  %374 = vmatpush1.msra.mxu0 0.0
  %375 = vmatprep.subr.mxu0 0.0
  %376 = vmatpush1.msra.mxu0 0.0
  %377 = vmatprep.subr.mxu0 0.0
  %378 = vmatpush1.msra.mxu0 0.0
  %379 = vmatprep.subr.mxu0 0.0
  %380 = vmatpush1.msra.mxu0 0.0
  %381 = vmatprep.subr.mxu0 0.0
  %382 = vmatpush1.msra.mxu0 0.0
  %383 = vmatprep.subr.mxu0 0.0
  %384 = vmatpush1.msra.mxu0 0.0
  %385 = vmatprep.subr.mxu0 0.0
  %386 = vmatpush1.msra.mxu0 0.0
  %387 = vmatprep.subr.mxu0 0.0
  %388 = vmatpush1.msra.mxu0 0.0
  %389 = vmatprep.mubr.f32.mxu0 0.0
  %390 = vmatmul.mubr.f32.gmra.mrb[0].mxu0 %v323
  %v391 = vpop.f32.mrb[0].mxu0
  %v392 = vadd.f32 0.0, %v391
  %v393 = vpop.f32.mrb[0].mxu0
  %394 = vdwg.mxu0
  %v395 = vadd.f32 %v313, %v392
  %396 = vrot.lane.b32.xlu0 %v237, 126
  %v397 = vpop.permute.xlu0 %396
  %398 = vrot.lane.b32.xlu0 %v238, 126
  %v399 = vpop.permute.xlu0 %398
  %v403 = vsel %vm239, %v228, 0
  %405 = vmatprep.subr.mxu0 0.0
  %406 = vmatpush1.msra.mxu0 %v397
  %407 = vmatprep.subr.mxu0 0.0
  %408 = vmatpush1.msra.mxu0 %v399
  %409 = vmatprep.subr.mxu0 0.0
  %410 = vmatpush1.msra.mxu0 0.0
  %411 = vmatprep.subr.mxu0 0.0
  %412 = vmatpush1.msra.mxu0 0.0
  %413 = vmatprep.subr.mxu0 0.0
  %414 = vmatpush1.msra.mxu0 0.0
  %415 = vmatprep.subr.mxu0 0.0
  %416 = vmatpush1.msra.mxu0 0.0
  %417 = vmatprep.subr.mxu0 0.0
  %418 = vmatpush1.msra.mxu0 0.0
  %419 = vmatprep.subr.mxu0 0.0
  %420 = vmatpush1.msra.mxu0 0.0
  %421 = vmatprep.subr.mxu0 0.0
  %422 = vmatpush1.msra.mxu0 0.0
  %423 = vmatprep.subr.mxu0 0.0
  %424 = vmatpush1.msra.mxu0 0.0
  %425 = vmatprep.subr.mxu0 0.0
  %426 = vmatpush1.msra.mxu0 0.0
  %427 = vmatprep.subr.mxu0 0.0
  %428 = vmatpush1.msra.mxu0 0.0
  %429 = vmatprep.subr.mxu0 0.0
  %430 = vmatpush1.msra.mxu0 0.0
  %431 = vmatprep.subr.mxu0 0.0
  %432 = vmatpush1.msra.mxu0 0.0
  %433 = vmatprep.subr.mxu0 0.0
  %434 = vmatpush1.msra.mxu0 0.0
  %435 = vmatprep.subr.mxu0 0.0
  %436 = vmatpush1.msra.mxu0 0.0
  %437 = vmatprep.subr.mxu0 0.0
  %438 = vmatpush1.msra.mxu0 0.0
  %439 = vmatprep.subr.mxu0 0.0
  %440 = vmatpush1.msra.mxu0 0.0
  %441 = vmatprep.subr.mxu0 0.0
  %442 = vmatpush1.msra.mxu0 0.0
  %443 = vmatprep.subr.mxu0 0.0
  %444 = vmatpush1.msra.mxu0 0.0
  %445 = vmatprep.subr.mxu0 0.0
  %446 = vmatpush1.msra.mxu0 0.0
  %447 = vmatprep.subr.mxu0 0.0
  %448 = vmatpush1.msra.mxu0 0.0
  %449 = vmatprep.subr.mxu0 0.0
  %450 = vmatpush1.msra.mxu0 0.0
  %451 = vmatprep.subr.mxu0 0.0
  %452 = vmatpush1.msra.mxu0 0.0
  %453 = vmatprep.subr.mxu0 0.0
  %454 = vmatpush1.msra.mxu0 0.0
  %455 = vmatprep.subr.mxu0 0.0
  %456 = vmatpush1.msra.mxu0 0.0
  %457 = vmatprep.subr.mxu0 0.0
  %458 = vmatpush1.msra.mxu0 0.0
  %459 = vmatprep.subr.mxu0 0.0
  %460 = vmatpush1.msra.mxu0 0.0
  %461 = vmatprep.subr.mxu0 0.0
  %462 = vmatpush1.msra.mxu0 0.0
  %463 = vmatprep.subr.mxu0 0.0
  %464 = vmatpush1.msra.mxu0 0.0
  %465 = vmatprep.subr.mxu0 0.0
  %466 = vmatpush1.msra.mxu0 0.0
  %467 = vmatprep.subr.mxu0 0.0
  %468 = vmatpush1.msra.mxu0 0.0
  %469 = vmatprep.mubr.f32.mxu0 0.0
  %470 = vmatmul.mubr.f32.gmra.mrb[0].mxu0 %v403
  %v471 = vpop.f32.mrb[0].mxu0
  %v472 = vadd.f32 0.0, %v471
  %v473 = vpop.f32.mrb[0].mxu0
  %474 = vdwg.mxu0
  %v475 = vadd.f32 %v395, %v472
  %476 = vrot.lane.b32.xlu0 %v237, 125
  %v477 = vpop.permute.xlu0 %476
  %478 = vrot.lane.b32.xlu0 %v238, 125
  %v479 = vpop.permute.xlu0 %478
  %v483 = vsel %vm239, %v229, 0
  %485 = vmatprep.subr.mxu0 0.0
  %486 = vmatpush1.msra.mxu0 %v477
  %487 = vmatprep.subr.mxu0 0.0
  %488 = vmatpush1.msra.mxu0 %v479
  %489 = vmatprep.subr.mxu0 0.0
  %490 = vmatpush1.msra.mxu0 0.0
  %491 = vmatprep.subr.mxu0 0.0
  %492 = vmatpush1.msra.mxu0 0.0
  %493 = vmatprep.subr.mxu0 0.0
  %494 = vmatpush1.msra.mxu0 0.0
  %495 = vmatprep.subr.mxu0 0.0
  %496 = vmatpush1.msra.mxu0 0.0
  %497 = vmatprep.subr.mxu0 0.0
  %498 = vmatpush1.msra.mxu0 0.0
  %499 = vmatprep.subr.mxu0 0.0
  %500 = vmatpush1.msra.mxu0 0.0
  %501 = vmatprep.subr.mxu0 0.0
  %502 = vmatpush1.msra.mxu0 0.0
  %503 = vmatprep.subr.mxu0 0.0
  %504 = vmatpush1.msra.mxu0 0.0
  %505 = vmatprep.subr.mxu0 0.0
  %506 = vmatpush1.msra.mxu0 0.0
  %507 = vmatprep.subr.mxu0 0.0
  %508 = vmatpush1.msra.mxu0 0.0
  %509 = vmatprep.subr.mxu0 0.0
  %510 = vmatpush1.msra.mxu0 0.0
  %511 = vmatprep.subr.mxu0 0.0
  %512 = vmatpush1.msra.mxu0 0.0
  %513 = vmatprep.subr.mxu0 0.0
  %514 = vmatpush1.msra.mxu0 0.0
  %515 = vmatprep.subr.mxu0 0.0
  %516 = vmatpush1.msra.mxu0 0.0
  %517 = vmatprep.subr.mxu0 0.0
  %518 = vmatpush1.msra.mxu0 0.0
  %519 = vmatprep.subr.mxu0 0.0
  %520 = vmatpush1.msra.mxu0 0.0
  %521 = vmatprep.subr.mxu0 0.0
  %522 = vmatpush1.msra.mxu0 0.0
  %523 = vmatprep.subr.mxu0 0.0
  %524 = vmatpush1.msra.mxu0 0.0
  %525 = vmatprep.subr.mxu0 0.0
  %526 = vmatpush1.msra.mxu0 0.0
  %527 = vmatprep.subr.mxu0 0.0
  %528 = vmatpush1.msra.mxu0 0.0
  %529 = vmatprep.subr.mxu0 0.0
  %530 = vmatpush1.msra.mxu0 0.0
  %531 = vmatprep.subr.mxu0 0.0
  %532 = vmatpush1.msra.mxu0 0.0
  %533 = vmatprep.subr.mxu0 0.0
  %534 = vmatpush1.msra.mxu0 0.0
  %535 = vmatprep.subr.mxu0 0.0
  %536 = vmatpush1.msra.mxu0 0.0
  %537 = vmatprep.subr.mxu0 0.0
  %538 = vmatpush1.msra.mxu0 0.0
  %539 = vmatprep.subr.mxu0 0.0
  %540 = vmatpush1.msra.mxu0 0.0
  %541 = vmatprep.subr.mxu0 0.0
  %542 = vmatpush1.msra.mxu0 0.0
  %543 = vmatprep.subr.mxu0 0.0
  %544 = vmatpush1.msra.mxu0 0.0
  %545 = vmatprep.subr.mxu0 0.0
  %546 = vmatpush1.msra.mxu0 0.0
  %547 = vmatprep.subr.mxu0 0.0
  %548 = vmatpush1.msra.mxu0 0.0
  %549 = vmatprep.mubr.f32.mxu0 0.0
  %550 = vmatmul.mubr.f32.gmra.mrb[0].mxu0 %v483
  %v551 = vpop.f32.mrb[0].mxu0
  %v552 = vadd.f32 0.0, %v551
  %v553 = vpop.f32.mrb[0].mxu0
  %554 = vdwg.mxu0
  %v555 = vadd.f32 %v475, %v552
  %556 = vrot.lane.b32.xlu0 %v237, 124
  %v557 = vpop.permute.xlu0 %556
  %558 = vrot.lane.b32.xlu0 %v238, 124
  %v559 = vpop.permute.xlu0 %558
  %v563 = vsel %vm239, %v230, 0
  %565 = vmatprep.subr.mxu0 0.0
  %566 = vmatpush1.msra.mxu0 %v557
  %567 = vmatprep.subr.mxu0 0.0
  %568 = vmatpush1.msra.mxu0 %v559
  %569 = vmatprep.subr.mxu0 0.0
  %570 = vmatpush1.msra.mxu0 0.0
  %571 = vmatprep.subr.mxu0 0.0
  %572 = vmatpush1.msra.mxu0 0.0
  %573 = vmatprep.subr.mxu0 0.0
  %574 = vmatpush1.msra.mxu0 0.0
  %575 = vmatprep.subr.mxu0 0.0
  %576 = vmatpush1.msra.mxu0 0.0
  %577 = vmatprep.subr.mxu0 0.0
  %578 = vmatpush1.msra.mxu0 0.0
  %579 = vmatprep.subr.mxu0 0.0
  %580 = vmatpush1.msra.mxu0 0.0
  %581 = vmatprep.subr.mxu0 0.0
  %582 = vmatpush1.msra.mxu0 0.0
  %583 = vmatprep.subr.mxu0 0.0
  %584 = vmatpush1.msra.mxu0 0.0
  %585 = vmatprep.subr.mxu0 0.0
  %586 = vmatpush1.msra.mxu0 0.0
  %587 = vmatprep.subr.mxu0 0.0
  %588 = vmatpush1.msra.mxu0 0.0
  %589 = vmatprep.subr.mxu0 0.0
  %590 = vmatpush1.msra.mxu0 0.0
  %591 = vmatprep.subr.mxu0 0.0
  %592 = vmatpush1.msra.mxu0 0.0
  %593 = vmatprep.subr.mxu0 0.0
  %594 = vmatpush1.msra.mxu0 0.0
  %595 = vmatprep.subr.mxu0 0.0
  %596 = vmatpush1.msra.mxu0 0.0
  %597 = vmatprep.subr.mxu0 0.0
  %598 = vmatpush1.msra.mxu0 0.0
  %599 = vmatprep.subr.mxu0 0.0
  %600 = vmatpush1.msra.mxu0 0.0
  %601 = vmatprep.subr.mxu0 0.0
  %602 = vmatpush1.msra.mxu0 0.0
  %603 = vmatprep.subr.mxu0 0.0
  %604 = vmatpush1.msra.mxu0 0.0
  %605 = vmatprep.subr.mxu0 0.0
  %606 = vmatpush1.msra.mxu0 0.0
  %607 = vmatprep.subr.mxu0 0.0
  %608 = vmatpush1.msra.mxu0 0.0
  %609 = vmatprep.subr.mxu0 0.0
  %610 = vmatpush1.msra.mxu0 0.0
  %611 = vmatprep.subr.mxu0 0.0
  %612 = vmatpush1.msra.mxu0 0.0
  %613 = vmatprep.subr.mxu0 0.0
  %614 = vmatpush1.msra.mxu0 0.0
  %615 = vmatprep.subr.mxu0 0.0
  %616 = vmatpush1.msra.mxu0 0.0
  %617 = vmatprep.subr.mxu0 0.0
  %618 = vmatpush1.msra.mxu0 0.0
  %619 = vmatprep.subr.mxu0 0.0
  %620 = vmatpush1.msra.mxu0 0.0
  %621 = vmatprep.subr.mxu0 0.0
  %622 = vmatpush1.msra.mxu0 0.0
  %623 = vmatprep.subr.mxu0 0.0
  %624 = vmatpush1.msra.mxu0 0.0
  %625 = vmatprep.subr.mxu0 0.0
  %626 = vmatpush1.msra.mxu0 0.0
  %627 = vmatprep.subr.mxu0 0.0
  %628 = vmatpush1.msra.mxu0 0.0
  %629 = vmatprep.mubr.f32.mxu0 0.0
  %630 = vmatmul.mubr.f32.gmra.mrb[0].mxu0 %v563
  %v631 = vpop.f32.mrb[0].mxu0
  %v632 = vadd.f32 0.0, %v631
  %v633 = vpop.f32.mrb[0].mxu0
  %634 = vdwg.mxu0
  %v635 = vadd.f32 %v555, %v632
  %vm636 = vcmask 408576
  %637 = vst.msk [vmem:[#allocation3] sm:$0xff] %vm636, %v635
  %v638 = vld [vmem:[%s6] sm:$0xff]
  %640 = vset.pattern.permute.xlu0 0
  %641 = vperm.xlu0 %640, %v638
  %v642 = vpop.permute.xlu0 %641
  %v644 = vld [vmem:[#allocation2] sm:$0xff]
  %v645 = vld [vmem:[#allocation2 + $0x8] sm:$0xff]
  %648 = vrot.lane.b32.xlu0 %v644, 74
  %v649 = vpop.permute.xlu0 %648
  %650 = vrot.lane.b32.xlu0 %v645, 74
  %v651 = vpop.permute.xlu0 %650
  %654 = vmatprep.subr.mxu0 0.0
  %655 = vmatpush1.msra.mxu0 %v649
  %656 = vmatprep.subr.mxu0 0.0
  %657 = vmatpush1.msra.mxu0 %v651
  %658 = vmatprep.subr.mxu0 0.0
  %659 = vmatpush1.msra.mxu0 0.0
  %660 = vmatprep.subr.mxu0 0.0
  %661 = vmatpush1.msra.mxu0 0.0
  %662 = vmatprep.subr.mxu0 0.0
  %663 = vmatpush1.msra.mxu0 0.0
  %664 = vmatprep.subr.mxu0 0.0
  %665 = vmatpush1.msra.mxu0 0.0
  %666 = vmatprep.subr.mxu0 0.0
  %667 = vmatpush1.msra.mxu0 0.0
  %668 = vmatprep.subr.mxu0 0.0
  %669 = vmatpush1.msra.mxu0 0.0
  %670 = vmatprep.subr.mxu0 0.0
  %671 = vmatpush1.msra.mxu0 0.0
  %672 = vmatprep.subr.mxu0 0.0
  %673 = vmatpush1.msra.mxu0 0.0
  %674 = vmatprep.subr.mxu0 0.0
  %675 = vmatpush1.msra.mxu0 0.0
  %676 = vmatprep.subr.mxu0 0.0
  %677 = vmatpush1.msra.mxu0 0.0
  %678 = vmatprep.subr.mxu0 0.0
  %679 = vmatpush1.msra.mxu0 0.0
  %680 = vmatprep.subr.mxu0 0.0
  %681 = vmatpush1.msra.mxu0 0.0
  %682 = vmatprep.subr.mxu0 0.0
  %683 = vmatpush1.msra.mxu0 0.0
  %684 = vmatprep.subr.mxu0 0.0
  %685 = vmatpush1.msra.mxu0 0.0
  %686 = vmatprep.subr.mxu0 0.0
  %687 = vmatpush1.msra.mxu0 0.0
  %688 = vmatprep.subr.mxu0 0.0
  %689 = vmatpush1.msra.mxu0 0.0
  %690 = vmatprep.subr.mxu0 0.0
  %691 = vmatpush1.msra.mxu0 0.0
  %692 = vmatprep.subr.mxu0 0.0
  %693 = vmatpush1.msra.mxu0 0.0
  %694 = vmatprep.subr.mxu0 0.0
  %695 = vmatpush1.msra.mxu0 0.0
  %696 = vmatprep.subr.mxu0 0.0
  %697 = vmatpush1.msra.mxu0 0.0
  %698 = vmatprep.subr.mxu0 0.0
  %699 = vmatpush1.msra.mxu0 0.0
  %700 = vmatprep.subr.mxu0 0.0
  %701 = vmatpush1.msra.mxu0 0.0
  %702 = vmatprep.subr.mxu0 0.0
  %703 = vmatpush1.msra.mxu0 0.0
  %704 = vmatprep.subr.mxu0 0.0
  %705 = vmatpush1.msra.mxu0 0.0
  %706 = vmatprep.subr.mxu0 0.0
  %707 = vmatpush1.msra.mxu0 0.0
  %708 = vmatprep.subr.mxu0 0.0
  %709 = vmatpush1.msra.mxu0 0.0
  %710 = vmatprep.subr.mxu0 0.0
  %711 = vmatpush1.msra.mxu0 0.0
  %712 = vmatprep.subr.mxu0 0.0
  %713 = vmatpush1.msra.mxu0 0.0
  %714 = vmatprep.subr.mxu0 0.0
  %715 = vmatpush1.msra.mxu0 0.0
  %716 = vmatprep.subr.mxu0 0.0
  %717 = vmatpush1.msra.mxu0 0.0
  %718 = vmatprep.mubr.f32.mxu0 0.0
  %719 = vmatmul.mubr.f32.gmra.mrb[0].mxu0 %v241
  %v720 = vpop.f32.mrb[0].mxu0
  %v721 = vadd.f32 0.0, %v720
  %v722 = vpop.f32.mrb[0].mxu0
  %723 = vdwg.mxu0
  %v724 = vadd.f32 %v642, %v721
  %725 = vrot.lane.b32.xlu0 %v644, 73
  %v726 = vpop.permute.xlu0 %725
  %727 = vrot.lane.b32.xlu0 %v645, 73
  %v728 = vpop.permute.xlu0 %727
  %731 = vmatprep.subr.mxu0 0.0
  %732 = vmatpush1.msra.mxu0 %v726
  %733 = vmatprep.subr.mxu0 0.0
  %734 = vmatpush1.msra.mxu0 %v728
  %735 = vmatprep.subr.mxu0 0.0
  %736 = vmatpush1.msra.mxu0 0.0
  %737 = vmatprep.subr.mxu0 0.0
  %738 = vmatpush1.msra.mxu0 0.0
  %739 = vmatprep.subr.mxu0 0.0
  %740 = vmatpush1.msra.mxu0 0.0
  %741 = vmatprep.subr.mxu0 0.0
  %742 = vmatpush1.msra.mxu0 0.0
  %743 = vmatprep.subr.mxu0 0.0
  %744 = vmatpush1.msra.mxu0 0.0
  %745 = vmatprep.subr.mxu0 0.0
  %746 = vmatpush1.msra.mxu0 0.0
  %747 = vmatprep.subr.mxu0 0.0
  %748 = vmatpush1.msra.mxu0 0.0
  %749 = vmatprep.subr.mxu0 0.0
  %750 = vmatpush1.msra.mxu0 0.0
  %751 = vmatprep.subr.mxu0 0.0
  %752 = vmatpush1.msra.mxu0 0.0
  %753 = vmatprep.subr.mxu0 0.0
  %754 = vmatpush1.msra.mxu0 0.0
  %755 = vmatprep.subr.mxu0 0.0
  %756 = vmatpush1.msra.mxu0 0.0
  %757 = vmatprep.subr.mxu0 0.0
  %758 = vmatpush1.msra.mxu0 0.0
  %759 = vmatprep.subr.mxu0 0.0
  %760 = vmatpush1.msra.mxu0 0.0
  %761 = vmatprep.subr.mxu0 0.0
  %762 = vmatpush1.msra.mxu0 0.0
  %763 = vmatprep.subr.mxu0 0.0
  %764 = vmatpush1.msra.mxu0 0.0
  %765 = vmatprep.subr.mxu0 0.0
  %766 = vmatpush1.msra.mxu0 0.0
  %767 = vmatprep.subr.mxu0 0.0
  %768 = vmatpush1.msra.mxu0 0.0
  %769 = vmatprep.subr.mxu0 0.0
  %770 = vmatpush1.msra.mxu0 0.0
  %771 = vmatprep.subr.mxu0 0.0
  %772 = vmatpush1.msra.mxu0 0.0
  %773 = vmatprep.subr.mxu0 0.0
  %774 = vmatpush1.msra.mxu0 0.0
  %775 = vmatprep.subr.mxu0 0.0
  %776 = vmatpush1.msra.mxu0 0.0
  %777 = vmatprep.subr.mxu0 0.0
  %778 = vmatpush1.msra.mxu0 0.0
  %779 = vmatprep.subr.mxu0 0.0
  %780 = vmatpush1.msra.mxu0 0.0
  %781 = vmatprep.subr.mxu0 0.0
  %782 = vmatpush1.msra.mxu0 0.0
  %783 = vmatprep.subr.mxu0 0.0
  %784 = vmatpush1.msra.mxu0 0.0
  %785 = vmatprep.subr.mxu0 0.0
  %786 = vmatpush1.msra.mxu0 0.0
  %787 = vmatprep.subr.mxu0 0.0
  %788 = vmatpush1.msra.mxu0 0.0
  %789 = vmatprep.subr.mxu0 0.0
  %790 = vmatpush1.msra.mxu0 0.0
  %791 = vmatprep.subr.mxu0 0.0
  %792 = vmatpush1.msra.mxu0 0.0
  %793 = vmatprep.subr.mxu0 0.0
  %794 = vmatpush1.msra.mxu0 0.0
  %795 = vmatprep.mubr.f32.mxu0 0.0
  %796 = vmatmul.mubr.f32.gmra.mrb[0].mxu0 %v323
  %v797 = vpop.f32.mrb[0].mxu0
  %v798 = vadd.f32 0.0, %v797
  %v799 = vpop.f32.mrb[0].mxu0
  %800 = vdwg.mxu0
  %v801 = vadd.f32 %v724, %v798
  %802 = vrot.lane.b32.xlu0 %v644, 72
  %v803 = vpop.permute.xlu0 %802
  %804 = vrot.lane.b32.xlu0 %v645, 72
  %v805 = vpop.permute.xlu0 %804
  %808 = vmatprep.subr.mxu0 0.0
  %809 = vmatpush1.msra.mxu0 %v803
  %810 = vmatprep.subr.mxu0 0.0
  %811 = vmatpush1.msra.mxu0 %v805
  %812 = vmatprep.subr.mxu0 0.0
  %813 = vmatpush1.msra.mxu0 0.0
  %814 = vmatprep.subr.mxu0 0.0
  %815 = vmatpush1.msra.mxu0 0.0
  %816 = vmatprep.subr.mxu0 0.0
  %817 = vmatpush1.msra.mxu0 0.0
  %818 = vmatprep.subr.mxu0 0.0
  %819 = vmatpush1.msra.mxu0 0.0
  %820 = vmatprep.subr.mxu0 0.0
  %821 = vmatpush1.msra.mxu0 0.0
  %822 = vmatprep.subr.mxu0 0.0
  %823 = vmatpush1.msra.mxu0 0.0
  %824 = vmatprep.subr.mxu0 0.0
  %825 = vmatpush1.msra.mxu0 0.0
  %826 = vmatprep.subr.mxu0 0.0
  %827 = vmatpush1.msra.mxu0 0.0
  %828 = vmatprep.subr.mxu0 0.0
  %829 = vmatpush1.msra.mxu0 0.0
  %830 = vmatprep.subr.mxu0 0.0
  %831 = vmatpush1.msra.mxu0 0.0
  %832 = vmatprep.subr.mxu0 0.0
  %833 = vmatpush1.msra.mxu0 0.0
  %834 = vmatprep.subr.mxu0 0.0
  %835 = vmatpush1.msra.mxu0 0.0
  %836 = vmatprep.subr.mxu0 0.0
  %837 = vmatpush1.msra.mxu0 0.0
  %838 = vmatprep.subr.mxu0 0.0
  %839 = vmatpush1.msra.mxu0 0.0
  %840 = vmatprep.subr.mxu0 0.0
  %841 = vmatpush1.msra.mxu0 0.0
  %842 = vmatprep.subr.mxu0 0.0
  %843 = vmatpush1.msra.mxu0 0.0
  %844 = vmatprep.subr.mxu0 0.0
  %845 = vmatpush1.msra.mxu0 0.0
  %846 = vmatprep.subr.mxu0 0.0
  %847 = vmatpush1.msra.mxu0 0.0
  %848 = vmatprep.subr.mxu0 0.0
  %849 = vmatpush1.msra.mxu0 0.0
  %850 = vmatprep.subr.mxu0 0.0
  %851 = vmatpush1.msra.mxu0 0.0
  %852 = vmatprep.subr.mxu0 0.0
  %853 = vmatpush1.msra.mxu0 0.0
  %854 = vmatprep.subr.mxu0 0.0
  %855 = vmatpush1.msra.mxu0 0.0
  %856 = vmatprep.subr.mxu0 0.0
  %857 = vmatpush1.msra.mxu0 0.0
  %858 = vmatprep.subr.mxu0 0.0
  %859 = vmatpush1.msra.mxu0 0.0
  %860 = vmatprep.subr.mxu0 0.0
  %861 = vmatpush1.msra.mxu0 0.0
  %862 = vmatprep.subr.mxu0 0.0
  %863 = vmatpush1.msra.mxu0 0.0
  %864 = vmatprep.subr.mxu0 0.0
  %865 = vmatpush1.msra.mxu0 0.0
  %866 = vmatprep.subr.mxu0 0.0
  %867 = vmatpush1.msra.mxu0 0.0
  %868 = vmatprep.subr.mxu0 0.0
  %869 = vmatpush1.msra.mxu0 0.0
  %870 = vmatprep.subr.mxu0 0.0
  %871 = vmatpush1.msra.mxu0 0.0
  %872 = vmatprep.mubr.f32.mxu0 0.0
  %873 = vmatmul.mubr.f32.gmra.mrb[0].mxu0 %v403
  %v874 = vpop.f32.mrb[0].mxu0
  %v875 = vadd.f32 0.0, %v874
  %v876 = vpop.f32.mrb[0].mxu0
  %877 = vdwg.mxu0
  %v878 = vadd.f32 %v801, %v875
  %879 = vrot.lane.b32.xlu0 %v644, 71
  %v880 = vpop.permute.xlu0 %879
  %881 = vrot.lane.b32.xlu0 %v645, 71
  %v882 = vpop.permute.xlu0 %881
  %885 = vmatprep.subr.mxu0 0.0
  %886 = vmatpush1.msra.mxu0 %v880
  %887 = vmatprep.subr.mxu0 0.0
  %888 = vmatpush1.msra.mxu0 %v882
  %889 = vmatprep.subr.mxu0 0.0
  %890 = vmatpush1.msra.mxu0 0.0
  %891 = vmatprep.subr.mxu0 0.0
  %892 = vmatpush1.msra.mxu0 0.0
  %893 = vmatprep.subr.mxu0 0.0
  %894 = vmatpush1.msra.mxu0 0.0
  %895 = vmatprep.subr.mxu0 0.0
  %896 = vmatpush1.msra.mxu0 0.0
  %897 = vmatprep.subr.mxu0 0.0
  %898 = vmatpush1.msra.mxu0 0.0
  %899 = vmatprep.subr.mxu0 0.0
  %900 = vmatpush1.msra.mxu0 0.0
  %901 = vmatprep.subr.mxu0 0.0
  %902 = vmatpush1.msra.mxu0 0.0
  %903 = vmatprep.subr.mxu0 0.0
  %904 = vmatpush1.msra.mxu0 0.0
  %905 = vmatprep.subr.mxu0 0.0
  %906 = vmatpush1.msra.mxu0 0.0
  %907 = vmatprep.subr.mxu0 0.0
  %908 = vmatpush1.msra.mxu0 0.0
  %909 = vmatprep.subr.mxu0 0.0
  %910 = vmatpush1.msra.mxu0 0.0
  %911 = vmatprep.subr.mxu0 0.0
  %912 = vmatpush1.msra.mxu0 0.0
  %913 = vmatprep.subr.mxu0 0.0
  %914 = vmatpush1.msra.mxu0 0.0
  %915 = vmatprep.subr.mxu0 0.0
  %916 = vmatpush1.msra.mxu0 0.0
  %917 = vmatprep.subr.mxu0 0.0
  %918 = vmatpush1.msra.mxu0 0.0
  %919 = vmatprep.subr.mxu0 0.0
  %920 = vmatpush1.msra.mxu0 0.0
  %921 = vmatprep.subr.mxu0 0.0
  %922 = vmatpush1.msra.mxu0 0.0
  %923 = vmatprep.subr.mxu0 0.0
  %924 = vmatpush1.msra.mxu0 0.0
  %925 = vmatprep.subr.mxu0 0.0
  %926 = vmatpush1.msra.mxu0 0.0
  %927 = vmatprep.subr.mxu0 0.0
  %928 = vmatpush1.msra.mxu0 0.0
  %929 = vmatprep.subr.mxu0 0.0
  %930 = vmatpush1.msra.mxu0 0.0
  %931 = vmatprep.subr.mxu0 0.0
  %932 = vmatpush1.msra.mxu0 0.0
  %933 = vmatprep.subr.mxu0 0.0
  %934 = vmatpush1.msra.mxu0 0.0
  %935 = vmatprep.subr.mxu0 0.0
  %936 = vmatpush1.msra.mxu0 0.0
  %937 = vmatprep.subr.mxu0 0.0
  %938 = vmatpush1.msra.mxu0 0.0
  %939 = vmatprep.subr.mxu0 0.0
  %940 = vmatpush1.msra.mxu0 0.0
  %941 = vmatprep.subr.mxu0 0.0
  %942 = vmatpush1.msra.mxu0 0.0
  %943 = vmatprep.subr.mxu0 0.0
  %944 = vmatpush1.msra.mxu0 0.0
  %945 = vmatprep.subr.mxu0 0.0
  %946 = vmatpush1.msra.mxu0 0.0
  %947 = vmatprep.subr.mxu0 0.0
  %948 = vmatpush1.msra.mxu0 0.0
  %949 = vmatprep.mubr.f32.mxu0 0.0
  %950 = vmatmul.mubr.f32.gmra.mrb[0].mxu0 %v483
  %v951 = vpop.f32.mrb[0].mxu0
  %v952 = vadd.f32 0.0, %v951
  %v953 = vpop.f32.mrb[0].mxu0
  %954 = vdwg.mxu0
  %v955 = vadd.f32 %v878, %v952
  %956 = vrot.lane.b32.xlu0 %v644, 70
  %v957 = vpop.permute.xlu0 %956
  %958 = vrot.lane.b32.xlu0 %v645, 70
  %v959 = vpop.permute.xlu0 %958
  %962 = vmatprep.subr.mxu0 0.0
  %963 = vmatpush1.msra.mxu0 %v957
  %964 = vmatprep.subr.mxu0 0.0
  %965 = vmatpush1.msra.mxu0 %v959
  %966 = vmatprep.subr.mxu0 0.0
  %967 = vmatpush1.msra.mxu0 0.0
  %968 = vmatprep.subr.mxu0 0.0
  %969 = vmatpush1.msra.mxu0 0.0
  %970 = vmatprep.subr.mxu0 0.0
  %971 = vmatpush1.msra.mxu0 0.0
  %972 = vmatprep.subr.mxu0 0.0
  %973 = vmatpush1.msra.mxu0 0.0
  %974 = vmatprep.subr.mxu0 0.0
  %975 = vmatpush1.msra.mxu0 0.0
  %976 = vmatprep.subr.mxu0 0.0
  %977 = vmatpush1.msra.mxu0 0.0
  %978 = vmatprep.subr.mxu0 0.0
  %979 = vmatpush1.msra.mxu0 0.0
  %980 = vmatprep.subr.mxu0 0.0
  %981 = vmatpush1.msra.mxu0 0.0
  %982 = vmatprep.subr.mxu0 0.0
  %983 = vmatpush1.msra.mxu0 0.0
  %984 = vmatprep.subr.mxu0 0.0
  %985 = vmatpush1.msra.mxu0 0.0
  %986 = vmatprep.subr.mxu0 0.0
  %987 = vmatpush1.msra.mxu0 0.0
  %988 = vmatprep.subr.mxu0 0.0
  %989 = vmatpush1.msra.mxu0 0.0
  %990 = vmatprep.subr.mxu0 0.0
  %991 = vmatpush1.msra.mxu0 0.0
  %992 = vmatprep.subr.mxu0 0.0
  %993 = vmatpush1.msra.mxu0 0.0
  %994 = vmatprep.subr.mxu0 0.0
  %995 = vmatpush1.msra.mxu0 0.0
  %996 = vmatprep.subr.mxu0 0.0
  %997 = vmatpush1.msra.mxu0 0.0
  %998 = vmatprep.subr.mxu0 0.0
  %999 = vmatpush1.msra.mxu0 0.0
  %1000 = vmatprep.subr.mxu0 0.0
  %1001 = vmatpush1.msra.mxu0 0.0
  %1002 = vmatprep.subr.mxu0 0.0
  %1003 = vmatpush1.msra.mxu0 0.0
  %1004 = vmatprep.subr.mxu0 0.0
  %1005 = vmatpush1.msra.mxu0 0.0
  %1006 = vmatprep.subr.mxu0 0.0
  %1007 = vmatpush1.msra.mxu0 0.0
  %1008 = vmatprep.subr.mxu0 0.0
  %1009 = vmatpush1.msra.mxu0 0.0
  %1010 = vmatprep.subr.mxu0 0.0
  %1011 = vmatpush1.msra.mxu0 0.0
  %1012 = vmatprep.subr.mxu0 0.0
  %1013 = vmatpush1.msra.mxu0 0.0
  %1014 = vmatprep.subr.mxu0 0.0
  %1015 = vmatpush1.msra.mxu0 0.0
  %1016 = vmatprep.subr.mxu0 0.0
  %1017 = vmatpush1.msra.mxu0 0.0
  %1018 = vmatprep.subr.mxu0 0.0
  %1019 = vmatpush1.msra.mxu0 0.0
  %1020 = vmatprep.subr.mxu0 0.0
  %1021 = vmatpush1.msra.mxu0 0.0
  %1022 = vmatprep.subr.mxu0 0.0
  %1023 = vmatpush1.msra.mxu0 0.0
  %1024 = vmatprep.subr.mxu0 0.0
  %1025 = vmatpush1.msra.mxu0 0.0
  %1026 = vmatprep.mubr.f32.mxu0 0.0
  %1027 = vmatmul.mubr.f32.gmra.mrb[0].mxu0 %v563
  %v1028 = vpop.f32.mrb[0].mxu0
  %v1029 = vadd.f32 0.0, %v1028
  %v1030 = vpop.f32.mrb[0].mxu0
  %1031 = vdwg.mxu0
  %v1032 = vadd.f32 %v955, %v1029
  %1034 = vrot.lane.b32.xlu0 %v1032, 50
  %v1035 = vpop.permute.xlu0 %1034
  %vm1037 = vcmask 818576
  %1038 = vst.msk [vmem:[#allocation3] sm:$0xff] %vm1037, %v1035
  %v1039 = vld [vmem:[#allocation3] sm:$0xff]
  %v1040 = vsel %vm133, %v1039, 0.0
  %1041 = vadd.xlane.f32.xlu0 %v1040
  %v1042 = vpop.xlane.xlu0 %1041
  %v1043 = vmul.f32 %v1042, %v140
  %v1044 = vsub.f32 %v1039, %v1043
  %v1045 = vmul.f32 %v1044, %v1044
  %v1046 = vsel %vm133, %v1045, 0.0
  %1047 = vadd.xlane.f32.xlu0 %v1046
  %v1048 = vpop.xlane.xlu0 %1047
  %v1049 = vmul.f32 %v1048, %v140
  %v1050 = vld [vmem:[%s7] sm:$0xff]
  %v1051 = vadd.f32 %v1049, 1e-05
  %v1052 = vrsqrt.pop %v1051
  %v1053 = vmul.f32 %v1051, %v1052
  %vm1054 = vcmp.eq.f32.partialorder %v1051, inf
  %v1055 = vsel %vm1054, %v1051, %v1053
  %vm1056 = vcmp.eq.f32.partialorder %v1051, 0.0
  %v1057 = vand.u32 %v1051, 2147483648
  %v1058 = vsel %vm1056, %v1057, %v1055
  %v1059 = vrcp.pop %v1058
  %v1060 = vmul.f32 %v1050, %v1059
  %1062 = vset.pattern.permute.xlu0 0
  %1063 = vperm.xlu0 %1062, %v1060
  %v1064 = vpop.permute.xlu0 %1063
  %v1066 = vmul.f32 %v1044, %v1064
  %v1067 = vld [vmem:[%s8] sm:$0xff]
  %1069 = vset.pattern.permute.xlu0 0
  %1070 = vperm.xlu0 %1069, %v1067
  %v1071 = vpop.permute.xlu0 %1070
  %v1073 = vadd.f32 %v1066, %v1071
  %v1074 = vlaneseq
  %v1075 = vshrl.u32 %v1074, 7
  %v1076 = vlaneseq
  %v1077 = vand.u32 %v1076, 127
  %vm1078 = vcmp.eq.s32.totalorder %v1075, %v1077
  %v1079 = vsel %vm1078, 1, 0
  %v1080 = vcvt.s32.f32 %v1079
  %vm1081 = vcmask 80896
  %v1082 = vsel %vm1081, %v1073, 0.0
  %1083 = vadd.xlane.f32.xlu0 %v1082
  %v1084 = vpop.xlane.xlu0 %1083
  %v1085 = vrcp.pop 10.0
  %v1086 = vmul.f32 %v1084, %v1085
  %v1087 = vsub.f32 %v1073, %v1086
  %v1089 = vsel %vm1081, %v1087, 0
  %1091 = vmatprep.subr.mxu0 0.0
  %1092 = vmatpush1.xpose.msra.mxu0 %v1089
  %1093 = vmatprep.subr.mxu0 0.0
  %1094 = vmatpush1.xpose.msra.mxu0 0.0
  %1095 = vmatprep.subr.mxu0 0.0
  %1096 = vmatpush1.xpose.msra.mxu0 0.0
  %1097 = vmatprep.subr.mxu0 0.0
  %1098 = vmatpush1.xpose.msra.mxu0 0.0
  %1099 = vmatprep.subr.mxu0 0.0
  %1100 = vmatpush1.xpose.msra.mxu0 0.0
  %1101 = vmatprep.subr.mxu0 0.0
  %1102 = vmatpush1.xpose.msra.mxu0 0.0
  %1103 = vmatprep.subr.mxu0 0.0
  %1104 = vmatpush1.xpose.msra.mxu0 0.0
  %1105 = vmatprep.subr.mxu0 0.0
  %1106 = vmatpush1.xpose.msra.mxu0 0.0
  %1107 = vmatprep.subr.mxu0 0.0
  %1108 = vmatpush1.xpose.msra.mxu0 0.0
  %1109 = vmatprep.subr.mxu0 0.0
  %1110 = vmatpush1.xpose.msra.mxu0 0.0
  %1111 = vmatprep.subr.mxu0 0.0
  %1112 = vmatpush1.xpose.msra.mxu0 0.0
  %1113 = vmatprep.subr.mxu0 0.0
  %1114 = vmatpush1.xpose.msra.mxu0 0.0
  %1115 = vmatprep.subr.mxu0 0.0
  %1116 = vmatpush1.xpose.msra.mxu0 0.0
  %1117 = vmatprep.subr.mxu0 0.0
  %1118 = vmatpush1.xpose.msra.mxu0 0.0
  %1119 = vmatprep.subr.mxu0 0.0
  %1120 = vmatpush1.xpose.msra.mxu0 0.0
  %1121 = vmatprep.subr.mxu0 0.0
  %1122 = vmatpush1.xpose.msra.mxu0 0.0
  %1123 = vmatprep.subr.mxu0 0.0
  %1124 = vmatpush1.xpose.msra.mxu0 0.0
  %1125 = vmatprep.subr.mxu0 0.0
  %1126 = vmatpush1.xpose.msra.mxu0 0.0
  %1127 = vmatprep.subr.mxu0 0.0
  %1128 = vmatpush1.xpose.msra.mxu0 0.0
  %1129 = vmatprep.subr.mxu0 0.0
  %1130 = vmatpush1.xpose.msra.mxu0 0.0
  %1131 = vmatprep.subr.mxu0 0.0
  %1132 = vmatpush1.xpose.msra.mxu0 0.0
  %1133 = vmatprep.subr.mxu0 0.0
  %1134 = vmatpush1.xpose.msra.mxu0 0.0
  %1135 = vmatprep.subr.mxu0 0.0
  %1136 = vmatpush1.xpose.msra.mxu0 0.0
  %1137 = vmatprep.subr.mxu0 0.0
  %1138 = vmatpush1.xpose.msra.mxu0 0.0
  %1139 = vmatprep.subr.mxu0 0.0
  %1140 = vmatpush1.xpose.msra.mxu0 0.0
  %1141 = vmatprep.subr.mxu0 0.0
  %1142 = vmatpush1.xpose.msra.mxu0 0.0
  %1143 = vmatprep.subr.mxu0 0.0
  %1144 = vmatpush1.xpose.msra.mxu0 0.0
  %1145 = vmatprep.subr.mxu0 0.0
  %1146 = vmatpush1.xpose.msra.mxu0 0.0
  %1147 = vmatprep.subr.mxu0 0.0
  %1148 = vmatpush1.xpose.msra.mxu0 0.0
  %1149 = vmatprep.subr.mxu0 0.0
  %1150 = vmatpush1.xpose.msra.mxu0 0.0
  %1151 = vmatprep.subr.mxu0 0.0
  %1152 = vmatpush1.xpose.msra.mxu0 0.0
  %1153 = vmatprep.subr.mxu0 0.0
  %1154 = vmatpush1.xpose.msra.mxu0 0.0
  %1155 = vmatprep.mubr.f32.mxu0 0.0
  %1156 = vmatmul.mubr.f32.gmra.mrb[0].mxu0 %v1089
  %v1157 = vpop.f32.mrb[0].mxu0
  %v1158 = vadd.f32 0.0, %v1157
  %v1159 = vpop.f32.mrb[0].mxu0
  %1160 = vdwg.mxu0
  %v1161 = vrcp.pop 9.0
  %v1162 = vmul.f32 %v1158, %v1161
  %v1163 = vmul.f32 %v1162, %v1080
  %vm1164 = vcmask 64512
  %v1165 = vsel %vm1164, %v1163, 0.0
  %1166 = vadd.xlane.f32.xlu0 %v1165
  %v1167 = vpop.xlane.xlu0 %1166
  %v1168 = vrot.slane %v1167, 4
  %v1169 = vadd.f32 %v1167, %v1168
  %v1170 = vrot.slane %v1169, 2
  %v1171 = vadd.f32 %v1169, %v1170
  %v1172 = vrot.slane %v1171, 1
  %v1173 = vadd.f32 %v1171, %v1172
  %s1174 = vtos %v1173
  %v1175 = vstv %s1174
  %v1176 = vrcp.pop %v1175
  %v1177 = vmul.f32 %v1162, %v1176
  %v1178 = vmul.f32 %v1080, 1e-05
  %v1179 = vadd.f32 %v1177, %v1178
  %1180 = vst.msk [vmem:[%s9] sm:$0xff] %vm1164, %v1179
  %1182 = vrot.lane.b32.xlu0 %v1073, 118
  %v1183 = vpop.permute.xlu0 %1182
  %v1185 = vsel %vm1081, %v1183, 0.0
  %1186 = vadd.xlane.f32.xlu0 %v1185
  %v1187 = vpop.xlane.xlu0 %1186
  %v1188 = vmul.f32 %v1187, %v1085
  %v1189 = vsub.f32 %v1073, %v1188
  %1191 = vrot.lane.b32.xlu0 %v1189, 118
  %v1192 = vpop.permute.xlu0 %1191
  %v1193 = vsel %vm1081, %v1192, 0
  %1195 = vmatprep.subr.mxu0 0.0
  %1196 = vmatpush1.xpose.msra.mxu0 %v1193
  %1197 = vmatprep.subr.mxu0 0.0
  %1198 = vmatpush1.xpose.msra.mxu0 0.0
  %1199 = vmatprep.subr.mxu0 0.0
  %1200 = vmatpush1.xpose.msra.mxu0 0.0
  %1201 = vmatprep.subr.mxu0 0.0
  %1202 = vmatpush1.xpose.msra.mxu0 0.0
  %1203 = vmatprep.subr.mxu0 0.0
  %1204 = vmatpush1.xpose.msra.mxu0 0.0
  %1205 = vmatprep.subr.mxu0 0.0
  %1206 = vmatpush1.xpose.msra.mxu0 0.0
  %1207 = vmatprep.subr.mxu0 0.0
  %1208 = vmatpush1.xpose.msra.mxu0 0.0
  %1209 = vmatprep.subr.mxu0 0.0
  %1210 = vmatpush1.xpose.msra.mxu0 0.0
  %1211 = vmatprep.subr.mxu0 0.0
  %1212 = vmatpush1.xpose.msra.mxu0 0.0
  %1213 = vmatprep.subr.mxu0 0.0
  %1214 = vmatpush1.xpose.msra.mxu0 0.0
  %1215 = vmatprep.subr.mxu0 0.0
  %1216 = vmatpush1.xpose.msra.mxu0 0.0
  %1217 = vmatprep.subr.mxu0 0.0
  %1218 = vmatpush1.xpose.msra.mxu0 0.0
  %1219 = vmatprep.subr.mxu0 0.0
  %1220 = vmatpush1.xpose.msra.mxu0 0.0
  %1221 = vmatprep.subr.mxu0 0.0
  %1222 = vmatpush1.xpose.msra.mxu0 0.0
  %1223 = vmatprep.subr.mxu0 0.0
  %1224 = vmatpush1.xpose.msra.mxu0 0.0
  %1225 = vmatprep.subr.mxu0 0.0
  %1226 = vmatpush1.xpose.msra.mxu0 0.0
  %1227 = vmatprep.subr.mxu0 0.0
  %1228 = vmatpush1.xpose.msra.mxu0 0.0
  %1229 = vmatprep.subr.mxu0 0.0
  %1230 = vmatpush1.xpose.msra.mxu0 0.0
  %1231 = vmatprep.subr.mxu0 0.0
  %1232 = vmatpush1.xpose.msra.mxu0 0.0
  %1233 = vmatprep.subr.mxu0 0.0
  %1234 = vmatpush1.xpose.msra.mxu0 0.0
  %1235 = vmatprep.subr.mxu0 0.0
  %1236 = vmatpush1.xpose.msra.mxu0 0.0
  %1237 = vmatprep.subr.mxu0 0.0
  %1238 = vmatpush1.xpose.msra.mxu0 0.0
  %1239 = vmatprep.subr.mxu0 0.0
  %1240 = vmatpush1.xpose.msra.mxu0 0.0
  %1241 = vmatprep.subr.mxu0 0.0
  %1242 = vmatpush1.xpose.msra.mxu0 0.0
  %1243 = vmatprep.subr.mxu0 0.0
  %1244 = vmatpush1.xpose.msra.mxu0 0.0
  %1245 = vmatprep.subr.mxu0 0.0
  %1246 = vmatpush1.xpose.msra.mxu0 0.0
  %1247 = vmatprep.subr.mxu0 0.0
  %1248 = vmatpush1.xpose.msra.mxu0 0.0
  %1249 = vmatprep.subr.mxu0 0.0
  %1250 = vmatpush1.xpose.msra.mxu0 0.0
  %1251 = vmatprep.subr.mxu0 0.0
  %1252 = vmatpush1.xpose.msra.mxu0 0.0
  %1253 = vmatprep.subr.mxu0 0.0
  %1254 = vmatpush1.xpose.msra.mxu0 0.0
  %1255 = vmatprep.subr.mxu0 0.0
  %1256 = vmatpush1.xpose.msra.mxu0 0.0
  %1257 = vmatprep.subr.mxu0 0.0
  %1258 = vmatpush1.xpose.msra.mxu0 0.0
  %1259 = vmatprep.mubr.f32.mxu0 0.0
  %1260 = vmatmul.mubr.f32.gmra.mrb[0].mxu0 %v1193
  %v1261 = vpop.f32.mrb[0].mxu0
  %v1262 = vadd.f32 0.0, %v1261
  %v1263 = vpop.f32.mrb[0].mxu0
  %1264 = vdwg.mxu0
  %v1265 = vmul.f32 %v1262, %v1161
  %v1266 = vmul.f32 %v1265, %v1080
  %v1267 = vsel %vm1164, %v1266, 0.0
  %1268 = vadd.xlane.f32.xlu0 %v1267
  %v1269 = vpop.xlane.xlu0 %1268
  %v1270 = vrot.slane %v1269, 4
  %v1271 = vadd.f32 %v1269, %v1270
  %v1272 = vrot.slane %v1271, 2
  %v1273 = vadd.f32 %v1271, %v1272
  %v1274 = vrot.slane %v1273, 1
  %v1275 = vadd.f32 %v1273, %v1274
  %s1276 = vtos %v1275
  %v1277 = vstv %s1276
  %v1278 = vrcp.pop %v1277
  %v1279 = vmul.f32 %v1265, %v1278
  %v1280 = vadd.f32 %v1279, %v1178
  %s1281 = scalar_lea.vmem %s9, 8
  %1282 = vst.msk [vmem:[%s1281] sm:$0xff] %vm1164, %v1280
  %1283 = vrot.lane.b32.xlu0 %v1073, 108
  %v1284 = vpop.permute.xlu0 %1283
  %v1286 = vsel %vm1081, %v1284, 0.0
  %1287 = vadd.xlane.f32.xlu0 %v1286
  %v1288 = vpop.xlane.xlu0 %1287
  %v1289 = vmul.f32 %v1288, %v1085
  %v1290 = vsub.f32 %v1073, %v1289
  %1292 = vrot.lane.b32.xlu0 %v1290, 108
  %v1293 = vpop.permute.xlu0 %1292
  %v1294 = vsel %vm1081, %v1293, 0
  %1296 = vmatprep.subr.mxu0 0.0
  %1297 = vmatpush1.xpose.msra.mxu0 %v1294
  %1298 = vmatprep.subr.mxu0 0.0
  %1299 = vmatpush1.xpose.msra.mxu0 0.0
  %1300 = vmatprep.subr.mxu0 0.0
  %1301 = vmatpush1.xpose.msra.mxu0 0.0
  %1302 = vmatprep.subr.mxu0 0.0
  %1303 = vmatpush1.xpose.msra.mxu0 0.0
  %1304 = vmatprep.subr.mxu0 0.0
  %1305 = vmatpush1.xpose.msra.mxu0 0.0
  %1306 = vmatprep.subr.mxu0 0.0
  %1307 = vmatpush1.xpose.msra.mxu0 0.0
  %1308 = vmatprep.subr.mxu0 0.0
  %1309 = vmatpush1.xpose.msra.mxu0 0.0
  %1310 = vmatprep.subr.mxu0 0.0
  %1311 = vmatpush1.xpose.msra.mxu0 0.0
  %1312 = vmatprep.subr.mxu0 0.0
  %1313 = vmatpush1.xpose.msra.mxu0 0.0
  %1314 = vmatprep.subr.mxu0 0.0
  %1315 = vmatpush1.xpose.msra.mxu0 0.0
  %1316 = vmatprep.subr.mxu0 0.0
  %1317 = vmatpush1.xpose.msra.mxu0 0.0
  %1318 = vmatprep.subr.mxu0 0.0
  %1319 = vmatpush1.xpose.msra.mxu0 0.0
  %1320 = vmatprep.subr.mxu0 0.0
  %1321 = vmatpush1.xpose.msra.mxu0 0.0
  %1322 = vmatprep.subr.mxu0 0.0
  %1323 = vmatpush1.xpose.msra.mxu0 0.0
  %1324 = vmatprep.subr.mxu0 0.0
  %1325 = vmatpush1.xpose.msra.mxu0 0.0
  %1326 = vmatprep.subr.mxu0 0.0
  %1327 = vmatpush1.xpose.msra.mxu0 0.0
  %1328 = vmatprep.subr.mxu0 0.0
  %1329 = vmatpush1.xpose.msra.mxu0 0.0
  %1330 = vmatprep.subr.mxu0 0.0
  %1331 = vmatpush1.xpose.msra.mxu0 0.0
  %1332 = vmatprep.subr.mxu0 0.0
  %1333 = vmatpush1.xpose.msra.mxu0 0.0
  %1334 = vmatprep.subr.mxu0 0.0
  %1335 = vmatpush1.xpose.msra.mxu0 0.0
  %1336 = vmatprep.subr.mxu0 0.0
  %1337 = vmatpush1.xpose.msra.mxu0 0.0
  %1338 = vmatprep.subr.mxu0 0.0
  %1339 = vmatpush1.xpose.msra.mxu0 0.0
  %1340 = vmatprep.subr.mxu0 0.0
  %1341 = vmatpush1.xpose.msra.mxu0 0.0
  %1342 = vmatprep.subr.mxu0 0.0
  %1343 = vmatpush1.xpose.msra.mxu0 0.0
  %1344 = vmatprep.subr.mxu0 0.0
  %1345 = vmatpush1.xpose.msra.mxu0 0.0
  %1346 = vmatprep.subr.mxu0 0.0
  %1347 = vmatpush1.xpose.msra.mxu0 0.0
  %1348 = vmatprep.subr.mxu0 0.0
  %1349 = vmatpush1.xpose.msra.mxu0 0.0
  %1350 = vmatprep.subr.mxu0 0.0
  %1351 = vmatpush1.xpose.msra.mxu0 0.0
  %1352 = vmatprep.subr.mxu0 0.0
  %1353 = vmatpush1.xpose.msra.mxu0 0.0
  %1354 = vmatprep.subr.mxu0 0.0
  %1355 = vmatpush1.xpose.msra.mxu0 0.0
  %1356 = vmatprep.subr.mxu0 0.0
  %1357 = vmatpush1.xpose.msra.mxu0 0.0
  %1358 = vmatprep.subr.mxu0 0.0
  %1359 = vmatpush1.xpose.msra.mxu0 0.0
  %1360 = vmatprep.mubr.f32.mxu0 0.0
  %1361 = vmatmul.mubr.f32.gmra.mrb[0].mxu0 %v1294
  %v1362 = vpop.f32.mrb[0].mxu0
  %v1363 = vadd.f32 0.0, %v1362
  %v1364 = vpop.f32.mrb[0].mxu0
  %1365 = vdwg.mxu0
  %v1366 = vmul.f32 %v1363, %v1161
  %v1367 = vmul.f32 %v1366, %v1080
  %v1368 = vsel %vm1164, %v1367, 0.0
  %1369 = vadd.xlane.f32.xlu0 %v1368
  %v1370 = vpop.xlane.xlu0 %1369
  %v1371 = vrot.slane %v1370, 4
  %v1372 = vadd.f32 %v1370, %v1371
  %v1373 = vrot.slane %v1372, 2
  %v1374 = vadd.f32 %v1372, %v1373
  %v1375 = vrot.slane %v1374, 1
  %v1376 = vadd.f32 %v1374, %v1375
  %s1377 = vtos %v1376
  %v1378 = vstv %s1377
  %v1379 = vrcp.pop %v1378
  %v1380 = vmul.f32 %v1366, %v1379
  %v1381 = vadd.f32 %v1380, %v1178
  %s1382 = scalar_lea.vmem %s9, 16
  %1383 = vst.msk [vmem:[%s1382] sm:$0xff] %vm1164, %v1381
  %1384 = vrot.lane.b32.xlu0 %v1073, 98
  %v1385 = vpop.permute.xlu0 %1384
  %v1387 = vsel %vm1081, %v1385, 0.0
  %1388 = vadd.xlane.f32.xlu0 %v1387
  %v1389 = vpop.xlane.xlu0 %1388
  %v1390 = vmul.f32 %v1389, %v1085
  %v1391 = vsub.f32 %v1073, %v1390
  %1393 = vrot.lane.b32.xlu0 %v1391, 98
  %v1394 = vpop.permute.xlu0 %1393
  %v1395 = vsel %vm1081, %v1394, 0
  %1397 = vmatprep.subr.mxu0 0.0
  %1398 = vmatpush1.xpose.msra.mxu0 %v1395
  %1399 = vmatprep.subr.mxu0 0.0
  %1400 = vmatpush1.xpose.msra.mxu0 0.0
  %1401 = vmatprep.subr.mxu0 0.0
  %1402 = vmatpush1.xpose.msra.mxu0 0.0
  %1403 = vmatprep.subr.mxu0 0.0
  %1404 = vmatpush1.xpose.msra.mxu0 0.0
  %1405 = vmatprep.subr.mxu0 0.0
  %1406 = vmatpush1.xpose.msra.mxu0 0.0
  %1407 = vmatprep.subr.mxu0 0.0
  %1408 = vmatpush1.xpose.msra.mxu0 0.0
  %1409 = vmatprep.subr.mxu0 0.0
  %1410 = vmatpush1.xpose.msra.mxu0 0.0
  %1411 = vmatprep.subr.mxu0 0.0
  %1412 = vmatpush1.xpose.msra.mxu0 0.0
  %1413 = vmatprep.subr.mxu0 0.0
  %1414 = vmatpush1.xpose.msra.mxu0 0.0
  %1415 = vmatprep.subr.mxu0 0.0
  %1416 = vmatpush1.xpose.msra.mxu0 0.0
  %1417 = vmatprep.subr.mxu0 0.0
  %1418 = vmatpush1.xpose.msra.mxu0 0.0
  %1419 = vmatprep.subr.mxu0 0.0
  %1420 = vmatpush1.xpose.msra.mxu0 0.0
  %1421 = vmatprep.subr.mxu0 0.0
  %1422 = vmatpush1.xpose.msra.mxu0 0.0
  %1423 = vmatprep.subr.mxu0 0.0
  %1424 = vmatpush1.xpose.msra.mxu0 0.0
  %1425 = vmatprep.subr.mxu0 0.0
  %1426 = vmatpush1.xpose.msra.mxu0 0.0
  %1427 = vmatprep.subr.mxu0 0.0
  %1428 = vmatpush1.xpose.msra.mxu0 0.0
  %1429 = vmatprep.subr.mxu0 0.0
  %1430 = vmatpush1.xpose.msra.mxu0 0.0
  %1431 = vmatprep.subr.mxu0 0.0
  %1432 = vmatpush1.xpose.msra.mxu0 0.0
  %1433 = vmatprep.subr.mxu0 0.0
  %1434 = vmatpush1.xpose.msra.mxu0 0.0
  %1435 = vmatprep.subr.mxu0 0.0
  %1436 = vmatpush1.xpose.msra.mxu0 0.0
  %1437 = vmatprep.subr.mxu0 0.0
  %1438 = vmatpush1.xpose.msra.mxu0 0.0
  %1439 = vmatprep.subr.mxu0 0.0
  %1440 = vmatpush1.xpose.msra.mxu0 0.0
  %1441 = vmatprep.subr.mxu0 0.0
  %1442 = vmatpush1.xpose.msra.mxu0 0.0
  %1443 = vmatprep.subr.mxu0 0.0
  %1444 = vmatpush1.xpose.msra.mxu0 0.0
  %1445 = vmatprep.subr.mxu0 0.0
  %1446 = vmatpush1.xpose.msra.mxu0 0.0
  %1447 = vmatprep.subr.mxu0 0.0
  %1448 = vmatpush1.xpose.msra.mxu0 0.0
  %1449 = vmatprep.subr.mxu0 0.0
  %1450 = vmatpush1.xpose.msra.mxu0 0.0
  %1451 = vmatprep.subr.mxu0 0.0
  %1452 = vmatpush1.xpose.msra.mxu0 0.0
  %1453 = vmatprep.subr.mxu0 0.0
  %1454 = vmatpush1.xpose.msra.mxu0 0.0
  %1455 = vmatprep.subr.mxu0 0.0
  %1456 = vmatpush1.xpose.msra.mxu0 0.0
  %1457 = vmatprep.subr.mxu0 0.0
  %1458 = vmatpush1.xpose.msra.mxu0 0.0
  %1459 = vmatprep.subr.mxu0 0.0
  %1460 = vmatpush1.xpose.msra.mxu0 0.0
  %1461 = vmatprep.mubr.f32.mxu0 0.0
  %1462 = vmatmul.mubr.f32.gmra.mrb[0].mxu0 %v1395
  %v1463 = vpop.f32.mrb[0].mxu0
  %v1464 = vadd.f32 0.0, %v1463
  %v1465 = vpop.f32.mrb[0].mxu0
  %1466 = vdwg.mxu0
  %v1467 = vmul.f32 %v1464, %v1161
  %v1468 = vmul.f32 %v1467, %v1080
  %v1469 = vsel %vm1164, %v1468, 0.0
  %1470 = vadd.xlane.f32.xlu0 %v1469
  %v1471 = vpop.xlane.xlu0 %1470
  %v1472 = vrot.slane %v1471, 4
  %v1473 = vadd.f32 %v1471, %v1472
  %v1474 = vrot.slane %v1473, 2
  %v1475 = vadd.f32 %v1473, %v1474
  %v1476 = vrot.slane %v1475, 1
  %v1477 = vadd.f32 %v1475, %v1476
  %s1478 = vtos %v1477
  %v1479 = vstv %s1478
  %v1480 = vrcp.pop %v1479
  %v1481 = vmul.f32 %v1467, %v1480
  %v1482 = vadd.f32 %v1481, %v1178
  %s1483 = scalar_lea.vmem %s9, 24
  %1484 = vst.msk [vmem:[%s1483] sm:$0xff] %vm1164, %v1482
  %1485 = vrot.lane.b32.xlu0 %v1073, 88
  %v1486 = vpop.permute.xlu0 %1485
  %v1488 = vsel %vm1081, %v1486, 0.0
  %1489 = vadd.xlane.f32.xlu0 %v1488
  %v1490 = vpop.xlane.xlu0 %1489
  %v1491 = vmul.f32 %v1490, %v1085
  %v1492 = vsub.f32 %v1073, %v1491
  %1494 = vrot.lane.b32.xlu0 %v1492, 88
  %v1495 = vpop.permute.xlu0 %1494
  %v1496 = vsel %vm1081, %v1495, 0
  %1498 = vmatprep.subr.mxu0 0.0
  %1499 = vmatpush1.xpose.msra.mxu0 %v1496
  %1500 = vmatprep.subr.mxu0 0.0
  %1501 = vmatpush1.xpose.msra.mxu0 0.0
  %1502 = vmatprep.subr.mxu0 0.0
  %1503 = vmatpush1.xpose.msra.mxu0 0.0
  %1504 = vmatprep.subr.mxu0 0.0
  %1505 = vmatpush1.xpose.msra.mxu0 0.0
  %1506 = vmatprep.subr.mxu0 0.0
  %1507 = vmatpush1.xpose.msra.mxu0 0.0
  %1508 = vmatprep.subr.mxu0 0.0
  %1509 = vmatpush1.xpose.msra.mxu0 0.0
  %1510 = vmatprep.subr.mxu0 0.0
  %1511 = vmatpush1.xpose.msra.mxu0 0.0
  %1512 = vmatprep.subr.mxu0 0.0
  %1513 = vmatpush1.xpose.msra.mxu0 0.0
  %1514 = vmatprep.subr.mxu0 0.0
  %1515 = vmatpush1.xpose.msra.mxu0 0.0
  %1516 = vmatprep.subr.mxu0 0.0
  %1517 = vmatpush1.xpose.msra.mxu0 0.0
  %1518 = vmatprep.subr.mxu0 0.0
  %1519 = vmatpush1.xpose.msra.mxu0 0.0
  %1520 = vmatprep.subr.mxu0 0.0
  %1521 = vmatpush1.xpose.msra.mxu0 0.0
  %1522 = vmatprep.subr.mxu0 0.0
  %1523 = vmatpush1.xpose.msra.mxu0 0.0
  %1524 = vmatprep.subr.mxu0 0.0
  %1525 = vmatpush1.xpose.msra.mxu0 0.0
  %1526 = vmatprep.subr.mxu0 0.0
  %1527 = vmatpush1.xpose.msra.mxu0 0.0
  %1528 = vmatprep.subr.mxu0 0.0
  %1529 = vmatpush1.xpose.msra.mxu0 0.0
  %1530 = vmatprep.subr.mxu0 0.0
  %1531 = vmatpush1.xpose.msra.mxu0 0.0
  %1532 = vmatprep.subr.mxu0 0.0
  %1533 = vmatpush1.xpose.msra.mxu0 0.0
  %1534 = vmatprep.subr.mxu0 0.0
  %1535 = vmatpush1.xpose.msra.mxu0 0.0
  %1536 = vmatprep.subr.mxu0 0.0
  %1537 = vmatpush1.xpose.msra.mxu0 0.0
  %1538 = vmatprep.subr.mxu0 0.0
  %1539 = vmatpush1.xpose.msra.mxu0 0.0
  %1540 = vmatprep.subr.mxu0 0.0
  %1541 = vmatpush1.xpose.msra.mxu0 0.0
  %1542 = vmatprep.subr.mxu0 0.0
  %1543 = vmatpush1.xpose.msra.mxu0 0.0
  %1544 = vmatprep.subr.mxu0 0.0
  %1545 = vmatpush1.xpose.msra.mxu0 0.0
  %1546 = vmatprep.subr.mxu0 0.0
  %1547 = vmatpush1.xpose.msra.mxu0 0.0
  %1548 = vmatprep.subr.mxu0 0.0
  %1549 = vmatpush1.xpose.msra.mxu0 0.0
  %1550 = vmatprep.subr.mxu0 0.0
  %1551 = vmatpush1.xpose.msra.mxu0 0.0
  %1552 = vmatprep.subr.mxu0 0.0
  %1553 = vmatpush1.xpose.msra.mxu0 0.0
  %1554 = vmatprep.subr.mxu0 0.0
  %1555 = vmatpush1.xpose.msra.mxu0 0.0
  %1556 = vmatprep.subr.mxu0 0.0
  %1557 = vmatpush1.xpose.msra.mxu0 0.0
  %1558 = vmatprep.subr.mxu0 0.0
  %1559 = vmatpush1.xpose.msra.mxu0 0.0
  %1560 = vmatprep.subr.mxu0 0.0
  %1561 = vmatpush1.xpose.msra.mxu0 0.0
  %1562 = vmatprep.mubr.f32.mxu0 0.0
  %1563 = vmatmul.mubr.f32.gmra.mrb[0].mxu0 %v1496
  %v1564 = vpop.f32.mrb[0].mxu0
  %v1565 = vadd.f32 0.0, %v1564
  %v1566 = vpop.f32.mrb[0].mxu0
  %1567 = vdwg.mxu0
  %v1568 = vmul.f32 %v1565, %v1161
  %v1569 = vmul.f32 %v1568, %v1080
  %v1570 = vsel %vm1164, %v1569, 0.0
  %1571 = vadd.xlane.f32.xlu0 %v1570
  %v1572 = vpop.xlane.xlu0 %1571
  %v1573 = vrot.slane %v1572, 4
  %v1574 = vadd.f32 %v1572, %v1573
  %v1575 = vrot.slane %v1574, 2
  %v1576 = vadd.f32 %v1574, %v1575
  %v1577 = vrot.slane %v1576, 1
  %v1578 = vadd.f32 %v1576, %v1577
  %s1579 = vtos %v1578
  %v1580 = vstv %s1579
  %v1581 = vrcp.pop %v1580
  %v1582 = vmul.f32 %v1568, %v1581
  %v1583 = vadd.f32 %v1582, %v1178
  %s1584 = scalar_lea.vmem %s9, 32
  %1585 = vst.msk [vmem:[%s1584] sm:$0xff] %vm1164, %v1583
  %1586 = vrot.lane.b32.xlu0 %v1073, 78
  %v1587 = vpop.permute.xlu0 %1586
  %v1589 = vsel %vm1081, %v1587, 0.0
  %1590 = vadd.xlane.f32.xlu0 %v1589
  %v1591 = vpop.xlane.xlu0 %1590
  %v1592 = vmul.f32 %v1591, %v1085
  %v1593 = vsub.f32 %v1073, %v1592
  %1595 = vrot.lane.b32.xlu0 %v1593, 78
  %v1596 = vpop.permute.xlu0 %1595
  %v1597 = vsel %vm1081, %v1596, 0
  %1599 = vmatprep.subr.mxu0 0.0
  %1600 = vmatpush1.xpose.msra.mxu0 %v1597
  %1601 = vmatprep.subr.mxu0 0.0
  %1602 = vmatpush1.xpose.msra.mxu0 0.0
  %1603 = vmatprep.subr.mxu0 0.0
  %1604 = vmatpush1.xpose.msra.mxu0 0.0
  %1605 = vmatprep.subr.mxu0 0.0
  %1606 = vmatpush1.xpose.msra.mxu0 0.0
  %1607 = vmatprep.subr.mxu0 0.0
  %1608 = vmatpush1.xpose.msra.mxu0 0.0
  %1609 = vmatprep.subr.mxu0 0.0
  %1610 = vmatpush1.xpose.msra.mxu0 0.0
  %1611 = vmatprep.subr.mxu0 0.0
  %1612 = vmatpush1.xpose.msra.mxu0 0.0
  %1613 = vmatprep.subr.mxu0 0.0
  %1614 = vmatpush1.xpose.msra.mxu0 0.0
  %1615 = vmatprep.subr.mxu0 0.0
  %1616 = vmatpush1.xpose.msra.mxu0 0.0
  %1617 = vmatprep.subr.mxu0 0.0
  %1618 = vmatpush1.xpose.msra.mxu0 0.0
  %1619 = vmatprep.subr.mxu0 0.0
  %1620 = vmatpush1.xpose.msra.mxu0 0.0
  %1621 = vmatprep.subr.mxu0 0.0
  %1622 = vmatpush1.xpose.msra.mxu0 0.0
  %1623 = vmatprep.subr.mxu0 0.0
  %1624 = vmatpush1.xpose.msra.mxu0 0.0
  %1625 = vmatprep.subr.mxu0 0.0
  %1626 = vmatpush1.xpose.msra.mxu0 0.0
  %1627 = vmatprep.subr.mxu0 0.0
  %1628 = vmatpush1.xpose.msra.mxu0 0.0
  %1629 = vmatprep.subr.mxu0 0.0
  %1630 = vmatpush1.xpose.msra.mxu0 0.0
  %1631 = vmatprep.subr.mxu0 0.0
  %1632 = vmatpush1.xpose.msra.mxu0 0.0
  %1633 = vmatprep.subr.mxu0 0.0
  %1634 = vmatpush1.xpose.msra.mxu0 0.0
  %1635 = vmatprep.subr.mxu0 0.0
  %1636 = vmatpush1.xpose.msra.mxu0 0.0
  %1637 = vmatprep.subr.mxu0 0.0
  %1638 = vmatpush1.xpose.msra.mxu0 0.0
  %1639 = vmatprep.subr.mxu0 0.0
  %1640 = vmatpush1.xpose.msra.mxu0 0.0
  %1641 = vmatprep.subr.mxu0 0.0
  %1642 = vmatpush1.xpose.msra.mxu0 0.0
  %1643 = vmatprep.subr.mxu0 0.0
  %1644 = vmatpush1.xpose.msra.mxu0 0.0
  %1645 = vmatprep.subr.mxu0 0.0
  %1646 = vmatpush1.xpose.msra.mxu0 0.0
  %1647 = vmatprep.subr.mxu0 0.0
  %1648 = vmatpush1.xpose.msra.mxu0 0.0
  %1649 = vmatprep.subr.mxu0 0.0
  %1650 = vmatpush1.xpose.msra.mxu0 0.0
  %1651 = vmatprep.subr.mxu0 0.0
  %1652 = vmatpush1.xpose.msra.mxu0 0.0
  %1653 = vmatprep.subr.mxu0 0.0
  %1654 = vmatpush1.xpose.msra.mxu0 0.0
  %1655 = vmatprep.subr.mxu0 0.0
  %1656 = vmatpush1.xpose.msra.mxu0 0.0
  %1657 = vmatprep.subr.mxu0 0.0
  %1658 = vmatpush1.xpose.msra.mxu0 0.0
  %1659 = vmatprep.subr.mxu0 0.0
  %1660 = vmatpush1.xpose.msra.mxu0 0.0
  %1661 = vmatprep.subr.mxu0 0.0
  %1662 = vmatpush1.xpose.msra.mxu0 0.0
  %1663 = vmatprep.mubr.f32.mxu0 0.0
  %1664 = vmatmul.mubr.f32.gmra.mrb[0].mxu0 %v1597
  %v1665 = vpop.f32.mrb[0].mxu0
  %v1666 = vadd.f32 0.0, %v1665
  %v1667 = vpop.f32.mrb[0].mxu0
  %1668 = vdwg.mxu0
  %v1669 = vmul.f32 %v1666, %v1161
  %v1670 = vmul.f32 %v1669, %v1080
  %v1671 = vsel %vm1164, %v1670, 0.0
  %1672 = vadd.xlane.f32.xlu0 %v1671
  %v1673 = vpop.xlane.xlu0 %1672
  %v1674 = vrot.slane %v1673, 4
  %v1675 = vadd.f32 %v1673, %v1674
  %v1676 = vrot.slane %v1675, 2
  %v1677 = vadd.f32 %v1675, %v1676
  %v1678 = vrot.slane %v1677, 1
  %v1679 = vadd.f32 %v1677, %v1678
  %s1680 = vtos %v1679
  %v1681 = vstv %s1680
  %v1682 = vrcp.pop %v1681
  %v1683 = vmul.f32 %v1669, %v1682
  %v1684 = vadd.f32 %v1683, %v1178
  %s1685 = scalar_lea.vmem %s9, 40
  %1686 = vst.msk [vmem:[%s1685] sm:$0xff] %vm1164, %v1684
  %1687 = vrot.lane.b32.xlu0 %v1073, 68
  %v1688 = vpop.permute.xlu0 %1687
  %v1690 = vsel %vm1081, %v1688, 0.0
  %1691 = vadd.xlane.f32.xlu0 %v1690
  %v1692 = vpop.xlane.xlu0 %1691
  %v1693 = vmul.f32 %v1692, %v1085
  %v1694 = vsub.f32 %v1073, %v1693
  %1696 = vrot.lane.b32.xlu0 %v1694, 68
  %v1697 = vpop.permute.xlu0 %1696
  %v1698 = vsel %vm1081, %v1697, 0
  %1700 = vmatprep.subr.mxu0 0.0
  %1701 = vmatpush1.xpose.msra.mxu0 %v1698
  %1702 = vmatprep.subr.mxu0 0.0
  %1703 = vmatpush1.xpose.msra.mxu0 0.0
  %1704 = vmatprep.subr.mxu0 0.0
  %1705 = vmatpush1.xpose.msra.mxu0 0.0
  %1706 = vmatprep.subr.mxu0 0.0
  %1707 = vmatpush1.xpose.msra.mxu0 0.0
  %1708 = vmatprep.subr.mxu0 0.0
  %1709 = vmatpush1.xpose.msra.mxu0 0.0
  %1710 = vmatprep.subr.mxu0 0.0
  %1711 = vmatpush1.xpose.msra.mxu0 0.0
  %1712 = vmatprep.subr.mxu0 0.0
  %1713 = vmatpush1.xpose.msra.mxu0 0.0
  %1714 = vmatprep.subr.mxu0 0.0
  %1715 = vmatpush1.xpose.msra.mxu0 0.0
  %1716 = vmatprep.subr.mxu0 0.0
  %1717 = vmatpush1.xpose.msra.mxu0 0.0
  %1718 = vmatprep.subr.mxu0 0.0
  %1719 = vmatpush1.xpose.msra.mxu0 0.0
  %1720 = vmatprep.subr.mxu0 0.0
  %1721 = vmatpush1.xpose.msra.mxu0 0.0
  %1722 = vmatprep.subr.mxu0 0.0
  %1723 = vmatpush1.xpose.msra.mxu0 0.0
  %1724 = vmatprep.subr.mxu0 0.0
  %1725 = vmatpush1.xpose.msra.mxu0 0.0
  %1726 = vmatprep.subr.mxu0 0.0
  %1727 = vmatpush1.xpose.msra.mxu0 0.0
  %1728 = vmatprep.subr.mxu0 0.0
  %1729 = vmatpush1.xpose.msra.mxu0 0.0
  %1730 = vmatprep.subr.mxu0 0.0
  %1731 = vmatpush1.xpose.msra.mxu0 0.0
  %1732 = vmatprep.subr.mxu0 0.0
  %1733 = vmatpush1.xpose.msra.mxu0 0.0
  %1734 = vmatprep.subr.mxu0 0.0
  %1735 = vmatpush1.xpose.msra.mxu0 0.0
  %1736 = vmatprep.subr.mxu0 0.0
  %1737 = vmatpush1.xpose.msra.mxu0 0.0
  %1738 = vmatprep.subr.mxu0 0.0
  %1739 = vmatpush1.xpose.msra.mxu0 0.0
  %1740 = vmatprep.subr.mxu0 0.0
  %1741 = vmatpush1.xpose.msra.mxu0 0.0
  %1742 = vmatprep.subr.mxu0 0.0
  %1743 = vmatpush1.xpose.msra.mxu0 0.0
  %1744 = vmatprep.subr.mxu0 0.0
  %1745 = vmatpush1.xpose.msra.mxu0 0.0
  %1746 = vmatprep.subr.mxu0 0.0
  %1747 = vmatpush1.xpose.msra.mxu0 0.0
  %1748 = vmatprep.subr.mxu0 0.0
  %1749 = vmatpush1.xpose.msra.mxu0 0.0
  %1750 = vmatprep.subr.mxu0 0.0
  %1751 = vmatpush1.xpose.msra.mxu0 0.0
  %1752 = vmatprep.subr.mxu0 0.0
  %1753 = vmatpush1.xpose.msra.mxu0 0.0
  %1754 = vmatprep.subr.mxu0 0.0
  %1755 = vmatpush1.xpose.msra.mxu0 0.0
  %1756 = vmatprep.subr.mxu0 0.0
  %1757 = vmatpush1.xpose.msra.mxu0 0.0
  %1758 = vmatprep.subr.mxu0 0.0
  %1759 = vmatpush1.xpose.msra.mxu0 0.0
  %1760 = vmatprep.subr.mxu0 0.0
  %1761 = vmatpush1.xpose.msra.mxu0 0.0
  %1762 = vmatprep.subr.mxu0 0.0
  %1763 = vmatpush1.xpose.msra.mxu0 0.0
  %1764 = vmatprep.mubr.f32.mxu0 0.0
  %1765 = vmatmul.mubr.f32.gmra.mrb[0].mxu0 %v1698
  %v1766 = vpop.f32.mrb[0].mxu0
  %v1767 = vadd.f32 0.0, %v1766
  %v1768 = vpop.f32.mrb[0].mxu0
  %1769 = vdwg.mxu0
  %v1770 = vmul.f32 %v1767, %v1161
  %v1771 = vmul.f32 %v1770, %v1080
  %v1772 = vsel %vm1164, %v1771, 0.0
  %1773 = vadd.xlane.f32.xlu0 %v1772
  %v1774 = vpop.xlane.xlu0 %1773
  %v1775 = vrot.slane %v1774, 4
  %v1776 = vadd.f32 %v1774, %v1775
  %v1777 = vrot.slane %v1776, 2
  %v1778 = vadd.f32 %v1776, %v1777
  %v1779 = vrot.slane %v1778, 1
  %v1780 = vadd.f32 %v1778, %v1779
  %s1781 = vtos %v1780
  %v1782 = vstv %s1781
  %v1783 = vrcp.pop %v1782
  %v1784 = vmul.f32 %v1770, %v1783
  %v1785 = vadd.f32 %v1784, %v1178
  %s1786 = scalar_lea.vmem %s9, 48
  %1787 = vst.msk [vmem:[%s1786] sm:$0xff] %vm1164, %v1785
  %1788 = vrot.lane.b32.xlu0 %v1073, 58
  %v1789 = vpop.permute.xlu0 %1788
  %v1791 = vsel %vm1081, %v1789, 0.0
  %1792 = vadd.xlane.f32.xlu0 %v1791
  %v1793 = vpop.xlane.xlu0 %1792
  %v1794 = vmul.f32 %v1793, %v1085
  %v1795 = vsub.f32 %v1073, %v1794
  %1797 = vrot.lane.b32.xlu0 %v1795, 58
  %v1798 = vpop.permute.xlu0 %1797
  %v1799 = vsel %vm1081, %v1798, 0
  %1801 = vmatprep.subr.mxu0 0.0
  %1802 = vmatpush1.xpose.msra.mxu0 %v1799
  %1803 = vmatprep.subr.mxu0 0.0
  %1804 = vmatpush1.xpose.msra.mxu0 0.0
  %1805 = vmatprep.subr.mxu0 0.0
  %1806 = vmatpush1.xpose.msra.mxu0 0.0
  %1807 = vmatprep.subr.mxu0 0.0
  %1808 = vmatpush1.xpose.msra.mxu0 0.0
  %1809 = vmatprep.subr.mxu0 0.0
  %1810 = vmatpush1.xpose.msra.mxu0 0.0
  %1811 = vmatprep.subr.mxu0 0.0
  %1812 = vmatpush1.xpose.msra.mxu0 0.0
  %1813 = vmatprep.subr.mxu0 0.0
  %1814 = vmatpush1.xpose.msra.mxu0 0.0
  %1815 = vmatprep.subr.mxu0 0.0
  %1816 = vmatpush1.xpose.msra.mxu0 0.0
  %1817 = vmatprep.subr.mxu0 0.0
  %1818 = vmatpush1.xpose.msra.mxu0 0.0
  %1819 = vmatprep.subr.mxu0 0.0
  %1820 = vmatpush1.xpose.msra.mxu0 0.0
  %1821 = vmatprep.subr.mxu0 0.0
  %1822 = vmatpush1.xpose.msra.mxu0 0.0
  %1823 = vmatprep.subr.mxu0 0.0
  %1824 = vmatpush1.xpose.msra.mxu0 0.0
  %1825 = vmatprep.subr.mxu0 0.0
  %1826 = vmatpush1.xpose.msra.mxu0 0.0
  %1827 = vmatprep.subr.mxu0 0.0
  %1828 = vmatpush1.xpose.msra.mxu0 0.0
  %1829 = vmatprep.subr.mxu0 0.0
  %1830 = vmatpush1.xpose.msra.mxu0 0.0
  %1831 = vmatprep.subr.mxu0 0.0
  %1832 = vmatpush1.xpose.msra.mxu0 0.0
  %1833 = vmatprep.subr.mxu0 0.0
  %1834 = vmatpush1.xpose.msra.mxu0 0.0
  %1835 = vmatprep.subr.mxu0 0.0
  %1836 = vmatpush1.xpose.msra.mxu0 0.0
  %1837 = vmatprep.subr.mxu0 0.0
  %1838 = vmatpush1.xpose.msra.mxu0 0.0
  %1839 = vmatprep.subr.mxu0 0.0
  %1840 = vmatpush1.xpose.msra.mxu0 0.0
  %1841 = vmatprep.subr.mxu0 0.0
  %1842 = vmatpush1.xpose.msra.mxu0 0.0
  %1843 = vmatprep.subr.mxu0 0.0
  %1844 = vmatpush1.xpose.msra.mxu0 0.0
  %1845 = vmatprep.subr.mxu0 0.0
  %1846 = vmatpush1.xpose.msra.mxu0 0.0
  %1847 = vmatprep.subr.mxu0 0.0
  %1848 = vmatpush1.xpose.msra.mxu0 0.0
  %1849 = vmatprep.subr.mxu0 0.0
  %1850 = vmatpush1.xpose.msra.mxu0 0.0
  %1851 = vmatprep.subr.mxu0 0.0
  %1852 = vmatpush1.xpose.msra.mxu0 0.0
  %1853 = vmatprep.subr.mxu0 0.0
  %1854 = vmatpush1.xpose.msra.mxu0 0.0
  %1855 = vmatprep.subr.mxu0 0.0
  %1856 = vmatpush1.xpose.msra.mxu0 0.0
  %1857 = vmatprep.subr.mxu0 0.0
  %1858 = vmatpush1.xpose.msra.mxu0 0.0
  %1859 = vmatprep.subr.mxu0 0.0
  %1860 = vmatpush1.xpose.msra.mxu0 0.0
  %1861 = vmatprep.subr.mxu0 0.0
  %1862 = vmatpush1.xpose.msra.mxu0 0.0
  %1863 = vmatprep.subr.mxu0 0.0
  %1864 = vmatpush1.xpose.msra.mxu0 0.0
  %1865 = vmatprep.mubr.f32.mxu0 0.0
  %1866 = vmatmul.mubr.f32.gmra.mrb[0].mxu0 %v1799
  %v1867 = vpop.f32.mrb[0].mxu0
  %v1868 = vadd.f32 0.0, %v1867
  %v1869 = vpop.f32.mrb[0].mxu0
  %1870 = vdwg.mxu0
  %v1871 = vmul.f32 %v1868, %v1161
  %v1872 = vmul.f32 %v1871, %v1080
  %v1873 = vsel %vm1164, %v1872, 0.0
  %1874 = vadd.xlane.f32.xlu0 %v1873
  %v1875 = vpop.xlane.xlu0 %1874
  %v1876 = vrot.slane %v1875, 4
  %v1877 = vadd.f32 %v1875, %v1876
  %v1878 = vrot.slane %v1877, 2
  %v1879 = vadd.f32 %v1877, %v1878
  %v1880 = vrot.slane %v1879, 1
  %v1881 = vadd.f32 %v1879, %v1880
  %s1882 = vtos %v1881
  %v1883 = vstv %s1882
  %v1884 = vrcp.pop %v1883
  %v1885 = vmul.f32 %v1871, %v1884
  %v1886 = vadd.f32 %v1885, %v1178
  %s1887 = scalar_lea.vmem %s9, 56
  %1888 = vst.msk [vmem:[%s1887] sm:$0xff] %vm1164, %v1886
  %1889 = vrot.lane.b32.xlu0 %v1073, 48
  %v1890 = vpop.permute.xlu0 %1889
  %v1892 = vsel %vm1081, %v1890, 0.0
  %1893 = vadd.xlane.f32.xlu0 %v1892
  %v1894 = vpop.xlane.xlu0 %1893
  %v1895 = vmul.f32 %v1894, %v1085
  %v1896 = vsub.f32 %v1073, %v1895
  %1898 = vrot.lane.b32.xlu0 %v1896, 48
  %v1899 = vpop.permute.xlu0 %1898
  %v1900 = vsel %vm1081, %v1899, 0
  %1902 = vmatprep.subr.mxu0 0.0
  %1903 = vmatpush1.xpose.msra.mxu0 %v1900
  %1904 = vmatprep.subr.mxu0 0.0
  %1905 = vmatpush1.xpose.msra.mxu0 0.0
  %1906 = vmatprep.subr.mxu0 0.0
  %1907 = vmatpush1.xpose.msra.mxu0 0.0
  %1908 = vmatprep.subr.mxu0 0.0
  %1909 = vmatpush1.xpose.msra.mxu0 0.0
  %1910 = vmatprep.subr.mxu0 0.0
  %1911 = vmatpush1.xpose.msra.mxu0 0.0
  %1912 = vmatprep.subr.mxu0 0.0
  %1913 = vmatpush1.xpose.msra.mxu0 0.0
  %1914 = vmatprep.subr.mxu0 0.0
  %1915 = vmatpush1.xpose.msra.mxu0 0.0
  %1916 = vmatprep.subr.mxu0 0.0
  %1917 = vmatpush1.xpose.msra.mxu0 0.0
  %1918 = vmatprep.subr.mxu0 0.0
  %1919 = vmatpush1.xpose.msra.mxu0 0.0
  %1920 = vmatprep.subr.mxu0 0.0
  %1921 = vmatpush1.xpose.msra.mxu0 0.0
  %1922 = vmatprep.subr.mxu0 0.0
  %1923 = vmatpush1.xpose.msra.mxu0 0.0
  %1924 = vmatprep.subr.mxu0 0.0
  %1925 = vmatpush1.xpose.msra.mxu0 0.0
  %1926 = vmatprep.subr.mxu0 0.0
  %1927 = vmatpush1.xpose.msra.mxu0 0.0
  %1928 = vmatprep.subr.mxu0 0.0
  %1929 = vmatpush1.xpose.msra.mxu0 0.0
  %1930 = vmatprep.subr.mxu0 0.0
  %1931 = vmatpush1.xpose.msra.mxu0 0.0
  %1932 = vmatprep.subr.mxu0 0.0
  %1933 = vmatpush1.xpose.msra.mxu0 0.0
  %1934 = vmatprep.subr.mxu0 0.0
  %1935 = vmatpush1.xpose.msra.mxu0 0.0
  %1936 = vmatprep.subr.mxu0 0.0
  %1937 = vmatpush1.xpose.msra.mxu0 0.0
  %1938 = vmatprep.subr.mxu0 0.0
  %1939 = vmatpush1.xpose.msra.mxu0 0.0
  %1940 = vmatprep.subr.mxu0 0.0
  %1941 = vmatpush1.xpose.msra.mxu0 0.0
  %1942 = vmatprep.subr.mxu0 0.0
  %1943 = vmatpush1.xpose.msra.mxu0 0.0
  %1944 = vmatprep.subr.mxu0 0.0
  %1945 = vmatpush1.xpose.msra.mxu0 0.0
  %1946 = vmatprep.subr.mxu0 0.0
  %1947 = vmatpush1.xpose.msra.mxu0 0.0
  %1948 = vmatprep.subr.mxu0 0.0
  %1949 = vmatpush1.xpose.msra.mxu0 0.0
  %1950 = vmatprep.subr.mxu0 0.0
  %1951 = vmatpush1.xpose.msra.mxu0 0.0
  %1952 = vmatprep.subr.mxu0 0.0
  %1953 = vmatpush1.xpose.msra.mxu0 0.0
  %1954 = vmatprep.subr.mxu0 0.0
  %1955 = vmatpush1.xpose.msra.mxu0 0.0
  %1956 = vmatprep.subr.mxu0 0.0
  %1957 = vmatpush1.xpose.msra.mxu0 0.0
  %1958 = vmatprep.subr.mxu0 0.0
  %1959 = vmatpush1.xpose.msra.mxu0 0.0
  %1960 = vmatprep.subr.mxu0 0.0
  %1961 = vmatpush1.xpose.msra.mxu0 0.0
  %1962 = vmatprep.subr.mxu0 0.0
  %1963 = vmatpush1.xpose.msra.mxu0 0.0
  %1964 = vmatprep.subr.mxu0 0.0
  %1965 = vmatpush1.xpose.msra.mxu0 0.0
  %1966 = vmatprep.mubr.f32.mxu0 0.0
  %1967 = vmatmul.mubr.f32.gmra.mrb[0].mxu0 %v1900
  %v1968 = vpop.f32.mrb[0].mxu0
  %v1969 = vadd.f32 0.0, %v1968
  %v1970 = vpop.f32.mrb[0].mxu0
  %1971 = vdwg.mxu0
  %v1972 = vmul.f32 %v1969, %v1161
  %v1973 = vmul.f32 %v1972, %v1080
  %v1974 = vsel %vm1164, %v1973, 0.0
  %1975 = vadd.xlane.f32.xlu0 %v1974
  %v1976 = vpop.xlane.xlu0 %1975
  %v1977 = vrot.slane %v1976, 4
  %v1978 = vadd.f32 %v1976, %v1977
  %v1979 = vrot.slane %v1978, 2
  %v1980 = vadd.f32 %v1978, %v1979
  %v1981 = vrot.slane %v1980, 1
  %v1982 = vadd.f32 %v1980, %v1981
  %s1983 = vtos %v1982
  %v1984 = vstv %s1983
  %v1985 = vrcp.pop %v1984
  %v1986 = vmul.f32 %v1972, %v1985
  %v1987 = vadd.f32 %v1986, %v1178
  %s1988 = scalar_lea.vmem %s9, 64
  %1989 = vst.msk [vmem:[%s1988] sm:$0xff] %vm1164, %v1987
  %1990 = vrot.lane.b32.xlu0 %v1073, 38
  %v1991 = vpop.permute.xlu0 %1990
  %v1993 = vsel %vm1081, %v1991, 0.0
  %1994 = vadd.xlane.f32.xlu0 %v1993
  %v1995 = vpop.xlane.xlu0 %1994
  %v1996 = vmul.f32 %v1995, %v1085
  %v1997 = vsub.f32 %v1073, %v1996
  %1999 = vrot.lane.b32.xlu0 %v1997, 38
  %v2000 = vpop.permute.xlu0 %1999
  %v2001 = vsel %vm1081, %v2000, 0
  %2003 = vmatprep.subr.mxu0 0.0
  %2004 = vmatpush1.xpose.msra.mxu0 %v2001
  %2005 = vmatprep.subr.mxu0 0.0
  %2006 = vmatpush1.xpose.msra.mxu0 0.0
  %2007 = vmatprep.subr.mxu0 0.0
  %2008 = vmatpush1.xpose.msra.mxu0 0.0
  %2009 = vmatprep.subr.mxu0 0.0
  %2010 = vmatpush1.xpose.msra.mxu0 0.0
  %2011 = vmatprep.subr.mxu0 0.0
  %2012 = vmatpush1.xpose.msra.mxu0 0.0
  %2013 = vmatprep.subr.mxu0 0.0
  %2014 = vmatpush1.xpose.msra.mxu0 0.0
  %2015 = vmatprep.subr.mxu0 0.0
  %2016 = vmatpush1.xpose.msra.mxu0 0.0
  %2017 = vmatprep.subr.mxu0 0.0
  %2018 = vmatpush1.xpose.msra.mxu0 0.0
  %2019 = vmatprep.subr.mxu0 0.0
  %2020 = vmatpush1.xpose.msra.mxu0 0.0
  %2021 = vmatprep.subr.mxu0 0.0
  %2022 = vmatpush1.xpose.msra.mxu0 0.0
  %2023 = vmatprep.subr.mxu0 0.0
  %2024 = vmatpush1.xpose.msra.mxu0 0.0
  %2025 = vmatprep.subr.mxu0 0.0
  %2026 = vmatpush1.xpose.msra.mxu0 0.0
  %2027 = vmatprep.subr.mxu0 0.0
  %2028 = vmatpush1.xpose.msra.mxu0 0.0
  %2029 = vmatprep.subr.mxu0 0.0
  %2030 = vmatpush1.xpose.msra.mxu0 0.0
  %2031 = vmatprep.subr.mxu0 0.0
  %2032 = vmatpush1.xpose.msra.mxu0 0.0
  %2033 = vmatprep.subr.mxu0 0.0
  %2034 = vmatpush1.xpose.msra.mxu0 0.0
  %2035 = vmatprep.subr.mxu0 0.0
  %2036 = vmatpush1.xpose.msra.mxu0 0.0
  %2037 = vmatprep.subr.mxu0 0.0
  %2038 = vmatpush1.xpose.msra.mxu0 0.0
  %2039 = vmatprep.subr.mxu0 0.0
  %2040 = vmatpush1.xpose.msra.mxu0 0.0
  %2041 = vmatprep.subr.mxu0 0.0
  %2042 = vmatpush1.xpose.msra.mxu0 0.0
  %2043 = vmatprep.subr.mxu0 0.0
  %2044 = vmatpush1.xpose.msra.mxu0 0.0
  %2045 = vmatprep.subr.mxu0 0.0
  %2046 = vmatpush1.xpose.msra.mxu0 0.0
  %2047 = vmatprep.subr.mxu0 0.0
  %2048 = vmatpush1.xpose.msra.mxu0 0.0
  %2049 = vmatprep.subr.mxu0 0.0
  %2050 = vmatpush1.xpose.msra.mxu0 0.0
  %2051 = vmatprep.subr.mxu0 0.0
  %2052 = vmatpush1.xpose.msra.mxu0 0.0
  %2053 = vmatprep.subr.mxu0 0.0
  %2054 = vmatpush1.xpose.msra.mxu0 0.0
  %2055 = vmatprep.subr.mxu0 0.0
  %2056 = vmatpush1.xpose.msra.mxu0 0.0
  %2057 = vmatprep.subr.mxu0 0.0
  %2058 = vmatpush1.xpose.msra.mxu0 0.0
  %2059 = vmatprep.subr.mxu0 0.0
  %2060 = vmatpush1.xpose.msra.mxu0 0.0
  %2061 = vmatprep.subr.mxu0 0.0
  %2062 = vmatpush1.xpose.msra.mxu0 0.0
  %2063 = vmatprep.subr.mxu0 0.0
  %2064 = vmatpush1.xpose.msra.mxu0 0.0
  %2065 = vmatprep.subr.mxu0 0.0
  %2066 = vmatpush1.xpose.msra.mxu0 0.0
  %2067 = vmatprep.mubr.f32.mxu0 0.0
  %2068 = vmatmul.mubr.f32.gmra.mrb[0].mxu0 %v2001
  %v2069 = vpop.f32.mrb[0].mxu0
  %v2070 = vadd.f32 0.0, %v2069
  %v2071 = vpop.f32.mrb[0].mxu0
  %2072 = vdwg.mxu0
  %v2073 = vmul.f32 %v2070, %v1161
  %v2074 = vmul.f32 %v2073, %v1080
  %v2075 = vsel %vm1164, %v2074, 0.0
  %2076 = vadd.xlane.f32.xlu0 %v2075
  %v2077 = vpop.xlane.xlu0 %2076
  %v2078 = vrot.slane %v2077, 4
  %v2079 = vadd.f32 %v2077, %v2078
  %v2080 = vrot.slane %v2079, 2
  %v2081 = vadd.f32 %v2079, %v2080
  %v2082 = vrot.slane %v2081, 1
  %v2083 = vadd.f32 %v2081, %v2082
  %s2084 = vtos %v2083
  %v2085 = vstv %s2084
  %v2086 = vrcp.pop %v2085
  %v2087 = vmul.f32 %v2073, %v2086
  %v2088 = vadd.f32 %v2087, %v1178
  %s2089 = scalar_lea.vmem %s9, 72
  %2090 = vst.msk [vmem:[%s2089] sm:$0xff] %vm1164, %v2088
  // Predicated region
  $region38: #{matt_forward.5} parent=0 // pred_check
    _
  $region39: #{matt_forward.5} parent=0 // pred_check_branch
    %2092 = sbr.rel (0) target = $region41
  $region40: #{matt_forward.5} parent=0 // pred_region
    _
  $region41: #{matt_forward.5} parent=0 // pred_fallthru
    _
  // Predicated region
  $region42: #{matt_forward.5} parent=0 // pred_check
    _
  $region43: #{matt_forward.5} parent=0 // pred_check_branch
    %2094 = sbr.rel (0) target = $region45
  $region44: #{matt_forward.5} parent=0 // pred_region
    _
  $region45: #{matt_forward.5} parent=0 // pred_fallthru
    _

// kernel: custom-call.5
$region0: #{custom-call.5}
  %s0 = inlined_call_operand.vmem [shape: f32[10,2,2], index: 0, kind: input, shape index: {}]
  %s1 = inlined_call_operand.vmem [shape: f32[10,2,2], index: 1, kind: input, shape index: {}]
  %s2 = inlined_call_operand.vmem [shape: f32[10,2,2], index: 2, kind: input, shape index: {}]
  %s3 = inlined_call_operand.vmem [shape: f32[10,2,2], index: 3, kind: input, shape index: {}]
  %s4 = inlined_call_operand.vmem [shape: f32[10,2], index: 4, kind: output, shape index: {0}]
  %s5 = inlined_call_operand.vmem [shape: f32[10,2], index: 5, kind: output, shape index: {1}]
  %s6 = inlined_call_operand.vmem [shape: f32[10,2,2], index: 6, kind: output, shape index: {2}]
  %s7 = inlined_call_operand.vmem [shape: f32[10,2,2], index: 7, kind: output, shape index: {3}]
  %s8 = inlined_call_operand.vmem [shape: f32[10,2,2], index: 8, kind: output, shape index: {4}]
  %s9 = inlined_call_operand.vmem [shape: f32[10,2,2], index: 9, kind: output, shape index: {5}]
  %10 = xla_tuple %s4, %s5, %s6, %s7, %s8, %s9
  $region1: #{custom-call.5} parent=0
    #allocation0 [shape = 'u8[4096]{0}', space=vmem, size = 0x1000, scoped, tag = 'operand span for operand 0']
    #allocation1 [shape = 'u8[2048]{0}', space=vmem, size = 0x800, scoped, tag = 'packed  for operand 0']
    #allocation2 [shape = 'u8[4096]{0}', space=vmem, size = 0x1000, scoped, tag = 'operand span for operand 1']
    #allocation3 [shape = 'u8[2048]{0}', space=vmem, size = 0x800, scoped, tag = 'packed  for operand 1']
    #allocation4 [shape = 'u8[4096]{0}', space=vmem, size = 0x1000, scoped, tag = 'operand span for operand 2']
    #allocation5 [shape = 'u8[2048]{0}', space=vmem, size = 0x800, scoped, tag = 'packed  for operand 2']
    #allocation6 [shape = 'u8[4096]{0}', space=vmem, size = 0x1000, scoped, tag = 'operand span for operand 3']
    #allocation7 [shape = 'u8[2048]{0}', space=vmem, size = 0x800, scoped, tag = 'packed  for operand 3']
    #allocation8 [shape = 'u8[8192]{0}', space=vmem, size = 0x2000, scoped, tag = 'operand span for operand 4']
    #allocation9 [shape = 'u8[8192]{0}', space=vmem, size = 0x2000, scoped, tag = 'operand span for operand 5']
    #allocation10 [shape = 'u8[4096]{0}', space=vmem, size = 0x1000, scoped, tag = 'operand span for operand 6']
    #allocation11 [shape = 'u8[2048]{0}', space=vmem, size = 0x800, scoped, tag = 'packed  for operand 6']
    #allocation12 [shape = 'u8[4096]{0}', space=vmem, size = 0x1000, scoped, tag = 'operand span for operand 7']
    #allocation13 [shape = 'u8[2048]{0}', space=vmem, size = 0x800, scoped, tag = 'packed  for operand 7']
    #allocation14 [shape = 'u8[4096]{0}', space=vmem, size = 0x1000, scoped, tag = 'operand span for operand 8']
    #allocation15 [shape = 'u8[2048]{0}', space=vmem, size = 0x800, scoped, tag = 'packed  for operand 8']
    #allocation16 [shape = 'u8[4096]{0}', space=vmem, size = 0x1000, scoped, tag = 'operand span for operand 9']
    #allocation17 [shape = 'u8[2048]{0}', space=vmem, size = 0x800, scoped, tag = 'packed  for operand 9']
    loop: start=0, step=1, limit=12
    $region2: #{custom-call.5} parent=1 // loop_pre_header
      _
    $region3: #{custom-call.5} parent=1 // loop_header
      %s12 = sphi 0, %s16
      %p13 = scmp.ge.s32.totalorder %s12, 12
      %s24 = sphi 0, %s26
      %s27 = sphi 0, %s24
      %s28 = sphi 0, %s27
      %s44 = sphi 0, %s28
      %s52 = sphi 0, %s54
      %s55 = sphi 0, %s52
      %s56 = sphi 0, %s55
      %s72 = sphi 0, %s56
    $region4: #{custom-call.5} parent=1 // loop_header_branch
      %15 = sbr.rel (%p13) target = $region8
    $region5: #{custom-call.5} parent=1 // loop_body
      %s17 = ssub.s32 %s12, 1
      %s18 = ssub.s32 %s12, 2
      %s19 = sadd.s32 %s12, 1
      %s20 = sshrl.u32 %s12, 3
      %s21 = sshrl.u32 %s19, 3
      %s22 = ssub.s32 %s20, %s21
      %p23 = scmp.eq.s32.totalorder %s22, 0
      %s25 = sadd.s32 %s24, 1
      %s26 = scalar_select %p23, %s24, %s25
      %p29 = pneg %p23
      %p30 = scmp.eq.s32.totalorder %s12, 9
      %p31 = por %p29, %p30
      %p32 = scmp.ne.s32.totalorder %s24, %s27
      %p33 = scmp.eq.s32.totalorder %s12, 0
      %p34 = por %p32, %p33
      %p35 = scmp.ne.s32.totalorder %s24, %s27
      %p36 = scmp.eq.s32.totalorder %s17, 9
      %p37 = por %p35, %p36
      %p38 = scmp.ne.s32.totalorder %s27, %s28
      %p39 = scmp.eq.s32.totalorder %s17, 0
      %p40 = por %p38, %p39
      %p41 = scmp.ne.s32.totalorder %s27, %s28
      %p42 = scmp.eq.s32.totalorder %s18, 9
      %p43 = por %p41, %p42
      %p45 = scmp.ne.s32.totalorder %s28, %s44
      %p46 = scmp.eq.s32.totalorder %s18, 0
      %p47 = por %p45, %p46
      %s48 = sshrl.u32 %s12, 3
      %s49 = sshrl.u32 %s19, 3
      %s50 = ssub.s32 %s48, %s49
      %p51 = scmp.eq.s32.totalorder %s50, 0
      %s53 = sadd.s32 %s52, 1
      %s54 = scalar_select %p51, %s52, %s53
      %p57 = pneg %p51
      %p58 = scmp.eq.s32.totalorder %s12, 9
      %p59 = por %p57, %p58
      %p60 = scmp.ne.s32.totalorder %s52, %s55
      %p61 = scmp.eq.s32.totalorder %s12, 0
      %p62 = por %p60, %p61
      %p63 = scmp.ne.s32.totalorder %s52, %s55
      %p64 = scmp.eq.s32.totalorder %s17, 9
      %p65 = por %p63, %p64
      %p66 = scmp.ne.s32.totalorder %s55, %s56
      %p67 = scmp.eq.s32.totalorder %s17, 0
      %p68 = por %p66, %p67
      %p69 = scmp.ne.s32.totalorder %s55, %s56
      %p70 = scmp.eq.s32.totalorder %s18, 9
      %p71 = por %p69, %p70
      %p73 = scmp.ne.s32.totalorder %s56, %s72
      %p74 = scmp.eq.s32.totalorder %s18, 0
      %p75 = por %p73, %p74
      %p76 = scmp.le.s32.totalorder 1, %s12
      %p77 = scmp.lt.s32.totalorder %s12, 11
      %p78 = pnand %p76, %p77
      %p79 = pneg %p78
      // Predicated region
      $region9: #{custom-call.5} parent=5 // pred_check
        _
      $region10: #{custom-call.5} parent=5 // pred_check_branch
        %81 = sbr.rel (%p78) target = $region12
      $region11: #{custom-call.5} parent=5 // pred_region
        %s82 = ssub.s32 %s12, 1
      $region12: #{custom-call.5} parent=5 // pred_fallthru
        _
      %p83 = scmp.lt.s32.totalorder %s12, 10
      // Predicated region
      $region13: #{custom-call.5} parent=5 // pred_check
        %p84 = pneg %p83
      $region14: #{custom-call.5} parent=5 // pred_check_branch
        %86 = sbr.rel (%p84) target = $region16
      $region15: #{custom-call.5} parent=5 // pred_region
        %s87 = sand.u32 %s12, 1
        %s88 = sand.u32 %s12, 1
        %s89 = smul.addr %s88, 2
        %s90 = scalar_lea.vmem [#allocation1], %s89
        %s91 = smul.addr %s12, 2
        %s92 = scalar_lea.vmem %s0, %s91
        // Predicated region
        $region17: #{custom-call.5} parent=15 // pred_check
          _
        $region18: #{custom-call.5} parent=15 // pred_check_branch
          %94 = sbr.rel (0) target = $region20
        $region19: #{custom-call.5} parent=15 // pred_region
          // Predicated region
          $region21: #{custom-call.5} parent=19 // pred_check
            _
          $region22: #{custom-call.5} parent=19 // pred_check_branch
            %96 = sbr.rel target = $region24
          $region23: #{custom-call.5} parent=19 // pred_region
            // Predicated region
            $region36: #{custom-call.5} parent=23 // pred_check
              _
            $region37: #{custom-call.5} parent=23 // pred_check_branch
              %111 = sbr.rel (0) target = $region39
            $region38: #{custom-call.5} parent=23 // pred_region
              loop: start=0, step=1, limit=1
              $region40: #{custom-call.5} parent=38 // loop_pre_header
                _
              $region41: #{custom-call.5} parent=38 // loop_header
                %s114 = sphi 0, %s118
                %p115 = scmp.ge.s32.totalorder %s114, 1
                %s119 = sphi %s92, %s92
                %s120 = sphi %s90, %s90
              $region42: #{custom-call.5} parent=38 // loop_header_branch
                %117 = sbr.rel (%p115) target = $region46
              $region43: #{custom-call.5} parent=38 // loop_body
                %v121 = vld [vmem:[%s119] sm:$0x3]
                %122 = vst [vmem:[%s120] sm:$0x3] %v121
              $region44: #{custom-call.5} parent=38 // loop_footer
                %s118 = sadd.s32 1, %s114
              $region45: #{custom-call.5} parent=38 // loop_footer_branch
                %113 = sbr.rel target = $region41
              $region46: #{custom-call.5} parent=38 // loop_exit
                _
            $region39: #{custom-call.5} parent=23 // pred_fallthru
              _
          $region24: #{custom-call.5} parent=19 // pred_fallthru
            _
          // Predicated region
          $region25: #{custom-call.5} parent=19 // pred_check
            _
          $region26: #{custom-call.5} parent=19 // pred_check_branch
            %98 = sbr.rel (0) target = $region28
          $region27: #{custom-call.5} parent=19 // pred_region
            loop: start=0, step=1, limit=1
            $region29: #{custom-call.5} parent=27 // loop_pre_header
              _
            $region30: #{custom-call.5} parent=27 // loop_header
              %s101 = sphi 0, %s105
              %p102 = scmp.ge.s32.totalorder %s101, 1
              %s106 = sphi %s92, %s92
              %s107 = sphi %s90, %s90
            $region31: #{custom-call.5} parent=27 // loop_header_branch
              %104 = sbr.rel (%p102) target = $region35
            $region32: #{custom-call.5} parent=27 // loop_body
              %v108 = vld [vmem:[%s106] sm:$0x3]
              %109 = vst [vmem:[%s107] sm:$0x3] %v108
            $region33: #{custom-call.5} parent=27 // loop_footer
              %s105 = sadd.s32 1, %s101
            $region34: #{custom-call.5} parent=27 // loop_footer_branch
              %100 = sbr.rel target = $region30
            $region35: #{custom-call.5} parent=27 // loop_exit
              _
          $region28: #{custom-call.5} parent=19 // pred_fallthru
            _
        $region20: #{custom-call.5} parent=15 // pred_fallthru
          _
        %123 = vnop
        %s124 = sand.u32 %s12, 1
        %s125 = sand.u32 %s12, 1
        %s126 = smul.addr %s125, 2
        %s127 = scalar_lea.vmem [#allocation3], %s126
        %s128 = smul.addr %s12, 2
        %s129 = scalar_lea.vmem %s1, %s128
        // Predicated region
        $region47: #{custom-call.5} parent=15 // pred_check
          _
        $region48: #{custom-call.5} parent=15 // pred_check_branch
          %131 = sbr.rel (0) target = $region50
        $region49: #{custom-call.5} parent=15 // pred_region
          // Predicated region
          $region51: #{custom-call.5} parent=49 // pred_check
            _
          $region52: #{custom-call.5} parent=49 // pred_check_branch
            %133 = sbr.rel target = $region54
          $region53: #{custom-call.5} parent=49 // pred_region
            // Predicated region
            $region66: #{custom-call.5} parent=53 // pred_check
              _
            $region67: #{custom-call.5} parent=53 // pred_check_branch
              %148 = sbr.rel (0) target = $region69
            $region68: #{custom-call.5} parent=53 // pred_region
              loop: start=0, step=1, limit=1
              $region70: #{custom-call.5} parent=68 // loop_pre_header
                _
              $region71: #{custom-call.5} parent=68 // loop_header
                %s151 = sphi 0, %s155
                %p152 = scmp.ge.s32.totalorder %s151, 1
                %s156 = sphi %s129, %s129
                %s157 = sphi %s127, %s127
              $region72: #{custom-call.5} parent=68 // loop_header_branch
                %154 = sbr.rel (%p152) target = $region76
              $region73: #{custom-call.5} parent=68 // loop_body
                %v158 = vld [vmem:[%s156] sm:$0x3]
                %159 = vst [vmem:[%s157] sm:$0x3] %v158
              $region74: #{custom-call.5} parent=68 // loop_footer
                %s155 = sadd.s32 1, %s151
              $region75: #{custom-call.5} parent=68 // loop_footer_branch
                %150 = sbr.rel target = $region71
              $region76: #{custom-call.5} parent=68 // loop_exit
                _
            $region69: #{custom-call.5} parent=53 // pred_fallthru
              _
          $region54: #{custom-call.5} parent=49 // pred_fallthru
            _
          // Predicated region
          $region55: #{custom-call.5} parent=49 // pred_check
            _
          $region56: #{custom-call.5} parent=49 // pred_check_branch
            %135 = sbr.rel (0) target = $region58
          $region57: #{custom-call.5} parent=49 // pred_region
            loop: start=0, step=1, limit=1
            $region59: #{custom-call.5} parent=57 // loop_pre_header
              _
            $region60: #{custom-call.5} parent=57 // loop_header
              %s138 = sphi 0, %s142
              %p139 = scmp.ge.s32.totalorder %s138, 1
              %s143 = sphi %s129, %s129
              %s144 = sphi %s127, %s127
            $region61: #{custom-call.5} parent=57 // loop_header_branch
              %141 = sbr.rel (%p139) target = $region65
            $region62: #{custom-call.5} parent=57 // loop_body
              %v145 = vld [vmem:[%s143] sm:$0x3]
              %146 = vst [vmem:[%s144] sm:$0x3] %v145
            $region63: #{custom-call.5} parent=57 // loop_footer
              %s142 = sadd.s32 1, %s138
            $region64: #{custom-call.5} parent=57 // loop_footer_branch
              %137 = sbr.rel target = $region60
            $region65: #{custom-call.5} parent=57 // loop_exit
              _
          $region58: #{custom-call.5} parent=49 // pred_fallthru
            _
        $region50: #{custom-call.5} parent=15 // pred_fallthru
          _
        %160 = vnop
        %s161 = sand.u32 %s12, 1
        %s162 = sand.u32 %s12, 1
        %s163 = smul.addr %s162, 2
        %s164 = scalar_lea.vmem [#allocation5], %s163
        %s165 = smul.addr %s12, 2
        %s166 = scalar_lea.vmem %s2, %s165
        // Predicated region
        $region77: #{custom-call.5} parent=15 // pred_check
          _
        $region78: #{custom-call.5} parent=15 // pred_check_branch
          %168 = sbr.rel (0) target = $region80
        $region79: #{custom-call.5} parent=15 // pred_region
          // Predicated region
          $region81: #{custom-call.5} parent=79 // pred_check
            _
          $region82: #{custom-call.5} parent=79 // pred_check_branch
            %170 = sbr.rel target = $region84
          $region83: #{custom-call.5} parent=79 // pred_region
            // Predicated region
            $region96: #{custom-call.5} parent=83 // pred_check
              _
            $region97: #{custom-call.5} parent=83 // pred_check_branch
              %185 = sbr.rel (0) target = $region99
            $region98: #{custom-call.5} parent=83 // pred_region
              loop: start=0, step=1, limit=1
              $region100: #{custom-call.5} parent=98 // loop_pre_header
                _
              $region101: #{custom-call.5} parent=98 // loop_header
                %s188 = sphi 0, %s192
                %p189 = scmp.ge.s32.totalorder %s188, 1
                %s193 = sphi %s166, %s166
                %s194 = sphi %s164, %s164
              $region102: #{custom-call.5} parent=98 // loop_header_branch
                %191 = sbr.rel (%p189) target = $region106
              $region103: #{custom-call.5} parent=98 // loop_body
                %v195 = vld [vmem:[%s193] sm:$0x3]
                %196 = vst [vmem:[%s194] sm:$0x3] %v195
              $region104: #{custom-call.5} parent=98 // loop_footer
                %s192 = sadd.s32 1, %s188
              $region105: #{custom-call.5} parent=98 // loop_footer_branch
                %187 = sbr.rel target = $region101
              $region106: #{custom-call.5} parent=98 // loop_exit
                _
            $region99: #{custom-call.5} parent=83 // pred_fallthru
              _
          $region84: #{custom-call.5} parent=79 // pred_fallthru
            _
          // Predicated region
          $region85: #{custom-call.5} parent=79 // pred_check
            _
          $region86: #{custom-call.5} parent=79 // pred_check_branch
            %172 = sbr.rel (0) target = $region88
          $region87: #{custom-call.5} parent=79 // pred_region
            loop: start=0, step=1, limit=1
            $region89: #{custom-call.5} parent=87 // loop_pre_header
              _
            $region90: #{custom-call.5} parent=87 // loop_header
              %s175 = sphi 0, %s179
              %p176 = scmp.ge.s32.totalorder %s175, 1
              %s180 = sphi %s166, %s166
              %s181 = sphi %s164, %s164
            $region91: #{custom-call.5} parent=87 // loop_header_branch
              %178 = sbr.rel (%p176) target = $region95
            $region92: #{custom-call.5} parent=87 // loop_body
              %v182 = vld [vmem:[%s180] sm:$0x3]
              %183 = vst [vmem:[%s181] sm:$0x3] %v182
            $region93: #{custom-call.5} parent=87 // loop_footer
              %s179 = sadd.s32 1, %s175
            $region94: #{custom-call.5} parent=87 // loop_footer_branch
              %174 = sbr.rel target = $region90
            $region95: #{custom-call.5} parent=87 // loop_exit
              _
          $region88: #{custom-call.5} parent=79 // pred_fallthru
            _
        $region80: #{custom-call.5} parent=15 // pred_fallthru
          _
        %197 = vnop
        %s198 = sand.u32 %s12, 1
        %s199 = sand.u32 %s12, 1
        %s200 = smul.addr %s199, 2
        %s201 = scalar_lea.vmem [#allocation7], %s200
        %s202 = smul.addr %s12, 2
        %s203 = scalar_lea.vmem %s3, %s202
        // Predicated region
        $region107: #{custom-call.5} parent=15 // pred_check
          _
        $region108: #{custom-call.5} parent=15 // pred_check_branch
          %205 = sbr.rel (0) target = $region110
        $region109: #{custom-call.5} parent=15 // pred_region
          // Predicated region
          $region111: #{custom-call.5} parent=109 // pred_check
            _
          $region112: #{custom-call.5} parent=109 // pred_check_branch
            %207 = sbr.rel target = $region114
          $region113: #{custom-call.5} parent=109 // pred_region
            // Predicated region
            $region126: #{custom-call.5} parent=113 // pred_check
              _
            $region127: #{custom-call.5} parent=113 // pred_check_branch
              %222 = sbr.rel (0) target = $region129
            $region128: #{custom-call.5} parent=113 // pred_region
              loop: start=0, step=1, limit=1
              $region130: #{custom-call.5} parent=128 // loop_pre_header
                _
              $region131: #{custom-call.5} parent=128 // loop_header
                %s225 = sphi 0, %s229
                %p226 = scmp.ge.s32.totalorder %s225, 1
                %s230 = sphi %s203, %s203
                %s231 = sphi %s201, %s201
              $region132: #{custom-call.5} parent=128 // loop_header_branch
                %228 = sbr.rel (%p226) target = $region136
              $region133: #{custom-call.5} parent=128 // loop_body
                %v232 = vld [vmem:[%s230] sm:$0x3]
                %233 = vst [vmem:[%s231] sm:$0x3] %v232
              $region134: #{custom-call.5} parent=128 // loop_footer
                %s229 = sadd.s32 1, %s225
              $region135: #{custom-call.5} parent=128 // loop_footer_branch
                %224 = sbr.rel target = $region131
              $region136: #{custom-call.5} parent=128 // loop_exit
                _
            $region129: #{custom-call.5} parent=113 // pred_fallthru
              _
          $region114: #{custom-call.5} parent=109 // pred_fallthru
            _
          // Predicated region
          $region115: #{custom-call.5} parent=109 // pred_check
            _
          $region116: #{custom-call.5} parent=109 // pred_check_branch
            %209 = sbr.rel (0) target = $region118
          $region117: #{custom-call.5} parent=109 // pred_region
            loop: start=0, step=1, limit=1
            $region119: #{custom-call.5} parent=117 // loop_pre_header
              _
            $region120: #{custom-call.5} parent=117 // loop_header
              %s212 = sphi 0, %s216
              %p213 = scmp.ge.s32.totalorder %s212, 1
              %s217 = sphi %s203, %s203
              %s218 = sphi %s201, %s201
            $region121: #{custom-call.5} parent=117 // loop_header_branch
              %215 = sbr.rel (%p213) target = $region125
            $region122: #{custom-call.5} parent=117 // loop_body
              %v219 = vld [vmem:[%s217] sm:$0x3]
              %220 = vst [vmem:[%s218] sm:$0x3] %v219
            $region123: #{custom-call.5} parent=117 // loop_footer
              %s216 = sadd.s32 1, %s212
            $region124: #{custom-call.5} parent=117 // loop_footer_branch
              %211 = sbr.rel target = $region120
            $region125: #{custom-call.5} parent=117 // loop_exit
              _
          $region118: #{custom-call.5} parent=109 // pred_fallthru
            _
        $region110: #{custom-call.5} parent=15 // pred_fallthru
          _
        %234 = vnop
      $region16: #{custom-call.5} parent=5 // pred_fallthru
        _
      %p235 = scmp.le.s32.totalorder 1, %s12
      %p236 = scmp.lt.s32.totalorder %s12, 11
      %p237 = pnand %p235, %p236
      %p238 = pneg %p237
      // Predicated region
      $region137: #{custom-call.5} parent=5 // pred_check
        _
      $region138: #{custom-call.5} parent=5 // pred_check_branch
        %240 = sbr.rel (%p237) target = $region140
      $region139: #{custom-call.5} parent=5 // pred_region
        #allocation18 [shape = 'f32[2,2]{1,0}', space=vmem, size = 0x1000, scoped, tag = 'a top-left matrix']
        #allocation19 [shape = 'f32[2,2]{1,0}', space=vmem, size = 0x1000, scoped, tag = 'a top-right matrix']
        #allocation20 [shape = 'f32[2,2]{1,0}', space=vmem, size = 0x1000, scoped, tag = 'a bottom-left matrix']
        #allocation21 [shape = 'f32[2,2]{1,0}', space=vmem, size = 0x1000, scoped, tag = 'a bottom-right matrix']
        %s241 = ssub.s32 %s12, 1
        %s242 = sand.u32 %s17, 1
        %s243 = sand.u32 %s17, 1
        %s244 = smul.addr %s243, 2
        %s245 = scalar_lea.vmem [#allocation1], %s244
        %s246 = sand.u32 %s17, 1
        %s247 = sand.u32 %s17, 1
        %s248 = smul.addr %s247, 2
        %s249 = scalar_lea.vmem [#allocation3], %s248
        %s250 = sand.u32 %s17, 1
        %s251 = sand.u32 %s17, 1
        %s252 = smul.addr %s251, 2
        %s253 = scalar_lea.vmem [#allocation5], %s252
        %s254 = sand.u32 %s17, 1
        %s255 = sand.u32 %s17, 1
        %s256 = smul.addr %s255, 2
        %s257 = scalar_lea.vmem [#allocation7], %s256
        %s258 = sand.u32 %s17, 1
        %s259 = sand.u32 %s17, 1
        %s260 = smul.addr %s259, 2
        %s261 = scalar_lea.vmem [#allocation1], %s260
        %s262 = sand.u32 %s17, 1
        %s263 = sand.u32 %s17, 1
        %s264 = smul.addr %s263, 2
        %s265 = scalar_lea.vmem [#allocation3], %s264
        %s266 = sand.u32 %s17, 1
        %s267 = sand.u32 %s17, 1
        %s268 = smul.addr %s267, 2
        %s269 = scalar_lea.vmem [#allocation5], %s268
        %s270 = sand.u32 %s17, 1
        %s271 = sand.u32 %s17, 1
        %s272 = smul.addr %s271, 2
        %s273 = scalar_lea.vmem [#allocation7], %s272
        %p274 = pneg %p40
        %p275 = pneg %p37
        %s276 = sand.u32 %s27, 1
        %s277 = sand.u32 %s27, 1
        %s278 = smul.addr %s277, 8
        %s279 = scalar_lea.vmem [#allocation8], %s278
        %p280 = pneg %p68
        %p281 = pneg %p65
        %s282 = sand.u32 %s55, 1
        %s283 = sand.u32 %s55, 1
        %s284 = smul.addr %s283, 8
        %s285 = scalar_lea.vmem [#allocation9], %s284
        %s286 = sand.u32 %s17, 1
        %s287 = sand.u32 %s17, 1
        %s288 = smul.addr %s287, 2
        %s289 = scalar_lea.vmem [#allocation11], %s288
        %s290 = sand.u32 %s17, 1
        %s291 = sand.u32 %s17, 1
        %s292 = smul.addr %s291, 2
        %s293 = scalar_lea.vmem [#allocation13], %s292
        %s294 = sand.u32 %s17, 1
        %s295 = sand.u32 %s17, 1
        %s296 = smul.addr %s295, 2
        %s297 = scalar_lea.vmem [#allocation15], %s296
        %s298 = sand.u32 %s17, 1
        %s299 = sand.u32 %s17, 1
        %s300 = smul.addr %s299, 2
        %s301 = scalar_lea.vmem [#allocation17], %s300
        %s303 = sshllo.u32 0, 2
        %v304 = vld [vmem:[%s261] sm:%s303]
        %305 = vst [vmem:[#allocation0] sm:%s303] %v304
        %s307 = sshllo.u32 0, 2
        %v308 = vld [vmem:[%s265] sm:%s307]
        %309 = vst [vmem:[#allocation2] sm:%s307] %v308
        %s311 = sshllo.u32 0, 2
        %v312 = vld [vmem:[%s269] sm:%s311]
        %313 = vst [vmem:[#allocation4] sm:%s311] %v312
        %s315 = sshllo.u32 0, 2
        %v316 = vld [vmem:[%s273] sm:%s315]
        %317 = vst [vmem:[#allocation6] sm:%s315] %v316
        %s318 = sshrl.u32 %s17, 3
        %s319 = sshrl.u32 %s17, 3
        %s320 = smov [#allocation18]
        %v321 = vld [vmem:[#allocation0] sm:$0xff]
        %322 = vst [vmem:[%s320] sm:$0xff] %v321
        %s323 = smov [#allocation19]
        %v324 = vld [vmem:[#allocation2] sm:$0xff]
        %325 = vst [vmem:[%s323] sm:$0xff] %v324
        %s326 = smov [#allocation20]
        %v327 = vld [vmem:[#allocation4] sm:$0xff]
        %328 = vst [vmem:[%s326] sm:$0xff] %v327
        %s329 = smov [#allocation21]
        %v330 = vld [vmem:[#allocation6] sm:$0xff]
        %331 = vst [vmem:[%s329] sm:$0xff] %v330
        %332 = vst [vmem:[#allocation10] sm:$0xff] 0.0
        %333 = vst [vmem:[#allocation12] sm:$0xff] 0.0
        %334 = vst [vmem:[#allocation14] sm:$0xff] 0.0
        %335 = vst [vmem:[#allocation16] sm:$0xff] 0.0
        %s336 = smov [#allocation10]
        %v337 = vlaneseq
        %v338 = vand.u32 %v337, 127
        %v339 = vmov %v338
        %v340 = vlaneseq
        %v341 = vshrl.u32 %v340, 7
        %v342 = vmov %v341
        %v343 = vld [vmem:[%s336] sm:$0x3]
        %vm346 = vcmp.eq.s32.totalorder %v342, %v339
        %v347 = vsel %vm346, 1.0, %v343
        %348 = vst [vmem:[%s336] sm:$0x3] %v347
        %s349 = smov [#allocation16]
        %v350 = vlaneseq
        %v351 = vand.u32 %v350, 127
        %v352 = vmov %v351
        %v353 = vlaneseq
        %v354 = vshrl.u32 %v353, 7
        %v355 = vmov %v354
        %v356 = vld [vmem:[%s349] sm:$0x3]
        %vm359 = vcmp.eq.s32.totalorder %v355, %v352
        %v360 = vsel %vm359, 1.0, %v356
        %361 = vst [vmem:[%s349] sm:$0x3] %v360
        // While loop
        $region141: #{custom-call.5} parent=139 // loop_pre_header
          _
        $region142: #{custom-call.5} parent=139 // loop_header
          %s363 = sphi 0, %s905
          %v364 = vlaneseq
          %v365 = vand.u32 %v364, 127
          %v366 = vmov %v365
          %v367 = vlaneseq
          %v368 = vshrl.u32 %v367, 7
          %v369 = vmov %v368
          %s370 = smov [#allocation18]
          %v371 = vlaneseq
          %v372 = vand.u32 %v371, 127
          %vm373 = vcmp.ge.s32.totalorder %v372, 0
          %vm374 = vcmp.lt.s32.totalorder %v372, 2
          %vm375 = vmand %vm373, %vm374
          %v376 = vld [vmem:[%s370] sm:$0x3]
          %v377 = vsel %vm375, %v376, 0.0
          %v378 = vmul.f32 %v377, %v377
          %vm381 = vcmp.eq.s32.totalorder %v369, %v366
          %v382 = vsel %vm381, 0.0, %v378
          %v383 = vlaneseq
          %v384 = vand.u32 %v383, 127
          %v385 = vmov %v384
          %v386 = vlaneseq
          %v387 = vshrl.u32 %v386, 7
          %v388 = vmov %v387
          %s389 = smov [#allocation19]
          %v390 = vlaneseq
          %v391 = vand.u32 %v390, 127
          %vm392 = vcmp.ge.s32.totalorder %v391, 0
          %vm393 = vcmp.lt.s32.totalorder %v391, 2
          %vm394 = vmand %vm392, %vm393
          %v395 = vld [vmem:[%s389] sm:$0x3]
          %v396 = vsel %vm394, %v395, 0.0
          %v397 = vmul.f32 %v396, %v396
          %v398 = vadd.f32 %v382, %v397
          %v399 = vadd.f32 %v378, %v397
          %v400 = vlaneseq
          %v401 = vand.u32 %v400, 127
          %v402 = vmov %v401
          %v403 = vlaneseq
          %v404 = vshrl.u32 %v403, 7
          %v405 = vmov %v404
          %s406 = smov [#allocation20]
          %v407 = vlaneseq
          %v408 = vand.u32 %v407, 127
          %vm409 = vcmp.ge.s32.totalorder %v408, 0
          %vm410 = vcmp.lt.s32.totalorder %v408, 2
          %vm411 = vmand %vm409, %vm410
          %v412 = vld [vmem:[%s406] sm:$0x3]
          %v413 = vsel %vm411, %v412, 0.0
          %v414 = vmul.f32 %v413, %v413
          %v415 = vadd.f32 %v398, %v414
          %v416 = vadd.f32 %v399, %v414
          %v417 = vlaneseq
          %v418 = vand.u32 %v417, 127
          %v419 = vmov %v418
          %v420 = vlaneseq
          %v421 = vshrl.u32 %v420, 7
          %v422 = vmov %v421
          %s423 = smov [#allocation21]
          %v424 = vlaneseq
          %v425 = vand.u32 %v424, 127
          %vm426 = vcmp.ge.s32.totalorder %v425, 0
          %vm427 = vcmp.lt.s32.totalorder %v425, 2
          %vm428 = vmand %vm426, %vm427
          %v429 = vld [vmem:[%s423] sm:$0x3]
          %v430 = vsel %vm428, %v429, 0.0
          %v431 = vmul.f32 %v430, %v430
          %vm434 = vcmp.eq.s32.totalorder %v422, %v419
          %v435 = vsel %vm434, 0.0, %v431
          %v436 = vadd.f32 %v415, %v435
          %v437 = vadd.f32 %v416, %v431
          %438 = vadd.xlane.f32.xlu0 %v437
          %v439 = vpop.xlane.xlu0 %438
          %v440 = vrot.slane %v439, 4
          %v441 = vadd.f32 %v439, %v440
          %v442 = vrot.slane %v441, 2
          %v443 = vadd.f32 %v441, %v442
          %v444 = vrot.slane %v443, 1
          %v445 = vadd.f32 %v443, %v444
          %446 = vadd.xlane.f32.xlu0 %v436
          %v447 = vpop.xlane.xlu0 %446
          %v448 = vrot.slane %v447, 4
          %v449 = vadd.f32 %v447, %v448
          %v450 = vrot.slane %v449, 2
          %v451 = vadd.f32 %v449, %v450
          %v452 = vrot.slane %v451, 1
          %v453 = vadd.f32 %v451, %v452
          %s454 = vtos %v453
          %s455 = vtos %v445
          %s456 = smul.f32 1e-10, %s455
          %p457 = scmp.le.f32.partialorder %s454, %s456
          %p458 = scmp.ge.s32.totalorder %s363, 15
          %p459 = por %p457, %p458
        $region143: #{custom-call.5} parent=139 // loop_header_branch
          %907 = sbr.rel (%p459) target = $region147
        $region144: #{custom-call.5} parent=139 // loop_body
          loop: start=0, step=1, limit=3
          $region148: #{custom-call.5} parent=144 // loop_pre_header
            _
          $region149: #{custom-call.5} parent=144 // loop_header
            %s461 = sphi 0, %s465
            %p462 = scmp.ge.s32.totalorder %s461, 3
          $region150: #{custom-call.5} parent=144 // loop_header_branch
            %464 = sbr.rel (%p462) target = $region154
          $region151: #{custom-call.5} parent=144 // loop_body
            #allocation22 [shape = 'f32[1024]{0}', space=vmem, size = 0x1000, scoped, tag = 'a_tl_diag vmem']
            #allocation23 [shape = 'f32[1024]{0}', space=vmem, size = 0x1000, scoped, tag = 'a_tr_diag vmem']
            #allocation24 [shape = 'f32[1024]{0}', space=vmem, size = 0x1000, scoped, tag = 'a_br_diag vmem']
            #allocation25 [shape = 'f32[1024]{0}', space=vmem, size = 0x1000, scoped, tag = 'rt1 vmem']
            #allocation26 [shape = 'f32[1024]{0}', space=vmem, size = 0x1000, scoped, tag = 'rt2 vmem']
            #allocation27 [shape = 'f32[1024]{0}', space=vmem, size = 0x1000, scoped, tag = 'c vmem']
            #allocation28 [shape = 'f32[1024]{0}', space=vmem, size = 0x1000, scoped, tag = 's vmem']
            #allocation29 [shape = 'f32[4096]{0}', space=vmem, size = 0x4000, scoped, tag = 'c broadcast']
            #allocation30 [shape = 'f32[4096]{0}', space=vmem, size = 0x4000, scoped, tag = 's broadcast']
            %s466 = smov [#allocation18]
            %s467 = smov [#allocation22]
            %v468 = vlaneseq
            %v469 = vand.u32 %v468, 127
            %v470 = vmov %v469
            %v471 = vlaneseq
            %v472 = vshrl.u32 %v471, 7
            %v473 = vmov %v472
            %v474 = vld [vmem:[%s466] sm:$0x3]
            %vm477 = vcmp.eq.s32.totalorder %v473, %v470
            %v478 = vsel %vm477, %v474, 0.0
            %v479 = vrot.slane %v478, 4
            %v480 = vadd.f32 %v478, %v479
            %v481 = vrot.slane %v480, 2
            %v482 = vadd.f32 %v480, %v481
            %v483 = vrot.slane %v482, 1
            %v484 = vadd.f32 %v482, %v483
            %485 = vst [vmem:[%s467] sm:$0x1] %v484
            %s486 = smov [#allocation19]
            %s487 = smov [#allocation23]
            %v488 = vlaneseq
            %v489 = vand.u32 %v488, 127
            %v490 = vmov %v489
            %v491 = vlaneseq
            %v492 = vshrl.u32 %v491, 7
            %v493 = vmov %v492
            %v494 = vld [vmem:[%s486] sm:$0x3]
            %vm497 = vcmp.eq.s32.totalorder %v493, %v490
            %v498 = vsel %vm497, %v494, 0.0
            %v499 = vrot.slane %v498, 4
            %v500 = vadd.f32 %v498, %v499
            %v501 = vrot.slane %v500, 2
            %v502 = vadd.f32 %v500, %v501
            %v503 = vrot.slane %v502, 1
            %v504 = vadd.f32 %v502, %v503
            %505 = vst [vmem:[%s487] sm:$0x1] %v504
            %s506 = smov [#allocation21]
            %s507 = smov [#allocation24]
            %v508 = vlaneseq
            %v509 = vand.u32 %v508, 127
            %v510 = vmov %v509
            %v511 = vlaneseq
            %v512 = vshrl.u32 %v511, 7
            %v513 = vmov %v512
            %v514 = vld [vmem:[%s506] sm:$0x3]
            %vm517 = vcmp.eq.s32.totalorder %v513, %v510
            %v518 = vsel %vm517, %v514, 0.0
            %v519 = vrot.slane %v518, 4
            %v520 = vadd.f32 %v518, %v519
            %v521 = vrot.slane %v520, 2
            %v522 = vadd.f32 %v520, %v521
            %v523 = vrot.slane %v522, 1
            %v524 = vadd.f32 %v522, %v523
            %525 = vst [vmem:[%s507] sm:$0x1] %v524
            %s526 = smov [#allocation27]
            %s527 = smov [#allocation28]
            %s528 = smov [#allocation22]
            %v529 = vld [vmem:[%s528] sm:$0xff]
            %s530 = smov [#allocation23]
            %v531 = vld [vmem:[%s530] sm:$0xff]
            %s532 = smov [#allocation24]
            %v533 = vld [vmem:[%s532] sm:$0xff]
            %v534 = vsub.f32 %v533, %v529
            %v535 = vmul.f32 2.0, %v531
            %v536 = vrcp.pop %v535
            %v537 = vmul.f32 %v534, %v536
            %vm538 = vcmp.ge.f32.partialorder %v537, 0.0
            %v539 = vmul.f32 %v537, %v537
            %v540 = vadd.f32 1.0, %v539
            %v541 = vrsqrt.pop %v540
            %v542 = vmul.f32 %v540, %v541
            %vm543 = vcmp.eq.f32.partialorder %v540, inf
            %v544 = vsel %vm543, %v540, %v542
            %vm545 = vcmp.eq.f32.partialorder %v540, 0.0
            %v546 = vand.u32 %v540, 2147483648
            %v547 = vsel %vm545, %v546, %v544
            %v548 = vxor.u32 %v547, 2147483648
            %v549 = vsel %vm538, %v547, %v548
            %v550 = vadd.f32 %v537, %v549
            %v551 = vrcp.pop %v550
            %v552 = vand.u32 2147483647, %v529
            %v553 = vand.u32 2147483647, %v531
            %v554 = vand.u32 2147483647, %v533
            %v555 = vmin.f32 %v552, %v554
            %v556 = vmul.f32 1.1920929e-08, %v555
            %vm557 = vcmp.le.f32.partialorder %v553, %v556
            %v558 = vsel %vm557, 0.0, %v551
            %v559 = vmul.f32 %v558, %v558
            %v560 = vadd.f32 1.0, %v559
            %v561 = vrsqrt.pop %v560
            %v562 = vmul.f32 %v558, %v561
            %v563 = vmul.f32 %v558, %v531
            %v564 = vsub.f32 %v529, %v563
            %v565 = vmul.f32 %v558, %v531
            %v566 = vadd.f32 %v533, %v565
            %s567 = smov [#allocation25]
            %568 = vst [vmem:[%s567] sm:$0xff] %v564
            %s569 = smov [#allocation26]
            %570 = vst [vmem:[%s569] sm:$0xff] %v566
            %s571 = smov %s526
            %572 = vst [vmem:[%s571] sm:$0xff] %v561
            %s573 = smov %s527
            %574 = vst [vmem:[%s573] sm:$0xff] %v562
            %s575 = smov [#allocation27]
            %v576 = vld [vmem:[%s575] ss:$0 sm:$0xff]
            %v577 = vlaneseq
            %v578 = vand.u32 %v577, 127
            %v579 = vmov %v578
            %v580 = vlaneseq
            %v581 = vshrl.u32 %v580, 7
            %v582 = vmov %v581
            %vm584 = vcmp.eq.s32.totalorder %v582, %v579
            %v585 = vsel %vm584, %v576, 0.0
            %586 = vadd.xlane.f32.xlu0 %v585
            %v587 = vpop.xlane.xlu0 %586
            %s588 = smov [#allocation29]
            %589 = vst [vmem:[%s588] sm:$0xff] %v587
            %s590 = smov [#allocation28]
            %v591 = vld [vmem:[%s590] ss:$0 sm:$0xff]
            %v592 = vlaneseq
            %v593 = vand.u32 %v592, 127
            %v594 = vmov %v593
            %v595 = vlaneseq
            %v596 = vshrl.u32 %v595, 7
            %v597 = vmov %v596
            %vm599 = vcmp.eq.s32.totalorder %v597, %v594
            %v600 = vsel %vm599, %v591, 0.0
            %601 = vadd.xlane.f32.xlu0 %v600
            %v602 = vpop.xlane.xlu0 %601
            %s603 = smov [#allocation30]
            %604 = vst [vmem:[%s603] sm:$0xff] %v602
            %s605 = smov [#allocation29]
            %v606 = vld [vmem:[%s605] sm:$0xff]
            %s607 = smov [#allocation30]
            %v608 = vld [vmem:[%s607] sm:$0xff]
            %s609 = smov [#allocation18]
            %s610 = smov [#allocation19]
            %s611 = smov [#allocation20]
            %s612 = smov [#allocation21]
            %v613 = vld [vmem:[%s609] sm:$0x3]
            %v614 = vld [vmem:[%s610] sm:$0x3]
            %v615 = vld [vmem:[%s611] sm:$0x3]
            %v616 = vld [vmem:[%s612] sm:$0x3]
            %v617 = vmul.f32 %v606, %v613
            %v618 = vmul.f32 %v608, %v615
            %v619 = vsub.f32 %v617, %v618
            %v620 = vmul.f32 %v606, %v614
            %v621 = vmul.f32 %v608, %v616
            %v622 = vsub.f32 %v620, %v621
            %v623 = vmul.f32 %v608, %v613
            %v624 = vmul.f32 %v606, %v615
            %v625 = vadd.f32 %v623, %v624
            %v626 = vmul.f32 %v608, %v614
            %v627 = vmul.f32 %v606, %v616
            %v628 = vadd.f32 %v626, %v627
            %629 = vst [vmem:[%s609] sm:$0x3] %v619
            %630 = vst [vmem:[%s610] sm:$0x3] %v622
            %631 = vst [vmem:[%s611] sm:$0x3] %v625
            %632 = vst [vmem:[%s612] sm:$0x3] %v628
            %s633 = smov [#allocation27]
            %v634 = vld [vmem:[%s633] ss:$0 sm:$0xff]
            %s635 = smov [#allocation28]
            %v636 = vld [vmem:[%s635] ss:$0 sm:$0xff]
            %s637 = smov [#allocation18]
            %s638 = smov [#allocation19]
            %s639 = smov [#allocation20]
            %s640 = smov [#allocation21]
            %v641 = vld [vmem:[%s637] sm:$0x3]
            %v642 = vld [vmem:[%s638] sm:$0x3]
            %v643 = vld [vmem:[%s639] sm:$0x3]
            %v644 = vld [vmem:[%s640] sm:$0x3]
            %v645 = vmul.f32 %v634, %v641
            %v646 = vmul.f32 %v636, %v642
            %v647 = vsub.f32 %v645, %v646
            %v648 = vmul.f32 %v636, %v641
            %v649 = vmul.f32 %v634, %v642
            %v650 = vadd.f32 %v648, %v649
            %v651 = vmul.f32 %v634, %v643
            %v652 = vmul.f32 %v636, %v644
            %v653 = vsub.f32 %v651, %v652
            %v654 = vmul.f32 %v636, %v643
            %v655 = vmul.f32 %v634, %v644
            %v656 = vadd.f32 %v654, %v655
            %657 = vst [vmem:[%s637] sm:$0x3] %v647
            %658 = vst [vmem:[%s638] sm:$0x3] %v650
            %659 = vst [vmem:[%s639] sm:$0x3] %v653
            %660 = vst [vmem:[%s640] sm:$0x3] %v656
            %s661 = smov [#allocation18]
            %s662 = smov [#allocation25]
            %v663 = vlaneseq
            %v664 = vand.u32 %v663, 127
            %v665 = vmov %v664
            %v666 = vlaneseq
            %v667 = vshrl.u32 %v666, 7
            %v668 = vmov %v667
            %v669 = vld [vmem:[%s662] ss:$0 sm:$0xff]
            %v670 = vld [vmem:[%s661] sm:$0x3]
            %vm673 = vcmp.eq.s32.totalorder %v668, %v665
            %v674 = vsel %vm673, %v669, %v670
            %675 = vst [vmem:[%s661] sm:$0x3] %v674
            %s676 = smov [#allocation19]
            %v677 = vlaneseq
            %v678 = vand.u32 %v677, 127
            %v679 = vmov %v678
            %v680 = vlaneseq
            %v681 = vshrl.u32 %v680, 7
            %v682 = vmov %v681
            %v683 = vld [vmem:[%s676] sm:$0x3]
            %vm686 = vcmp.eq.s32.totalorder %v682, %v679
            %v687 = vsel %vm686, 0.0, %v683
            %688 = vst [vmem:[%s676] sm:$0x3] %v687
            %s689 = smov [#allocation20]
            %v690 = vlaneseq
            %v691 = vand.u32 %v690, 127
            %v692 = vmov %v691
            %v693 = vlaneseq
            %v694 = vshrl.u32 %v693, 7
            %v695 = vmov %v694
            %v696 = vld [vmem:[%s689] sm:$0x3]
            %vm699 = vcmp.eq.s32.totalorder %v695, %v692
            %v700 = vsel %vm699, 0.0, %v696
            %701 = vst [vmem:[%s689] sm:$0x3] %v700
            %s702 = smov [#allocation21]
            %s703 = smov [#allocation26]
            %v704 = vlaneseq
            %v705 = vand.u32 %v704, 127
            %v706 = vmov %v705
            %v707 = vlaneseq
            %v708 = vshrl.u32 %v707, 7
            %v709 = vmov %v708
            %v710 = vld [vmem:[%s703] ss:$0 sm:$0xff]
            %v711 = vld [vmem:[%s702] sm:$0x3]
            %vm714 = vcmp.eq.s32.totalorder %v709, %v706
            %v715 = vsel %vm714, %v710, %v711
            %716 = vst [vmem:[%s702] sm:$0x3] %v715
            %s717 = smov [#allocation18]
            %s718 = smov [#allocation19]
            %v719 = vld [vmem:[%s718] sm:$0x3]
            %720 = vrot.lane.b32.xlu0 %v719, 1
            %v721 = vpop.permute.xlu0 %720
            %v722 = vld [vmem:[%s717] sm:$0x3]
            %v723 = vld [vmem:[%s717] sm:$0x3]
            %724 = vrot.lane.b32.xlu0 %v723, 1
            %v725 = vpop.permute.xlu0 %724
            %v726 = vlaneseq
            %v727 = vand.u32 %v726, 127
            %vm728 = vcmp.eq.s32.totalorder %v727, 0
            %v729 = vsel %vm728, %v723, %v725
            %v730 = vlaneseq
            %v731 = vand.u32 %v730, 127
            %vm732 = vcmp.eq.s32.totalorder %v731, 1
            %v733 = vsel %vm732, %v721, %v729
            %v734 = vlaneseq
            %v735 = vand.u32 %v734, 127
            %vm736 = vcmp.ge.s32.totalorder %v735, 0
            %vm737 = vcmp.lt.s32.totalorder %v735, 2
            %vm738 = vmand %vm736, %vm737
            %v739 = vsel %vm738, %v733, 0.0
            %v740 = vld [vmem:[%s718] sm:$0x3]
            %741 = vrot.lane.b32.xlu0 %v740, 127
            %v742 = vpop.permute.xlu0 %741
            %v743 = vlaneseq
            %v744 = vand.u32 %v743, 127
            %vm745 = vcmp.eq.s32.totalorder %v744, 1
            %v746 = vsel %vm745, %v722, %v742
            %747 = vst [vmem:[%s717] sm:$0x3] %v739
            %748 = vst [vmem:[%s718] sm:$0x3] %v746
            %s749 = smov [#allocation20]
            %s750 = smov [#allocation21]
            %v751 = vld [vmem:[%s750] sm:$0x3]
            %752 = vrot.lane.b32.xlu0 %v751, 1
            %v753 = vpop.permute.xlu0 %752
            %v754 = vld [vmem:[%s749] sm:$0x3]
            %v755 = vld [vmem:[%s749] sm:$0x3]
            %756 = vrot.lane.b32.xlu0 %v755, 1
            %v757 = vpop.permute.xlu0 %756
            %v758 = vlaneseq
            %v759 = vand.u32 %v758, 127
            %vm760 = vcmp.eq.s32.totalorder %v759, 0
            %v761 = vsel %vm760, %v755, %v757
            %v762 = vlaneseq
            %v763 = vand.u32 %v762, 127
            %vm764 = vcmp.eq.s32.totalorder %v763, 1
            %v765 = vsel %vm764, %v753, %v761
            %v766 = vlaneseq
            %v767 = vand.u32 %v766, 127
            %vm768 = vcmp.ge.s32.totalorder %v767, 0
            %vm769 = vcmp.lt.s32.totalorder %v767, 2
            %vm770 = vmand %vm768, %vm769
            %v771 = vsel %vm770, %v765, 0.0
            %v772 = vld [vmem:[%s750] sm:$0x3]
            %773 = vrot.lane.b32.xlu0 %v772, 127
            %v774 = vpop.permute.xlu0 %773
            %v775 = vlaneseq
            %v776 = vand.u32 %v775, 127
            %vm777 = vcmp.eq.s32.totalorder %v776, 1
            %v778 = vsel %vm777, %v754, %v774
            %779 = vst [vmem:[%s749] sm:$0x3] %v771
            %780 = vst [vmem:[%s750] sm:$0x3] %v778
            %s781 = smov [#allocation18]
            %s782 = smov [#allocation20]
            %v783 = vld [vmem:[%s781] ss:$0 sm:$0xff]
            %s785 = scalar_lea.vmem %s781, 4294967295
            %v786 = vld [vmem:[%s785] sm:$0x2]
            %v787 = vlaneseq
            %v788 = vshrl.u32 %v787, 7
            %vm789 = vcmp.eq.s32.totalorder %v788, 0
            %v790 = vsel %vm789, %v783, %v786
            %s791 = scalar_lea.vmem %s781, 1
            %v792 = vld [vmem:[%s791] ss:$0 sm:$0xff]
            %793 = vst [vmem:[%s781] sm:$0x3] %v790
            %v794 = vld [vmem:[%s782] ss:$0 sm:$0xff]
            %s795 = scalar_lea.vmem %s781, 1
            %796 = vst [vmem:[%s795] sm:$0x1] %v794
            %s797 = scalar_lea.vmem %s782, 1
            %v798 = vld [vmem:[%s797] sm:$0x1]
            %v799 = vlaneseq
            %v800 = vshrl.u32 %v799, 7
            %vm801 = vcmp.eq.s32.totalorder %v800, 1
            %v802 = vsel %vm801, %v792, %v798
            %v803 = vld [vmem:[%s782] ss:$0 sm:$0xff]
            %804 = vst [vmem:[%s782] sm:$0x3] %v802
            %s805 = smov [#allocation19]
            %s806 = smov [#allocation21]
            %v807 = vld [vmem:[%s805] ss:$0 sm:$0xff]
            %s809 = scalar_lea.vmem %s805, 4294967295
            %v810 = vld [vmem:[%s809] sm:$0x2]
            %v811 = vlaneseq
            %v812 = vshrl.u32 %v811, 7
            %vm813 = vcmp.eq.s32.totalorder %v812, 0
            %v814 = vsel %vm813, %v807, %v810
            %s815 = scalar_lea.vmem %s805, 1
            %v816 = vld [vmem:[%s815] ss:$0 sm:$0xff]
            %817 = vst [vmem:[%s805] sm:$0x3] %v814
            %v818 = vld [vmem:[%s806] ss:$0 sm:$0xff]
            %s819 = scalar_lea.vmem %s805, 1
            %820 = vst [vmem:[%s819] sm:$0x1] %v818
            %s821 = scalar_lea.vmem %s806, 1
            %v822 = vld [vmem:[%s821] sm:$0x1]
            %v823 = vlaneseq
            %v824 = vshrl.u32 %v823, 7
            %vm825 = vcmp.eq.s32.totalorder %v824, 1
            %v826 = vsel %vm825, %v816, %v822
            %v827 = vld [vmem:[%s806] ss:$0 sm:$0xff]
            %828 = vst [vmem:[%s806] sm:$0x3] %v826
            %s829 = smov [#allocation29]
            %v830 = vld [vmem:[%s829] sm:$0xff]
            %s831 = smov [#allocation30]
            %v832 = vld [vmem:[%s831] sm:$0xff]
            %s833 = smov [#allocation10]
            %s834 = smov [#allocation12]
            %s835 = smov [#allocation14]
            %s836 = smov [#allocation16]
            %v837 = vld [vmem:[%s833] sm:$0x3]
            %v838 = vld [vmem:[%s834] sm:$0x3]
            %v839 = vld [vmem:[%s835] sm:$0x3]
            %v840 = vld [vmem:[%s836] sm:$0x3]
            %v841 = vmul.f32 %v830, %v837
            %v842 = vmul.f32 %v832, %v839
            %v843 = vsub.f32 %v841, %v842
            %v844 = vmul.f32 %v830, %v838
            %v845 = vmul.f32 %v832, %v840
            %v846 = vsub.f32 %v844, %v845
            %v847 = vmul.f32 %v832, %v837
            %v848 = vmul.f32 %v830, %v839
            %v849 = vadd.f32 %v847, %v848
            %v850 = vmul.f32 %v832, %v838
            %v851 = vmul.f32 %v830, %v840
            %v852 = vadd.f32 %v850, %v851
            %853 = vst [vmem:[%s833] sm:$0x3] %v843
            %854 = vst [vmem:[%s834] sm:$0x3] %v846
            %855 = vst [vmem:[%s835] sm:$0x3] %v849
            %856 = vst [vmem:[%s836] sm:$0x3] %v852
            %s857 = smov [#allocation10]
            %s858 = smov [#allocation14]
            %v859 = vld [vmem:[%s857] ss:$0 sm:$0xff]
            %s861 = scalar_lea.vmem %s857, 4294967295
            %v862 = vld [vmem:[%s861] sm:$0x2]
            %v863 = vlaneseq
            %v864 = vshrl.u32 %v863, 7
            %vm865 = vcmp.eq.s32.totalorder %v864, 0
            %v866 = vsel %vm865, %v859, %v862
            %s867 = scalar_lea.vmem %s857, 1
            %v868 = vld [vmem:[%s867] ss:$0 sm:$0xff]
            %869 = vst [vmem:[%s857] sm:$0x3] %v866
            %v870 = vld [vmem:[%s858] ss:$0 sm:$0xff]
            %s871 = scalar_lea.vmem %s857, 1
            %872 = vst [vmem:[%s871] sm:$0x1] %v870
            %s873 = scalar_lea.vmem %s858, 1
            %v874 = vld [vmem:[%s873] sm:$0x1]
            %v875 = vlaneseq
            %v876 = vshrl.u32 %v875, 7
            %vm877 = vcmp.eq.s32.totalorder %v876, 1
            %v878 = vsel %vm877, %v868, %v874
            %v879 = vld [vmem:[%s858] ss:$0 sm:$0xff]
            %880 = vst [vmem:[%s858] sm:$0x3] %v878
            %s881 = smov [#allocation12]
            %s882 = smov [#allocation16]
            %v883 = vld [vmem:[%s881] ss:$0 sm:$0xff]
            %s885 = scalar_lea.vmem %s881, 4294967295
            %v886 = vld [vmem:[%s885] sm:$0x2]
            %v887 = vlaneseq
            %v888 = vshrl.u32 %v887, 7
            %vm889 = vcmp.eq.s32.totalorder %v888, 0
            %v890 = vsel %vm889, %v883, %v886
            %s891 = scalar_lea.vmem %s881, 1
            %v892 = vld [vmem:[%s891] ss:$0 sm:$0xff]
            %893 = vst [vmem:[%s881] sm:$0x3] %v890
            %v894 = vld [vmem:[%s882] ss:$0 sm:$0xff]
            %s895 = scalar_lea.vmem %s881, 1
            %896 = vst [vmem:[%s895] sm:$0x1] %v894
            %s897 = scalar_lea.vmem %s882, 1
            %v898 = vld [vmem:[%s897] sm:$0x1]
            %v899 = vlaneseq
            %v900 = vshrl.u32 %v899, 7
            %vm901 = vcmp.eq.s32.totalorder %v900, 1
            %v902 = vsel %vm901, %v892, %v898
            %v903 = vld [vmem:[%s882] ss:$0 sm:$0xff]
            %904 = vst [vmem:[%s882] sm:$0x3] %v902
          $region152: #{custom-call.5} parent=144 // loop_footer
            %s465 = sadd.s32 1, %s461
          $region153: #{custom-call.5} parent=144 // loop_footer_branch
            %460 = sbr.rel target = $region149
          $region154: #{custom-call.5} parent=144 // loop_exit
            _
          %s905 = sadd.s32 %s363, 1
        $region145: #{custom-call.5} parent=139 // loop_footer
          _
        $region146: #{custom-call.5} parent=139 // loop_footer_branch
          %362 = sbr.rel target = $region142
        $region147: #{custom-call.5} parent=139 // loop_exit
          _
        %s908 = sand.u32 %s17, 7
        %s909 = scalar_lea.vmem %s279, %s908 [#allocation8]
        %s910 = sand.u32 %s17, 7
        %s911 = scalar_lea.vmem %s285, %s910 [#allocation9]
        %s912 = smov [#allocation18]
        %s913 = smov %s909
        %v914 = vlaneseq
        %v915 = vand.u32 %v914, 127
        %v916 = vmov %v915
        %v917 = vlaneseq
        %v918 = vshrl.u32 %v917, 7
        %v919 = vmov %v918
        %v920 = vld [vmem:[%s912] sm:$0x3]
        %vm923 = vcmp.eq.s32.totalorder %v919, %v916
        %v924 = vsel %vm923, %v920, 0.0
        %v925 = vrot.slane %v924, 4
        %v926 = vadd.f32 %v924, %v925
        %v927 = vrot.slane %v926, 2
        %v928 = vadd.f32 %v926, %v927
        %v929 = vrot.slane %v928, 1
        %v930 = vadd.f32 %v928, %v929
        %931 = vst [vmem:[%s913] sm:$0x1] %v930
        %s932 = smov [#allocation21]
        %s933 = smov %s911
        %v934 = vlaneseq
        %v935 = vand.u32 %v934, 127
        %v936 = vmov %v935
        %v937 = vlaneseq
        %v938 = vshrl.u32 %v937, 7
        %v939 = vmov %v938
        %v940 = vld [vmem:[%s932] sm:$0x3]
        %vm943 = vcmp.eq.s32.totalorder %v939, %v936
        %v944 = vsel %vm943, %v940, 0.0
        %v945 = vrot.slane %v944, 4
        %v946 = vadd.f32 %v944, %v945
        %v947 = vrot.slane %v946, 2
        %v948 = vadd.f32 %v946, %v947
        %v949 = vrot.slane %v948, 1
        %v950 = vadd.f32 %v948, %v949
        %951 = vst [vmem:[%s933] sm:$0x1] %v950
        %s953 = sshllo.u32 0, 2
        %v955 = vld [vmem:[#allocation10] sm:%s953]
        %s956 = sshllo.u32 0, 2
        %957 = vst [vmem:[%s289] sm:%s956] %v955
        %s959 = sshllo.u32 0, 2
        %v961 = vld [vmem:[#allocation12] sm:%s959]
        %s962 = sshllo.u32 0, 2
        %963 = vst [vmem:[%s293] sm:%s962] %v961
        %s965 = sshllo.u32 0, 2
        %v967 = vld [vmem:[#allocation14] sm:%s965]
        %s968 = sshllo.u32 0, 2
        %969 = vst [vmem:[%s297] sm:%s968] %v967
        %s971 = sshllo.u32 0, 2
        %v973 = vld [vmem:[#allocation16] sm:%s971]
        %s974 = sshllo.u32 0, 2
        %975 = vst [vmem:[%s301] sm:%s974] %v973
        %s976 = sand.u32 %s27, 1
        %s977 = sand.u32 %s27, 1
        %s978 = smul.addr %s977, 8
        %s979 = scalar_lea.vmem [#allocation8], %s978
        %s980 = sand.u32 %s55, 1
        %s981 = sand.u32 %s55, 1
        %s982 = smul.addr %s981, 8
        %s983 = scalar_lea.vmem [#allocation9], %s982
        %s984 = sand.u32 %s17, 1
        %s985 = sand.u32 %s17, 1
        %s986 = smul.addr %s985, 2
        %s987 = scalar_lea.vmem [#allocation11], %s986
        %s988 = sand.u32 %s17, 1
        %s989 = sand.u32 %s17, 1
        %s990 = smul.addr %s989, 2
        %s991 = scalar_lea.vmem [#allocation13], %s990
        %s992 = sand.u32 %s17, 1
        %s993 = sand.u32 %s17, 1
        %s994 = smul.addr %s993, 2
        %s995 = scalar_lea.vmem [#allocation15], %s994
        %s996 = sand.u32 %s17, 1
        %s997 = sand.u32 %s17, 1
        %s998 = smul.addr %s997, 2
        %s999 = scalar_lea.vmem [#allocation17], %s998
        // Predicated region
        $region155: #{custom-call.5} parent=139 // pred_check
          %p1000 = pneg %p37
        $region156: #{custom-call.5} parent=139 // pred_check_branch
          %1002 = sbr.rel (%p1000) target = $region158
        $region157: #{custom-call.5} parent=139 // pred_region
          %s1003 = sshrl.u32 %s17, 3
          %s1004 = smul.addr %s1003, 8
          %s1005 = scalar_lea.vmem %s4, %s1004
          // Predicated region
          $region159: #{custom-call.5} parent=157 // pred_check
            _
          $region160: #{custom-call.5} parent=157 // pred_check_branch
            %1007 = sbr.rel (0) target = $region162
          $region161: #{custom-call.5} parent=157 // pred_region
            // Predicated region
            $region163: #{custom-call.5} parent=161 // pred_check
              _
            $region164: #{custom-call.5} parent=161 // pred_check_branch
              %1009 = sbr.rel (0) target = $region166
            $region165: #{custom-call.5} parent=161 // pred_region
              // Predicated region
              $region178: #{custom-call.5} parent=165 // pred_check
                _
              $region179: #{custom-call.5} parent=165 // pred_check_branch
                %1024 = sbr.rel (0) target = $region181
              $region180: #{custom-call.5} parent=165 // pred_region
                loop: start=0, step=1, limit=1
                $region182: #{custom-call.5} parent=180 // loop_pre_header
                  _
                $region183: #{custom-call.5} parent=180 // loop_header
                  %s1026 = sphi 0, %s1030
                  %p1027 = scmp.ge.s32.totalorder %s1026, 1
                  %s1031 = sphi %s979, %s979
                  %s1032 = sphi %s1005, %s1005
                $region184: #{custom-call.5} parent=180 // loop_header_branch
                  %1029 = sbr.rel (%p1027) target = $region188
                $region185: #{custom-call.5} parent=180 // loop_body
                  %v1033 = vld [vmem:[%s1031] sm:$0xff]
                  %1034 = vst [vmem:[%s1032] sm:$0xff] %v1033
                $region186: #{custom-call.5} parent=180 // loop_footer
                  %s1030 = sadd.s32 1, %s1026
                $region187: #{custom-call.5} parent=180 // loop_footer_branch
                  %1025 = sbr.rel target = $region183
                $region188: #{custom-call.5} parent=180 // loop_exit
                  _
              $region181: #{custom-call.5} parent=165 // pred_fallthru
                _
              // Predicated region
              $region189: #{custom-call.5} parent=165 // pred_check
                _
              $region190: #{custom-call.5} parent=165 // pred_check_branch
                %1036 = sbr.rel target = $region192
              $region191: #{custom-call.5} parent=165 // pred_region
                _
              $region192: #{custom-call.5} parent=165 // pred_fallthru
                _
            $region166: #{custom-call.5} parent=161 // pred_fallthru
              _
            // Predicated region
            $region167: #{custom-call.5} parent=161 // pred_check
              _
            $region168: #{custom-call.5} parent=161 // pred_check_branch
              %1011 = sbr.rel target = $region170
            $region169: #{custom-call.5} parent=161 // pred_region
              loop: start=0, step=1, limit=1
              $region171: #{custom-call.5} parent=169 // loop_pre_header
                _
              $region172: #{custom-call.5} parent=169 // loop_header
                %s1014 = sphi 0, %s1018
                %p1015 = scmp.ge.s32.totalorder %s1014, 1
                %s1019 = sphi %s979, %s979
                %s1020 = sphi %s1005, %s1005
              $region173: #{custom-call.5} parent=169 // loop_header_branch
                %1017 = sbr.rel (%p1015) target = $region177
              $region174: #{custom-call.5} parent=169 // loop_body
                %v1021 = vld [vmem:[%s1019] sm:$0xff]
                %1022 = vst [vmem:[%s1020] sm:$0xff] %v1021
              $region175: #{custom-call.5} parent=169 // loop_footer
                %s1018 = sadd.s32 1, %s1014
              $region176: #{custom-call.5} parent=169 // loop_footer_branch
                %1013 = sbr.rel target = $region172
              $region177: #{custom-call.5} parent=169 // loop_exit
                _
            $region170: #{custom-call.5} parent=161 // pred_fallthru
              _
          $region162: #{custom-call.5} parent=157 // pred_fallthru
            _
          %1037 = vnop
        $region158: #{custom-call.5} parent=139 // pred_fallthru
          _
        // Predicated region
        $region193: #{custom-call.5} parent=139 // pred_check
          %p1038 = pneg %p65
        $region194: #{custom-call.5} parent=139 // pred_check_branch
          %1040 = sbr.rel (%p1038) target = $region196
        $region195: #{custom-call.5} parent=139 // pred_region
          %s1041 = sshrl.u32 %s17, 3
          %s1042 = smul.addr %s1041, 8
          %s1043 = scalar_lea.vmem %s5, %s1042
          // Predicated region
          $region197: #{custom-call.5} parent=195 // pred_check
            _
          $region198: #{custom-call.5} parent=195 // pred_check_branch
            %1045 = sbr.rel (0) target = $region200
          $region199: #{custom-call.5} parent=195 // pred_region
            // Predicated region
            $region201: #{custom-call.5} parent=199 // pred_check
              _
            $region202: #{custom-call.5} parent=199 // pred_check_branch
              %1047 = sbr.rel (0) target = $region204
            $region203: #{custom-call.5} parent=199 // pred_region
              // Predicated region
              $region216: #{custom-call.5} parent=203 // pred_check
                _
              $region217: #{custom-call.5} parent=203 // pred_check_branch
                %1062 = sbr.rel (0) target = $region219
              $region218: #{custom-call.5} parent=203 // pred_region
                loop: start=0, step=1, limit=1
                $region220: #{custom-call.5} parent=218 // loop_pre_header
                  _
                $region221: #{custom-call.5} parent=218 // loop_header
                  %s1064 = sphi 0, %s1068
                  %p1065 = scmp.ge.s32.totalorder %s1064, 1
                  %s1069 = sphi %s983, %s983
                  %s1070 = sphi %s1043, %s1043
                $region222: #{custom-call.5} parent=218 // loop_header_branch
                  %1067 = sbr.rel (%p1065) target = $region226
                $region223: #{custom-call.5} parent=218 // loop_body
                  %v1071 = vld [vmem:[%s1069] sm:$0xff]
                  %1072 = vst [vmem:[%s1070] sm:$0xff] %v1071
                $region224: #{custom-call.5} parent=218 // loop_footer
                  %s1068 = sadd.s32 1, %s1064
                $region225: #{custom-call.5} parent=218 // loop_footer_branch
                  %1063 = sbr.rel target = $region221
                $region226: #{custom-call.5} parent=218 // loop_exit
                  _
              $region219: #{custom-call.5} parent=203 // pred_fallthru
                _
              // Predicated region
              $region227: #{custom-call.5} parent=203 // pred_check
                _
              $region228: #{custom-call.5} parent=203 // pred_check_branch
                %1074 = sbr.rel target = $region230
              $region229: #{custom-call.5} parent=203 // pred_region
                _
              $region230: #{custom-call.5} parent=203 // pred_fallthru
                _
            $region204: #{custom-call.5} parent=199 // pred_fallthru
              _
            // Predicated region
            $region205: #{custom-call.5} parent=199 // pred_check
              _
            $region206: #{custom-call.5} parent=199 // pred_check_branch
              %1049 = sbr.rel target = $region208
            $region207: #{custom-call.5} parent=199 // pred_region
              loop: start=0, step=1, limit=1
              $region209: #{custom-call.5} parent=207 // loop_pre_header
                _
              $region210: #{custom-call.5} parent=207 // loop_header
                %s1052 = sphi 0, %s1056
                %p1053 = scmp.ge.s32.totalorder %s1052, 1
                %s1057 = sphi %s983, %s983
                %s1058 = sphi %s1043, %s1043
              $region211: #{custom-call.5} parent=207 // loop_header_branch
                %1055 = sbr.rel (%p1053) target = $region215
              $region212: #{custom-call.5} parent=207 // loop_body
                %v1059 = vld [vmem:[%s1057] sm:$0xff]
                %1060 = vst [vmem:[%s1058] sm:$0xff] %v1059
              $region213: #{custom-call.5} parent=207 // loop_footer
                %s1056 = sadd.s32 1, %s1052
              $region214: #{custom-call.5} parent=207 // loop_footer_branch
                %1051 = sbr.rel target = $region210
              $region215: #{custom-call.5} parent=207 // loop_exit
                _
            $region208: #{custom-call.5} parent=199 // pred_fallthru
              _
          $region200: #{custom-call.5} parent=195 // pred_fallthru
            _
          %1075 = vnop
        $region196: #{custom-call.5} parent=139 // pred_fallthru
          _
        %s1076 = smul.addr %s17, 2
        %s1077 = scalar_lea.vmem %s6, %s1076
        // Predicated region
        $region231: #{custom-call.5} parent=139 // pred_check
          _
        $region232: #{custom-call.5} parent=139 // pred_check_branch
          %1079 = sbr.rel (0) target = $region234
        $region233: #{custom-call.5} parent=139 // pred_region
          // Predicated region
          $region235: #{custom-call.5} parent=233 // pred_check
            _
          $region236: #{custom-call.5} parent=233 // pred_check_branch
            %1081 = sbr.rel target = $region238
          $region237: #{custom-call.5} parent=233 // pred_region
            // Predicated region
            $region250: #{custom-call.5} parent=237 // pred_check
              _
            $region251: #{custom-call.5} parent=237 // pred_check_branch
              %1096 = sbr.rel (0) target = $region253
            $region252: #{custom-call.5} parent=237 // pred_region
              loop: start=0, step=1, limit=1
              $region254: #{custom-call.5} parent=252 // loop_pre_header
                _
              $region255: #{custom-call.5} parent=252 // loop_header
                %s1099 = sphi 0, %s1103
                %p1100 = scmp.ge.s32.totalorder %s1099, 1
                %s1104 = sphi %s987, %s987
                %s1105 = sphi %s1077, %s1077
              $region256: #{custom-call.5} parent=252 // loop_header_branch
                %1102 = sbr.rel (%p1100) target = $region260
              $region257: #{custom-call.5} parent=252 // loop_body
                %v1106 = vld [vmem:[%s1104] sm:$0x3]
                %1107 = vst [vmem:[%s1105] sm:$0x3] %v1106
              $region258: #{custom-call.5} parent=252 // loop_footer
                %s1103 = sadd.s32 1, %s1099
              $region259: #{custom-call.5} parent=252 // loop_footer_branch
                %1098 = sbr.rel target = $region255
              $region260: #{custom-call.5} parent=252 // loop_exit
                _
            $region253: #{custom-call.5} parent=237 // pred_fallthru
              _
          $region238: #{custom-call.5} parent=233 // pred_fallthru
            _
          // Predicated region
          $region239: #{custom-call.5} parent=233 // pred_check
            _
          $region240: #{custom-call.5} parent=233 // pred_check_branch
            %1083 = sbr.rel (0) target = $region242
          $region241: #{custom-call.5} parent=233 // pred_region
            loop: start=0, step=1, limit=1
            $region243: #{custom-call.5} parent=241 // loop_pre_header
              _
            $region244: #{custom-call.5} parent=241 // loop_header
              %s1086 = sphi 0, %s1090
              %p1087 = scmp.ge.s32.totalorder %s1086, 1
              %s1091 = sphi %s987, %s987
              %s1092 = sphi %s1077, %s1077
            $region245: #{custom-call.5} parent=241 // loop_header_branch
              %1089 = sbr.rel (%p1087) target = $region249
            $region246: #{custom-call.5} parent=241 // loop_body
              %v1093 = vld [vmem:[%s1091] sm:$0x3]
              %1094 = vst [vmem:[%s1092] sm:$0x3] %v1093
            $region247: #{custom-call.5} parent=241 // loop_footer
              %s1090 = sadd.s32 1, %s1086
            $region248: #{custom-call.5} parent=241 // loop_footer_branch
              %1085 = sbr.rel target = $region244
            $region249: #{custom-call.5} parent=241 // loop_exit
              _
          $region242: #{custom-call.5} parent=233 // pred_fallthru
            _
        $region234: #{custom-call.5} parent=139 // pred_fallthru
          _
        %1108 = vnop
        %s1109 = smul.addr %s17, 2
        %s1110 = scalar_lea.vmem %s7, %s1109
        // Predicated region
        $region261: #{custom-call.5} parent=139 // pred_check
          _
        $region262: #{custom-call.5} parent=139 // pred_check_branch
          %1112 = sbr.rel (0) target = $region264
        $region263: #{custom-call.5} parent=139 // pred_region
          // Predicated region
          $region265: #{custom-call.5} parent=263 // pred_check
            _
          $region266: #{custom-call.5} parent=263 // pred_check_branch
            %1114 = sbr.rel target = $region268
          $region267: #{custom-call.5} parent=263 // pred_region
            // Predicated region
            $region280: #{custom-call.5} parent=267 // pred_check
              _
            $region281: #{custom-call.5} parent=267 // pred_check_branch
              %1129 = sbr.rel (0) target = $region283
            $region282: #{custom-call.5} parent=267 // pred_region
              loop: start=0, step=1, limit=1
              $region284: #{custom-call.5} parent=282 // loop_pre_header
                _
              $region285: #{custom-call.5} parent=282 // loop_header
                %s1132 = sphi 0, %s1136
                %p1133 = scmp.ge.s32.totalorder %s1132, 1
                %s1137 = sphi %s991, %s991
                %s1138 = sphi %s1110, %s1110
              $region286: #{custom-call.5} parent=282 // loop_header_branch
                %1135 = sbr.rel (%p1133) target = $region290
              $region287: #{custom-call.5} parent=282 // loop_body
                %v1139 = vld [vmem:[%s1137] sm:$0x3]
                %1140 = vst [vmem:[%s1138] sm:$0x3] %v1139
              $region288: #{custom-call.5} parent=282 // loop_footer
                %s1136 = sadd.s32 1, %s1132
              $region289: #{custom-call.5} parent=282 // loop_footer_branch
                %1131 = sbr.rel target = $region285
              $region290: #{custom-call.5} parent=282 // loop_exit
                _
            $region283: #{custom-call.5} parent=267 // pred_fallthru
              _
          $region268: #{custom-call.5} parent=263 // pred_fallthru
            _
          // Predicated region
          $region269: #{custom-call.5} parent=263 // pred_check
            _
          $region270: #{custom-call.5} parent=263 // pred_check_branch
            %1116 = sbr.rel (0) target = $region272
          $region271: #{custom-call.5} parent=263 // pred_region
            loop: start=0, step=1, limit=1
            $region273: #{custom-call.5} parent=271 // loop_pre_header
              _
            $region274: #{custom-call.5} parent=271 // loop_header
              %s1119 = sphi 0, %s1123
              %p1120 = scmp.ge.s32.totalorder %s1119, 1
              %s1124 = sphi %s991, %s991
              %s1125 = sphi %s1110, %s1110
            $region275: #{custom-call.5} parent=271 // loop_header_branch
              %1122 = sbr.rel (%p1120) target = $region279
            $region276: #{custom-call.5} parent=271 // loop_body
              %v1126 = vld [vmem:[%s1124] sm:$0x3]
              %1127 = vst [vmem:[%s1125] sm:$0x3] %v1126
            $region277: #{custom-call.5} parent=271 // loop_footer
              %s1123 = sadd.s32 1, %s1119
            $region278: #{custom-call.5} parent=271 // loop_footer_branch
              %1118 = sbr.rel target = $region274
            $region279: #{custom-call.5} parent=271 // loop_exit
              _
          $region272: #{custom-call.5} parent=263 // pred_fallthru
            _
        $region264: #{custom-call.5} parent=139 // pred_fallthru
          _
        %1141 = vnop
        %s1142 = smul.addr %s17, 2
        %s1143 = scalar_lea.vmem %s8, %s1142
        // Predicated region
        $region291: #{custom-call.5} parent=139 // pred_check
          _
        $region292: #{custom-call.5} parent=139 // pred_check_branch
          %1145 = sbr.rel (0) target = $region294
        $region293: #{custom-call.5} parent=139 // pred_region
          // Predicated region
          $region295: #{custom-call.5} parent=293 // pred_check
            _
          $region296: #{custom-call.5} parent=293 // pred_check_branch
            %1147 = sbr.rel target = $region298
          $region297: #{custom-call.5} parent=293 // pred_region
            // Predicated region
            $region310: #{custom-call.5} parent=297 // pred_check
              _
            $region311: #{custom-call.5} parent=297 // pred_check_branch
              %1162 = sbr.rel (0) target = $region313
            $region312: #{custom-call.5} parent=297 // pred_region
              loop: start=0, step=1, limit=1
              $region314: #{custom-call.5} parent=312 // loop_pre_header
                _
              $region315: #{custom-call.5} parent=312 // loop_header
                %s1165 = sphi 0, %s1169
                %p1166 = scmp.ge.s32.totalorder %s1165, 1
                %s1170 = sphi %s995, %s995
                %s1171 = sphi %s1143, %s1143
              $region316: #{custom-call.5} parent=312 // loop_header_branch
                %1168 = sbr.rel (%p1166) target = $region320
              $region317: #{custom-call.5} parent=312 // loop_body
                %v1172 = vld [vmem:[%s1170] sm:$0x3]
                %1173 = vst [vmem:[%s1171] sm:$0x3] %v1172
              $region318: #{custom-call.5} parent=312 // loop_footer
                %s1169 = sadd.s32 1, %s1165
              $region319: #{custom-call.5} parent=312 // loop_footer_branch
                %1164 = sbr.rel target = $region315
              $region320: #{custom-call.5} parent=312 // loop_exit
                _
            $region313: #{custom-call.5} parent=297 // pred_fallthru
              _
          $region298: #{custom-call.5} parent=293 // pred_fallthru
            _
          // Predicated region
          $region299: #{custom-call.5} parent=293 // pred_check
            _
          $region300: #{custom-call.5} parent=293 // pred_check_branch
            %1149 = sbr.rel (0) target = $region302
          $region301: #{custom-call.5} parent=293 // pred_region
            loop: start=0, step=1, limit=1
            $region303: #{custom-call.5} parent=301 // loop_pre_header
              _
            $region304: #{custom-call.5} parent=301 // loop_header
              %s1152 = sphi 0, %s1156
              %p1153 = scmp.ge.s32.totalorder %s1152, 1
              %s1157 = sphi %s995, %s995
              %s1158 = sphi %s1143, %s1143
            $region305: #{custom-call.5} parent=301 // loop_header_branch
              %1155 = sbr.rel (%p1153) target = $region309
            $region306: #{custom-call.5} parent=301 // loop_body
              %v1159 = vld [vmem:[%s1157] sm:$0x3]
              %1160 = vst [vmem:[%s1158] sm:$0x3] %v1159
            $region307: #{custom-call.5} parent=301 // loop_footer
              %s1156 = sadd.s32 1, %s1152
            $region308: #{custom-call.5} parent=301 // loop_footer_branch
              %1151 = sbr.rel target = $region304
            $region309: #{custom-call.5} parent=301 // loop_exit
              _
          $region302: #{custom-call.5} parent=293 // pred_fallthru
            _
        $region294: #{custom-call.5} parent=139 // pred_fallthru
          _
        %1174 = vnop
        %s1175 = smul.addr %s17, 2
        %s1176 = scalar_lea.vmem %s9, %s1175
        // Predicated region
        $region321: #{custom-call.5} parent=139 // pred_check
          _
        $region322: #{custom-call.5} parent=139 // pred_check_branch
          %1178 = sbr.rel (0) target = $region324
        $region323: #{custom-call.5} parent=139 // pred_region
          // Predicated region
          $region325: #{custom-call.5} parent=323 // pred_check
            _
          $region326: #{custom-call.5} parent=323 // pred_check_branch
            %1180 = sbr.rel target = $region328
          $region327: #{custom-call.5} parent=323 // pred_region
            // Predicated region
            $region340: #{custom-call.5} parent=327 // pred_check
              _
            $region341: #{custom-call.5} parent=327 // pred_check_branch
              %1195 = sbr.rel (0) target = $region343
            $region342: #{custom-call.5} parent=327 // pred_region
              loop: start=0, step=1, limit=1
              $region344: #{custom-call.5} parent=342 // loop_pre_header
                _
              $region345: #{custom-call.5} parent=342 // loop_header
                %s1198 = sphi 0, %s1202
                %p1199 = scmp.ge.s32.totalorder %s1198, 1
                %s1203 = sphi %s999, %s999
                %s1204 = sphi %s1176, %s1176
              $region346: #{custom-call.5} parent=342 // loop_header_branch
                %1201 = sbr.rel (%p1199) target = $region350
              $region347: #{custom-call.5} parent=342 // loop_body
                %v1205 = vld [vmem:[%s1203] sm:$0x3]
                %1206 = vst [vmem:[%s1204] sm:$0x3] %v1205
              $region348: #{custom-call.5} parent=342 // loop_footer
                %s1202 = sadd.s32 1, %s1198
              $region349: #{custom-call.5} parent=342 // loop_footer_branch
                %1197 = sbr.rel target = $region345
              $region350: #{custom-call.5} parent=342 // loop_exit
                _
            $region343: #{custom-call.5} parent=327 // pred_fallthru
              _
          $region328: #{custom-call.5} parent=323 // pred_fallthru
            _
          // Predicated region
          $region329: #{custom-call.5} parent=323 // pred_check
            _
          $region330: #{custom-call.5} parent=323 // pred_check_branch
            %1182 = sbr.rel (0) target = $region332
          $region331: #{custom-call.5} parent=323 // pred_region
            loop: start=0, step=1, limit=1
            $region333: #{custom-call.5} parent=331 // loop_pre_header
              _
            $region334: #{custom-call.5} parent=331 // loop_header
              %s1185 = sphi 0, %s1189
              %p1186 = scmp.ge.s32.totalorder %s1185, 1
              %s1190 = sphi %s999, %s999
              %s1191 = sphi %s1176, %s1176
            $region335: #{custom-call.5} parent=331 // loop_header_branch
              %1188 = sbr.rel (%p1186) target = $region339
            $region336: #{custom-call.5} parent=331 // loop_body
              %v1192 = vld [vmem:[%s1190] sm:$0x3]
              %1193 = vst [vmem:[%s1191] sm:$0x3] %v1192
            $region337: #{custom-call.5} parent=331 // loop_footer
              %s1189 = sadd.s32 1, %s1185
            $region338: #{custom-call.5} parent=331 // loop_footer_branch
              %1184 = sbr.rel target = $region334
            $region339: #{custom-call.5} parent=331 // loop_exit
              _
          $region332: #{custom-call.5} parent=323 // pred_fallthru
            _
        $region324: #{custom-call.5} parent=139 // pred_fallthru
          _
        %1207 = vnop
      $region140: #{custom-call.5} parent=5 // pred_fallthru
        _
      %p1208 = scmp.le.s32.totalorder 2, %s12
      // Predicated region
      $region351: #{custom-call.5} parent=5 // pred_check
        %p1209 = pneg %p1208
      $region352: #{custom-call.5} parent=5 // pred_check_branch
        %1211 = sbr.rel (%p1209) target = $region354
      $region353: #{custom-call.5} parent=5 // pred_region
        %s1212 = ssub.s32 %s12, 2
        // Predicated region
        $region355: #{custom-call.5} parent=353 // pred_check
          %p1213 = pneg %p43
        $region356: #{custom-call.5} parent=353 // pred_check_branch
          %1215 = sbr.rel (%p1213) target = $region358
        $region357: #{custom-call.5} parent=353 // pred_region
          %s1216 = sand.u32 %s28, 1
          %s1217 = sand.u32 %s28, 1
          %s1218 = smul.addr %s1217, 8
          %s1219 = scalar_lea.vmem [#allocation8], %s1218
        $region358: #{custom-call.5} parent=353 // pred_fallthru
          _
        // Predicated region
        $region359: #{custom-call.5} parent=353 // pred_check
          %p1220 = pneg %p71
        $region360: #{custom-call.5} parent=353 // pred_check_branch
          %1222 = sbr.rel (%p1220) target = $region362
        $region361: #{custom-call.5} parent=353 // pred_region
          %s1223 = sand.u32 %s56, 1
          %s1224 = sand.u32 %s56, 1
          %s1225 = smul.addr %s1224, 8
          %s1226 = scalar_lea.vmem [#allocation9], %s1225
        $region362: #{custom-call.5} parent=353 // pred_fallthru
          _
        %s1227 = sand.u32 %s18, 1
        %s1228 = sand.u32 %s18, 1
        %s1229 = smul.addr %s1228, 2
        %s1230 = scalar_lea.vmem [#allocation11], %s1229
        %s1231 = sand.u32 %s18, 1
        %s1232 = sand.u32 %s18, 1
        %s1233 = smul.addr %s1232, 2
        %s1234 = scalar_lea.vmem [#allocation13], %s1233
        %s1235 = sand.u32 %s18, 1
        %s1236 = sand.u32 %s18, 1
        %s1237 = smul.addr %s1236, 2
        %s1238 = scalar_lea.vmem [#allocation15], %s1237
        %s1239 = sand.u32 %s18, 1
        %s1240 = sand.u32 %s18, 1
        %s1241 = smul.addr %s1240, 2
        %s1242 = scalar_lea.vmem [#allocation17], %s1241
      $region354: #{custom-call.5} parent=5 // pred_fallthru
        _
    $region6: #{custom-call.5} parent=1 // loop_footer
      %s16 = sadd.s32 1, %s12
    $region7: #{custom-call.5} parent=1 // loop_footer_branch
      %11 = sbr.rel target = $region3
    $region8: #{custom-call.5} parent=1 // loop_exit
      _

// kernel: matt_forward.8
$region0: #{matt_forward.8}
  #allocation0 [shape = 'u32[]', space=smem, size = 0x4, offset = 0x4, fixed_abs, tag = 'smem constant byte address 0x4 - core index']
  #allocation1 [shape = 'u32[144,128]{1,0:T(1,128)}', space=vmem, size = 0x12000, scoped, tag = 'internal scratch']
  %s0 = inlined_call_operand.vmem [shape: f32[2,5,16], index: 0, kind: input, shape index: {}]
  %s1 = inlined_call_operand.vmem [shape: f32[2,5,16], index: 1, kind: input, shape index: {}]
  %s2 = inlined_call_operand.vmem [shape: f32[2,5,16], index: 2, kind: input, shape index: {}]
  %s3 = inlined_call_operand.vmem [shape: f32[2,5,16], index: 3, kind: output, shape index: {}]
  %s4 = sld [smem:[#allocation0]]
  $region45: #{matt_forward.8} parent=0
    _
  %s6 = ssub.s32 1, %s4
  %s7 = scalar_select 0, %s6, %s4
  loop: start=0, step=1, limit=4
  $region2: #{matt_forward.8} parent=0 // loop_pre_header
    _
  $region3: #{matt_forward.8} parent=0 // loop_header
    %s9 = sphi 0, %s13
    %p10 = scmp.ge.s32.totalorder %s9, 4
    %s19 = sphi 0, %s21
    %s22 = sphi 0, %s19
    %s23 = sphi 0, %s22
    %s39 = sphi 0, %s23
    %s45 = sphi 0, %s47
    %s48 = sphi 0, %s45
    %s49 = sphi 0, %s48
    %s65 = sphi 0, %s49
    %s71 = sphi 0, %s73
    %s74 = sphi 0, %s71
    %s75 = sphi 0, %s74
    %s91 = sphi 0, %s75
    %s97 = sphi 0, %s99
    %s100 = sphi 0, %s97
    %s101 = sphi 0, %s100
    %s117 = sphi 0, %s101
  $region4: #{matt_forward.8} parent=0 // loop_header_branch
    %12 = sbr.rel (%p10) target = $region8
  $region5: #{matt_forward.8} parent=0 // loop_body
    %s14 = ssub.s32 %s9, 1
    %s15 = ssub.s32 %s9, 2
    %s16 = sadd.s32 %s9, 1
    %s17 = ssub.s32 %s9, %s16
    %p18 = scmp.eq.s32.totalorder %s17, 0
    %s20 = sadd.s32 %s19, 1
    %s21 = scalar_select %p18, %s19, %s20
    %p24 = pneg %p18
    %p25 = scmp.eq.s32.totalorder %s9, 1
    %p26 = por %p24, %p25
    %p27 = scmp.ne.s32.totalorder %s19, %s22
    %p28 = scmp.eq.s32.totalorder %s9, 0
    %p29 = por %p27, %p28
    %p30 = scmp.ne.s32.totalorder %s19, %s22
    %p31 = scmp.eq.s32.totalorder %s14, 1
    %p32 = por %p30, %p31
    %p33 = scmp.ne.s32.totalorder %s22, %s23
    %p34 = scmp.eq.s32.totalorder %s14, 0
    %p35 = por %p33, %p34
    %p36 = scmp.ne.s32.totalorder %s22, %s23
    %p37 = scmp.eq.s32.totalorder %s15, 1
    %p38 = por %p36, %p37
    %p40 = scmp.ne.s32.totalorder %s23, %s39
    %p41 = scmp.eq.s32.totalorder %s15, 0
    %p42 = por %p40, %p41
    %s43 = ssub.s32 %s9, %s16
    %p44 = scmp.eq.s32.totalorder %s43, 0
    %s46 = sadd.s32 %s45, 1
    %s47 = scalar_select %p44, %s45, %s46
    %p50 = pneg %p44
    %p51 = scmp.eq.s32.totalorder %s9, 1
    %p52 = por %p50, %p51
    %p53 = scmp.ne.s32.totalorder %s45, %s48
    %p54 = scmp.eq.s32.totalorder %s9, 0
    %p55 = por %p53, %p54
    %p56 = scmp.ne.s32.totalorder %s45, %s48
    %p57 = scmp.eq.s32.totalorder %s14, 1
    %p58 = por %p56, %p57
    %p59 = scmp.ne.s32.totalorder %s48, %s49
    %p60 = scmp.eq.s32.totalorder %s14, 0
    %p61 = por %p59, %p60
    %p62 = scmp.ne.s32.totalorder %s48, %s49
    %p63 = scmp.eq.s32.totalorder %s15, 1
    %p64 = por %p62, %p63
    %p66 = scmp.ne.s32.totalorder %s49, %s65
    %p67 = scmp.eq.s32.totalorder %s15, 0
    %p68 = por %p66, %p67
    %s69 = ssub.s32 %s9, %s16
    %p70 = scmp.eq.s32.totalorder %s69, 0
    %s72 = sadd.s32 %s71, 1
    %s73 = scalar_select %p70, %s71, %s72
    %p76 = pneg %p70
    %p77 = scmp.eq.s32.totalorder %s9, 1
    %p78 = por %p76, %p77
    %p79 = scmp.ne.s32.totalorder %s71, %s74
    %p80 = scmp.eq.s32.totalorder %s9, 0
    %p81 = por %p79, %p80
    %p82 = scmp.ne.s32.totalorder %s71, %s74
    %p83 = scmp.eq.s32.totalorder %s14, 1
    %p84 = por %p82, %p83
    %p85 = scmp.ne.s32.totalorder %s74, %s75
    %p86 = scmp.eq.s32.totalorder %s14, 0
    %p87 = por %p85, %p86
    %p88 = scmp.ne.s32.totalorder %s74, %s75
    %p89 = scmp.eq.s32.totalorder %s15, 1
    %p90 = por %p88, %p89
    %p92 = scmp.ne.s32.totalorder %s75, %s91
    %p93 = scmp.eq.s32.totalorder %s15, 0
    %p94 = por %p92, %p93
    %s95 = ssub.s32 %s9, %s16
    %p96 = scmp.eq.s32.totalorder %s95, 0
    %s98 = sadd.s32 %s97, 1
    %s99 = scalar_select %p96, %s97, %s98
    %p102 = pneg %p96
    %p103 = scmp.eq.s32.totalorder %s9, 1
    %p104 = por %p102, %p103
    %p105 = scmp.ne.s32.totalorder %s97, %s100
    %p106 = scmp.eq.s32.totalorder %s9, 0
    %p107 = por %p105, %p106
    %p108 = scmp.ne.s32.totalorder %s97, %s100
    %p109 = scmp.eq.s32.totalorder %s14, 1
    %p110 = por %p108, %p109
    %p111 = scmp.ne.s32.totalorder %s100, %s101
    %p112 = scmp.eq.s32.totalorder %s14, 0
    %p113 = por %p111, %p112
    %p114 = scmp.ne.s32.totalorder %s100, %s101
    %p115 = scmp.eq.s32.totalorder %s15, 1
    %p116 = por %p114, %p115
    %p118 = scmp.ne.s32.totalorder %s101, %s117
    %p119 = scmp.eq.s32.totalorder %s15, 0
    %p120 = por %p118, %p119
    %p121 = scmp.le.s32.totalorder 1, %s9
    %p122 = scmp.lt.s32.totalorder %s9, 3
    %p123 = pnand %p121, %p122
    %p124 = pneg %p123
    // Predicated region
    $region9: #{matt_forward.8} parent=5 // pred_check
      _
    $region10: #{matt_forward.8} parent=5 // pred_check_branch
      %126 = sbr.rel (%p123) target = $region12
    $region11: #{matt_forward.8} parent=5 // pred_region
      %s127 = ssub.s32 %s9, 1
    $region12: #{matt_forward.8} parent=5 // pred_fallthru
      _
    %p128 = scmp.lt.s32.totalorder %s9, 2
    // Predicated region
    $region13: #{matt_forward.8} parent=5 // pred_check
      %p129 = pneg %p128
    $region14: #{matt_forward.8} parent=5 // pred_check_branch
      %131 = sbr.rel (%p129) target = $region16
    $region15: #{matt_forward.8} parent=5 // pred_region
      // Predicated region
      $region17: #{matt_forward.8} parent=15 // pred_check
        %p132 = pneg %p29
      $region18: #{matt_forward.8} parent=15 // pred_check_branch
        %134 = sbr.rel (%p132) target = $region20
      $region19: #{matt_forward.8} parent=15 // pred_region
        %p135 = scmp.lt.s32.totalorder %s9, 1
        %s136 = scalar_select %p135, %s9, 1
        %s137 = smul.addr %s136, 8
        %s138 = scalar_lea.vmem %s0, %s137
      $region20: #{matt_forward.8} parent=15 // pred_fallthru
        _
      // Predicated region
      $region21: #{matt_forward.8} parent=15 // pred_check
        %p139 = pneg %p55
      $region22: #{matt_forward.8} parent=15 // pred_check_branch
        %141 = sbr.rel (%p139) target = $region24
      $region23: #{matt_forward.8} parent=15 // pred_region
        %p142 = scmp.lt.s32.totalorder %s9, 1
        %s143 = scalar_select %p142, %s9, 1
        %s144 = smul.addr %s143, 8
        %s145 = scalar_lea.vmem %s1, %s144
      $region24: #{matt_forward.8} parent=15 // pred_fallthru
        _
      // Predicated region
      $region25: #{matt_forward.8} parent=15 // pred_check
        %p146 = pneg %p81
      $region26: #{matt_forward.8} parent=15 // pred_check_branch
        %148 = sbr.rel (%p146) target = $region28
      $region27: #{matt_forward.8} parent=15 // pred_region
        %p149 = scmp.lt.s32.totalorder %s9, 1
        %s150 = scalar_select %p149, %s9, 1
        %s151 = smul.addr %s150, 8
        %s152 = scalar_lea.vmem %s2, %s151
      $region28: #{matt_forward.8} parent=15 // pred_fallthru
        _
    $region16: #{matt_forward.8} parent=5 // pred_fallthru
      _
    %p153 = scmp.le.s32.totalorder 1, %s9
    %p154 = scmp.lt.s32.totalorder %s9, 3
    %p155 = pnand %p153, %p154
    %p156 = pneg %p155
    // Predicated region
    $region29: #{matt_forward.8} parent=5 // pred_check
      _
    $region30: #{matt_forward.8} parent=5 // pred_check_branch
      %158 = sbr.rel (%p155) target = $region32
    $region31: #{matt_forward.8} parent=5 // pred_region
      %s159 = ssub.s32 %s9, 1
      %p160 = scmp.lt.s32.totalorder %s14, 1
      %s161 = scalar_select %p160, %s14, 1
      %s162 = smul.addr %s161, 8
      %s163 = scalar_lea.vmem %s0, %s162
      %p164 = pneg %p35
      %p165 = pneg %p32
      %p166 = scmp.lt.s32.totalorder %s14, 1
      %s167 = scalar_select %p166, %s14, 1
      %s168 = smul.addr %s167, 8
      %s169 = scalar_lea.vmem %s1, %s168
      %p170 = pneg %p61
      %p171 = pneg %p58
      %p172 = scmp.lt.s32.totalorder %s14, 1
      %s173 = scalar_select %p172, %s14, 1
      %s174 = smul.addr %s173, 8
      %s175 = scalar_lea.vmem %s2, %s174
      %p176 = pneg %p87
      %p177 = pneg %p84
      %p178 = pneg %p113
      %p179 = pneg %p110
      %p180 = scmp.lt.s32.totalorder %s14, 1
      %s181 = scalar_select %p180, %s14, 1
      %s182 = smul.addr %s181, 8
      %s183 = scalar_lea.vmem %s3, %s182
      %p184 = scmp.lt.s32.totalorder %s14, 1
      %s185 = scalar_select %p184, %s14, 1
      %s186 = smul.addr %s185, 8
      %s187 = scalar_lea.vmem %s0, %s186
      %p188 = scmp.lt.s32.totalorder %s14, 1
      %s189 = scalar_select %p188, %s14, 1
      %s190 = smul.addr %s189, 8
      %s191 = scalar_lea.vmem %s1, %s190
      %p192 = scmp.lt.s32.totalorder %s14, 1
      %s193 = scalar_select %p192, %s14, 1
      %s194 = smul.addr %s193, 8
      %s195 = scalar_lea.vmem %s2, %s194
      %p196 = scmp.lt.s32.totalorder %s14, 1
      %s197 = scalar_select %p196, %s14, 1
      %s198 = smul.addr %s197, 8
      %s199 = scalar_lea.vmem %s3, %s198
      %v200 = vld [vmem:[%s187] sm:$0x1f]
      %v201 = vld [vmem:[%s191] sm:$0x1f]
      %v202 = vld [vmem:[%s195] sm:$0x1f]
      %v203 = vmul.f32 %v200, %v200
      %vm204 = vcmask 126976
      %v205 = vsel %vm204, %v203, 0.0
      %206 = vadd.xlane.f32.xlu0 %v205
      %v207 = vpop.xlane.xlu0 %206
      %v208 = vmul.f32 %v201, %v201
      %v209 = vsel %vm204, %v208, 0.0
      %210 = vadd.xlane.f32.xlu0 %v209
      %v211 = vpop.xlane.xlu0 %210
      %vm212 = vcmask 130048
      %v214 = vsel %vm212, %v200, 0
      %v217 = vsel %vm212, %v201, 0
      %219 = vmatprep.subr.mxu0 0.0
      %220 = vmatpush1.xpose.msra.mxu0 %v217
      %221 = vmatprep.subr.mxu0 0.0
      %222 = vmatpush1.xpose.msra.mxu0 0.0
      %223 = vmatprep.subr.mxu0 0.0
      %224 = vmatpush1.xpose.msra.mxu0 0.0
      %225 = vmatprep.subr.mxu0 0.0
      %226 = vmatpush1.xpose.msra.mxu0 0.0
      %227 = vmatprep.subr.mxu0 0.0
      %228 = vmatpush1.xpose.msra.mxu0 0.0
      %229 = vmatprep.subr.mxu0 0.0
      %230 = vmatpush1.xpose.msra.mxu0 0.0
      %231 = vmatprep.subr.mxu0 0.0
      %232 = vmatpush1.xpose.msra.mxu0 0.0
      %233 = vmatprep.subr.mxu0 0.0
      %234 = vmatpush1.xpose.msra.mxu0 0.0
      %235 = vmatprep.subr.mxu0 0.0
      %236 = vmatpush1.xpose.msra.mxu0 0.0
      %237 = vmatprep.subr.mxu0 0.0
      %238 = vmatpush1.xpose.msra.mxu0 0.0
      %239 = vmatprep.subr.mxu0 0.0
      %240 = vmatpush1.xpose.msra.mxu0 0.0
      %241 = vmatprep.subr.mxu0 0.0
      %242 = vmatpush1.xpose.msra.mxu0 0.0
      %243 = vmatprep.subr.mxu0 0.0
      %244 = vmatpush1.xpose.msra.mxu0 0.0
      %245 = vmatprep.subr.mxu0 0.0
      %246 = vmatpush1.xpose.msra.mxu0 0.0
      %247 = vmatprep.subr.mxu0 0.0
      %248 = vmatpush1.xpose.msra.mxu0 0.0
      %249 = vmatprep.subr.mxu0 0.0
      %250 = vmatpush1.xpose.msra.mxu0 0.0
      %251 = vmatprep.subr.mxu0 0.0
      %252 = vmatpush1.xpose.msra.mxu0 0.0
      %253 = vmatprep.subr.mxu0 0.0
      %254 = vmatpush1.xpose.msra.mxu0 0.0
      %255 = vmatprep.subr.mxu0 0.0
      %256 = vmatpush1.xpose.msra.mxu0 0.0
      %257 = vmatprep.subr.mxu0 0.0
      %258 = vmatpush1.xpose.msra.mxu0 0.0
      %259 = vmatprep.subr.mxu0 0.0
      %260 = vmatpush1.xpose.msra.mxu0 0.0
      %261 = vmatprep.subr.mxu0 0.0
      %262 = vmatpush1.xpose.msra.mxu0 0.0
      %263 = vmatprep.subr.mxu0 0.0
      %264 = vmatpush1.xpose.msra.mxu0 0.0
      %265 = vmatprep.subr.mxu0 0.0
      %266 = vmatpush1.xpose.msra.mxu0 0.0
      %267 = vmatprep.subr.mxu0 0.0
      %268 = vmatpush1.xpose.msra.mxu0 0.0
      %269 = vmatprep.subr.mxu0 0.0
      %270 = vmatpush1.xpose.msra.mxu0 0.0
      %271 = vmatprep.subr.mxu0 0.0
      %272 = vmatpush1.xpose.msra.mxu0 0.0
      %273 = vmatprep.subr.mxu0 0.0
      %274 = vmatpush1.xpose.msra.mxu0 0.0
      %275 = vmatprep.subr.mxu0 0.0
      %276 = vmatpush1.xpose.msra.mxu0 0.0
      %277 = vmatprep.subr.mxu0 0.0
      %278 = vmatpush1.xpose.msra.mxu0 0.0
      %279 = vmatprep.subr.mxu0 0.0
      %280 = vmatpush1.xpose.msra.mxu0 0.0
      %281 = vmatprep.subr.mxu0 0.0
      %282 = vmatpush1.xpose.msra.mxu0 0.0
      %283 = vmatprep.mubr.f32.mxu0 0.0
      %284 = vmatmul.mubr.f32.gmra.mrb[0].mxu0 %v214
      %v285 = vpop.f32.mrb[0].mxu0
      %v286 = vadd.f32 0.0, %v285
      %v287 = vpop.f32.mrb[0].mxu0
      %288 = vdwg.mxu0
      %289 = vxpose.xlu0.b32.start [1/16] %v211, 128
      %290 = vxpose.xlu0.b32.cont [2/16] 0.0, 128
      %291 = vxpose.xlu0.b32.cont [3/16] 0.0, 128
      %292 = vxpose.xlu0.b32.cont [4/16] 0.0, 128
      %293 = vxpose.xlu0.b32.cont [5/16] 0.0, 128
      %294 = vxpose.xlu0.b32.cont [6/16] 0.0, 128
      %295 = vxpose.xlu0.b32.cont [7/16] 0.0, 128
      %296 = vxpose.xlu0.b32.cont [8/16] 0.0, 128
      %297 = vxpose.xlu0.b32.cont [9/16] 0.0, 128
      %298 = vxpose.xlu0.b32.cont [10/16] 0.0, 128
      %299 = vxpose.xlu0.b32.cont [11/16] 0.0, 128
      %300 = vxpose.xlu0.b32.cont [12/16] 0.0, 128
      %301 = vxpose.xlu0.b32.cont [13/16] 0.0, 128
      %302 = vxpose.xlu0.b32.cont [14/16] 0.0, 128
      %303 = vxpose.xlu0.b32.cont [15/16] 0.0, 128
      %304 = vxpose.xlu0.b32.end [16/16] 0.0, 128
      %v305 = vpop.trf.xlu0
      %v306 = vpop.trf.xlu0
      %v307 = vpop.trf.xlu0
      %v308 = vpop.trf.xlu0
      %v309 = vpop.trf.xlu0
      %v310 = vpop.trf.xlu0
      %v311 = vpop.trf.xlu0
      %v312 = vpop.trf.xlu0
      %v313 = vpop.trf.xlu0
      %v314 = vpop.trf.xlu0
      %v315 = vpop.trf.xlu0
      %v316 = vpop.trf.xlu0
      %v317 = vpop.trf.xlu0
      %v318 = vpop.trf.xlu0
      %v319 = vpop.trf.xlu0
      %v320 = vpop.trf.xlu0
      %v321 = vlaneseq
      %v322 = vshrl.u32 %v321, 7
      %v323 = vsub.s32 0, %v322
      %v324 = vrot.slane %v305, %v323
      %v325 = vadd.f32 %v207, %v324
      %v326 = vmul.f32 %v286, 2.0
      %v327 = vsub.f32 %v325, %v326
      %v328 = vmax.f32 %v327, 0.0
      %v329 = vadd.f32 %v328, 1.0
      %v330 = vlog2.pop %v329
      %v331 = vmul.f32 %v330, 0.6931472
      %v332 = vadd.f32 %v331, 1.0
      %v333 = vrcp.pop %v332
      %v334 = vmul.f32 1.0, %v333
      %vm335 = vcmask 36864
      %v336 = vsel %vm335, %v334, -inf
      %337 = vmax.xlane.f32.xlu0 %v336
      %v338 = vpop.xlane.xlu0 %337
      %v339 = vsub.f32 %v334, %v338
      %v340 = vmul.f32 %v339, 1.442695
      %v341 = vpow.pop %v340
      %v342 = vsel %vm335, %v341, 0.0
      %343 = vadd.xlane.f32.xlu0 %v342
      %v344 = vpop.xlane.xlu0 %343
      %v345 = vrcp.pop %v344
      %v346 = vmul.f32 %v341, %v345
      %vm347 = vcmask 39936
      %v349 = vsel %vm347, %v346, 0
      %vm351 = vcmask 1044480
      %v353 = vsel %vm351, %v202, 0
      %355 = vmatprep.subr.mxu0 0.0
      %356 = vmatpush1.msra.mxu0 %v353
      %357 = vmatprep.subr.mxu0 0.0
      %358 = vmatpush1.msra.mxu0 0.0
      %359 = vmatprep.subr.mxu0 0.0
      %360 = vmatpush1.msra.mxu0 0.0
      %361 = vmatprep.subr.mxu0 0.0
      %362 = vmatpush1.msra.mxu0 0.0
      %363 = vmatprep.subr.mxu0 0.0
      %364 = vmatpush1.msra.mxu0 0.0
      %365 = vmatprep.subr.mxu0 0.0
      %366 = vmatpush1.msra.mxu0 0.0
      %367 = vmatprep.subr.mxu0 0.0
      %368 = vmatpush1.msra.mxu0 0.0
      %369 = vmatprep.subr.mxu0 0.0
      %370 = vmatpush1.msra.mxu0 0.0
      %371 = vmatprep.subr.mxu0 0.0
      %372 = vmatpush1.msra.mxu0 0.0
      %373 = vmatprep.subr.mxu0 0.0
      %374 = vmatpush1.msra.mxu0 0.0
      %375 = vmatprep.subr.mxu0 0.0
      %376 = vmatpush1.msra.mxu0 0.0
      %377 = vmatprep.subr.mxu0 0.0
      %378 = vmatpush1.msra.mxu0 0.0
      %379 = vmatprep.subr.mxu0 0.0
      %380 = vmatpush1.msra.mxu0 0.0
      %381 = vmatprep.subr.mxu0 0.0
      %382 = vmatpush1.msra.mxu0 0.0
      %383 = vmatprep.subr.mxu0 0.0
      %384 = vmatpush1.msra.mxu0 0.0
      %385 = vmatprep.subr.mxu0 0.0
      %386 = vmatpush1.msra.mxu0 0.0
      %387 = vmatprep.subr.mxu0 0.0
      %388 = vmatpush1.msra.mxu0 0.0
      %389 = vmatprep.subr.mxu0 0.0
      %390 = vmatpush1.msra.mxu0 0.0
      %391 = vmatprep.subr.mxu0 0.0
      %392 = vmatpush1.msra.mxu0 0.0
      %393 = vmatprep.subr.mxu0 0.0
      %394 = vmatpush1.msra.mxu0 0.0
      %395 = vmatprep.subr.mxu0 0.0
      %396 = vmatpush1.msra.mxu0 0.0
      %397 = vmatprep.subr.mxu0 0.0
      %398 = vmatpush1.msra.mxu0 0.0
      %399 = vmatprep.subr.mxu0 0.0
      %400 = vmatpush1.msra.mxu0 0.0
      %401 = vmatprep.subr.mxu0 0.0
      %402 = vmatpush1.msra.mxu0 0.0
      %403 = vmatprep.subr.mxu0 0.0
      %404 = vmatpush1.msra.mxu0 0.0
      %405 = vmatprep.subr.mxu0 0.0
      %406 = vmatpush1.msra.mxu0 0.0
      %407 = vmatprep.subr.mxu0 0.0
      %408 = vmatpush1.msra.mxu0 0.0
      %409 = vmatprep.subr.mxu0 0.0
      %410 = vmatpush1.msra.mxu0 0.0
      %411 = vmatprep.subr.mxu0 0.0
      %412 = vmatpush1.msra.mxu0 0.0
      %413 = vmatprep.subr.mxu0 0.0
      %414 = vmatpush1.msra.mxu0 0.0
      %415 = vmatprep.subr.mxu0 0.0
      %416 = vmatpush1.msra.mxu0 0.0
      %417 = vmatprep.subr.mxu0 0.0
      %418 = vmatpush1.msra.mxu0 0.0
      %419 = vmatprep.mubr.f32.mxu0 0.0
      %420 = vmatmul.mubr.f32.gmra.mrb[0].mxu0 %v349
      %v421 = vpop.f32.mrb[0].mxu0
      %v422 = vadd.f32 0.0, %v421
      %v423 = vpop.f32.mrb[0].mxu0
      %424 = vdwg.mxu0
      %425 = vst.msk [vmem:[%s199] sm:$0x1f] %vm204, %v422
      %p426 = scmp.lt.s32.totalorder %s14, 1
      %s427 = scalar_select %p426, %s14, 1
      %s428 = smul.addr %s427, 8
      %s429 = scalar_lea.vmem %s3, %s428
      // Predicated region
      $region33: #{matt_forward.8} parent=31 // pred_check
        %p430 = pneg %p110
      $region34: #{matt_forward.8} parent=31 // pred_check_branch
        %432 = sbr.rel (%p430) target = $region36
      $region35: #{matt_forward.8} parent=31 // pred_region
        _
      $region36: #{matt_forward.8} parent=31 // pred_fallthru
        _
    $region32: #{matt_forward.8} parent=5 // pred_fallthru
      _
    %p433 = scmp.le.s32.totalorder 2, %s9
    // Predicated region
    $region37: #{matt_forward.8} parent=5 // pred_check
      %p434 = pneg %p433
    $region38: #{matt_forward.8} parent=5 // pred_check_branch
      %436 = sbr.rel (%p434) target = $region40
    $region39: #{matt_forward.8} parent=5 // pred_region
      %s437 = ssub.s32 %s9, 2
      // Predicated region
      $region41: #{matt_forward.8} parent=39 // pred_check
        %p438 = pneg %p116
      $region42: #{matt_forward.8} parent=39 // pred_check_branch
        %440 = sbr.rel (%p438) target = $region44
      $region43: #{matt_forward.8} parent=39 // pred_region
        %p441 = scmp.lt.s32.totalorder %s15, 1
        %s442 = scalar_select %p441, %s15, 1
        %s443 = smul.addr %s442, 8
        %s444 = scalar_lea.vmem %s3, %s443
      $region44: #{matt_forward.8} parent=39 // pred_fallthru
        _
    $region40: #{matt_forward.8} parent=5 // pred_fallthru
      _
  $region6: #{matt_forward.8} parent=0 // loop_footer
    %s13 = sadd.s32 1, %s9
  $region7: #{matt_forward.8} parent=0 // loop_footer_branch
    %8 = sbr.rel target = $region3
  $region8: #{matt_forward.8} parent=0 // loop_exit
    _

// kernel: matt_forward.7
$region0: #{matt_forward.7}
  #allocation0 [shape = 'u32[]', space=smem, size = 0x4, offset = 0x4, fixed_abs, tag = 'smem constant byte address 0x4 - core index']
  #allocation1 [shape = 'u32[144,128]{1,0:T(1,128)}', space=vmem, size = 0x12000, scoped, tag = 'internal scratch']
  %s0 = inlined_call_operand.vmem [shape: f32[30,4,4], index: 0, kind: input, shape index: {}]
  %s1 = inlined_call_operand.vmem [shape: f32[30,1,4], index: 1, kind: input, shape index: {}]
  %s2 = inlined_call_operand.vmem [shape: f32[30,4,4], index: 2, kind: output, shape index: {}]
  %s3 = sld [smem:[#allocation0]]
  $region41: #{matt_forward.7} parent=0
    _
  %s5 = ssub.s32 1, %s3
  %s6 = scalar_select 0, %s5, %s3
  loop: start=0, step=1, limit=4
  $region2: #{matt_forward.7} parent=0 // loop_pre_header
    _
  $region3: #{matt_forward.7} parent=0 // loop_header
    %s8 = sphi 0, %s12
    %p9 = scmp.ge.s32.totalorder %s8, 4
    %s18 = sphi 0, %s20
    %s21 = sphi 0, %s18
    %s22 = sphi 0, %s21
    %s38 = sphi 0, %s22
    %s44 = sphi 0, %s46
    %s47 = sphi 0, %s44
    %s48 = sphi 0, %s47
    %s64 = sphi 0, %s48
    %s70 = sphi 0, %s72
    %s73 = sphi 0, %s70
    %s74 = sphi 0, %s73
    %s90 = sphi 0, %s74
  $region4: #{matt_forward.7} parent=0 // loop_header_branch
    %11 = sbr.rel (%p9) target = $region8
  $region5: #{matt_forward.7} parent=0 // loop_body
    %s13 = ssub.s32 %s8, 1
    %s14 = ssub.s32 %s8, 2
    %s15 = sadd.s32 %s8, 1
    %s16 = ssub.s32 %s8, %s15
    %p17 = scmp.eq.s32.totalorder %s16, 0
    %s19 = sadd.s32 %s18, 1
    %s20 = scalar_select %p17, %s18, %s19
    %p23 = pneg %p17
    %p24 = scmp.eq.s32.totalorder %s8, 1
    %p25 = por %p23, %p24
    %p26 = scmp.ne.s32.totalorder %s18, %s21
    %p27 = scmp.eq.s32.totalorder %s8, 0
    %p28 = por %p26, %p27
    %p29 = scmp.ne.s32.totalorder %s18, %s21
    %p30 = scmp.eq.s32.totalorder %s13, 1
    %p31 = por %p29, %p30
    %p32 = scmp.ne.s32.totalorder %s21, %s22
    %p33 = scmp.eq.s32.totalorder %s13, 0
    %p34 = por %p32, %p33
    %p35 = scmp.ne.s32.totalorder %s21, %s22
    %p36 = scmp.eq.s32.totalorder %s14, 1
    %p37 = por %p35, %p36
    %p39 = scmp.ne.s32.totalorder %s22, %s38
    %p40 = scmp.eq.s32.totalorder %s14, 0
    %p41 = por %p39, %p40
    %s42 = ssub.s32 %s8, %s15
    %p43 = scmp.eq.s32.totalorder %s42, 0
    %s45 = sadd.s32 %s44, 1
    %s46 = scalar_select %p43, %s44, %s45
    %p49 = pneg %p43
    %p50 = scmp.eq.s32.totalorder %s8, 1
    %p51 = por %p49, %p50
    %p52 = scmp.ne.s32.totalorder %s44, %s47
    %p53 = scmp.eq.s32.totalorder %s8, 0
    %p54 = por %p52, %p53
    %p55 = scmp.ne.s32.totalorder %s44, %s47
    %p56 = scmp.eq.s32.totalorder %s13, 1
    %p57 = por %p55, %p56
    %p58 = scmp.ne.s32.totalorder %s47, %s48
    %p59 = scmp.eq.s32.totalorder %s13, 0
    %p60 = por %p58, %p59
    %p61 = scmp.ne.s32.totalorder %s47, %s48
    %p62 = scmp.eq.s32.totalorder %s14, 1
    %p63 = por %p61, %p62
    %p65 = scmp.ne.s32.totalorder %s48, %s64
    %p66 = scmp.eq.s32.totalorder %s14, 0
    %p67 = por %p65, %p66
    %s68 = ssub.s32 %s8, %s15
    %p69 = scmp.eq.s32.totalorder %s68, 0
    %s71 = sadd.s32 %s70, 1
    %s72 = scalar_select %p69, %s70, %s71
    %p75 = pneg %p69
    %p76 = scmp.eq.s32.totalorder %s8, 1
    %p77 = por %p75, %p76
    %p78 = scmp.ne.s32.totalorder %s70, %s73
    %p79 = scmp.eq.s32.totalorder %s8, 0
    %p80 = por %p78, %p79
    %p81 = scmp.ne.s32.totalorder %s70, %s73
    %p82 = scmp.eq.s32.totalorder %s13, 1
    %p83 = por %p81, %p82
    %p84 = scmp.ne.s32.totalorder %s73, %s74
    %p85 = scmp.eq.s32.totalorder %s13, 0
    %p86 = por %p84, %p85
    %p87 = scmp.ne.s32.totalorder %s73, %s74
    %p88 = scmp.eq.s32.totalorder %s14, 1
    %p89 = por %p87, %p88
    %p91 = scmp.ne.s32.totalorder %s74, %s90
    %p92 = scmp.eq.s32.totalorder %s14, 0
    %p93 = por %p91, %p92
    %p94 = scmp.le.s32.totalorder 1, %s8
    %p95 = scmp.lt.s32.totalorder %s8, 3
    %p96 = pnand %p94, %p95
    %p97 = pneg %p96
    // Predicated region
    $region9: #{matt_forward.7} parent=5 // pred_check
      _
    $region10: #{matt_forward.7} parent=5 // pred_check_branch
      %99 = sbr.rel (%p96) target = $region12
    $region11: #{matt_forward.7} parent=5 // pred_region
      %s100 = ssub.s32 %s8, 1
    $region12: #{matt_forward.7} parent=5 // pred_fallthru
      _
    %p101 = scmp.lt.s32.totalorder %s8, 2
    // Predicated region
    $region13: #{matt_forward.7} parent=5 // pred_check
      %p102 = pneg %p101
    $region14: #{matt_forward.7} parent=5 // pred_check_branch
      %104 = sbr.rel (%p102) target = $region16
    $region15: #{matt_forward.7} parent=5 // pred_region
      // Predicated region
      $region17: #{matt_forward.7} parent=15 // pred_check
        %p105 = pneg %p28
      $region18: #{matt_forward.7} parent=15 // pred_check_branch
        %107 = sbr.rel (%p105) target = $region20
      $region19: #{matt_forward.7} parent=15 // pred_region
        %s108 = smul.u32 15, %s8
        %p109 = scmp.lt.s32.totalorder %s108, 29
        %s110 = scalar_select %p109, %s108, 29
        %s111 = smul.addr %s110, 4
        %s112 = scalar_lea.vmem %s0, %s111
        %s113 = smul.u32 15, %s8
      $region20: #{matt_forward.7} parent=15 // pred_fallthru
        _
      // Predicated region
      $region21: #{matt_forward.7} parent=15 // pred_check
        %p114 = pneg %p54
      $region22: #{matt_forward.7} parent=15 // pred_check_branch
        %116 = sbr.rel (%p114) target = $region24
      $region23: #{matt_forward.7} parent=15 // pred_region
        %s117 = smul.u32 15, %s8
        %p118 = scmp.lt.s32.totalorder %s117, 29
        %s119 = scalar_select %p118, %s117, 29
        %s120 = scalar_lea.vmem %s1, %s119
        %s121 = smul.u32 15, %s8
      $region24: #{matt_forward.7} parent=15 // pred_fallthru
        _
    $region16: #{matt_forward.7} parent=5 // pred_fallthru
      _
    %p122 = scmp.le.s32.totalorder 1, %s8
    %p123 = scmp.lt.s32.totalorder %s8, 3
    %p124 = pnand %p122, %p123
    %p125 = pneg %p124
    // Predicated region
    $region25: #{matt_forward.7} parent=5 // pred_check
      _
    $region26: #{matt_forward.7} parent=5 // pred_check_branch
      %127 = sbr.rel (%p124) target = $region28
    $region27: #{matt_forward.7} parent=5 // pred_region
      %s128 = ssub.s32 %s8, 1
      %s129 = smul.u32 15, %s13
      %p130 = scmp.lt.s32.totalorder %s129, 29
      %s131 = scalar_select %p130, %s129, 29
      %s132 = smul.addr %s131, 4
      %s133 = scalar_lea.vmem %s0, %s132
      %p134 = pneg %p34
      %p135 = pneg %p31
      %s136 = smul.u32 15, %s13
      %p137 = scmp.lt.s32.totalorder %s136, 29
      %s138 = scalar_select %p137, %s136, 29
      %s139 = scalar_lea.vmem %s1, %s138
      %p140 = pneg %p60
      %p141 = pneg %p57
      %p142 = pneg %p86
      %p143 = pneg %p83
      %s144 = smul.u32 15, %s13
      %p145 = scmp.lt.s32.totalorder %s144, 29
      %s146 = scalar_select %p145, %s144, 29
      %s147 = smul.addr %s146, 4
      %s148 = scalar_lea.vmem %s2, %s147
      %s149 = smul.u32 15, %s13
      %p150 = scmp.lt.s32.totalorder %s149, 29
      %s151 = scalar_select %p150, %s149, 29
      %s152 = smul.addr %s151, 4
      %s153 = scalar_lea.vmem %s0, %s152
      %s154 = smul.u32 15, %s13
      %s155 = smul.u32 15, %s13
      %p156 = scmp.lt.s32.totalorder %s155, 29
      %s157 = scalar_select %p156, %s155, 29
      %s158 = scalar_lea.vmem %s1, %s157
      %s159 = smul.u32 15, %s13
      %s160 = smul.u32 15, %s13
      %p161 = scmp.lt.s32.totalorder %s160, 29
      %s162 = scalar_select %p161, %s160, 29
      %s163 = smul.addr %s162, 4
      %s164 = scalar_lea.vmem %s2, %s163
      %s165 = smul.u32 15, %s13
      %v166 = vld [vmem:[%s153] sm:$0xf]
      %v167 = vld [vmem:[%s153 + $0x4] sm:$0xf]
      %v168 = vld [vmem:[%s153 + $0x8] sm:$0xf]
      %v169 = vld [vmem:[%s153 + $0xc] sm:$0xf]
      %v170 = vld [vmem:[%s153 + $0x10] sm:$0xf]
      %v171 = vld [vmem:[%s153 + $0x14] sm:$0xf]
      %v172 = vld [vmem:[%s153 + $0x18] sm:$0xf]
      %v173 = vld [vmem:[%s153 + $0x1c] sm:$0xf]
      %v174 = vld [vmem:[%s153 + $0x20] sm:$0xf]
      %v175 = vld [vmem:[%s153 + $0x24] sm:$0xf]
      %v176 = vld [vmem:[%s153 + $0x28] sm:$0xf]
      %v177 = vld [vmem:[%s153 + $0x2c] sm:$0xf]
      %v178 = vld [vmem:[%s153 + $0x30] sm:$0xf]
      %v179 = vld [vmem:[%s153 + $0x34] sm:$0xf]
      %v180 = vld [vmem:[%s153 + $0x38] sm:$0xf]
      %v181 = vld [vmem:[%s158] sm:$0x1]
      %v182 = vld [vmem:[%s158 + $0x1] sm:$0x1]
      %v183 = vld [vmem:[%s158 + $0x2] sm:$0x1]
      %v184 = vld [vmem:[%s158 + $0x3] sm:$0x1]
      %v185 = vld [vmem:[%s158 + $0x4] sm:$0x1]
      %v186 = vld [vmem:[%s158 + $0x5] sm:$0x1]
      %v187 = vld [vmem:[%s158 + $0x6] sm:$0x1]
      %v188 = vld [vmem:[%s158 + $0x7] sm:$0x1]
      %v189 = vld [vmem:[%s158 + $0x8] sm:$0x1]
      %v190 = vld [vmem:[%s158 + $0x9] sm:$0x1]
      %v191 = vld [vmem:[%s158 + $0xa] sm:$0x1]
      %v192 = vld [vmem:[%s158 + $0xb] sm:$0x1]
      %v193 = vld [vmem:[%s158 + $0xc] sm:$0x1]
      %v194 = vld [vmem:[%s158 + $0xd] sm:$0x1]
      %v195 = vld [vmem:[%s158 + $0xe] sm:$0x1]
      %v211 = vlaneseq
      %v212 = vshrl.u32 %v211, 7
      %v213 = vsub.s32 0, %v212
      %v214 = vrot.slane %v181, %v213
      %v215 = vlaneseq
      %v216 = vshrl.u32 %v215, 7
      %v217 = vsub.s32 0, %v216
      %v218 = vrot.slane %v182, %v217
      %v219 = vlaneseq
      %v220 = vshrl.u32 %v219, 7
      %v221 = vsub.s32 0, %v220
      %v222 = vrot.slane %v183, %v221
      %v223 = vlaneseq
      %v224 = vshrl.u32 %v223, 7
      %v225 = vsub.s32 0, %v224
      %v226 = vrot.slane %v184, %v225
      %v227 = vlaneseq
      %v228 = vshrl.u32 %v227, 7
      %v229 = vsub.s32 0, %v228
      %v230 = vrot.slane %v185, %v229
      %v231 = vlaneseq
      %v232 = vshrl.u32 %v231, 7
      %v233 = vsub.s32 0, %v232
      %v234 = vrot.slane %v186, %v233
      %v235 = vlaneseq
      %v236 = vshrl.u32 %v235, 7
      %v237 = vsub.s32 0, %v236
      %v238 = vrot.slane %v187, %v237
      %v239 = vlaneseq
      %v240 = vshrl.u32 %v239, 7
      %v241 = vsub.s32 0, %v240
      %v242 = vrot.slane %v188, %v241
      %v243 = vlaneseq
      %v244 = vshrl.u32 %v243, 7
      %v245 = vsub.s32 0, %v244
      %v246 = vrot.slane %v189, %v245
      %v247 = vlaneseq
      %v248 = vshrl.u32 %v247, 7
      %v249 = vsub.s32 0, %v248
      %v250 = vrot.slane %v190, %v249
      %v251 = vlaneseq
      %v252 = vshrl.u32 %v251, 7
      %v253 = vsub.s32 0, %v252
      %v254 = vrot.slane %v191, %v253
      %v255 = vlaneseq
      %v256 = vshrl.u32 %v255, 7
      %v257 = vsub.s32 0, %v256
      %v258 = vrot.slane %v192, %v257
      %v259 = vlaneseq
      %v260 = vshrl.u32 %v259, 7
      %v261 = vsub.s32 0, %v260
      %v262 = vrot.slane %v193, %v261
      %v263 = vlaneseq
      %v264 = vshrl.u32 %v263, 7
      %v265 = vsub.s32 0, %v264
      %v266 = vrot.slane %v194, %v265
      %v267 = vlaneseq
      %v268 = vshrl.u32 %v267, 7
      %v269 = vsub.s32 0, %v268
      %v270 = vrot.slane %v195, %v269
      %v286 = vmul.f32 %v166, %v214
      %v287 = vmul.f32 %v167, %v218
      %v288 = vmul.f32 %v168, %v222
      %v289 = vmul.f32 %v169, %v226
      %v290 = vmul.f32 %v170, %v230
      %v291 = vmul.f32 %v171, %v234
      %v292 = vmul.f32 %v172, %v238
      %v293 = vmul.f32 %v173, %v242
      %v294 = vmul.f32 %v174, %v246
      %v295 = vmul.f32 %v175, %v250
      %v296 = vmul.f32 %v176, %v254
      %v297 = vmul.f32 %v177, %v258
      %v298 = vmul.f32 %v178, %v262
      %v299 = vmul.f32 %v179, %v266
      %v300 = vmul.f32 %v180, %v270
      %vm301 = vcmask 31744
      %v303 = vsel %vm301, %v286, 0
      %v306 = vsel %vm301, %v166, 0
      %308 = vmatprep.subr.mxu0 0.0
      %309 = vmatpush1.xpose.msra.mxu0 %v306
      %310 = vmatprep.subr.mxu0 0.0
      %311 = vmatpush1.xpose.msra.mxu0 0.0
      %312 = vmatprep.subr.mxu0 0.0
      %313 = vmatpush1.xpose.msra.mxu0 0.0
      %314 = vmatprep.subr.mxu0 0.0
      %315 = vmatpush1.xpose.msra.mxu0 0.0
      %316 = vmatprep.subr.mxu0 0.0
      %317 = vmatpush1.xpose.msra.mxu0 0.0
      %318 = vmatprep.subr.mxu0 0.0
      %319 = vmatpush1.xpose.msra.mxu0 0.0
      %320 = vmatprep.subr.mxu0 0.0
      %321 = vmatpush1.xpose.msra.mxu0 0.0
      %322 = vmatprep.subr.mxu0 0.0
      %323 = vmatpush1.xpose.msra.mxu0 0.0
      %324 = vmatprep.subr.mxu0 0.0
      %325 = vmatpush1.xpose.msra.mxu0 0.0
      %326 = vmatprep.subr.mxu0 0.0
      %327 = vmatpush1.xpose.msra.mxu0 0.0
      %328 = vmatprep.subr.mxu0 0.0
      %329 = vmatpush1.xpose.msra.mxu0 0.0
      %330 = vmatprep.subr.mxu0 0.0
      %331 = vmatpush1.xpose.msra.mxu0 0.0
      %332 = vmatprep.subr.mxu0 0.0
      %333 = vmatpush1.xpose.msra.mxu0 0.0
      %334 = vmatprep.subr.mxu0 0.0
      %335 = vmatpush1.xpose.msra.mxu0 0.0
      %336 = vmatprep.subr.mxu0 0.0
      %337 = vmatpush1.xpose.msra.mxu0 0.0
      %338 = vmatprep.subr.mxu0 0.0
      %339 = vmatpush1.xpose.msra.mxu0 0.0
      %340 = vmatprep.subr.mxu0 0.0
      %341 = vmatpush1.xpose.msra.mxu0 0.0
      %342 = vmatprep.subr.mxu0 0.0
      %343 = vmatpush1.xpose.msra.mxu0 0.0
      %344 = vmatprep.subr.mxu0 0.0
      %345 = vmatpush1.xpose.msra.mxu0 0.0
      %346 = vmatprep.subr.mxu0 0.0
      %347 = vmatpush1.xpose.msra.mxu0 0.0
      %348 = vmatprep.subr.mxu0 0.0
      %349 = vmatpush1.xpose.msra.mxu0 0.0
      %350 = vmatprep.subr.mxu0 0.0
      %351 = vmatpush1.xpose.msra.mxu0 0.0
      %352 = vmatprep.subr.mxu0 0.0
      %353 = vmatpush1.xpose.msra.mxu0 0.0
      %354 = vmatprep.subr.mxu0 0.0
      %355 = vmatpush1.xpose.msra.mxu0 0.0
      %356 = vmatprep.subr.mxu0 0.0
      %357 = vmatpush1.xpose.msra.mxu0 0.0
      %358 = vmatprep.subr.mxu0 0.0
      %359 = vmatpush1.xpose.msra.mxu0 0.0
      %360 = vmatprep.subr.mxu0 0.0
      %361 = vmatpush1.xpose.msra.mxu0 0.0
      %362 = vmatprep.subr.mxu0 0.0
      %363 = vmatpush1.xpose.msra.mxu0 0.0
      %364 = vmatprep.subr.mxu0 0.0
      %365 = vmatpush1.xpose.msra.mxu0 0.0
      %366 = vmatprep.subr.mxu0 0.0
      %367 = vmatpush1.xpose.msra.mxu0 0.0
      %368 = vmatprep.subr.mxu0 0.0
      %369 = vmatpush1.xpose.msra.mxu0 0.0
      %370 = vmatprep.subr.mxu0 0.0
      %371 = vmatpush1.xpose.msra.mxu0 0.0
      %372 = vmatprep.mubr.f32.mxu0 0.0
      %373 = vmatmul.mubr.f32.gmra.mrb[0].mxu0 %v303
      %v374 = vpop.f32.mrb[0].mxu0
      %v375 = vadd.f32 0.0, %v374
      %v376 = vpop.f32.mrb[0].mxu0
      %377 = vdwg.mxu0
      %v379 = vsel %vm301, %v287, 0
      %v382 = vsel %vm301, %v167, 0
      %384 = vmatprep.subr.mxu0 0.0
      %385 = vmatpush1.xpose.msra.mxu0 %v382
      %386 = vmatprep.subr.mxu0 0.0
      %387 = vmatpush1.xpose.msra.mxu0 0.0
      %388 = vmatprep.subr.mxu0 0.0
      %389 = vmatpush1.xpose.msra.mxu0 0.0
      %390 = vmatprep.subr.mxu0 0.0
      %391 = vmatpush1.xpose.msra.mxu0 0.0
      %392 = vmatprep.subr.mxu0 0.0
      %393 = vmatpush1.xpose.msra.mxu0 0.0
      %394 = vmatprep.subr.mxu0 0.0
      %395 = vmatpush1.xpose.msra.mxu0 0.0
      %396 = vmatprep.subr.mxu0 0.0
      %397 = vmatpush1.xpose.msra.mxu0 0.0
      %398 = vmatprep.subr.mxu0 0.0
      %399 = vmatpush1.xpose.msra.mxu0 0.0
      %400 = vmatprep.subr.mxu0 0.0
      %401 = vmatpush1.xpose.msra.mxu0 0.0
      %402 = vmatprep.subr.mxu0 0.0
      %403 = vmatpush1.xpose.msra.mxu0 0.0
      %404 = vmatprep.subr.mxu0 0.0
      %405 = vmatpush1.xpose.msra.mxu0 0.0
      %406 = vmatprep.subr.mxu0 0.0
      %407 = vmatpush1.xpose.msra.mxu0 0.0
      %408 = vmatprep.subr.mxu0 0.0
      %409 = vmatpush1.xpose.msra.mxu0 0.0
      %410 = vmatprep.subr.mxu0 0.0
      %411 = vmatpush1.xpose.msra.mxu0 0.0
      %412 = vmatprep.subr.mxu0 0.0
      %413 = vmatpush1.xpose.msra.mxu0 0.0
      %414 = vmatprep.subr.mxu0 0.0
      %415 = vmatpush1.xpose.msra.mxu0 0.0
      %416 = vmatprep.subr.mxu0 0.0
      %417 = vmatpush1.xpose.msra.mxu0 0.0
      %418 = vmatprep.subr.mxu0 0.0
      %419 = vmatpush1.xpose.msra.mxu0 0.0
      %420 = vmatprep.subr.mxu0 0.0
      %421 = vmatpush1.xpose.msra.mxu0 0.0
      %422 = vmatprep.subr.mxu0 0.0
      %423 = vmatpush1.xpose.msra.mxu0 0.0
      %424 = vmatprep.subr.mxu0 0.0
      %425 = vmatpush1.xpose.msra.mxu0 0.0
      %426 = vmatprep.subr.mxu0 0.0
      %427 = vmatpush1.xpose.msra.mxu0 0.0
      %428 = vmatprep.subr.mxu0 0.0
      %429 = vmatpush1.xpose.msra.mxu0 0.0
      %430 = vmatprep.subr.mxu0 0.0
      %431 = vmatpush1.xpose.msra.mxu0 0.0
      %432 = vmatprep.subr.mxu0 0.0
      %433 = vmatpush1.xpose.msra.mxu0 0.0
      %434 = vmatprep.subr.mxu0 0.0
      %435 = vmatpush1.xpose.msra.mxu0 0.0
      %436 = vmatprep.subr.mxu0 0.0
      %437 = vmatpush1.xpose.msra.mxu0 0.0
      %438 = vmatprep.subr.mxu0 0.0
      %439 = vmatpush1.xpose.msra.mxu0 0.0
      %440 = vmatprep.subr.mxu0 0.0
      %441 = vmatpush1.xpose.msra.mxu0 0.0
      %442 = vmatprep.subr.mxu0 0.0
      %443 = vmatpush1.xpose.msra.mxu0 0.0
      %444 = vmatprep.subr.mxu0 0.0
      %445 = vmatpush1.xpose.msra.mxu0 0.0
      %446 = vmatprep.subr.mxu0 0.0
      %447 = vmatpush1.xpose.msra.mxu0 0.0
      %448 = vmatprep.mubr.f32.mxu0 0.0
      %449 = vmatmul.mubr.f32.gmra.mrb[0].mxu0 %v379
      %v450 = vpop.f32.mrb[0].mxu0
      %v451 = vadd.f32 0.0, %v450
      %v452 = vpop.f32.mrb[0].mxu0
      %453 = vdwg.mxu0
      %v455 = vsel %vm301, %v288, 0
      %v458 = vsel %vm301, %v168, 0
      %460 = vmatprep.subr.mxu0 0.0
      %461 = vmatpush1.xpose.msra.mxu0 %v458
      %462 = vmatprep.subr.mxu0 0.0
      %463 = vmatpush1.xpose.msra.mxu0 0.0
      %464 = vmatprep.subr.mxu0 0.0
      %465 = vmatpush1.xpose.msra.mxu0 0.0
      %466 = vmatprep.subr.mxu0 0.0
      %467 = vmatpush1.xpose.msra.mxu0 0.0
      %468 = vmatprep.subr.mxu0 0.0
      %469 = vmatpush1.xpose.msra.mxu0 0.0
      %470 = vmatprep.subr.mxu0 0.0
      %471 = vmatpush1.xpose.msra.mxu0 0.0
      %472 = vmatprep.subr.mxu0 0.0
      %473 = vmatpush1.xpose.msra.mxu0 0.0
      %474 = vmatprep.subr.mxu0 0.0
      %475 = vmatpush1.xpose.msra.mxu0 0.0
      %476 = vmatprep.subr.mxu0 0.0
      %477 = vmatpush1.xpose.msra.mxu0 0.0
      %478 = vmatprep.subr.mxu0 0.0
      %479 = vmatpush1.xpose.msra.mxu0 0.0
      %480 = vmatprep.subr.mxu0 0.0
      %481 = vmatpush1.xpose.msra.mxu0 0.0
      %482 = vmatprep.subr.mxu0 0.0
      %483 = vmatpush1.xpose.msra.mxu0 0.0
      %484 = vmatprep.subr.mxu0 0.0
      %485 = vmatpush1.xpose.msra.mxu0 0.0
      %486 = vmatprep.subr.mxu0 0.0
      %487 = vmatpush1.xpose.msra.mxu0 0.0
      %488 = vmatprep.subr.mxu0 0.0
      %489 = vmatpush1.xpose.msra.mxu0 0.0
      %490 = vmatprep.subr.mxu0 0.0
      %491 = vmatpush1.xpose.msra.mxu0 0.0
      %492 = vmatprep.subr.mxu0 0.0
      %493 = vmatpush1.xpose.msra.mxu0 0.0
      %494 = vmatprep.subr.mxu0 0.0
      %495 = vmatpush1.xpose.msra.mxu0 0.0
      %496 = vmatprep.subr.mxu0 0.0
      %497 = vmatpush1.xpose.msra.mxu0 0.0
      %498 = vmatprep.subr.mxu0 0.0
      %499 = vmatpush1.xpose.msra.mxu0 0.0
      %500 = vmatprep.subr.mxu0 0.0
      %501 = vmatpush1.xpose.msra.mxu0 0.0
      %502 = vmatprep.subr.mxu0 0.0
      %503 = vmatpush1.xpose.msra.mxu0 0.0
      %504 = vmatprep.subr.mxu0 0.0
      %505 = vmatpush1.xpose.msra.mxu0 0.0
      %506 = vmatprep.subr.mxu0 0.0
      %507 = vmatpush1.xpose.msra.mxu0 0.0
      %508 = vmatprep.subr.mxu0 0.0
      %509 = vmatpush1.xpose.msra.mxu0 0.0
      %510 = vmatprep.subr.mxu0 0.0
      %511 = vmatpush1.xpose.msra.mxu0 0.0
      %512 = vmatprep.subr.mxu0 0.0
      %513 = vmatpush1.xpose.msra.mxu0 0.0
      %514 = vmatprep.subr.mxu0 0.0
      %515 = vmatpush1.xpose.msra.mxu0 0.0
      %516 = vmatprep.subr.mxu0 0.0
      %517 = vmatpush1.xpose.msra.mxu0 0.0
      %518 = vmatprep.subr.mxu0 0.0
      %519 = vmatpush1.xpose.msra.mxu0 0.0
      %520 = vmatprep.subr.mxu0 0.0
      %521 = vmatpush1.xpose.msra.mxu0 0.0
      %522 = vmatprep.subr.mxu0 0.0
      %523 = vmatpush1.xpose.msra.mxu0 0.0
      %524 = vmatprep.mubr.f32.mxu0 0.0
      %525 = vmatmul.mubr.f32.gmra.mrb[0].mxu0 %v455
      %v526 = vpop.f32.mrb[0].mxu0
      %v527 = vadd.f32 0.0, %v526
      %v528 = vpop.f32.mrb[0].mxu0
      %529 = vdwg.mxu0
      %v531 = vsel %vm301, %v289, 0
      %v534 = vsel %vm301, %v169, 0
      %536 = vmatprep.subr.mxu0 0.0
      %537 = vmatpush1.xpose.msra.mxu0 %v534
      %538 = vmatprep.subr.mxu0 0.0
      %539 = vmatpush1.xpose.msra.mxu0 0.0
      %540 = vmatprep.subr.mxu0 0.0
      %541 = vmatpush1.xpose.msra.mxu0 0.0
      %542 = vmatprep.subr.mxu0 0.0
      %543 = vmatpush1.xpose.msra.mxu0 0.0
      %544 = vmatprep.subr.mxu0 0.0
      %545 = vmatpush1.xpose.msra.mxu0 0.0
      %546 = vmatprep.subr.mxu0 0.0
      %547 = vmatpush1.xpose.msra.mxu0 0.0
      %548 = vmatprep.subr.mxu0 0.0
      %549 = vmatpush1.xpose.msra.mxu0 0.0
      %550 = vmatprep.subr.mxu0 0.0
      %551 = vmatpush1.xpose.msra.mxu0 0.0
      %552 = vmatprep.subr.mxu0 0.0
      %553 = vmatpush1.xpose.msra.mxu0 0.0
      %554 = vmatprep.subr.mxu0 0.0
      %555 = vmatpush1.xpose.msra.mxu0 0.0
      %556 = vmatprep.subr.mxu0 0.0
      %557 = vmatpush1.xpose.msra.mxu0 0.0
      %558 = vmatprep.subr.mxu0 0.0
      %559 = vmatpush1.xpose.msra.mxu0 0.0
      %560 = vmatprep.subr.mxu0 0.0
      %561 = vmatpush1.xpose.msra.mxu0 0.0
      %562 = vmatprep.subr.mxu0 0.0
      %563 = vmatpush1.xpose.msra.mxu0 0.0
      %564 = vmatprep.subr.mxu0 0.0
      %565 = vmatpush1.xpose.msra.mxu0 0.0
      %566 = vmatprep.subr.mxu0 0.0
      %567 = vmatpush1.xpose.msra.mxu0 0.0
      %568 = vmatprep.subr.mxu0 0.0
      %569 = vmatpush1.xpose.msra.mxu0 0.0
      %570 = vmatprep.subr.mxu0 0.0
      %571 = vmatpush1.xpose.msra.mxu0 0.0
      %572 = vmatprep.subr.mxu0 0.0
      %573 = vmatpush1.xpose.msra.mxu0 0.0
      %574 = vmatprep.subr.mxu0 0.0
      %575 = vmatpush1.xpose.msra.mxu0 0.0
      %576 = vmatprep.subr.mxu0 0.0
      %577 = vmatpush1.xpose.msra.mxu0 0.0
      %578 = vmatprep.subr.mxu0 0.0
      %579 = vmatpush1.xpose.msra.mxu0 0.0
      %580 = vmatprep.subr.mxu0 0.0
      %581 = vmatpush1.xpose.msra.mxu0 0.0
      %582 = vmatprep.subr.mxu0 0.0
      %583 = vmatpush1.xpose.msra.mxu0 0.0
      %584 = vmatprep.subr.mxu0 0.0
      %585 = vmatpush1.xpose.msra.mxu0 0.0
      %586 = vmatprep.subr.mxu0 0.0
      %587 = vmatpush1.xpose.msra.mxu0 0.0
      %588 = vmatprep.subr.mxu0 0.0
      %589 = vmatpush1.xpose.msra.mxu0 0.0
      %590 = vmatprep.subr.mxu0 0.0
      %591 = vmatpush1.xpose.msra.mxu0 0.0
      %592 = vmatprep.subr.mxu0 0.0
      %593 = vmatpush1.xpose.msra.mxu0 0.0
      %594 = vmatprep.subr.mxu0 0.0
      %595 = vmatpush1.xpose.msra.mxu0 0.0
      %596 = vmatprep.subr.mxu0 0.0
      %597 = vmatpush1.xpose.msra.mxu0 0.0
      %598 = vmatprep.subr.mxu0 0.0
      %599 = vmatpush1.xpose.msra.mxu0 0.0
      %600 = vmatprep.mubr.f32.mxu0 0.0
      %601 = vmatmul.mubr.f32.gmra.mrb[0].mxu0 %v531
      %v602 = vpop.f32.mrb[0].mxu0
      %v603 = vadd.f32 0.0, %v602
      %v604 = vpop.f32.mrb[0].mxu0
      %605 = vdwg.mxu0
      %v607 = vsel %vm301, %v290, 0
      %v610 = vsel %vm301, %v170, 0
      %612 = vmatprep.subr.mxu0 0.0
      %613 = vmatpush1.xpose.msra.mxu0 %v610
      %614 = vmatprep.subr.mxu0 0.0
      %615 = vmatpush1.xpose.msra.mxu0 0.0
      %616 = vmatprep.subr.mxu0 0.0
      %617 = vmatpush1.xpose.msra.mxu0 0.0
      %618 = vmatprep.subr.mxu0 0.0
      %619 = vmatpush1.xpose.msra.mxu0 0.0
      %620 = vmatprep.subr.mxu0 0.0
      %621 = vmatpush1.xpose.msra.mxu0 0.0
      %622 = vmatprep.subr.mxu0 0.0
      %623 = vmatpush1.xpose.msra.mxu0 0.0
      %624 = vmatprep.subr.mxu0 0.0
      %625 = vmatpush1.xpose.msra.mxu0 0.0
      %626 = vmatprep.subr.mxu0 0.0
      %627 = vmatpush1.xpose.msra.mxu0 0.0
      %628 = vmatprep.subr.mxu0 0.0
      %629 = vmatpush1.xpose.msra.mxu0 0.0
      %630 = vmatprep.subr.mxu0 0.0
      %631 = vmatpush1.xpose.msra.mxu0 0.0
      %632 = vmatprep.subr.mxu0 0.0
      %633 = vmatpush1.xpose.msra.mxu0 0.0
      %634 = vmatprep.subr.mxu0 0.0
      %635 = vmatpush1.xpose.msra.mxu0 0.0
      %636 = vmatprep.subr.mxu0 0.0
      %637 = vmatpush1.xpose.msra.mxu0 0.0
      %638 = vmatprep.subr.mxu0 0.0
      %639 = vmatpush1.xpose.msra.mxu0 0.0
      %640 = vmatprep.subr.mxu0 0.0
      %641 = vmatpush1.xpose.msra.mxu0 0.0
      %642 = vmatprep.subr.mxu0 0.0
      %643 = vmatpush1.xpose.msra.mxu0 0.0
      %644 = vmatprep.subr.mxu0 0.0
      %645 = vmatpush1.xpose.msra.mxu0 0.0
      %646 = vmatprep.subr.mxu0 0.0
      %647 = vmatpush1.xpose.msra.mxu0 0.0
      %648 = vmatprep.subr.mxu0 0.0
      %649 = vmatpush1.xpose.msra.mxu0 0.0
      %650 = vmatprep.subr.mxu0 0.0
      %651 = vmatpush1.xpose.msra.mxu0 0.0
      %652 = vmatprep.subr.mxu0 0.0
      %653 = vmatpush1.xpose.msra.mxu0 0.0
      %654 = vmatprep.subr.mxu0 0.0
      %655 = vmatpush1.xpose.msra.mxu0 0.0
      %656 = vmatprep.subr.mxu0 0.0
      %657 = vmatpush1.xpose.msra.mxu0 0.0
      %658 = vmatprep.subr.mxu0 0.0
      %659 = vmatpush1.xpose.msra.mxu0 0.0
      %660 = vmatprep.subr.mxu0 0.0
      %661 = vmatpush1.xpose.msra.mxu0 0.0
      %662 = vmatprep.subr.mxu0 0.0
      %663 = vmatpush1.xpose.msra.mxu0 0.0
      %664 = vmatprep.subr.mxu0 0.0
      %665 = vmatpush1.xpose.msra.mxu0 0.0
      %666 = vmatprep.subr.mxu0 0.0
      %667 = vmatpush1.xpose.msra.mxu0 0.0
      %668 = vmatprep.subr.mxu0 0.0
      %669 = vmatpush1.xpose.msra.mxu0 0.0
      %670 = vmatprep.subr.mxu0 0.0
      %671 = vmatpush1.xpose.msra.mxu0 0.0
      %672 = vmatprep.subr.mxu0 0.0
      %673 = vmatpush1.xpose.msra.mxu0 0.0
      %674 = vmatprep.subr.mxu0 0.0
      %675 = vmatpush1.xpose.msra.mxu0 0.0
      %676 = vmatprep.mubr.f32.mxu0 0.0
      %677 = vmatmul.mubr.f32.gmra.mrb[0].mxu0 %v607
      %v678 = vpop.f32.mrb[0].mxu0
      %v679 = vadd.f32 0.0, %v678
      %v680 = vpop.f32.mrb[0].mxu0
      %681 = vdwg.mxu0
      %v683 = vsel %vm301, %v291, 0
      %v686 = vsel %vm301, %v171, 0
      %688 = vmatprep.subr.mxu0 0.0
      %689 = vmatpush1.xpose.msra.mxu0 %v686
      %690 = vmatprep.subr.mxu0 0.0
      %691 = vmatpush1.xpose.msra.mxu0 0.0
      %692 = vmatprep.subr.mxu0 0.0
      %693 = vmatpush1.xpose.msra.mxu0 0.0
      %694 = vmatprep.subr.mxu0 0.0
      %695 = vmatpush1.xpose.msra.mxu0 0.0
      %696 = vmatprep.subr.mxu0 0.0
      %697 = vmatpush1.xpose.msra.mxu0 0.0
      %698 = vmatprep.subr.mxu0 0.0
      %699 = vmatpush1.xpose.msra.mxu0 0.0
      %700 = vmatprep.subr.mxu0 0.0
      %701 = vmatpush1.xpose.msra.mxu0 0.0
      %702 = vmatprep.subr.mxu0 0.0
      %703 = vmatpush1.xpose.msra.mxu0 0.0
      %704 = vmatprep.subr.mxu0 0.0
      %705 = vmatpush1.xpose.msra.mxu0 0.0
      %706 = vmatprep.subr.mxu0 0.0
      %707 = vmatpush1.xpose.msra.mxu0 0.0
      %708 = vmatprep.subr.mxu0 0.0
      %709 = vmatpush1.xpose.msra.mxu0 0.0
      %710 = vmatprep.subr.mxu0 0.0
      %711 = vmatpush1.xpose.msra.mxu0 0.0
      %712 = vmatprep.subr.mxu0 0.0
      %713 = vmatpush1.xpose.msra.mxu0 0.0
      %714 = vmatprep.subr.mxu0 0.0
      %715 = vmatpush1.xpose.msra.mxu0 0.0
      %716 = vmatprep.subr.mxu0 0.0
      %717 = vmatpush1.xpose.msra.mxu0 0.0
      %718 = vmatprep.subr.mxu0 0.0
      %719 = vmatpush1.xpose.msra.mxu0 0.0
      %720 = vmatprep.subr.mxu0 0.0
      %721 = vmatpush1.xpose.msra.mxu0 0.0
      %722 = vmatprep.subr.mxu0 0.0
      %723 = vmatpush1.xpose.msra.mxu0 0.0
      %724 = vmatprep.subr.mxu0 0.0
      %725 = vmatpush1.xpose.msra.mxu0 0.0
      %726 = vmatprep.subr.mxu0 0.0
      %727 = vmatpush1.xpose.msra.mxu0 0.0
      %728 = vmatprep.subr.mxu0 0.0
      %729 = vmatpush1.xpose.msra.mxu0 0.0
      %730 = vmatprep.subr.mxu0 0.0
      %731 = vmatpush1.xpose.msra.mxu0 0.0
      %732 = vmatprep.subr.mxu0 0.0
      %733 = vmatpush1.xpose.msra.mxu0 0.0
      %734 = vmatprep.subr.mxu0 0.0
      %735 = vmatpush1.xpose.msra.mxu0 0.0
      %736 = vmatprep.subr.mxu0 0.0
      %737 = vmatpush1.xpose.msra.mxu0 0.0
      %738 = vmatprep.subr.mxu0 0.0
      %739 = vmatpush1.xpose.msra.mxu0 0.0
      %740 = vmatprep.subr.mxu0 0.0
      %741 = vmatpush1.xpose.msra.mxu0 0.0
      %742 = vmatprep.subr.mxu0 0.0
      %743 = vmatpush1.xpose.msra.mxu0 0.0
      %744 = vmatprep.subr.mxu0 0.0
      %745 = vmatpush1.xpose.msra.mxu0 0.0
      %746 = vmatprep.subr.mxu0 0.0
      %747 = vmatpush1.xpose.msra.mxu0 0.0
      %748 = vmatprep.subr.mxu0 0.0
      %749 = vmatpush1.xpose.msra.mxu0 0.0
      %750 = vmatprep.subr.mxu0 0.0
      %751 = vmatpush1.xpose.msra.mxu0 0.0
      %752 = vmatprep.mubr.f32.mxu0 0.0
      %753 = vmatmul.mubr.f32.gmra.mrb[0].mxu0 %v683
      %v754 = vpop.f32.mrb[0].mxu0
      %v755 = vadd.f32 0.0, %v754
      %v756 = vpop.f32.mrb[0].mxu0
      %757 = vdwg.mxu0
      %v759 = vsel %vm301, %v292, 0
      %v762 = vsel %vm301, %v172, 0
      %764 = vmatprep.subr.mxu0 0.0
      %765 = vmatpush1.xpose.msra.mxu0 %v762
      %766 = vmatprep.subr.mxu0 0.0
      %767 = vmatpush1.xpose.msra.mxu0 0.0
      %768 = vmatprep.subr.mxu0 0.0
      %769 = vmatpush1.xpose.msra.mxu0 0.0
      %770 = vmatprep.subr.mxu0 0.0
      %771 = vmatpush1.xpose.msra.mxu0 0.0
      %772 = vmatprep.subr.mxu0 0.0
      %773 = vmatpush1.xpose.msra.mxu0 0.0
      %774 = vmatprep.subr.mxu0 0.0
      %775 = vmatpush1.xpose.msra.mxu0 0.0
      %776 = vmatprep.subr.mxu0 0.0
      %777 = vmatpush1.xpose.msra.mxu0 0.0
      %778 = vmatprep.subr.mxu0 0.0
      %779 = vmatpush1.xpose.msra.mxu0 0.0
      %780 = vmatprep.subr.mxu0 0.0
      %781 = vmatpush1.xpose.msra.mxu0 0.0
      %782 = vmatprep.subr.mxu0 0.0
      %783 = vmatpush1.xpose.msra.mxu0 0.0
      %784 = vmatprep.subr.mxu0 0.0
      %785 = vmatpush1.xpose.msra.mxu0 0.0
      %786 = vmatprep.subr.mxu0 0.0
      %787 = vmatpush1.xpose.msra.mxu0 0.0
      %788 = vmatprep.subr.mxu0 0.0
      %789 = vmatpush1.xpose.msra.mxu0 0.0
      %790 = vmatprep.subr.mxu0 0.0
      %791 = vmatpush1.xpose.msra.mxu0 0.0
      %792 = vmatprep.subr.mxu0 0.0
      %793 = vmatpush1.xpose.msra.mxu0 0.0
      %794 = vmatprep.subr.mxu0 0.0
      %795 = vmatpush1.xpose.msra.mxu0 0.0
      %796 = vmatprep.subr.mxu0 0.0
      %797 = vmatpush1.xpose.msra.mxu0 0.0
      %798 = vmatprep.subr.mxu0 0.0
      %799 = vmatpush1.xpose.msra.mxu0 0.0
      %800 = vmatprep.subr.mxu0 0.0
      %801 = vmatpush1.xpose.msra.mxu0 0.0
      %802 = vmatprep.subr.mxu0 0.0
      %803 = vmatpush1.xpose.msra.mxu0 0.0
      %804 = vmatprep.subr.mxu0 0.0
      %805 = vmatpush1.xpose.msra.mxu0 0.0
      %806 = vmatprep.subr.mxu0 0.0
      %807 = vmatpush1.xpose.msra.mxu0 0.0
      %808 = vmatprep.subr.mxu0 0.0
      %809 = vmatpush1.xpose.msra.mxu0 0.0
      %810 = vmatprep.subr.mxu0 0.0
      %811 = vmatpush1.xpose.msra.mxu0 0.0
      %812 = vmatprep.subr.mxu0 0.0
      %813 = vmatpush1.xpose.msra.mxu0 0.0
      %814 = vmatprep.subr.mxu0 0.0
      %815 = vmatpush1.xpose.msra.mxu0 0.0
      %816 = vmatprep.subr.mxu0 0.0
      %817 = vmatpush1.xpose.msra.mxu0 0.0
      %818 = vmatprep.subr.mxu0 0.0
      %819 = vmatpush1.xpose.msra.mxu0 0.0
      %820 = vmatprep.subr.mxu0 0.0
      %821 = vmatpush1.xpose.msra.mxu0 0.0
      %822 = vmatprep.subr.mxu0 0.0
      %823 = vmatpush1.xpose.msra.mxu0 0.0
      %824 = vmatprep.subr.mxu0 0.0
      %825 = vmatpush1.xpose.msra.mxu0 0.0
      %826 = vmatprep.subr.mxu0 0.0
      %827 = vmatpush1.xpose.msra.mxu0 0.0
      %828 = vmatprep.mubr.f32.mxu0 0.0
      %829 = vmatmul.mubr.f32.gmra.mrb[0].mxu0 %v759
      %v830 = vpop.f32.mrb[0].mxu0
      %v831 = vadd.f32 0.0, %v830
      %v832 = vpop.f32.mrb[0].mxu0
      %833 = vdwg.mxu0
      %v835 = vsel %vm301, %v293, 0
      %v838 = vsel %vm301, %v173, 0
      %840 = vmatprep.subr.mxu0 0.0
      %841 = vmatpush1.xpose.msra.mxu0 %v838
      %842 = vmatprep.subr.mxu0 0.0
      %843 = vmatpush1.xpose.msra.mxu0 0.0
      %844 = vmatprep.subr.mxu0 0.0
      %845 = vmatpush1.xpose.msra.mxu0 0.0
      %846 = vmatprep.subr.mxu0 0.0
      %847 = vmatpush1.xpose.msra.mxu0 0.0
      %848 = vmatprep.subr.mxu0 0.0
      %849 = vmatpush1.xpose.msra.mxu0 0.0
      %850 = vmatprep.subr.mxu0 0.0
      %851 = vmatpush1.xpose.msra.mxu0 0.0
      %852 = vmatprep.subr.mxu0 0.0
      %853 = vmatpush1.xpose.msra.mxu0 0.0
      %854 = vmatprep.subr.mxu0 0.0
      %855 = vmatpush1.xpose.msra.mxu0 0.0
      %856 = vmatprep.subr.mxu0 0.0
      %857 = vmatpush1.xpose.msra.mxu0 0.0
      %858 = vmatprep.subr.mxu0 0.0
      %859 = vmatpush1.xpose.msra.mxu0 0.0
      %860 = vmatprep.subr.mxu0 0.0
      %861 = vmatpush1.xpose.msra.mxu0 0.0
      %862 = vmatprep.subr.mxu0 0.0
      %863 = vmatpush1.xpose.msra.mxu0 0.0
      %864 = vmatprep.subr.mxu0 0.0
      %865 = vmatpush1.xpose.msra.mxu0 0.0
      %866 = vmatprep.subr.mxu0 0.0
      %867 = vmatpush1.xpose.msra.mxu0 0.0
      %868 = vmatprep.subr.mxu0 0.0
      %869 = vmatpush1.xpose.msra.mxu0 0.0
      %870 = vmatprep.subr.mxu0 0.0
      %871 = vmatpush1.xpose.msra.mxu0 0.0
      %872 = vmatprep.subr.mxu0 0.0
      %873 = vmatpush1.xpose.msra.mxu0 0.0
      %874 = vmatprep.subr.mxu0 0.0
      %875 = vmatpush1.xpose.msra.mxu0 0.0
      %876 = vmatprep.subr.mxu0 0.0
      %877 = vmatpush1.xpose.msra.mxu0 0.0
      %878 = vmatprep.subr.mxu0 0.0
      %879 = vmatpush1.xpose.msra.mxu0 0.0
      %880 = vmatprep.subr.mxu0 0.0
      %881 = vmatpush1.xpose.msra.mxu0 0.0
      %882 = vmatprep.subr.mxu0 0.0
      %883 = vmatpush1.xpose.msra.mxu0 0.0
      %884 = vmatprep.subr.mxu0 0.0
      %885 = vmatpush1.xpose.msra.mxu0 0.0
      %886 = vmatprep.subr.mxu0 0.0
      %887 = vmatpush1.xpose.msra.mxu0 0.0
      %888 = vmatprep.subr.mxu0 0.0
      %889 = vmatpush1.xpose.msra.mxu0 0.0
      %890 = vmatprep.subr.mxu0 0.0
      %891 = vmatpush1.xpose.msra.mxu0 0.0
      %892 = vmatprep.subr.mxu0 0.0
      %893 = vmatpush1.xpose.msra.mxu0 0.0
      %894 = vmatprep.subr.mxu0 0.0
      %895 = vmatpush1.xpose.msra.mxu0 0.0
      %896 = vmatprep.subr.mxu0 0.0
      %897 = vmatpush1.xpose.msra.mxu0 0.0
      %898 = vmatprep.subr.mxu0 0.0
      %899 = vmatpush1.xpose.msra.mxu0 0.0
      %900 = vmatprep.subr.mxu0 0.0
      %901 = vmatpush1.xpose.msra.mxu0 0.0
      %902 = vmatprep.subr.mxu0 0.0
      %903 = vmatpush1.xpose.msra.mxu0 0.0
      %904 = vmatprep.mubr.f32.mxu0 0.0
      %905 = vmatmul.mubr.f32.gmra.mrb[0].mxu0 %v835
      %v906 = vpop.f32.mrb[0].mxu0
      %v907 = vadd.f32 0.0, %v906
      %v908 = vpop.f32.mrb[0].mxu0
      %909 = vdwg.mxu0
      %v911 = vsel %vm301, %v294, 0
      %v914 = vsel %vm301, %v174, 0
      %916 = vmatprep.subr.mxu0 0.0
      %917 = vmatpush1.xpose.msra.mxu0 %v914
      %918 = vmatprep.subr.mxu0 0.0
      %919 = vmatpush1.xpose.msra.mxu0 0.0
      %920 = vmatprep.subr.mxu0 0.0
      %921 = vmatpush1.xpose.msra.mxu0 0.0
      %922 = vmatprep.subr.mxu0 0.0
      %923 = vmatpush1.xpose.msra.mxu0 0.0
      %924 = vmatprep.subr.mxu0 0.0
      %925 = vmatpush1.xpose.msra.mxu0 0.0
      %926 = vmatprep.subr.mxu0 0.0
      %927 = vmatpush1.xpose.msra.mxu0 0.0
      %928 = vmatprep.subr.mxu0 0.0
      %929 = vmatpush1.xpose.msra.mxu0 0.0
      %930 = vmatprep.subr.mxu0 0.0
      %931 = vmatpush1.xpose.msra.mxu0 0.0
      %932 = vmatprep.subr.mxu0 0.0
      %933 = vmatpush1.xpose.msra.mxu0 0.0
      %934 = vmatprep.subr.mxu0 0.0
      %935 = vmatpush1.xpose.msra.mxu0 0.0
      %936 = vmatprep.subr.mxu0 0.0
      %937 = vmatpush1.xpose.msra.mxu0 0.0
      %938 = vmatprep.subr.mxu0 0.0
      %939 = vmatpush1.xpose.msra.mxu0 0.0
      %940 = vmatprep.subr.mxu0 0.0
      %941 = vmatpush1.xpose.msra.mxu0 0.0
      %942 = vmatprep.subr.mxu0 0.0
      %943 = vmatpush1.xpose.msra.mxu0 0.0
      %944 = vmatprep.subr.mxu0 0.0
      %945 = vmatpush1.xpose.msra.mxu0 0.0
      %946 = vmatprep.subr.mxu0 0.0
      %947 = vmatpush1.xpose.msra.mxu0 0.0
      %948 = vmatprep.subr.mxu0 0.0
      %949 = vmatpush1.xpose.msra.mxu0 0.0
      %950 = vmatprep.subr.mxu0 0.0
      %951 = vmatpush1.xpose.msra.mxu0 0.0
      %952 = vmatprep.subr.mxu0 0.0
      %953 = vmatpush1.xpose.msra.mxu0 0.0
      %954 = vmatprep.subr.mxu0 0.0
      %955 = vmatpush1.xpose.msra.mxu0 0.0
      %956 = vmatprep.subr.mxu0 0.0
      %957 = vmatpush1.xpose.msra.mxu0 0.0
      %958 = vmatprep.subr.mxu0 0.0
      %959 = vmatpush1.xpose.msra.mxu0 0.0
      %960 = vmatprep.subr.mxu0 0.0
      %961 = vmatpush1.xpose.msra.mxu0 0.0
      %962 = vmatprep.subr.mxu0 0.0
      %963 = vmatpush1.xpose.msra.mxu0 0.0
      %964 = vmatprep.subr.mxu0 0.0
      %965 = vmatpush1.xpose.msra.mxu0 0.0
      %966 = vmatprep.subr.mxu0 0.0
      %967 = vmatpush1.xpose.msra.mxu0 0.0
      %968 = vmatprep.subr.mxu0 0.0
      %969 = vmatpush1.xpose.msra.mxu0 0.0
      %970 = vmatprep.subr.mxu0 0.0
      %971 = vmatpush1.xpose.msra.mxu0 0.0
      %972 = vmatprep.subr.mxu0 0.0
      %973 = vmatpush1.xpose.msra.mxu0 0.0
      %974 = vmatprep.subr.mxu0 0.0
      %975 = vmatpush1.xpose.msra.mxu0 0.0
      %976 = vmatprep.subr.mxu0 0.0
      %977 = vmatpush1.xpose.msra.mxu0 0.0
      %978 = vmatprep.subr.mxu0 0.0
      %979 = vmatpush1.xpose.msra.mxu0 0.0
      %980 = vmatprep.mubr.f32.mxu0 0.0
      %981 = vmatmul.mubr.f32.gmra.mrb[0].mxu0 %v911
      %v982 = vpop.f32.mrb[0].mxu0
      %v983 = vadd.f32 0.0, %v982
      %v984 = vpop.f32.mrb[0].mxu0
      %985 = vdwg.mxu0
      %v987 = vsel %vm301, %v295, 0
      %v990 = vsel %vm301, %v175, 0
      %992 = vmatprep.subr.mxu0 0.0
      %993 = vmatpush1.xpose.msra.mxu0 %v990
      %994 = vmatprep.subr.mxu0 0.0
      %995 = vmatpush1.xpose.msra.mxu0 0.0
      %996 = vmatprep.subr.mxu0 0.0
      %997 = vmatpush1.xpose.msra.mxu0 0.0
      %998 = vmatprep.subr.mxu0 0.0
      %999 = vmatpush1.xpose.msra.mxu0 0.0
      %1000 = vmatprep.subr.mxu0 0.0
      %1001 = vmatpush1.xpose.msra.mxu0 0.0
      %1002 = vmatprep.subr.mxu0 0.0
      %1003 = vmatpush1.xpose.msra.mxu0 0.0
      %1004 = vmatprep.subr.mxu0 0.0
      %1005 = vmatpush1.xpose.msra.mxu0 0.0
      %1006 = vmatprep.subr.mxu0 0.0
      %1007 = vmatpush1.xpose.msra.mxu0 0.0
      %1008 = vmatprep.subr.mxu0 0.0
      %1009 = vmatpush1.xpose.msra.mxu0 0.0
      %1010 = vmatprep.subr.mxu0 0.0
      %1011 = vmatpush1.xpose.msra.mxu0 0.0
      %1012 = vmatprep.subr.mxu0 0.0
      %1013 = vmatpush1.xpose.msra.mxu0 0.0
      %1014 = vmatprep.subr.mxu0 0.0
      %1015 = vmatpush1.xpose.msra.mxu0 0.0
      %1016 = vmatprep.subr.mxu0 0.0
      %1017 = vmatpush1.xpose.msra.mxu0 0.0
      %1018 = vmatprep.subr.mxu0 0.0
      %1019 = vmatpush1.xpose.msra.mxu0 0.0
      %1020 = vmatprep.subr.mxu0 0.0
      %1021 = vmatpush1.xpose.msra.mxu0 0.0
      %1022 = vmatprep.subr.mxu0 0.0
      %1023 = vmatpush1.xpose.msra.mxu0 0.0
      %1024 = vmatprep.subr.mxu0 0.0
      %1025 = vmatpush1.xpose.msra.mxu0 0.0
      %1026 = vmatprep.subr.mxu0 0.0
      %1027 = vmatpush1.xpose.msra.mxu0 0.0
      %1028 = vmatprep.subr.mxu0 0.0
      %1029 = vmatpush1.xpose.msra.mxu0 0.0
      %1030 = vmatprep.subr.mxu0 0.0
      %1031 = vmatpush1.xpose.msra.mxu0 0.0
      %1032 = vmatprep.subr.mxu0 0.0
      %1033 = vmatpush1.xpose.msra.mxu0 0.0
      %1034 = vmatprep.subr.mxu0 0.0
      %1035 = vmatpush1.xpose.msra.mxu0 0.0
      %1036 = vmatprep.subr.mxu0 0.0
      %1037 = vmatpush1.xpose.msra.mxu0 0.0
      %1038 = vmatprep.subr.mxu0 0.0
      %1039 = vmatpush1.xpose.msra.mxu0 0.0
      %1040 = vmatprep.subr.mxu0 0.0
      %1041 = vmatpush1.xpose.msra.mxu0 0.0
      %1042 = vmatprep.subr.mxu0 0.0
      %1043 = vmatpush1.xpose.msra.mxu0 0.0
      %1044 = vmatprep.subr.mxu0 0.0
      %1045 = vmatpush1.xpose.msra.mxu0 0.0
      %1046 = vmatprep.subr.mxu0 0.0
      %1047 = vmatpush1.xpose.msra.mxu0 0.0
      %1048 = vmatprep.subr.mxu0 0.0
      %1049 = vmatpush1.xpose.msra.mxu0 0.0
      %1050 = vmatprep.subr.mxu0 0.0
      %1051 = vmatpush1.xpose.msra.mxu0 0.0
      %1052 = vmatprep.subr.mxu0 0.0
      %1053 = vmatpush1.xpose.msra.mxu0 0.0
      %1054 = vmatprep.subr.mxu0 0.0
      %1055 = vmatpush1.xpose.msra.mxu0 0.0
      %1056 = vmatprep.mubr.f32.mxu0 0.0
      %1057 = vmatmul.mubr.f32.gmra.mrb[0].mxu0 %v987
      %v1058 = vpop.f32.mrb[0].mxu0
      %v1059 = vadd.f32 0.0, %v1058
      %v1060 = vpop.f32.mrb[0].mxu0
      %1061 = vdwg.mxu0
      %v1063 = vsel %vm301, %v296, 0
      %v1066 = vsel %vm301, %v176, 0
      %1068 = vmatprep.subr.mxu0 0.0
      %1069 = vmatpush1.xpose.msra.mxu0 %v1066
      %1070 = vmatprep.subr.mxu0 0.0
      %1071 = vmatpush1.xpose.msra.mxu0 0.0
      %1072 = vmatprep.subr.mxu0 0.0
      %1073 = vmatpush1.xpose.msra.mxu0 0.0
      %1074 = vmatprep.subr.mxu0 0.0
      %1075 = vmatpush1.xpose.msra.mxu0 0.0
      %1076 = vmatprep.subr.mxu0 0.0
      %1077 = vmatpush1.xpose.msra.mxu0 0.0
      %1078 = vmatprep.subr.mxu0 0.0
      %1079 = vmatpush1.xpose.msra.mxu0 0.0
      %1080 = vmatprep.subr.mxu0 0.0
      %1081 = vmatpush1.xpose.msra.mxu0 0.0
      %1082 = vmatprep.subr.mxu0 0.0
      %1083 = vmatpush1.xpose.msra.mxu0 0.0
      %1084 = vmatprep.subr.mxu0 0.0
      %1085 = vmatpush1.xpose.msra.mxu0 0.0
      %1086 = vmatprep.subr.mxu0 0.0
      %1087 = vmatpush1.xpose.msra.mxu0 0.0
      %1088 = vmatprep.subr.mxu0 0.0
      %1089 = vmatpush1.xpose.msra.mxu0 0.0
      %1090 = vmatprep.subr.mxu0 0.0
      %1091 = vmatpush1.xpose.msra.mxu0 0.0
      %1092 = vmatprep.subr.mxu0 0.0
      %1093 = vmatpush1.xpose.msra.mxu0 0.0
      %1094 = vmatprep.subr.mxu0 0.0
      %1095 = vmatpush1.xpose.msra.mxu0 0.0
      %1096 = vmatprep.subr.mxu0 0.0
      %1097 = vmatpush1.xpose.msra.mxu0 0.0
      %1098 = vmatprep.subr.mxu0 0.0
      %1099 = vmatpush1.xpose.msra.mxu0 0.0
      %1100 = vmatprep.subr.mxu0 0.0
      %1101 = vmatpush1.xpose.msra.mxu0 0.0
      %1102 = vmatprep.subr.mxu0 0.0
      %1103 = vmatpush1.xpose.msra.mxu0 0.0
      %1104 = vmatprep.subr.mxu0 0.0
      %1105 = vmatpush1.xpose.msra.mxu0 0.0
      %1106 = vmatprep.subr.mxu0 0.0
      %1107 = vmatpush1.xpose.msra.mxu0 0.0
      %1108 = vmatprep.subr.mxu0 0.0
      %1109 = vmatpush1.xpose.msra.mxu0 0.0
      %1110 = vmatprep.subr.mxu0 0.0
      %1111 = vmatpush1.xpose.msra.mxu0 0.0
      %1112 = vmatprep.subr.mxu0 0.0
      %1113 = vmatpush1.xpose.msra.mxu0 0.0
      %1114 = vmatprep.subr.mxu0 0.0
      %1115 = vmatpush1.xpose.msra.mxu0 0.0
      %1116 = vmatprep.subr.mxu0 0.0
      %1117 = vmatpush1.xpose.msra.mxu0 0.0
      %1118 = vmatprep.subr.mxu0 0.0
      %1119 = vmatpush1.xpose.msra.mxu0 0.0
      %1120 = vmatprep.subr.mxu0 0.0
      %1121 = vmatpush1.xpose.msra.mxu0 0.0
      %1122 = vmatprep.subr.mxu0 0.0
      %1123 = vmatpush1.xpose.msra.mxu0 0.0
      %1124 = vmatprep.subr.mxu0 0.0
      %1125 = vmatpush1.xpose.msra.mxu0 0.0
      %1126 = vmatprep.subr.mxu0 0.0
      %1127 = vmatpush1.xpose.msra.mxu0 0.0
      %1128 = vmatprep.subr.mxu0 0.0
      %1129 = vmatpush1.xpose.msra.mxu0 0.0
      %1130 = vmatprep.subr.mxu0 0.0
      %1131 = vmatpush1.xpose.msra.mxu0 0.0
      %1132 = vmatprep.mubr.f32.mxu0 0.0
      %1133 = vmatmul.mubr.f32.gmra.mrb[0].mxu0 %v1063
      %v1134 = vpop.f32.mrb[0].mxu0
      %v1135 = vadd.f32 0.0, %v1134
      %v1136 = vpop.f32.mrb[0].mxu0
      %1137 = vdwg.mxu0
      %v1139 = vsel %vm301, %v297, 0
      %v1142 = vsel %vm301, %v177, 0
      %1144 = vmatprep.subr.mxu0 0.0
      %1145 = vmatpush1.xpose.msra.mxu0 %v1142
      %1146 = vmatprep.subr.mxu0 0.0
      %1147 = vmatpush1.xpose.msra.mxu0 0.0
      %1148 = vmatprep.subr.mxu0 0.0
      %1149 = vmatpush1.xpose.msra.mxu0 0.0
      %1150 = vmatprep.subr.mxu0 0.0
      %1151 = vmatpush1.xpose.msra.mxu0 0.0
      %1152 = vmatprep.subr.mxu0 0.0
      %1153 = vmatpush1.xpose.msra.mxu0 0.0
      %1154 = vmatprep.subr.mxu0 0.0
      %1155 = vmatpush1.xpose.msra.mxu0 0.0
      %1156 = vmatprep.subr.mxu0 0.0
      %1157 = vmatpush1.xpose.msra.mxu0 0.0
      %1158 = vmatprep.subr.mxu0 0.0
      %1159 = vmatpush1.xpose.msra.mxu0 0.0
      %1160 = vmatprep.subr.mxu0 0.0
      %1161 = vmatpush1.xpose.msra.mxu0 0.0
      %1162 = vmatprep.subr.mxu0 0.0
      %1163 = vmatpush1.xpose.msra.mxu0 0.0
      %1164 = vmatprep.subr.mxu0 0.0
      %1165 = vmatpush1.xpose.msra.mxu0 0.0
      %1166 = vmatprep.subr.mxu0 0.0
      %1167 = vmatpush1.xpose.msra.mxu0 0.0
      %1168 = vmatprep.subr.mxu0 0.0
      %1169 = vmatpush1.xpose.msra.mxu0 0.0
      %1170 = vmatprep.subr.mxu0 0.0
      %1171 = vmatpush1.xpose.msra.mxu0 0.0
      %1172 = vmatprep.subr.mxu0 0.0
      %1173 = vmatpush1.xpose.msra.mxu0 0.0
      %1174 = vmatprep.subr.mxu0 0.0
      %1175 = vmatpush1.xpose.msra.mxu0 0.0
      %1176 = vmatprep.subr.mxu0 0.0
      %1177 = vmatpush1.xpose.msra.mxu0 0.0
      %1178 = vmatprep.subr.mxu0 0.0
      %1179 = vmatpush1.xpose.msra.mxu0 0.0
      %1180 = vmatprep.subr.mxu0 0.0
      %1181 = vmatpush1.xpose.msra.mxu0 0.0
      %1182 = vmatprep.subr.mxu0 0.0
      %1183 = vmatpush1.xpose.msra.mxu0 0.0
      %1184 = vmatprep.subr.mxu0 0.0
      %1185 = vmatpush1.xpose.msra.mxu0 0.0
      %1186 = vmatprep.subr.mxu0 0.0
      %1187 = vmatpush1.xpose.msra.mxu0 0.0
      %1188 = vmatprep.subr.mxu0 0.0
      %1189 = vmatpush1.xpose.msra.mxu0 0.0
      %1190 = vmatprep.subr.mxu0 0.0
      %1191 = vmatpush1.xpose.msra.mxu0 0.0
      %1192 = vmatprep.subr.mxu0 0.0
      %1193 = vmatpush1.xpose.msra.mxu0 0.0
      %1194 = vmatprep.subr.mxu0 0.0
      %1195 = vmatpush1.xpose.msra.mxu0 0.0
      %1196 = vmatprep.subr.mxu0 0.0
      %1197 = vmatpush1.xpose.msra.mxu0 0.0
      %1198 = vmatprep.subr.mxu0 0.0
      %1199 = vmatpush1.xpose.msra.mxu0 0.0
      %1200 = vmatprep.subr.mxu0 0.0
      %1201 = vmatpush1.xpose.msra.mxu0 0.0
      %1202 = vmatprep.subr.mxu0 0.0
      %1203 = vmatpush1.xpose.msra.mxu0 0.0
      %1204 = vmatprep.subr.mxu0 0.0
      %1205 = vmatpush1.xpose.msra.mxu0 0.0
      %1206 = vmatprep.subr.mxu0 0.0
      %1207 = vmatpush1.xpose.msra.mxu0 0.0
      %1208 = vmatprep.mubr.f32.mxu0 0.0
      %1209 = vmatmul.mubr.f32.gmra.mrb[0].mxu0 %v1139
      %v1210 = vpop.f32.mrb[0].mxu0
      %v1211 = vadd.f32 0.0, %v1210
      %v1212 = vpop.f32.mrb[0].mxu0
      %1213 = vdwg.mxu0
      %v1215 = vsel %vm301, %v298, 0
      %v1218 = vsel %vm301, %v178, 0
      %1220 = vmatprep.subr.mxu0 0.0
      %1221 = vmatpush1.xpose.msra.mxu0 %v1218
      %1222 = vmatprep.subr.mxu0 0.0
      %1223 = vmatpush1.xpose.msra.mxu0 0.0
      %1224 = vmatprep.subr.mxu0 0.0
      %1225 = vmatpush1.xpose.msra.mxu0 0.0
      %1226 = vmatprep.subr.mxu0 0.0
      %1227 = vmatpush1.xpose.msra.mxu0 0.0
      %1228 = vmatprep.subr.mxu0 0.0
      %1229 = vmatpush1.xpose.msra.mxu0 0.0
      %1230 = vmatprep.subr.mxu0 0.0
      %1231 = vmatpush1.xpose.msra.mxu0 0.0
      %1232 = vmatprep.subr.mxu0 0.0
      %1233 = vmatpush1.xpose.msra.mxu0 0.0
      %1234 = vmatprep.subr.mxu0 0.0
      %1235 = vmatpush1.xpose.msra.mxu0 0.0
      %1236 = vmatprep.subr.mxu0 0.0
      %1237 = vmatpush1.xpose.msra.mxu0 0.0
      %1238 = vmatprep.subr.mxu0 0.0
      %1239 = vmatpush1.xpose.msra.mxu0 0.0
      %1240 = vmatprep.subr.mxu0 0.0
      %1241 = vmatpush1.xpose.msra.mxu0 0.0
      %1242 = vmatprep.subr.mxu0 0.0
      %1243 = vmatpush1.xpose.msra.mxu0 0.0
      %1244 = vmatprep.subr.mxu0 0.0
      %1245 = vmatpush1.xpose.msra.mxu0 0.0
      %1246 = vmatprep.subr.mxu0 0.0
      %1247 = vmatpush1.xpose.msra.mxu0 0.0
      %1248 = vmatprep.subr.mxu0 0.0
      %1249 = vmatpush1.xpose.msra.mxu0 0.0
      %1250 = vmatprep.subr.mxu0 0.0
      %1251 = vmatpush1.xpose.msra.mxu0 0.0
      %1252 = vmatprep.subr.mxu0 0.0
      %1253 = vmatpush1.xpose.msra.mxu0 0.0
      %1254 = vmatprep.subr.mxu0 0.0
      %1255 = vmatpush1.xpose.msra.mxu0 0.0
      %1256 = vmatprep.subr.mxu0 0.0
      %1257 = vmatpush1.xpose.msra.mxu0 0.0
      %1258 = vmatprep.subr.mxu0 0.0
      %1259 = vmatpush1.xpose.msra.mxu0 0.0
      %1260 = vmatprep.subr.mxu0 0.0
      %1261 = vmatpush1.xpose.msra.mxu0 0.0
      %1262 = vmatprep.subr.mxu0 0.0
      %1263 = vmatpush1.xpose.msra.mxu0 0.0
      %1264 = vmatprep.subr.mxu0 0.0
      %1265 = vmatpush1.xpose.msra.mxu0 0.0
      %1266 = vmatprep.subr.mxu0 0.0
      %1267 = vmatpush1.xpose.msra.mxu0 0.0
      %1268 = vmatprep.subr.mxu0 0.0
      %1269 = vmatpush1.xpose.msra.mxu0 0.0
      %1270 = vmatprep.subr.mxu0 0.0
      %1271 = vmatpush1.xpose.msra.mxu0 0.0
      %1272 = vmatprep.subr.mxu0 0.0
      %1273 = vmatpush1.xpose.msra.mxu0 0.0
      %1274 = vmatprep.subr.mxu0 0.0
      %1275 = vmatpush1.xpose.msra.mxu0 0.0
      %1276 = vmatprep.subr.mxu0 0.0
      %1277 = vmatpush1.xpose.msra.mxu0 0.0
      %1278 = vmatprep.subr.mxu0 0.0
      %1279 = vmatpush1.xpose.msra.mxu0 0.0
      %1280 = vmatprep.subr.mxu0 0.0
      %1281 = vmatpush1.xpose.msra.mxu0 0.0
      %1282 = vmatprep.subr.mxu0 0.0
      %1283 = vmatpush1.xpose.msra.mxu0 0.0
      %1284 = vmatprep.mubr.f32.mxu0 0.0
      %1285 = vmatmul.mubr.f32.gmra.mrb[0].mxu0 %v1215
      %v1286 = vpop.f32.mrb[0].mxu0
      %v1287 = vadd.f32 0.0, %v1286
      %v1288 = vpop.f32.mrb[0].mxu0
      %1289 = vdwg.mxu0
      %v1291 = vsel %vm301, %v299, 0
      %v1294 = vsel %vm301, %v179, 0
      %1296 = vmatprep.subr.mxu0 0.0
      %1297 = vmatpush1.xpose.msra.mxu0 %v1294
      %1298 = vmatprep.subr.mxu0 0.0
      %1299 = vmatpush1.xpose.msra.mxu0 0.0
      %1300 = vmatprep.subr.mxu0 0.0
      %1301 = vmatpush1.xpose.msra.mxu0 0.0
      %1302 = vmatprep.subr.mxu0 0.0
      %1303 = vmatpush1.xpose.msra.mxu0 0.0
      %1304 = vmatprep.subr.mxu0 0.0
      %1305 = vmatpush1.xpose.msra.mxu0 0.0
      %1306 = vmatprep.subr.mxu0 0.0
      %1307 = vmatpush1.xpose.msra.mxu0 0.0
      %1308 = vmatprep.subr.mxu0 0.0
      %1309 = vmatpush1.xpose.msra.mxu0 0.0
      %1310 = vmatprep.subr.mxu0 0.0
      %1311 = vmatpush1.xpose.msra.mxu0 0.0
      %1312 = vmatprep.subr.mxu0 0.0
      %1313 = vmatpush1.xpose.msra.mxu0 0.0
      %1314 = vmatprep.subr.mxu0 0.0
      %1315 = vmatpush1.xpose.msra.mxu0 0.0
      %1316 = vmatprep.subr.mxu0 0.0
      %1317 = vmatpush1.xpose.msra.mxu0 0.0
      %1318 = vmatprep.subr.mxu0 0.0
      %1319 = vmatpush1.xpose.msra.mxu0 0.0
      %1320 = vmatprep.subr.mxu0 0.0
      %1321 = vmatpush1.xpose.msra.mxu0 0.0
      %1322 = vmatprep.subr.mxu0 0.0
      %1323 = vmatpush1.xpose.msra.mxu0 0.0
      %1324 = vmatprep.subr.mxu0 0.0
      %1325 = vmatpush1.xpose.msra.mxu0 0.0
      %1326 = vmatprep.subr.mxu0 0.0
      %1327 = vmatpush1.xpose.msra.mxu0 0.0
      %1328 = vmatprep.subr.mxu0 0.0
      %1329 = vmatpush1.xpose.msra.mxu0 0.0
      %1330 = vmatprep.subr.mxu0 0.0
      %1331 = vmatpush1.xpose.msra.mxu0 0.0
      %1332 = vmatprep.subr.mxu0 0.0
      %1333 = vmatpush1.xpose.msra.mxu0 0.0
      %1334 = vmatprep.subr.mxu0 0.0
      %1335 = vmatpush1.xpose.msra.mxu0 0.0
      %1336 = vmatprep.subr.mxu0 0.0
      %1337 = vmatpush1.xpose.msra.mxu0 0.0
      %1338 = vmatprep.subr.mxu0 0.0
      %1339 = vmatpush1.xpose.msra.mxu0 0.0
      %1340 = vmatprep.subr.mxu0 0.0
      %1341 = vmatpush1.xpose.msra.mxu0 0.0
      %1342 = vmatprep.subr.mxu0 0.0
      %1343 = vmatpush1.xpose.msra.mxu0 0.0
      %1344 = vmatprep.subr.mxu0 0.0
      %1345 = vmatpush1.xpose.msra.mxu0 0.0
      %1346 = vmatprep.subr.mxu0 0.0
      %1347 = vmatpush1.xpose.msra.mxu0 0.0
      %1348 = vmatprep.subr.mxu0 0.0
      %1349 = vmatpush1.xpose.msra.mxu0 0.0
      %1350 = vmatprep.subr.mxu0 0.0
      %1351 = vmatpush1.xpose.msra.mxu0 0.0
      %1352 = vmatprep.subr.mxu0 0.0
      %1353 = vmatpush1.xpose.msra.mxu0 0.0
      %1354 = vmatprep.subr.mxu0 0.0
      %1355 = vmatpush1.xpose.msra.mxu0 0.0
      %1356 = vmatprep.subr.mxu0 0.0
      %1357 = vmatpush1.xpose.msra.mxu0 0.0
      %1358 = vmatprep.subr.mxu0 0.0
      %1359 = vmatpush1.xpose.msra.mxu0 0.0
      %1360 = vmatprep.mubr.f32.mxu0 0.0
      %1361 = vmatmul.mubr.f32.gmra.mrb[0].mxu0 %v1291
      %v1362 = vpop.f32.mrb[0].mxu0
      %v1363 = vadd.f32 0.0, %v1362
      %v1364 = vpop.f32.mrb[0].mxu0
      %1365 = vdwg.mxu0
      %v1367 = vsel %vm301, %v300, 0
      %v1370 = vsel %vm301, %v180, 0
      %1372 = vmatprep.subr.mxu0 0.0
      %1373 = vmatpush1.xpose.msra.mxu0 %v1370
      %1374 = vmatprep.subr.mxu0 0.0
      %1375 = vmatpush1.xpose.msra.mxu0 0.0
      %1376 = vmatprep.subr.mxu0 0.0
      %1377 = vmatpush1.xpose.msra.mxu0 0.0
      %1378 = vmatprep.subr.mxu0 0.0
      %1379 = vmatpush1.xpose.msra.mxu0 0.0
      %1380 = vmatprep.subr.mxu0 0.0
      %1381 = vmatpush1.xpose.msra.mxu0 0.0
      %1382 = vmatprep.subr.mxu0 0.0
      %1383 = vmatpush1.xpose.msra.mxu0 0.0
      %1384 = vmatprep.subr.mxu0 0.0
      %1385 = vmatpush1.xpose.msra.mxu0 0.0
      %1386 = vmatprep.subr.mxu0 0.0
      %1387 = vmatpush1.xpose.msra.mxu0 0.0
      %1388 = vmatprep.subr.mxu0 0.0
      %1389 = vmatpush1.xpose.msra.mxu0 0.0
      %1390 = vmatprep.subr.mxu0 0.0
      %1391 = vmatpush1.xpose.msra.mxu0 0.0
      %1392 = vmatprep.subr.mxu0 0.0
      %1393 = vmatpush1.xpose.msra.mxu0 0.0
      %1394 = vmatprep.subr.mxu0 0.0
      %1395 = vmatpush1.xpose.msra.mxu0 0.0
      %1396 = vmatprep.subr.mxu0 0.0
      %1397 = vmatpush1.xpose.msra.mxu0 0.0
      %1398 = vmatprep.subr.mxu0 0.0
      %1399 = vmatpush1.xpose.msra.mxu0 0.0
      %1400 = vmatprep.subr.mxu0 0.0
      %1401 = vmatpush1.xpose.msra.mxu0 0.0
      %1402 = vmatprep.subr.mxu0 0.0
      %1403 = vmatpush1.xpose.msra.mxu0 0.0
      %1404 = vmatprep.subr.mxu0 0.0
      %1405 = vmatpush1.xpose.msra.mxu0 0.0
      %1406 = vmatprep.subr.mxu0 0.0
      %1407 = vmatpush1.xpose.msra.mxu0 0.0
      %1408 = vmatprep.subr.mxu0 0.0
      %1409 = vmatpush1.xpose.msra.mxu0 0.0
      %1410 = vmatprep.subr.mxu0 0.0
      %1411 = vmatpush1.xpose.msra.mxu0 0.0
      %1412 = vmatprep.subr.mxu0 0.0
      %1413 = vmatpush1.xpose.msra.mxu0 0.0
      %1414 = vmatprep.subr.mxu0 0.0
      %1415 = vmatpush1.xpose.msra.mxu0 0.0
      %1416 = vmatprep.subr.mxu0 0.0
      %1417 = vmatpush1.xpose.msra.mxu0 0.0
      %1418 = vmatprep.subr.mxu0 0.0
      %1419 = vmatpush1.xpose.msra.mxu0 0.0
      %1420 = vmatprep.subr.mxu0 0.0
      %1421 = vmatpush1.xpose.msra.mxu0 0.0
      %1422 = vmatprep.subr.mxu0 0.0
      %1423 = vmatpush1.xpose.msra.mxu0 0.0
      %1424 = vmatprep.subr.mxu0 0.0
      %1425 = vmatpush1.xpose.msra.mxu0 0.0
      %1426 = vmatprep.subr.mxu0 0.0
      %1427 = vmatpush1.xpose.msra.mxu0 0.0
      %1428 = vmatprep.subr.mxu0 0.0
      %1429 = vmatpush1.xpose.msra.mxu0 0.0
      %1430 = vmatprep.subr.mxu0 0.0
      %1431 = vmatpush1.xpose.msra.mxu0 0.0
      %1432 = vmatprep.subr.mxu0 0.0
      %1433 = vmatpush1.xpose.msra.mxu0 0.0
      %1434 = vmatprep.subr.mxu0 0.0
      %1435 = vmatpush1.xpose.msra.mxu0 0.0
      %1436 = vmatprep.mubr.f32.mxu0 0.0
      %1437 = vmatmul.mubr.f32.gmra.mrb[0].mxu0 %v1367
      %v1438 = vpop.f32.mrb[0].mxu0
      %v1439 = vadd.f32 0.0, %v1438
      %v1440 = vpop.f32.mrb[0].mxu0
      %1441 = vdwg.mxu0
      %vm1442 = vcmask 27648
      %1443 = vst.msk [vmem:[%s164] sm:$0xf] %vm1442, %v375
      %1444 = vst.msk [vmem:[%s164 + $0x4] sm:$0xf] %vm1442, %v451
      %1445 = vst.msk [vmem:[%s164 + $0x8] sm:$0xf] %vm1442, %v527
      %1446 = vst.msk [vmem:[%s164 + $0xc] sm:$0xf] %vm1442, %v603
      %1447 = vst.msk [vmem:[%s164 + $0x10] sm:$0xf] %vm1442, %v679
      %1448 = vst.msk [vmem:[%s164 + $0x14] sm:$0xf] %vm1442, %v755
      %1449 = vst.msk [vmem:[%s164 + $0x18] sm:$0xf] %vm1442, %v831
      %1450 = vst.msk [vmem:[%s164 + $0x1c] sm:$0xf] %vm1442, %v907
      %1451 = vst.msk [vmem:[%s164 + $0x20] sm:$0xf] %vm1442, %v983
      %1452 = vst.msk [vmem:[%s164 + $0x24] sm:$0xf] %vm1442, %v1059
      %1453 = vst.msk [vmem:[%s164 + $0x28] sm:$0xf] %vm1442, %v1135
      %1454 = vst.msk [vmem:[%s164 + $0x2c] sm:$0xf] %vm1442, %v1211
      %1455 = vst.msk [vmem:[%s164 + $0x30] sm:$0xf] %vm1442, %v1287
      %1456 = vst.msk [vmem:[%s164 + $0x34] sm:$0xf] %vm1442, %v1363
      %1457 = vst.msk [vmem:[%s164 + $0x38] sm:$0xf] %vm1442, %v1439
      %s1458 = smul.u32 15, %s13
      %p1459 = scmp.lt.s32.totalorder %s1458, 29
      %s1460 = scalar_select %p1459, %s1458, 29
      %s1461 = smul.addr %s1460, 4
      %s1462 = scalar_lea.vmem %s2, %s1461
      // Predicated region
      $region29: #{matt_forward.7} parent=27 // pred_check
        %p1463 = pneg %p83
      $region30: #{matt_forward.7} parent=27 // pred_check_branch
        %1465 = sbr.rel (%p1463) target = $region32
      $region31: #{matt_forward.7} parent=27 // pred_region
        %s1466 = smul.u32 15, %s13
      $region32: #{matt_forward.7} parent=27 // pred_fallthru
        _
    $region28: #{matt_forward.7} parent=5 // pred_fallthru
      _
    %p1467 = scmp.le.s32.totalorder 2, %s8
    // Predicated region
    $region33: #{matt_forward.7} parent=5 // pred_check
      %p1468 = pneg %p1467
    $region34: #{matt_forward.7} parent=5 // pred_check_branch
      %1470 = sbr.rel (%p1468) target = $region36
    $region35: #{matt_forward.7} parent=5 // pred_region
      %s1471 = ssub.s32 %s8, 2
      // Predicated region
      $region37: #{matt_forward.7} parent=35 // pred_check
        %p1472 = pneg %p89
      $region38: #{matt_forward.7} parent=35 // pred_check_branch
        %1474 = sbr.rel (%p1472) target = $region40
      $region39: #{matt_forward.7} parent=35 // pred_region
        %s1475 = smul.u32 15, %s14
        %p1476 = scmp.lt.s32.totalorder %s1475, 29
        %s1477 = scalar_select %p1476, %s1475, 29
        %s1478 = smul.addr %s1477, 4
        %s1479 = scalar_lea.vmem %s2, %s1478
      $region40: #{matt_forward.7} parent=35 // pred_fallthru
        _
    $region36: #{matt_forward.7} parent=5 // pred_fallthru
      _
  $region6: #{matt_forward.7} parent=0 // loop_footer
    %s12 = sadd.s32 1, %s8
  $region7: #{matt_forward.7} parent=0 // loop_footer_branch
    %7 = sbr.rel target = $region3
  $region8: #{matt_forward.7} parent=0 // loop_exit
    _

// kernel: matt_forward.9
$region0: #{matt_forward.9}
  #allocation0 [shape = 'u32[]', space=smem, size = 0x4, offset = 0x4, fixed_abs, tag = 'smem constant byte address 0x4 - core index']
  #allocation1 [shape = 'u32[144,128]{1,0:T(1,128)}', space=vmem, size = 0x12000, scoped, tag = 'internal scratch']
  %s0 = inlined_call_operand.vmem [shape: f32[10,4,4], index: 0, kind: input, shape index: {}]
  %s1 = inlined_call_operand.vmem [shape: f32[10,1,4], index: 1, kind: input, shape index: {}]
  %s2 = inlined_call_operand.vmem [shape: f32[10,4,4], index: 2, kind: output, shape index: {}]
  %s3 = sld [smem:[#allocation0]]
  $region41: #{matt_forward.9} parent=0
    _
  %s5 = ssub.s32 1, %s3
  %s6 = scalar_select 0, %s5, %s3
  loop: start=0, step=1, limit=4
  $region2: #{matt_forward.9} parent=0 // loop_pre_header
    _
  $region3: #{matt_forward.9} parent=0 // loop_header
    %s8 = sphi 0, %s12
    %p9 = scmp.ge.s32.totalorder %s8, 4
    %s18 = sphi 0, %s20
    %s21 = sphi 0, %s18
    %s22 = sphi 0, %s21
    %s38 = sphi 0, %s22
    %s44 = sphi 0, %s46
    %s47 = sphi 0, %s44
    %s48 = sphi 0, %s47
    %s64 = sphi 0, %s48
    %s70 = sphi 0, %s72
    %s73 = sphi 0, %s70
    %s74 = sphi 0, %s73
    %s90 = sphi 0, %s74
  $region4: #{matt_forward.9} parent=0 // loop_header_branch
    %11 = sbr.rel (%p9) target = $region8
  $region5: #{matt_forward.9} parent=0 // loop_body
    %s13 = ssub.s32 %s8, 1
    %s14 = ssub.s32 %s8, 2
    %s15 = sadd.s32 %s8, 1
    %s16 = ssub.s32 %s8, %s15
    %p17 = scmp.eq.s32.totalorder %s16, 0
    %s19 = sadd.s32 %s18, 1
    %s20 = scalar_select %p17, %s18, %s19
    %p23 = pneg %p17
    %p24 = scmp.eq.s32.totalorder %s8, 1
    %p25 = por %p23, %p24
    %p26 = scmp.ne.s32.totalorder %s18, %s21
    %p27 = scmp.eq.s32.totalorder %s8, 0
    %p28 = por %p26, %p27
    %p29 = scmp.ne.s32.totalorder %s18, %s21
    %p30 = scmp.eq.s32.totalorder %s13, 1
    %p31 = por %p29, %p30
    %p32 = scmp.ne.s32.totalorder %s21, %s22
    %p33 = scmp.eq.s32.totalorder %s13, 0
    %p34 = por %p32, %p33
    %p35 = scmp.ne.s32.totalorder %s21, %s22
    %p36 = scmp.eq.s32.totalorder %s14, 1
    %p37 = por %p35, %p36
    %p39 = scmp.ne.s32.totalorder %s22, %s38
    %p40 = scmp.eq.s32.totalorder %s14, 0
    %p41 = por %p39, %p40
    %s42 = ssub.s32 %s8, %s15
    %p43 = scmp.eq.s32.totalorder %s42, 0
    %s45 = sadd.s32 %s44, 1
    %s46 = scalar_select %p43, %s44, %s45
    %p49 = pneg %p43
    %p50 = scmp.eq.s32.totalorder %s8, 1
    %p51 = por %p49, %p50
    %p52 = scmp.ne.s32.totalorder %s44, %s47
    %p53 = scmp.eq.s32.totalorder %s8, 0
    %p54 = por %p52, %p53
    %p55 = scmp.ne.s32.totalorder %s44, %s47
    %p56 = scmp.eq.s32.totalorder %s13, 1
    %p57 = por %p55, %p56
    %p58 = scmp.ne.s32.totalorder %s47, %s48
    %p59 = scmp.eq.s32.totalorder %s13, 0
    %p60 = por %p58, %p59
    %p61 = scmp.ne.s32.totalorder %s47, %s48
    %p62 = scmp.eq.s32.totalorder %s14, 1
    %p63 = por %p61, %p62
    %p65 = scmp.ne.s32.totalorder %s48, %s64
    %p66 = scmp.eq.s32.totalorder %s14, 0
    %p67 = por %p65, %p66
    %s68 = ssub.s32 %s8, %s15
    %p69 = scmp.eq.s32.totalorder %s68, 0
    %s71 = sadd.s32 %s70, 1
    %s72 = scalar_select %p69, %s70, %s71
    %p75 = pneg %p69
    %p76 = scmp.eq.s32.totalorder %s8, 1
    %p77 = por %p75, %p76
    %p78 = scmp.ne.s32.totalorder %s70, %s73
    %p79 = scmp.eq.s32.totalorder %s8, 0
    %p80 = por %p78, %p79
    %p81 = scmp.ne.s32.totalorder %s70, %s73
    %p82 = scmp.eq.s32.totalorder %s13, 1
    %p83 = por %p81, %p82
    %p84 = scmp.ne.s32.totalorder %s73, %s74
    %p85 = scmp.eq.s32.totalorder %s13, 0
    %p86 = por %p84, %p85
    %p87 = scmp.ne.s32.totalorder %s73, %s74
    %p88 = scmp.eq.s32.totalorder %s14, 1
    %p89 = por %p87, %p88
    %p91 = scmp.ne.s32.totalorder %s74, %s90
    %p92 = scmp.eq.s32.totalorder %s14, 0
    %p93 = por %p91, %p92
    %p94 = scmp.le.s32.totalorder 1, %s8
    %p95 = scmp.lt.s32.totalorder %s8, 3
    %p96 = pnand %p94, %p95
    %p97 = pneg %p96
    // Predicated region
    $region9: #{matt_forward.9} parent=5 // pred_check
      _
    $region10: #{matt_forward.9} parent=5 // pred_check_branch
      %99 = sbr.rel (%p96) target = $region12
    $region11: #{matt_forward.9} parent=5 // pred_region
      %s100 = ssub.s32 %s8, 1
    $region12: #{matt_forward.9} parent=5 // pred_fallthru
      _
    %p101 = scmp.lt.s32.totalorder %s8, 2
    // Predicated region
    $region13: #{matt_forward.9} parent=5 // pred_check
      %p102 = pneg %p101
    $region14: #{matt_forward.9} parent=5 // pred_check_branch
      %104 = sbr.rel (%p102) target = $region16
    $region15: #{matt_forward.9} parent=5 // pred_region
      // Predicated region
      $region17: #{matt_forward.9} parent=15 // pred_check
        %p105 = pneg %p28
      $region18: #{matt_forward.9} parent=15 // pred_check_branch
        %107 = sbr.rel (%p105) target = $region20
      $region19: #{matt_forward.9} parent=15 // pred_region
        %s108 = smul.u32 5, %s8
        %p109 = scmp.lt.s32.totalorder %s108, 9
        %s110 = scalar_select %p109, %s108, 9
        %s111 = smul.addr %s110, 4
        %s112 = scalar_lea.vmem %s0, %s111
        %s113 = smul.u32 5, %s8
      $region20: #{matt_forward.9} parent=15 // pred_fallthru
        _
      // Predicated region
      $region21: #{matt_forward.9} parent=15 // pred_check
        %p114 = pneg %p54
      $region22: #{matt_forward.9} parent=15 // pred_check_branch
        %116 = sbr.rel (%p114) target = $region24
      $region23: #{matt_forward.9} parent=15 // pred_region
        %s117 = smul.u32 5, %s8
        %p118 = scmp.lt.s32.totalorder %s117, 9
        %s119 = scalar_select %p118, %s117, 9
        %s120 = scalar_lea.vmem %s1, %s119
        %s121 = smul.u32 5, %s8
      $region24: #{matt_forward.9} parent=15 // pred_fallthru
        _
    $region16: #{matt_forward.9} parent=5 // pred_fallthru
      _
    %p122 = scmp.le.s32.totalorder 1, %s8
    %p123 = scmp.lt.s32.totalorder %s8, 3
    %p124 = pnand %p122, %p123
    %p125 = pneg %p124
    // Predicated region
    $region25: #{matt_forward.9} parent=5 // pred_check
      _
    $region26: #{matt_forward.9} parent=5 // pred_check_branch
      %127 = sbr.rel (%p124) target = $region28
    $region27: #{matt_forward.9} parent=5 // pred_region
      %s128 = ssub.s32 %s8, 1
      %s129 = smul.u32 5, %s13
      %p130 = scmp.lt.s32.totalorder %s129, 9
      %s131 = scalar_select %p130, %s129, 9
      %s132 = smul.addr %s131, 4
      %s133 = scalar_lea.vmem %s0, %s132
      %p134 = pneg %p34
      %p135 = pneg %p31
      %s136 = smul.u32 5, %s13
      %p137 = scmp.lt.s32.totalorder %s136, 9
      %s138 = scalar_select %p137, %s136, 9
      %s139 = scalar_lea.vmem %s1, %s138
      %p140 = pneg %p60
      %p141 = pneg %p57
      %p142 = pneg %p86
      %p143 = pneg %p83
      %s144 = smul.u32 5, %s13
      %p145 = scmp.lt.s32.totalorder %s144, 9
      %s146 = scalar_select %p145, %s144, 9
      %s147 = smul.addr %s146, 4
      %s148 = scalar_lea.vmem %s2, %s147
      %s149 = smul.u32 5, %s13
      %p150 = scmp.lt.s32.totalorder %s149, 9
      %s151 = scalar_select %p150, %s149, 9
      %s152 = smul.addr %s151, 4
      %s153 = scalar_lea.vmem %s0, %s152
      %s154 = smul.u32 5, %s13
      %s155 = smul.u32 5, %s13
      %p156 = scmp.lt.s32.totalorder %s155, 9
      %s157 = scalar_select %p156, %s155, 9
      %s158 = scalar_lea.vmem %s1, %s157
      %s159 = smul.u32 5, %s13
      %s160 = smul.u32 5, %s13
      %p161 = scmp.lt.s32.totalorder %s160, 9
      %s162 = scalar_select %p161, %s160, 9
      %s163 = smul.addr %s162, 4
      %s164 = scalar_lea.vmem %s2, %s163
      %s165 = smul.u32 5, %s13
      %v166 = vld [vmem:[%s153] sm:$0xf]
      %v167 = vld [vmem:[%s153 + $0x4] sm:$0xf]
      %v168 = vld [vmem:[%s153 + $0x8] sm:$0xf]
      %v169 = vld [vmem:[%s153 + $0xc] sm:$0xf]
      %v170 = vld [vmem:[%s153 + $0x10] sm:$0xf]
      %v171 = vld [vmem:[%s158] sm:$0x1]
      %v172 = vld [vmem:[%s158 + $0x1] sm:$0x1]
      %v173 = vld [vmem:[%s158 + $0x2] sm:$0x1]
      %v174 = vld [vmem:[%s158 + $0x3] sm:$0x1]
      %v175 = vld [vmem:[%s158 + $0x4] sm:$0x1]
      %v181 = vlaneseq
      %v182 = vshrl.u32 %v181, 7
      %v183 = vsub.s32 0, %v182
      %v184 = vrot.slane %v171, %v183
      %v185 = vlaneseq
      %v186 = vshrl.u32 %v185, 7
      %v187 = vsub.s32 0, %v186
      %v188 = vrot.slane %v172, %v187
      %v189 = vlaneseq
      %v190 = vshrl.u32 %v189, 7
      %v191 = vsub.s32 0, %v190
      %v192 = vrot.slane %v173, %v191
      %v193 = vlaneseq
      %v194 = vshrl.u32 %v193, 7
      %v195 = vsub.s32 0, %v194
      %v196 = vrot.slane %v174, %v195
      %v197 = vlaneseq
      %v198 = vshrl.u32 %v197, 7
      %v199 = vsub.s32 0, %v198
      %v200 = vrot.slane %v175, %v199
      %v206 = vmul.f32 %v166, %v184
      %v207 = vmul.f32 %v167, %v188
      %v208 = vmul.f32 %v168, %v192
      %v209 = vmul.f32 %v169, %v196
      %v210 = vmul.f32 %v170, %v200
      %vm211 = vcmask 31744
      %v213 = vsel %vm211, %v206, 0
      %v216 = vsel %vm211, %v166, 0
      %218 = vmatprep.subr.mxu0 0.0
      %219 = vmatpush1.xpose.msra.mxu0 %v216
      %220 = vmatprep.subr.mxu0 0.0
      %221 = vmatpush1.xpose.msra.mxu0 0.0
      %222 = vmatprep.subr.mxu0 0.0
      %223 = vmatpush1.xpose.msra.mxu0 0.0
      %224 = vmatprep.subr.mxu0 0.0
      %225 = vmatpush1.xpose.msra.mxu0 0.0
      %226 = vmatprep.subr.mxu0 0.0
      %227 = vmatpush1.xpose.msra.mxu0 0.0
      %228 = vmatprep.subr.mxu0 0.0
      %229 = vmatpush1.xpose.msra.mxu0 0.0
      %230 = vmatprep.subr.mxu0 0.0
      %231 = vmatpush1.xpose.msra.mxu0 0.0
      %232 = vmatprep.subr.mxu0 0.0
      %233 = vmatpush1.xpose.msra.mxu0 0.0
      %234 = vmatprep.subr.mxu0 0.0
      %235 = vmatpush1.xpose.msra.mxu0 0.0
      %236 = vmatprep.subr.mxu0 0.0
      %237 = vmatpush1.xpose.msra.mxu0 0.0
      %238 = vmatprep.subr.mxu0 0.0
      %239 = vmatpush1.xpose.msra.mxu0 0.0
      %240 = vmatprep.subr.mxu0 0.0
      %241 = vmatpush1.xpose.msra.mxu0 0.0
      %242 = vmatprep.subr.mxu0 0.0
      %243 = vmatpush1.xpose.msra.mxu0 0.0
      %244 = vmatprep.subr.mxu0 0.0
      %245 = vmatpush1.xpose.msra.mxu0 0.0
      %246 = vmatprep.subr.mxu0 0.0
      %247 = vmatpush1.xpose.msra.mxu0 0.0
      %248 = vmatprep.subr.mxu0 0.0
      %249 = vmatpush1.xpose.msra.mxu0 0.0
      %250 = vmatprep.subr.mxu0 0.0
      %251 = vmatpush1.xpose.msra.mxu0 0.0
      %252 = vmatprep.subr.mxu0 0.0
      %253 = vmatpush1.xpose.msra.mxu0 0.0
      %254 = vmatprep.subr.mxu0 0.0
      %255 = vmatpush1.xpose.msra.mxu0 0.0
      %256 = vmatprep.subr.mxu0 0.0
      %257 = vmatpush1.xpose.msra.mxu0 0.0
      %258 = vmatprep.subr.mxu0 0.0
      %259 = vmatpush1.xpose.msra.mxu0 0.0
      %260 = vmatprep.subr.mxu0 0.0
      %261 = vmatpush1.xpose.msra.mxu0 0.0
      %262 = vmatprep.subr.mxu0 0.0
      %263 = vmatpush1.xpose.msra.mxu0 0.0
      %264 = vmatprep.subr.mxu0 0.0
      %265 = vmatpush1.xpose.msra.mxu0 0.0
      %266 = vmatprep.subr.mxu0 0.0
      %267 = vmatpush1.xpose.msra.mxu0 0.0
      %268 = vmatprep.subr.mxu0 0.0
      %269 = vmatpush1.xpose.msra.mxu0 0.0
      %270 = vmatprep.subr.mxu0 0.0
      %271 = vmatpush1.xpose.msra.mxu0 0.0
      %272 = vmatprep.subr.mxu0 0.0
      %273 = vmatpush1.xpose.msra.mxu0 0.0
      %274 = vmatprep.subr.mxu0 0.0
      %275 = vmatpush1.xpose.msra.mxu0 0.0
      %276 = vmatprep.subr.mxu0 0.0
      %277 = vmatpush1.xpose.msra.mxu0 0.0
      %278 = vmatprep.subr.mxu0 0.0
      %279 = vmatpush1.xpose.msra.mxu0 0.0
      %280 = vmatprep.subr.mxu0 0.0
      %281 = vmatpush1.xpose.msra.mxu0 0.0
      %282 = vmatprep.mubr.f32.mxu0 0.0
      %283 = vmatmul.mubr.f32.gmra.mrb[0].mxu0 %v213
      %v284 = vpop.f32.mrb[0].mxu0
      %v285 = vadd.f32 0.0, %v284
      %v286 = vpop.f32.mrb[0].mxu0
      %287 = vdwg.mxu0
      %v289 = vsel %vm211, %v207, 0
      %v292 = vsel %vm211, %v167, 0
      %294 = vmatprep.subr.mxu0 0.0
      %295 = vmatpush1.xpose.msra.mxu0 %v292
      %296 = vmatprep.subr.mxu0 0.0
      %297 = vmatpush1.xpose.msra.mxu0 0.0
      %298 = vmatprep.subr.mxu0 0.0
      %299 = vmatpush1.xpose.msra.mxu0 0.0
      %300 = vmatprep.subr.mxu0 0.0
      %301 = vmatpush1.xpose.msra.mxu0 0.0
      %302 = vmatprep.subr.mxu0 0.0
      %303 = vmatpush1.xpose.msra.mxu0 0.0
      %304 = vmatprep.subr.mxu0 0.0
      %305 = vmatpush1.xpose.msra.mxu0 0.0
      %306 = vmatprep.subr.mxu0 0.0
      %307 = vmatpush1.xpose.msra.mxu0 0.0
      %308 = vmatprep.subr.mxu0 0.0
      %309 = vmatpush1.xpose.msra.mxu0 0.0
      %310 = vmatprep.subr.mxu0 0.0
      %311 = vmatpush1.xpose.msra.mxu0 0.0
      %312 = vmatprep.subr.mxu0 0.0
      %313 = vmatpush1.xpose.msra.mxu0 0.0
      %314 = vmatprep.subr.mxu0 0.0
      %315 = vmatpush1.xpose.msra.mxu0 0.0
      %316 = vmatprep.subr.mxu0 0.0
      %317 = vmatpush1.xpose.msra.mxu0 0.0
      %318 = vmatprep.subr.mxu0 0.0
      %319 = vmatpush1.xpose.msra.mxu0 0.0
      %320 = vmatprep.subr.mxu0 0.0
      %321 = vmatpush1.xpose.msra.mxu0 0.0
      %322 = vmatprep.subr.mxu0 0.0
      %323 = vmatpush1.xpose.msra.mxu0 0.0
      %324 = vmatprep.subr.mxu0 0.0
      %325 = vmatpush1.xpose.msra.mxu0 0.0
      %326 = vmatprep.subr.mxu0 0.0
      %327 = vmatpush1.xpose.msra.mxu0 0.0
      %328 = vmatprep.subr.mxu0 0.0
      %329 = vmatpush1.xpose.msra.mxu0 0.0
      %330 = vmatprep.subr.mxu0 0.0
      %331 = vmatpush1.xpose.msra.mxu0 0.0
      %332 = vmatprep.subr.mxu0 0.0
      %333 = vmatpush1.xpose.msra.mxu0 0.0
      %334 = vmatprep.subr.mxu0 0.0
      %335 = vmatpush1.xpose.msra.mxu0 0.0
      %336 = vmatprep.subr.mxu0 0.0
      %337 = vmatpush1.xpose.msra.mxu0 0.0
      %338 = vmatprep.subr.mxu0 0.0
      %339 = vmatpush1.xpose.msra.mxu0 0.0
      %340 = vmatprep.subr.mxu0 0.0
      %341 = vmatpush1.xpose.msra.mxu0 0.0
      %342 = vmatprep.subr.mxu0 0.0
      %343 = vmatpush1.xpose.msra.mxu0 0.0
      %344 = vmatprep.subr.mxu0 0.0
      %345 = vmatpush1.xpose.msra.mxu0 0.0
      %346 = vmatprep.subr.mxu0 0.0
      %347 = vmatpush1.xpose.msra.mxu0 0.0
      %348 = vmatprep.subr.mxu0 0.0
      %349 = vmatpush1.xpose.msra.mxu0 0.0
      %350 = vmatprep.subr.mxu0 0.0
      %351 = vmatpush1.xpose.msra.mxu0 0.0
      %352 = vmatprep.subr.mxu0 0.0
      %353 = vmatpush1.xpose.msra.mxu0 0.0
      %354 = vmatprep.subr.mxu0 0.0
      %355 = vmatpush1.xpose.msra.mxu0 0.0
      %356 = vmatprep.subr.mxu0 0.0
      %357 = vmatpush1.xpose.msra.mxu0 0.0
      %358 = vmatprep.mubr.f32.mxu0 0.0
      %359 = vmatmul.mubr.f32.gmra.mrb[0].mxu0 %v289
      %v360 = vpop.f32.mrb[0].mxu0
      %v361 = vadd.f32 0.0, %v360
      %v362 = vpop.f32.mrb[0].mxu0
      %363 = vdwg.mxu0
      %v365 = vsel %vm211, %v208, 0
      %v368 = vsel %vm211, %v168, 0
      %370 = vmatprep.subr.mxu0 0.0
      %371 = vmatpush1.xpose.msra.mxu0 %v368
      %372 = vmatprep.subr.mxu0 0.0
      %373 = vmatpush1.xpose.msra.mxu0 0.0
      %374 = vmatprep.subr.mxu0 0.0
      %375 = vmatpush1.xpose.msra.mxu0 0.0
      %376 = vmatprep.subr.mxu0 0.0
      %377 = vmatpush1.xpose.msra.mxu0 0.0
      %378 = vmatprep.subr.mxu0 0.0
      %379 = vmatpush1.xpose.msra.mxu0 0.0
      %380 = vmatprep.subr.mxu0 0.0
      %381 = vmatpush1.xpose.msra.mxu0 0.0
      %382 = vmatprep.subr.mxu0 0.0
      %383 = vmatpush1.xpose.msra.mxu0 0.0
      %384 = vmatprep.subr.mxu0 0.0
      %385 = vmatpush1.xpose.msra.mxu0 0.0
      %386 = vmatprep.subr.mxu0 0.0
      %387 = vmatpush1.xpose.msra.mxu0 0.0
      %388 = vmatprep.subr.mxu0 0.0
      %389 = vmatpush1.xpose.msra.mxu0 0.0
      %390 = vmatprep.subr.mxu0 0.0
      %391 = vmatpush1.xpose.msra.mxu0 0.0
      %392 = vmatprep.subr.mxu0 0.0
      %393 = vmatpush1.xpose.msra.mxu0 0.0
      %394 = vmatprep.subr.mxu0 0.0
      %395 = vmatpush1.xpose.msra.mxu0 0.0
      %396 = vmatprep.subr.mxu0 0.0
      %397 = vmatpush1.xpose.msra.mxu0 0.0
      %398 = vmatprep.subr.mxu0 0.0
      %399 = vmatpush1.xpose.msra.mxu0 0.0
      %400 = vmatprep.subr.mxu0 0.0
      %401 = vmatpush1.xpose.msra.mxu0 0.0
      %402 = vmatprep.subr.mxu0 0.0
      %403 = vmatpush1.xpose.msra.mxu0 0.0
      %404 = vmatprep.subr.mxu0 0.0
      %405 = vmatpush1.xpose.msra.mxu0 0.0
      %406 = vmatprep.subr.mxu0 0.0
      %407 = vmatpush1.xpose.msra.mxu0 0.0
      %408 = vmatprep.subr.mxu0 0.0
      %409 = vmatpush1.xpose.msra.mxu0 0.0
      %410 = vmatprep.subr.mxu0 0.0
      %411 = vmatpush1.xpose.msra.mxu0 0.0
      %412 = vmatprep.subr.mxu0 0.0
      %413 = vmatpush1.xpose.msra.mxu0 0.0
      %414 = vmatprep.subr.mxu0 0.0
      %415 = vmatpush1.xpose.msra.mxu0 0.0
      %416 = vmatprep.subr.mxu0 0.0
      %417 = vmatpush1.xpose.msra.mxu0 0.0
      %418 = vmatprep.subr.mxu0 0.0
      %419 = vmatpush1.xpose.msra.mxu0 0.0
      %420 = vmatprep.subr.mxu0 0.0
      %421 = vmatpush1.xpose.msra.mxu0 0.0
      %422 = vmatprep.subr.mxu0 0.0
      %423 = vmatpush1.xpose.msra.mxu0 0.0
      %424 = vmatprep.subr.mxu0 0.0
      %425 = vmatpush1.xpose.msra.mxu0 0.0
      %426 = vmatprep.subr.mxu0 0.0
      %427 = vmatpush1.xpose.msra.mxu0 0.0
      %428 = vmatprep.subr.mxu0 0.0
      %429 = vmatpush1.xpose.msra.mxu0 0.0
      %430 = vmatprep.subr.mxu0 0.0
      %431 = vmatpush1.xpose.msra.mxu0 0.0
      %432 = vmatprep.subr.mxu0 0.0
      %433 = vmatpush1.xpose.msra.mxu0 0.0
      %434 = vmatprep.mubr.f32.mxu0 0.0
      %435 = vmatmul.mubr.f32.gmra.mrb[0].mxu0 %v365
      %v436 = vpop.f32.mrb[0].mxu0
      %v437 = vadd.f32 0.0, %v436
      %v438 = vpop.f32.mrb[0].mxu0
      %439 = vdwg.mxu0
      %v441 = vsel %vm211, %v209, 0
      %v444 = vsel %vm211, %v169, 0
      %446 = vmatprep.subr.mxu0 0.0
      %447 = vmatpush1.xpose.msra.mxu0 %v444
      %448 = vmatprep.subr.mxu0 0.0
      %449 = vmatpush1.xpose.msra.mxu0 0.0
      %450 = vmatprep.subr.mxu0 0.0
      %451 = vmatpush1.xpose.msra.mxu0 0.0
      %452 = vmatprep.subr.mxu0 0.0
      %453 = vmatpush1.xpose.msra.mxu0 0.0
      %454 = vmatprep.subr.mxu0 0.0
      %455 = vmatpush1.xpose.msra.mxu0 0.0
      %456 = vmatprep.subr.mxu0 0.0
      %457 = vmatpush1.xpose.msra.mxu0 0.0
      %458 = vmatprep.subr.mxu0 0.0
      %459 = vmatpush1.xpose.msra.mxu0 0.0
      %460 = vmatprep.subr.mxu0 0.0
      %461 = vmatpush1.xpose.msra.mxu0 0.0
      %462 = vmatprep.subr.mxu0 0.0
      %463 = vmatpush1.xpose.msra.mxu0 0.0
      %464 = vmatprep.subr.mxu0 0.0
      %465 = vmatpush1.xpose.msra.mxu0 0.0
      %466 = vmatprep.subr.mxu0 0.0
      %467 = vmatpush1.xpose.msra.mxu0 0.0
      %468 = vmatprep.subr.mxu0 0.0
      %469 = vmatpush1.xpose.msra.mxu0 0.0
      %470 = vmatprep.subr.mxu0 0.0
      %471 = vmatpush1.xpose.msra.mxu0 0.0
      %472 = vmatprep.subr.mxu0 0.0
      %473 = vmatpush1.xpose.msra.mxu0 0.0
      %474 = vmatprep.subr.mxu0 0.0
      %475 = vmatpush1.xpose.msra.mxu0 0.0
      %476 = vmatprep.subr.mxu0 0.0
      %477 = vmatpush1.xpose.msra.mxu0 0.0
      %478 = vmatprep.subr.mxu0 0.0
      %479 = vmatpush1.xpose.msra.mxu0 0.0
      %480 = vmatprep.subr.mxu0 0.0
      %481 = vmatpush1.xpose.msra.mxu0 0.0
      %482 = vmatprep.subr.mxu0 0.0
      %483 = vmatpush1.xpose.msra.mxu0 0.0
      %484 = vmatprep.subr.mxu0 0.0
      %485 = vmatpush1.xpose.msra.mxu0 0.0
      %486 = vmatprep.subr.mxu0 0.0
      %487 = vmatpush1.xpose.msra.mxu0 0.0
      %488 = vmatprep.subr.mxu0 0.0
      %489 = vmatpush1.xpose.msra.mxu0 0.0
      %490 = vmatprep.subr.mxu0 0.0
      %491 = vmatpush1.xpose.msra.mxu0 0.0
      %492 = vmatprep.subr.mxu0 0.0
      %493 = vmatpush1.xpose.msra.mxu0 0.0
      %494 = vmatprep.subr.mxu0 0.0
      %495 = vmatpush1.xpose.msra.mxu0 0.0
      %496 = vmatprep.subr.mxu0 0.0
      %497 = vmatpush1.xpose.msra.mxu0 0.0
      %498 = vmatprep.subr.mxu0 0.0
      %499 = vmatpush1.xpose.msra.mxu0 0.0
      %500 = vmatprep.subr.mxu0 0.0
      %501 = vmatpush1.xpose.msra.mxu0 0.0
      %502 = vmatprep.subr.mxu0 0.0
      %503 = vmatpush1.xpose.msra.mxu0 0.0
      %504 = vmatprep.subr.mxu0 0.0
      %505 = vmatpush1.xpose.msra.mxu0 0.0
      %506 = vmatprep.subr.mxu0 0.0
      %507 = vmatpush1.xpose.msra.mxu0 0.0
      %508 = vmatprep.subr.mxu0 0.0
      %509 = vmatpush1.xpose.msra.mxu0 0.0
      %510 = vmatprep.mubr.f32.mxu0 0.0
      %511 = vmatmul.mubr.f32.gmra.mrb[0].mxu0 %v441
      %v512 = vpop.f32.mrb[0].mxu0
      %v513 = vadd.f32 0.0, %v512
      %v514 = vpop.f32.mrb[0].mxu0
      %515 = vdwg.mxu0
      %v517 = vsel %vm211, %v210, 0
      %v520 = vsel %vm211, %v170, 0
      %522 = vmatprep.subr.mxu0 0.0
      %523 = vmatpush1.xpose.msra.mxu0 %v520
      %524 = vmatprep.subr.mxu0 0.0
      %525 = vmatpush1.xpose.msra.mxu0 0.0
      %526 = vmatprep.subr.mxu0 0.0
      %527 = vmatpush1.xpose.msra.mxu0 0.0
      %528 = vmatprep.subr.mxu0 0.0
      %529 = vmatpush1.xpose.msra.mxu0 0.0
      %530 = vmatprep.subr.mxu0 0.0
      %531 = vmatpush1.xpose.msra.mxu0 0.0
      %532 = vmatprep.subr.mxu0 0.0
      %533 = vmatpush1.xpose.msra.mxu0 0.0
      %534 = vmatprep.subr.mxu0 0.0
      %535 = vmatpush1.xpose.msra.mxu0 0.0
      %536 = vmatprep.subr.mxu0 0.0
      %537 = vmatpush1.xpose.msra.mxu0 0.0
      %538 = vmatprep.subr.mxu0 0.0
      %539 = vmatpush1.xpose.msra.mxu0 0.0
      %540 = vmatprep.subr.mxu0 0.0
      %541 = vmatpush1.xpose.msra.mxu0 0.0
      %542 = vmatprep.subr.mxu0 0.0
      %543 = vmatpush1.xpose.msra.mxu0 0.0
      %544 = vmatprep.subr.mxu0 0.0
      %545 = vmatpush1.xpose.msra.mxu0 0.0
      %546 = vmatprep.subr.mxu0 0.0
      %547 = vmatpush1.xpose.msra.mxu0 0.0
      %548 = vmatprep.subr.mxu0 0.0
      %549 = vmatpush1.xpose.msra.mxu0 0.0
      %550 = vmatprep.subr.mxu0 0.0
      %551 = vmatpush1.xpose.msra.mxu0 0.0
      %552 = vmatprep.subr.mxu0 0.0
      %553 = vmatpush1.xpose.msra.mxu0 0.0
      %554 = vmatprep.subr.mxu0 0.0
      %555 = vmatpush1.xpose.msra.mxu0 0.0
      %556 = vmatprep.subr.mxu0 0.0
      %557 = vmatpush1.xpose.msra.mxu0 0.0
      %558 = vmatprep.subr.mxu0 0.0
      %559 = vmatpush1.xpose.msra.mxu0 0.0
      %560 = vmatprep.subr.mxu0 0.0
      %561 = vmatpush1.xpose.msra.mxu0 0.0
      %562 = vmatprep.subr.mxu0 0.0
      %563 = vmatpush1.xpose.msra.mxu0 0.0
      %564 = vmatprep.subr.mxu0 0.0
      %565 = vmatpush1.xpose.msra.mxu0 0.0
      %566 = vmatprep.subr.mxu0 0.0
      %567 = vmatpush1.xpose.msra.mxu0 0.0
      %568 = vmatprep.subr.mxu0 0.0
      %569 = vmatpush1.xpose.msra.mxu0 0.0
      %570 = vmatprep.subr.mxu0 0.0
      %571 = vmatpush1.xpose.msra.mxu0 0.0
      %572 = vmatprep.subr.mxu0 0.0
      %573 = vmatpush1.xpose.msra.mxu0 0.0
      %574 = vmatprep.subr.mxu0 0.0
      %575 = vmatpush1.xpose.msra.mxu0 0.0
      %576 = vmatprep.subr.mxu0 0.0
      %577 = vmatpush1.xpose.msra.mxu0 0.0
      %578 = vmatprep.subr.mxu0 0.0
      %579 = vmatpush1.xpose.msra.mxu0 0.0
      %580 = vmatprep.subr.mxu0 0.0
      %581 = vmatpush1.xpose.msra.mxu0 0.0
      %582 = vmatprep.subr.mxu0 0.0
      %583 = vmatpush1.xpose.msra.mxu0 0.0
      %584 = vmatprep.subr.mxu0 0.0
      %585 = vmatpush1.xpose.msra.mxu0 0.0
      %586 = vmatprep.mubr.f32.mxu0 0.0
      %587 = vmatmul.mubr.f32.gmra.mrb[0].mxu0 %v517
      %v588 = vpop.f32.mrb[0].mxu0
      %v589 = vadd.f32 0.0, %v588
      %v590 = vpop.f32.mrb[0].mxu0
      %591 = vdwg.mxu0
      %vm592 = vcmask 27648
      %593 = vst.msk [vmem:[%s164] sm:$0xf] %vm592, %v285
      %594 = vst.msk [vmem:[%s164 + $0x4] sm:$0xf] %vm592, %v361
      %595 = vst.msk [vmem:[%s164 + $0x8] sm:$0xf] %vm592, %v437
      %596 = vst.msk [vmem:[%s164 + $0xc] sm:$0xf] %vm592, %v513
      %597 = vst.msk [vmem:[%s164 + $0x10] sm:$0xf] %vm592, %v589
      %s598 = smul.u32 5, %s13
      %p599 = scmp.lt.s32.totalorder %s598, 9
      %s600 = scalar_select %p599, %s598, 9
      %s601 = smul.addr %s600, 4
      %s602 = scalar_lea.vmem %s2, %s601
      // Predicated region
      $region29: #{matt_forward.9} parent=27 // pred_check
        %p603 = pneg %p83
      $region30: #{matt_forward.9} parent=27 // pred_check_branch
        %605 = sbr.rel (%p603) target = $region32
      $region31: #{matt_forward.9} parent=27 // pred_region
        %s606 = smul.u32 5, %s13
      $region32: #{matt_forward.9} parent=27 // pred_fallthru
        _
    $region28: #{matt_forward.9} parent=5 // pred_fallthru
      _
    %p607 = scmp.le.s32.totalorder 2, %s8
    // Predicated region
    $region33: #{matt_forward.9} parent=5 // pred_check
      %p608 = pneg %p607
    $region34: #{matt_forward.9} parent=5 // pred_check_branch
      %610 = sbr.rel (%p608) target = $region36
    $region35: #{matt_forward.9} parent=5 // pred_region
      %s611 = ssub.s32 %s8, 2
      // Predicated region
      $region37: #{matt_forward.9} parent=35 // pred_check
        %p612 = pneg %p89
      $region38: #{matt_forward.9} parent=35 // pred_check_branch
        %614 = sbr.rel (%p612) target = $region40
      $region39: #{matt_forward.9} parent=35 // pred_region
        %s615 = smul.u32 5, %s14
        %p616 = scmp.lt.s32.totalorder %s615, 9
        %s617 = scalar_select %p616, %s615, 9
        %s618 = smul.addr %s617, 4
        %s619 = scalar_lea.vmem %s2, %s618
      $region40: #{matt_forward.9} parent=35 // pred_fallthru
        _
    $region36: #{matt_forward.9} parent=5 // pred_fallthru
      _
  $region6: #{matt_forward.9} parent=0 // loop_footer
    %s12 = sadd.s32 1, %s8
  $region7: #{matt_forward.9} parent=0 // loop_footer_branch
    %7 = sbr.rel target = $region3
  $region8: #{matt_forward.9} parent=0 // loop_exit
    _

</llo_original>
